<compile_context>
chip_gen: v7x
topology: tpu7x:2x2x1
jax: 0.10.0
libtpu: 0.0.40
codegen_flags: <defaults>
</compile_context>

<pallas_src>
import functools

import numpy as np
import jax
import jax.numpy as jnp
from jax import lax
from jax.experimental import pallas as pl
from jax.experimental.pallas import tpu as pltpu

K = 8            # conv kernel size (all three conv layers)
POOL = 3         # MaxPool1d window == stride
NF1, NF2, NF3 = 32, 64, 128
BN_EPS = 1e-5


def _conv_pool_layer(src_ref, a_ref, w_ref, sh_ref, Bb, n_out, c_in, dst_ref):
    """Conv1d(K=8, folded BN scale) + maxpool(3) + BN shift + ReLU.

    src_ref : ((3*n_out+K-1)*Bb or more, c_in) bf16, position-major row blocks.
    a_ref   : (3*n_out*Bb, K*c_in) bf16 scratch -- hoisted im2col slab.
    w_ref   : (K*c_in, c_out) bf16 (BN scale folded).
    sh_ref  : (1, c_out) f32 BN shift.
    dst_ref : (n_out*Bb, c_out) bf16 scratch, or None to return values.
    """
    f32 = jnp.float32
    bf16 = jnp.bfloat16

    # 1) Build the im2col slab ONCE (review #1): lane-group k of A <- src rows
    #    shifted by k position blocks.  Chunked by 3*Bb rows so each copy is a
    #    small contiguous row-range move.
    for k in range(K):
        for c in range(n_out):
            r = POOL * c
            a_ref[r * Bb:(r + POOL) * Bb, k * c_in:(k + 1) * c_in] = \
                src_ref[(r + k) * Bb:(r + k + POOL) * Bb, :]

    w = w_ref[...]
    sh = sh_ref[...]
    outs = []
    # 2) One lane-dense (Bb, K*c_in) @ (K*c_in, c_out) matmul per conv position,
    #    running max over the three positions of each pool window (review #3).
    for j in range(n_out):
        m = None
        for t in range(POOL):
            y = jnp.dot(a_ref[(POOL * j + t) * Bb:(POOL * j + t + 1) * Bb, :],
                        w, preferred_element_type=f32)
            m = y if m is None else jnp.maximum(m, y)
        p = jnp.maximum(m + sh, 0.0)                     # BN shift + ReLU
        if dst_ref is not None:
            dst_ref[j * Bb:(j + 1) * Bb, :] = p.astype(bf16)
        else:
            outs.append(p.astype(bf16))
    return outs


def _cell_cnn_kernel(Bb, P2, P3, wpd1, cw1p, chunk_starts,
                     x_ref, w1_ref, w2_ref, w3_ref, wfc_ref,
                     sh1_ref, sh2_ref, sh3_ref, bfc_ref,
                     o_ref,
                     p1_ref, a2_ref, p2_ref, a3_ref):
    f32 = jnp.float32
    bf16 = jnp.bfloat16
    G1 = wpd1 * NF1       # lanes per pooling slot of the conv1 Toeplitz output

    # ------------------ conv1 + BN1 + ReLU + maxpool1 -----------------------
    # x_ref: (Bb, Lp) bf16, batch on sublanes, sequence on lanes.  Per chunk,
    # three per-slot Toeplitz matmuls (slot-major weight columns, review #2)
    # with a running max implement maxpool(3); the f32 live range never exceeds
    # one (Bb, G1) tile (review #3).
    x = x_ref[...]                        # (Bb, Lp)
    w1 = w1_ref[...]                      # (cw1p, 3*G1) bf16, slot-major
    sh1 = sh1_ref[...]                    # (1, G1) f32, per-lane BN1 shift
    for j0 in chunk_starts:               # first pooled position of the chunk
        xc = x[:, POOL * j0:POOL * j0 + cw1p]          # (Bb, cw1p)
        m = jnp.dot(xc, w1[:, 0:G1], preferred_element_type=f32)
        m = jnp.maximum(m, jnp.dot(xc, w1[:, G1:2 * G1],
                                   preferred_element_type=f32))
        m = jnp.maximum(m, jnp.dot(xc, w1[:, 2 * G1:3 * G1],
                                   preferred_element_type=f32))
        m = jnp.maximum(m + sh1, 0.0).astype(bf16)     # (Bb, wpd1*NF1)
        for w in range(wpd1):              # store into row-blocked p1 scratch
            j = j0 + w
            p1_ref[j * Bb:(j + 1) * Bb, :] = m[:, w * NF1:(w + 1) * NF1]

    # ------------- conv{2,3} + BN + ReLU + maxpool (hoisted im2col) ---------
    _conv_pool_layer(p1_ref, a2_ref, w2_ref, sh2_ref, Bb, P2, NF1, p2_ref)
    p3 = _conv_pool_layer(p2_ref, a3_ref, w3_ref, sh3_ref, Bb, P3, NF2, None)

    # ------------------------------ fc1_xt -----------------------------------
    # Single deep-K matmul (review #9); wfc rows were pre-permuted in the
    # wrapper to match PyTorch's channel-major flatten, output is lane-padded.
    xcat = jnp.concatenate(p3, axis=1) if len(p3) > 1 else p3[0]
    o_ref[...] = (jnp.dot(xcat, wfc_ref[...], preferred_element_type=f32)
                  + bfc_ref[...])


def cell_cnn_forward(mut, params, *, block_b=128):
    """mut: (B, 1, L) -> (B, hidden_dim), matching cell_cnn.forward (eval BN).

    block_b: batch rows per grid step (multiple of 16).  128 fills the v5e MXU;
    may be raised to 256 on v6e/v7x for large batches (scratch stays < 10 MB).
    """
    B, cin, L = mut.shape
    assert cin == 1
    L1 = L - (K - 1); P1 = L1 // POOL
    L2 = P1 - (K - 1); P2 = L2 // POOL
    L3 = P2 - (K - 1); P3 = L3 // POOL
    assert L1 > 0 and L2 > 0 and L3 > 0 and P3 >= 1, "sequence too short"
    H = params["fc_w"].shape[0]
    assert params["fc_w"].shape[1] == NF3 * P3, "out_dim must equal 128 * final_len"

    f32 = jnp.float32
    bf16 = jnp.bfloat16

    # ---- batch block: multiple of 16 (bf16 sublanes), <= block_b; prefer ----
    # ---- >= 2 grid steps so both v7x TensorCores get work (review v7x).  ----
    Bb = int(min(block_b, -(-B // 16) * 16))
    Bb = max(16, (Bb // 16) * 16)
    if B > 16 and -(-B // Bb) < 2:
        Bb = max(16, -(-B // 32) * 16)
    Bpad = -(-B // Bb) * Bb
    G = Bpad // Bb

    # ---- conv1 chunking: wpd1 pooled windows (3*wpd1*32 output lanes) per chunk
    wpd1 = min(4, P1)                     # wpd1=4 -> 128-lane pooling slots
    cw1 = 3 * wpd1 + (K - 1)              # input positions consumed per chunk
    cw1p = -(-cw1 // 8) * 8               # pad contraction to a sublane multiple
    starts = list(range(0, P1 - wpd1 + 1, wpd1))
    if starts[-1] != P1 - wpd1:
        starts.append(P1 - wpd1)          # ragged tail: overlapping chunk (same values)
    chunk_starts = tuple(starts)
    Lp = L + 16                           # slack so the last chunk slice is in bounds
    assert 3 * (P1 - wpd1) + cw1p <= Lp

    # ---- fold BatchNorm (eval mode, running stats) into scale / shift ----
    def bn_fold(g, b, m, v):
        sc = (g / jnp.sqrt(v + BN_EPS)).astype(f32)
        sh = (b - m * sc).astype(f32)
        return sc, sh

    sc1, sh1 = bn_fold(*params["bn1"])
    sc2, sh2 = bn_fold(*params["bn2"])
    sc3, sh3 = bn_fold(*params["bn3"])

    # ---- conv1 Toeplitz weight, SLOT-MAJOR columns (review #2): ----
    # ---- column = slot*wpd1*32 + window*32 + channel            ----
    w1 = params["w1"].astype(f32)                      # (32, 1, 8)
    w1sc = (w1[:, 0, :] * sc1[:, None]).T              # (8, 32), BN1 scale folded
    w1s = jnp.zeros((cw1p, 3 * wpd1 * NF1), f32)
    for t in range(POOL):
        for w in range(wpd1):
            r0 = 3 * w + t                             # input offset of conv pos (w, t)
            c0 = (t * wpd1 + w) * NF1
            w1s = w1s.at[r0:r0 + K, c0:c0 + NF1].set(w1sc)
    w1s = w1s.astype(bf16)

    # ---- conv2/conv3 weights as (K*C_in, C_out), BN scale folded ----
    w2 = jnp.transpose(params["w2"].astype(f32), (2, 1, 0)).reshape(K * NF1, NF2)
    w2s = (w2 * sc2[None, :]).astype(bf16)
    w3 = jnp.transpose(params["w3"].astype(f32), (2, 1, 0)).reshape(K * NF2, NF3)
    w3s = (w3 * sc3[None, :]).astype(bf16)

    # ---- fc: one deep-K matmul, lane-dense padded output (review #9) ----
    # PyTorch flattens (C=128, P3) channel-major; the kernel concatenates the
    # P3 pooled slabs position-major on lanes, so permute the weight rows.
    Hp = -(-H // 128) * 128
    wfc = (params["fc_w"].astype(f32).reshape(H, NF3, P3)
           .transpose(2, 1, 0).reshape(P3 * NF3, H))
    wfc = jnp.pad(wfc, ((0, 0), (0, Hp - H))).astype(bf16)
    bfc = jnp.pad(params["fc_b"].astype(f32), (0, Hp - H)).reshape(1, Hp)
    sh1t = jnp.tile(sh1.reshape(1, NF1), (1, wpd1))    # per-lane shift of one slot
    sh2 = sh2.reshape(1, NF2)
    sh3 = sh3.reshape(1, NF3)

    # ---- input: (B, 1, L) -> lane-dense, zero-padded (Bpad, Lp) bf16 ----
    x = mut.astype(f32).reshape(B, L)
    x = jnp.pad(x, ((0, Bpad - B), (0, Lp - L))).astype(bf16)

    kernel = functools.partial(_cell_cnn_kernel, Bb, P2, P3,
                               wpd1, cw1p, chunk_starts)

    def _full(a):
        return pl.BlockSpec(a.shape, lambda g: (0, 0))

    out = pl.pallas_call(
        kernel,
        out_shape=jax.ShapeDtypeStruct((Bpad, Hp), f32),
        grid_spec=pltpu.PrefetchScalarGridSpec(
            num_scalar_prefetch=0,
            grid=(G,),
            in_specs=[
                pl.BlockSpec((Bb, Lp), lambda g: (g, 0)),      # x, per batch block
                _full(w1s), _full(w2s), _full(w3s), _full(wfc),
                _full(sh1t), _full(sh2), _full(sh3), _full(bfc),
            ],
            out_specs=pl.BlockSpec((Bb, Hp), lambda g: (g, 0)),
            scratch_shapes=[
                pltpu.VMEM((P1 * Bb, NF1), bf16),             # pooled layer-1
                pltpu.VMEM((3 * P2 * Bb, K * NF1), bf16),     # conv2 im2col slab
                pltpu.VMEM((P2 * Bb, NF2), bf16),             # pooled layer-2
                pltpu.VMEM((3 * P3 * Bb, K * NF2), bf16),     # conv3 im2col slab
            ],
        ),
        compiler_params=pltpu.CompilerParams(
            dimension_semantics=("parallel",)),
    )(x, w1s, w2s, w3s, wfc, sh1t, sh2, sh3, bfc)
    return out[:B, :H]


def cell_cnn_reference(mut, params):
    """Independent pure-JAX/XLA reference (mirrors the PyTorch forward, eval BN)."""
    x = mut.astype(jnp.float32)

    def conv1d(x, w):
        return lax.conv_general_dilated(
            x, w, window_strides=(1,), padding="VALID",
            dimension_numbers=("NCH", "OIH", "NCH"),
            precision=lax.Precision.HIGHEST)

    def bn(x, g, b, m, v):
        return ((x - m[None, :, None]) / jnp.sqrt(v[None, :, None] + BN_EPS)
                * g[None, :, None] + b[None, :, None])

    def maxpool3(x):
        return lax.reduce_window(x, -jnp.inf, lax.max,
                                 window_dimensions=(1, 1, POOL),
                                 window_strides=(1, 1, POOL),
                                 padding="VALID")

    h = maxpool3(jax.nn.relu(bn(conv1d(x, params["w1"]), *params["bn1"])))
    h = maxpool3(jax.nn.relu(bn(conv1d(h, params["w2"]), *params["bn2"])))
    h = maxpool3(jax.nn.relu(bn(conv1d(h, params["w3"]), *params["bn3"])))
    flat = h.reshape(h.shape[0], -1)                    # channel-major flatten
    return flat @ params["fc_w"].T + params["fc_b"]


if __name__ == "__main__":
    L = 128
    hidden_dim = 32
    L1 = L - (K - 1); P1 = L1 // POOL
    L2 = P1 - (K - 1); P2 = L2 // POOL
    L3 = P2 - (K - 1); P3 = L3 // POOL
    out_dim = NF3 * P3                   # nn.Linear(out_dim, hidden_dim) -> 128 for L=128

    key = jax.random.PRNGKey(0)
    kit = iter(jax.random.split(key, 32))

    def nrm(shape, scale=0.1):
        return scale * jax.random.normal(next(kit), shape, jnp.float32)

    def bn_params(c):
        gamma = 1.0 + nrm((c,))
        beta = nrm((c,))
        mean = nrm((c,))
        var = 0.5 + jnp.abs(jax.random.normal(next(kit), (c,), jnp.float32))
        return (gamma, beta, mean, var)

    params = {
        "w1": nrm((NF1, 1, K)),          # Conv1d(1, 32, 8, bias=False)
        "w2": nrm((NF2, NF1, K)),        # Conv1d(32, 64, 8, bias=False)
        "w3": nrm((NF3, NF2, K)),        # Conv1d(64, 128, 8, bias=False)
        "bn1": bn_params(NF1),
        "bn2": bn_params(NF2),
        "bn3": bn_params(NF3),
        "fc_w": nrm((hidden_dim, out_dim)),   # Linear(out_dim, hidden_dim)
        "fc_b": nrm((hidden_dim,)),
    }

    # TODO(synk): BatchNorm1d is folded in inference mode only; training-mode
    # batch statistics are not computed by this kernel.

    fwd = jax.jit(cell_cnn_forward)

    # Small case (exercises batch padding) plus a 128-wide-block, grid>1 case.
    # Tolerance reflects bf16 MXU operands (f32 accumulation) vs. the f32
    # HIGHEST-precision reference.
    for B in (4, 192):
        mut = jax.random.normal(next(kit), (B, 1, L), jnp.float32)
        out = jax.block_until_ready(fwd(mut, params))
        ref = jax.block_until_ready(cell_cnn_reference(mut, params))
        np.testing.assert_allclose(np.asarray(out), np.asarray(ref),
                                   rtol=3e-2, atol=3e-2)
    print("KERNEL_OK")
</pallas_src>

<mosaic_0001>
module attributes {stable_mosaic.version = 11 : i64} {
  func.func @_cell_cnn_kernel(%arg0: i32, %arg1: memref<16x144xbf16, #tpu.memory_space<vmem>>, %arg2: memref<24x384xbf16, #tpu.memory_space<vmem>>, %arg3: memref<256x64xbf16, #tpu.memory_space<vmem>>, %arg4: memref<512x128xbf16, #tpu.memory_space<vmem>>, %arg5: memref<128x128xbf16, #tpu.memory_space<vmem>>, %arg6: memref<1x128xf32, #tpu.memory_space<vmem>>, %arg7: memref<1x64xf32, #tpu.memory_space<vmem>>, %arg8: memref<1x128xf32, #tpu.memory_space<vmem>>, %arg9: memref<1x128xf32, #tpu.memory_space<vmem>>, %arg10: memref<16x128xf32, #tpu.memory_space<vmem>>, %arg11: memref<640x32xbf16, #tpu.memory_space<vmem>>, %arg12: memref<528x256xbf16, #tpu.memory_space<vmem>>, %arg13: memref<176x64xbf16, #tpu.memory_space<vmem>>, %arg14: memref<48x512xbf16, #tpu.memory_space<vmem>>) attributes {dimension_semantics = [#tpu.dimension_semantics<parallel>], iteration_bounds = array<i64: 1>, scalar_prefetch = 0 : i64, scratch_operands = 4 : i64, tpu.core_type = #tpu.core_type<tc>, window_params = [{transform_indices = @transform_0, window_bounds = array<i64: 16, 144>}, {pipeline_mode = #tpu.pipeline_mode<synchronous>, transform_indices = @transform_1, window_bounds = array<i64: 24, 384>}, {pipeline_mode = #tpu.pipeline_mode<synchronous>, transform_indices = @transform_2, window_bounds = array<i64: 256, 64>}, {pipeline_mode = #tpu.pipeline_mode<synchronous>, transform_indices = @transform_3, window_bounds = array<i64: 512, 128>}, {pipeline_mode = #tpu.pipeline_mode<synchronous>, transform_indices = @transform_4, window_bounds = array<i64: 128, 128>}, {pipeline_mode = #tpu.pipeline_mode<synchronous>, transform_indices = @transform_5, window_bounds = array<i64: 1, 128>}, {pipeline_mode = #tpu.pipeline_mode<synchronous>, transform_indices = @transform_6, window_bounds = array<i64: 1, 64>}, {pipeline_mode = #tpu.pipeline_mode<synchronous>, transform_indices = @transform_7, window_bounds = array<i64: 1, 128>}, {pipeline_mode = #tpu.pipeline_mode<synchronous>, transform_indices = @transform_8, window_bounds = array<i64: 1, 128>}, {transform_indices = @transform_9, window_bounds = array<i64: 16, 128>}]} {
    %c0 = arith.constant 0 : index
    %c0_0 = arith.constant 0 : index
    %0 = vector.load %arg1[%c0, %c0_0] : memref<16x144xbf16, #tpu.memory_space<vmem>>, vector<16x144xbf16>
    %c0_1 = arith.constant 0 : index
    %c0_2 = arith.constant 0 : index
    %1 = vector.load %arg2[%c0_1, %c0_2] : memref<24x384xbf16, #tpu.memory_space<vmem>>, vector<24x384xbf16>
    %c0_3 = arith.constant 0 : index
    %c0_4 = arith.constant 0 : index
    %2 = vector.load %arg6[%c0_3, %c0_4] : memref<1x128xf32, #tpu.memory_space<vmem>>, vector<1x128xf32>
    %3 = vector.extract_strided_slice %0 {offsets = [0, 0], sizes = [16, 24], strides = [1, 1]} : vector<16x144xbf16> to vector<16x24xbf16>
    %4 = vector.extract_strided_slice %1 {offsets = [0, 0], sizes = [24, 128], strides = [1, 1]} : vector<24x384xbf16> to vector<24x128xbf16>
    %cst = arith.constant dense<0.000000e+00> : vector<16x128xf32>
    %5 = tpu.matmul %3, %4, %cst {dimension_numbers = #tpu.dot_dimension_numbers<[1], [0], [0], [1], [0, 0, 1, 1], [], []>} : vector<16x24xbf16>, vector<24x128xbf16>, vector<16x128xf32> -> vector<16x128xf32>
    %6 = vector.extract_strided_slice %1 {offsets = [0, 128], sizes = [24, 128], strides = [1, 1]} : vector<24x384xbf16> to vector<24x128xbf16>
    %cst_5 = arith.constant dense<0.000000e+00> : vector<16x128xf32>
    %7 = tpu.matmul %3, %6, %cst_5 {dimension_numbers = #tpu.dot_dimension_numbers<[1], [0], [0], [1], [0, 0, 1, 1], [], []>} : vector<16x24xbf16>, vector<24x128xbf16>, vector<16x128xf32> -> vector<16x128xf32>
    %8 = arith.maximumf %5, %7 : vector<16x128xf32>
    %9 = vector.extract_strided_slice %1 {offsets = [0, 256], sizes = [24, 128], strides = [1, 1]} : vector<24x384xbf16> to vector<24x128xbf16>
    %cst_6 = arith.constant dense<0.000000e+00> : vector<16x128xf32>
    %10 = tpu.matmul %3, %9, %cst_6 {dimension_numbers = #tpu.dot_dimension_numbers<[1], [0], [0], [1], [0, 0, 1, 1], [], []>} : vector<16x24xbf16>, vector<24x128xbf16>, vector<16x128xf32> -> vector<16x128xf32>
    %11 = arith.maximumf %8, %10 : vector<16x128xf32>
    %12 = vector.broadcast %2 : vector<1x128xf32> to vector<16x128xf32>
    %13 = arith.addf %11, %12 : vector<16x128xf32>
    %cst_7 = arith.constant 0.000000e+00 : f32
    %14 = vector.broadcast %cst_7 : f32 to vector<16x128xf32>
    %15 = arith.maximumf %13, %14 : vector<16x128xf32>
    %16 = arith.truncf %15 : vector<16x128xf32> to vector<16x128xbf16>
    %17 = vector.extract_strided_slice %16 {offsets = [0, 0], sizes = [16, 32], strides = [1, 1]} : vector<16x128xbf16> to vector<16x32xbf16>
    %c0_8 = arith.constant 0 : index
    %c0_9 = arith.constant 0 : index
    %18 = vector.load %arg11[%c0_8, %c0_9] : memref<640x32xbf16, #tpu.memory_space<vmem>>, vector<16x32xbf16>
    tpu.vector_store %arg11[%c0_8, %c0_9], %17 {strides = array<i32>} : memref<640x32xbf16, #tpu.memory_space<vmem>>, vector<16x32xbf16>,
    %19 = vector.extract_strided_slice %16 {offsets = [0, 32], sizes = [16, 32], strides = [1, 1]} : vector<16x128xbf16> to vector<16x32xbf16>
    %c16 = arith.constant 16 : index
    %c0_10 = arith.constant 0 : index
    %20 = vector.load %arg11[%c16, %c0_10] : memref<640x32xbf16, #tpu.memory_space<vmem>>, vector<16x32xbf16>
    tpu.vector_store %arg11[%c16, %c0_10], %19 {strides = array<i32>} : memref<640x32xbf16, #tpu.memory_space<vmem>>, vector<16x32xbf16>,
    %21 = vector.extract_strided_slice %16 {offsets = [0, 64], sizes = [16, 32], strides = [1, 1]} : vector<16x128xbf16> to vector<16x32xbf16>
    %c32 = arith.constant 32 : index
    %c0_11 = arith.constant 0 : index
    %22 = vector.load %arg11[%c32, %c0_11] : memref<640x32xbf16, #tpu.memory_space<vmem>>, vector<16x32xbf16>
    tpu.vector_store %arg11[%c32, %c0_11], %21 {strides = array<i32>} : memref<640x32xbf16, #tpu.memory_space<vmem>>, vector<16x32xbf16>,
    %23 = vector.extract_strided_slice %16 {offsets = [0, 96], sizes = [16, 32], strides = [1, 1]} : vector<16x128xbf16> to vector<16x32xbf16>
    %c48 = arith.constant 48 : index
    %c0_12 = arith.constant 0 : index
    %24 = vector.load %arg11[%c48, %c0_12] : memref<640x32xbf16, #tpu.memory_space<vmem>>, vector<16x32xbf16>
    tpu.vector_store %arg11[%c48, %c0_12], %23 {strides = array<i32>} : memref<640x32xbf16, #tpu.memory_space<vmem>>, vector<16x32xbf16>,
    %25 = vector.extract_strided_slice %0 {offsets = [0, 12], sizes = [16, 24], strides = [1, 1]} : vector<16x144xbf16> to vector<16x24xbf16>
    %26 = vector.extract_strided_slice %1 {offsets = [0, 0], sizes = [24, 128], strides = [1, 1]} : vector<24x384xbf16> to vector<24x128xbf16>
    %cst_13 = arith.constant dense<0.000000e+00> : vector<16x128xf32>
    %27 = tpu.matmul %25, %26, %cst_13 {dimension_numbers = #tpu.dot_dimension_numbers<[1], [0], [0], [1], [0, 0, 1, 1], [], []>} : vector<16x24xbf16>, vector<24x128xbf16>, vector<16x128xf32> -> vector<16x128xf32>
    %28 = vector.extract_strided_slice %1 {offsets = [0, 128], sizes = [24, 128], strides = [1, 1]} : vector<24x384xbf16> to vector<24x128xbf16>
    %cst_14 = arith.constant dense<0.000000e+00> : vector<16x128xf32>
    %29 = tpu.matmul %25, %28, %cst_14 {dimension_numbers = #tpu.dot_dimension_numbers<[1], [0], [0], [1], [0, 0, 1, 1], [], []>} : vector<16x24xbf16>, vector<24x128xbf16>, vector<16x128xf32> -> vector<16x128xf32>
    %30 = arith.maximumf %27, %29 : vector<16x128xf32>
    %31 = vector.extract_strided_slice %1 {offsets = [0, 256], sizes = [24, 128], strides = [1, 1]} : vector<24x384xbf16> to vector<24x128xbf16>
    %cst_15 = arith.constant dense<0.000000e+00> : vector<16x128xf32>
    %32 = tpu.matmul %25, %31, %cst_15 {dimension_numbers = #tpu.dot_dimension_numbers<[1], [0], [0], [1], [0, 0, 1, 1], [], []>} : vector<16x24xbf16>, vector<24x128xbf16>, vector<16x128xf32> -> vector<16x128xf32>
    %33 = arith.maximumf %30, %32 : vector<16x128xf32>
    %34 = vector.broadcast %2 : vector<1x128xf32> to vector<16x128xf32>
    %35 = arith.addf %33, %34 : vector<16x128xf32>
    %cst_16 = arith.constant 0.000000e+00 : f32
    %36 = vector.broadcast %cst_16 : f32 to vector<16x128xf32>
    %37 = arith.maximumf %35, %36 : vector<16x128xf32>
    %38 = arith.truncf %37 : vector<16x128xf32> to vector<16x128xbf16>
    %39 = vector.extract_strided_slice %38 {offsets = [0, 0], sizes = [16, 32], strides = [1, 1]} : vector<16x128xbf16> to vector<16x32xbf16>
    %c64 = arith.constant 64 : index
    %c0_17 = arith.constant 0 : index
    %40 = vector.load %arg11[%c64, %c0_17] : memref<640x32xbf16, #tpu.memory_space<vmem>>, vector<16x32xbf16>
    tpu.vector_store %arg11[%c64, %c0_17], %39 {strides = array<i32>} : memref<640x32xbf16, #tpu.memory_space<vmem>>, vector<16x32xbf16>,
    %41 = vector.extract_strided_slice %38 {offsets = [0, 32], sizes = [16, 32], strides = [1, 1]} : vector<16x128xbf16> to vector<16x32xbf16>
    %c80 = arith.constant 80 : index
    %c0_18 = arith.constant 0 : index
    %42 = vector.load %arg11[%c80, %c0_18] : memref<640x32xbf16, #tpu.memory_space<vmem>>, vector<16x32xbf16>
    tpu.vector_store %arg11[%c80, %c0_18], %41 {strides = array<i32>} : memref<640x32xbf16, #tpu.memory_space<vmem>>, vector<16x32xbf16>,
    %43 = vector.extract_strided_slice %38 {offsets = [0, 64], sizes = [16, 32], strides = [1, 1]} : vector<16x128xbf16> to vector<16x32xbf16>
    %c96 = arith.constant 96 : index
    %c0_19 = arith.constant 0 : index
    %44 = vector.load %arg11[%c96, %c0_19] : memref<640x32xbf16, #tpu.memory_space<vmem>>, vector<16x32xbf16>
    tpu.vector_store %arg11[%c96, %c0_19], %43 {strides = array<i32>} : memref<640x32xbf16, #tpu.memory_space<vmem>>, vector<16x32xbf16>,
    %45 = vector.extract_strided_slice %38 {offsets = [0, 96], sizes = [16, 32], strides = [1, 1]} : vector<16x128xbf16> to vector<16x32xbf16>
    %c112 = arith.constant 112 : index
    %c0_20 = arith.constant 0 : index
    %46 = vector.load %arg11[%c112, %c0_20] : memref<640x32xbf16, #tpu.memory_space<vmem>>, vector<16x32xbf16>
    tpu.vector_store %arg11[%c112, %c0_20], %45 {strides = array<i32>} : memref<640x32xbf16, #tpu.memory_space<vmem>>, vector<16x32xbf16>,
    %47 = vector.extract_strided_slice %0 {offsets = [0, 24], sizes = [16, 24], strides = [1, 1]} : vector<16x144xbf16> to vector<16x24xbf16>
    %48 = vector.extract_strided_slice %1 {offsets = [0, 0], sizes = [24, 128], strides = [1, 1]} : vector<24x384xbf16> to vector<24x128xbf16>
    %cst_21 = arith.constant dense<0.000000e+00> : vector<16x128xf32>
    %49 = tpu.matmul %47, %48, %cst_21 {dimension_numbers = #tpu.dot_dimension_numbers<[1], [0], [0], [1], [0, 0, 1, 1], [], []>} : vector<16x24xbf16>, vector<24x128xbf16>, vector<16x128xf32> -> vector<16x128xf32>
    %50 = vector.extract_strided_slice %1 {offsets = [0, 128], sizes = [24, 128], strides = [1, 1]} : vector<24x384xbf16> to vector<24x128xbf16>
    %cst_22 = arith.constant dense<0.000000e+00> : vector<16x128xf32>
    %51 = tpu.matmul %47, %50, %cst_22 {dimension_numbers = #tpu.dot_dimension_numbers<[1], [0], [0], [1], [0, 0, 1, 1], [], []>} : vector<16x24xbf16>, vector<24x128xbf16>, vector<16x128xf32> -> vector<16x128xf32>
    %52 = arith.maximumf %49, %51 : vector<16x128xf32>
    %53 = vector.extract_strided_slice %1 {offsets = [0, 256], sizes = [24, 128], strides = [1, 1]} : vector<24x384xbf16> to vector<24x128xbf16>
    %cst_23 = arith.constant dense<0.000000e+00> : vector<16x128xf32>
    %54 = tpu.matmul %47, %53, %cst_23 {dimension_numbers = #tpu.dot_dimension_numbers<[1], [0], [0], [1], [0, 0, 1, 1], [], []>} : vector<16x24xbf16>, vector<24x128xbf16>, vector<16x128xf32> -> vector<16x128xf32>
    %55 = arith.maximumf %52, %54 : vector<16x128xf32>
    %56 = vector.broadcast %2 : vector<1x128xf32> to vector<16x128xf32>
    %57 = arith.addf %55, %56 : vector<16x128xf32>
    %cst_24 = arith.constant 0.000000e+00 : f32
    %58 = vector.broadcast %cst_24 : f32 to vector<16x128xf32>
    %59 = arith.maximumf %57, %58 : vector<16x128xf32>
    %60 = arith.truncf %59 : vector<16x128xf32> to vector<16x128xbf16>
    %61 = vector.extract_strided_slice %60 {offsets = [0, 0], sizes = [16, 32], strides = [1, 1]} : vector<16x128xbf16> to vector<16x32xbf16>
    %c128 = arith.constant 128 : index
    %c0_25 = arith.constant 0 : index
    %62 = vector.load %arg11[%c128, %c0_25] : memref<640x32xbf16, #tpu.memory_space<vmem>>, vector<16x32xbf16>
    tpu.vector_store %arg11[%c128, %c0_25], %61 {strides = array<i32>} : memref<640x32xbf16, #tpu.memory_space<vmem>>, vector<16x32xbf16>,
    %63 = vector.extract_strided_slice %60 {offsets = [0, 32], sizes = [16, 32], strides = [1, 1]} : vector<16x128xbf16> to vector<16x32xbf16>
    %c144 = arith.constant 144 : index
    %c0_26 = arith.constant 0 : index
    %64 = vector.load %arg11[%c144, %c0_26] : memref<640x32xbf16, #tpu.memory_space<vmem>>, vector<16x32xbf16>
    tpu.vector_store %arg11[%c144, %c0_26], %63 {strides = array<i32>} : memref<640x32xbf16, #tpu.memory_space<vmem>>, vector<16x32xbf16>,
    %65 = vector.extract_strided_slice %60 {offsets = [0, 64], sizes = [16, 32], strides = [1, 1]} : vector<16x128xbf16> to vector<16x32xbf16>
    %c160 = arith.constant 160 : index
    %c0_27 = arith.constant 0 : index
    %66 = vector.load %arg11[%c160, %c0_27] : memref<640x32xbf16, #tpu.memory_space<vmem>>, vector<16x32xbf16>
    tpu.vector_store %arg11[%c160, %c0_27], %65 {strides = array<i32>} : memref<640x32xbf16, #tpu.memory_space<vmem>>, vector<16x32xbf16>,
    %67 = vector.extract_strided_slice %60 {offsets = [0, 96], sizes = [16, 32], strides = [1, 1]} : vector<16x128xbf16> to vector<16x32xbf16>
    %c176 = arith.constant 176 : index
    %c0_28 = arith.constant 0 : index
    %68 = vector.load %arg11[%c176, %c0_28] : memref<640x32xbf16, #tpu.memory_space<vmem>>, vector<16x32xbf16>
    tpu.vector_store %arg11[%c176, %c0_28], %67 {strides = array<i32>} : memref<640x32xbf16, #tpu.memory_space<vmem>>, vector<16x32xbf16>,
    %69 = vector.extract_strided_slice %0 {offsets = [0, 36], sizes = [16, 24], strides = [1, 1]} : vector<16x144xbf16> to vector<16x24xbf16>
    %70 = vector.extract_strided_slice %1 {offsets = [0, 0], sizes = [24, 128], strides = [1, 1]} : vector<24x384xbf16> to vector<24x128xbf16>
    %cst_29 = arith.constant dense<0.000000e+00> : vector<16x128xf32>
    %71 = tpu.matmul %69, %70, %cst_29 {dimension_numbers = #tpu.dot_dimension_numbers<[1], [0], [0], [1], [0, 0, 1, 1], [], []>} : vector<16x24xbf16>, vector<24x128xbf16>, vector<16x128xf32> -> vector<16x128xf32>
    %72 = vector.extract_strided_slice %1 {offsets = [0, 128], sizes = [24, 128], strides = [1, 1]} : vector<24x384xbf16> to vector<24x128xbf16>
    %cst_30 = arith.constant dense<0.000000e+00> : vector<16x128xf32>
    %73 = tpu.matmul %69, %72, %cst_30 {dimension_numbers = #tpu.dot_dimension_numbers<[1], [0], [0], [1], [0, 0, 1, 1], [], []>} : vector<16x24xbf16>, vector<24x128xbf16>, vector<16x128xf32> -> vector<16x128xf32>
    %74 = arith.maximumf %71, %73 : vector<16x128xf32>
    %75 = vector.extract_strided_slice %1 {offsets = [0, 256], sizes = [24, 128], strides = [1, 1]} : vector<24x384xbf16> to vector<24x128xbf16>
    %cst_31 = arith.constant dense<0.000000e+00> : vector<16x128xf32>
    %76 = tpu.matmul %69, %75, %cst_31 {dimension_numbers = #tpu.dot_dimension_numbers<[1], [0], [0], [1], [0, 0, 1, 1], [], []>} : vector<16x24xbf16>, vector<24x128xbf16>, vector<16x128xf32> -> vector<16x128xf32>
    %77 = arith.maximumf %74, %76 : vector<16x128xf32>
    %78 = vector.broadcast %2 : vector<1x128xf32> to vector<16x128xf32>
    %79 = arith.addf %77, %78 : vector<16x128xf32>
    %cst_32 = arith.constant 0.000000e+00 : f32
    %80 = vector.broadcast %cst_32 : f32 to vector<16x128xf32>
    %81 = arith.maximumf %79, %80 : vector<16x128xf32>
    %82 = arith.truncf %81 : vector<16x128xf32> to vector<16x128xbf16>
    %83 = vector.extract_strided_slice %82 {offsets = [0, 0], sizes = [16, 32], strides = [1, 1]} : vector<16x128xbf16> to vector<16x32xbf16>
    %c192 = arith.constant 192 : index
    %c0_33 = arith.constant 0 : index
    %84 = vector.load %arg11[%c192, %c0_33] : memref<640x32xbf16, #tpu.memory_space<vmem>>, vector<16x32xbf16>
    tpu.vector_store %arg11[%c192, %c0_33], %83 {strides = array<i32>} : memref<640x32xbf16, #tpu.memory_space<vmem>>, vector<16x32xbf16>,
    %85 = vector.extract_strided_slice %82 {offsets = [0, 32], sizes = [16, 32], strides = [1, 1]} : vector<16x128xbf16> to vector<16x32xbf16>
    %c208 = arith.constant 208 : index
    %c0_34 = arith.constant 0 : index
    %86 = vector.load %arg11[%c208, %c0_34] : memref<640x32xbf16, #tpu.memory_space<vmem>>, vector<16x32xbf16>
    tpu.vector_store %arg11[%c208, %c0_34], %85 {strides = array<i32>} : memref<640x32xbf16, #tpu.memory_space<vmem>>, vector<16x32xbf16>,
    %87 = vector.extract_strided_slice %82 {offsets = [0, 64], sizes = [16, 32], strides = [1, 1]} : vector<16x128xbf16> to vector<16x32xbf16>
    %c224 = arith.constant 224 : index
    %c0_35 = arith.constant 0 : index
    %88 = vector.load %arg11[%c224, %c0_35] : memref<640x32xbf16, #tpu.memory_space<vmem>>, vector<16x32xbf16>
    tpu.vector_store %arg11[%c224, %c0_35], %87 {strides = array<i32>} : memref<640x32xbf16, #tpu.memory_space<vmem>>, vector<16x32xbf16>,
    %89 = vector.extract_strided_slice %82 {offsets = [0, 96], sizes = [16, 32], strides = [1, 1]} : vector<16x128xbf16> to vector<16x32xbf16>
    %c240 = arith.constant 240 : index
    %c0_36 = arith.constant 0 : index
    %90 = vector.load %arg11[%c240, %c0_36] : memref<640x32xbf16, #tpu.memory_space<vmem>>, vector<16x32xbf16>
    tpu.vector_store %arg11[%c240, %c0_36], %89 {strides = array<i32>} : memref<640x32xbf16, #tpu.memory_space<vmem>>, vector<16x32xbf16>,
    %91 = vector.extract_strided_slice %0 {offsets = [0, 48], sizes = [16, 24], strides = [1, 1]} : vector<16x144xbf16> to vector<16x24xbf16>
    %92 = vector.extract_strided_slice %1 {offsets = [0, 0], sizes = [24, 128], strides = [1, 1]} : vector<24x384xbf16> to vector<24x128xbf16>
    %cst_37 = arith.constant dense<0.000000e+00> : vector<16x128xf32>
    %93 = tpu.matmul %91, %92, %cst_37 {dimension_numbers = #tpu.dot_dimension_numbers<[1], [0], [0], [1], [0, 0, 1, 1], [], []>} : vector<16x24xbf16>, vector<24x128xbf16>, vector<16x128xf32> -> vector<16x128xf32>
    %94 = vector.extract_strided_slice %1 {offsets = [0, 128], sizes = [24, 128], strides = [1, 1]} : vector<24x384xbf16> to vector<24x128xbf16>
    %cst_38 = arith.constant dense<0.000000e+00> : vector<16x128xf32>
    %95 = tpu.matmul %91, %94, %cst_38 {dimension_numbers = #tpu.dot_dimension_numbers<[1], [0], [0], [1], [0, 0, 1, 1], [], []>} : vector<16x24xbf16>, vector<24x128xbf16>, vector<16x128xf32> -> vector<16x128xf32>
    %96 = arith.maximumf %93, %95 : vector<16x128xf32>
    %97 = vector.extract_strided_slice %1 {offsets = [0, 256], sizes = [24, 128], strides = [1, 1]} : vector<24x384xbf16> to vector<24x128xbf16>
    %cst_39 = arith.constant dense<0.000000e+00> : vector<16x128xf32>
    %98 = tpu.matmul %91, %97, %cst_39 {dimension_numbers = #tpu.dot_dimension_numbers<[1], [0], [0], [1], [0, 0, 1, 1], [], []>} : vector<16x24xbf16>, vector<24x128xbf16>, vector<16x128xf32> -> vector<16x128xf32>
    %99 = arith.maximumf %96, %98 : vector<16x128xf32>
    %100 = vector.broadcast %2 : vector<1x128xf32> to vector<16x128xf32>
    %101 = arith.addf %99, %100 : vector<16x128xf32>
    %cst_40 = arith.constant 0.000000e+00 : f32
    %102 = vector.broadcast %cst_40 : f32 to vector<16x128xf32>
    %103 = arith.maximumf %101, %102 : vector<16x128xf32>
    %104 = arith.truncf %103 : vector<16x128xf32> to vector<16x128xbf16>
    %105 = vector.extract_strided_slice %104 {offsets = [0, 0], sizes = [16, 32], strides = [1, 1]} : vector<16x128xbf16> to vector<16x32xbf16>
    %c256 = arith.constant 256 : index
    %c0_41 = arith.constant 0 : index
    %106 = vector.load %arg11[%c256, %c0_41] : memref<640x32xbf16, #tpu.memory_space<vmem>>, vector<16x32xbf16>
    tpu.vector_store %arg11[%c256, %c0_41], %105 {strides = array<i32>} : memref<640x32xbf16, #tpu.memory_space<vmem>>, vector<16x32xbf16>,
    %107 = vector.extract_strided_slice %104 {offsets = [0, 32], sizes = [16, 32], strides = [1, 1]} : vector<16x128xbf16> to vector<16x32xbf16>
    %c272 = arith.constant 272 : index
    %c0_42 = arith.constant 0 : index
    %108 = vector.load %arg11[%c272, %c0_42] : memref<640x32xbf16, #tpu.memory_space<vmem>>, vector<16x32xbf16>
    tpu.vector_store %arg11[%c272, %c0_42], %107 {strides = array<i32>} : memref<640x32xbf16, #tpu.memory_space<vmem>>, vector<16x32xbf16>,
    %109 = vector.extract_strided_slice %104 {offsets = [0, 64], sizes = [16, 32], strides = [1, 1]} : vector<16x128xbf16> to vector<16x32xbf16>
    %c288 = arith.constant 288 : index
    %c0_43 = arith.constant 0 : index
    %110 = vector.load %arg11[%c288, %c0_43] : memref<640x32xbf16, #tpu.memory_space<vmem>>, vector<16x32xbf16>
    tpu.vector_store %arg11[%c288, %c0_43], %109 {strides = array<i32>} : memref<640x32xbf16, #tpu.memory_space<vmem>>, vector<16x32xbf16>,
    %111 = vector.extract_strided_slice %104 {offsets = [0, 96], sizes = [16, 32], strides = [1, 1]} : vector<16x128xbf16> to vector<16x32xbf16>
    %c304 = arith.constant 304 : index
    %c0_44 = arith.constant 0 : index
    %112 = vector.load %arg11[%c304, %c0_44] : memref<640x32xbf16, #tpu.memory_space<vmem>>, vector<16x32xbf16>
    tpu.vector_store %arg11[%c304, %c0_44], %111 {strides = array<i32>} : memref<640x32xbf16, #tpu.memory_space<vmem>>, vector<16x32xbf16>,
    %113 = vector.extract_strided_slice %0 {offsets = [0, 60], sizes = [16, 24], strides = [1, 1]} : vector<16x144xbf16> to vector<16x24xbf16>
    %114 = vector.extract_strided_slice %1 {offsets = [0, 0], sizes = [24, 128], strides = [1, 1]} : vector<24x384xbf16> to vector<24x128xbf16>
    %cst_45 = arith.constant dense<0.000000e+00> : vector<16x128xf32>
    %115 = tpu.matmul %113, %114, %cst_45 {dimension_numbers = #tpu.dot_dimension_numbers<[1], [0], [0], [1], [0, 0, 1, 1], [], []>} : vector<16x24xbf16>, vector<24x128xbf16>, vector<16x128xf32> -> vector<16x128xf32>
    %116 = vector.extract_strided_slice %1 {offsets = [0, 128], sizes = [24, 128], strides = [1, 1]} : vector<24x384xbf16> to vector<24x128xbf16>
    %cst_46 = arith.constant dense<0.000000e+00> : vector<16x128xf32>
    %117 = tpu.matmul %113, %116, %cst_46 {dimension_numbers = #tpu.dot_dimension_numbers<[1], [0], [0], [1], [0, 0, 1, 1], [], []>} : vector<16x24xbf16>, vector<24x128xbf16>, vector<16x128xf32> -> vector<16x128xf32>
    %118 = arith.maximumf %115, %117 : vector<16x128xf32>
    %119 = vector.extract_strided_slice %1 {offsets = [0, 256], sizes = [24, 128], strides = [1, 1]} : vector<24x384xbf16> to vector<24x128xbf16>
    %cst_47 = arith.constant dense<0.000000e+00> : vector<16x128xf32>
    %120 = tpu.matmul %113, %119, %cst_47 {dimension_numbers = #tpu.dot_dimension_numbers<[1], [0], [0], [1], [0, 0, 1, 1], [], []>} : vector<16x24xbf16>, vector<24x128xbf16>, vector<16x128xf32> -> vector<16x128xf32>
    %121 = arith.maximumf %118, %120 : vector<16x128xf32>
    %122 = vector.broadcast %2 : vector<1x128xf32> to vector<16x128xf32>
    %123 = arith.addf %121, %122 : vector<16x128xf32>
    %cst_48 = arith.constant 0.000000e+00 : f32
    %124 = vector.broadcast %cst_48 : f32 to vector<16x128xf32>
    %125 = arith.maximumf %123, %124 : vector<16x128xf32>
    %126 = arith.truncf %125 : vector<16x128xf32> to vector<16x128xbf16>
    %127 = vector.extract_strided_slice %126 {offsets = [0, 0], sizes = [16, 32], strides = [1, 1]} : vector<16x128xbf16> to vector<16x32xbf16>
    %c320 = arith.constant 320 : index
    %c0_49 = arith.constant 0 : index
    %128 = vector.load %arg11[%c320, %c0_49] : memref<640x32xbf16, #tpu.memory_space<vmem>>, vector<16x32xbf16>
    tpu.vector_store %arg11[%c320, %c0_49], %127 {strides = array<i32>} : memref<640x32xbf16, #tpu.memory_space<vmem>>, vector<16x32xbf16>,
    %129 = vector.extract_strided_slice %126 {offsets = [0, 32], sizes = [16, 32], strides = [1, 1]} : vector<16x128xbf16> to vector<16x32xbf16>
    %c336 = arith.constant 336 : index
    %c0_50 = arith.constant 0 : index
    %130 = vector.load %arg11[%c336, %c0_50] : memref<640x32xbf16, #tpu.memory_space<vmem>>, vector<16x32xbf16>
    tpu.vector_store %arg11[%c336, %c0_50], %129 {strides = array<i32>} : memref<640x32xbf16, #tpu.memory_space<vmem>>, vector<16x32xbf16>,
    %131 = vector.extract_strided_slice %126 {offsets = [0, 64], sizes = [16, 32], strides = [1, 1]} : vector<16x128xbf16> to vector<16x32xbf16>
    %c352 = arith.constant 352 : index
    %c0_51 = arith.constant 0 : index
    %132 = vector.load %arg11[%c352, %c0_51] : memref<640x32xbf16, #tpu.memory_space<vmem>>, vector<16x32xbf16>
    tpu.vector_store %arg11[%c352, %c0_51], %131 {strides = array<i32>} : memref<640x32xbf16, #tpu.memory_space<vmem>>, vector<16x32xbf16>,
    %133 = vector.extract_strided_slice %126 {offsets = [0, 96], sizes = [16, 32], strides = [1, 1]} : vector<16x128xbf16> to vector<16x32xbf16>
    %c368 = arith.constant 368 : index
    %c0_52 = arith.constant 0 : index
    %134 = vector.load %arg11[%c368, %c0_52] : memref<640x32xbf16, #tpu.memory_space<vmem>>, vector<16x32xbf16>
    tpu.vector_store %arg11[%c368, %c0_52], %133 {strides = array<i32>} : memref<640x32xbf16, #tpu.memory_space<vmem>>, vector<16x32xbf16>,
    %135 = vector.extract_strided_slice %0 {offsets = [0, 72], sizes = [16, 24], strides = [1, 1]} : vector<16x144xbf16> to vector<16x24xbf16>
    %136 = vector.extract_strided_slice %1 {offsets = [0, 0], sizes = [24, 128], strides = [1, 1]} : vector<24x384xbf16> to vector<24x128xbf16>
    %cst_53 = arith.constant dense<0.000000e+00> : vector<16x128xf32>
    %137 = tpu.matmul %135, %136, %cst_53 {dimension_numbers = #tpu.dot_dimension_numbers<[1], [0], [0], [1], [0, 0, 1, 1], [], []>} : vector<16x24xbf16>, vector<24x128xbf16>, vector<16x128xf32> -> vector<16x128xf32>
    %138 = vector.extract_strided_slice %1 {offsets = [0, 128], sizes = [24, 128], strides = [1, 1]} : vector<24x384xbf16> to vector<24x128xbf16>
    %cst_54 = arith.constant dense<0.000000e+00> : vector<16x128xf32>
    %139 = tpu.matmul %135, %138, %cst_54 {dimension_numbers = #tpu.dot_dimension_numbers<[1], [0], [0], [1], [0, 0, 1, 1], [], []>} : vector<16x24xbf16>, vector<24x128xbf16>, vector<16x128xf32> -> vector<16x128xf32>
    %140 = arith.maximumf %137, %139 : vector<16x128xf32>
    %141 = vector.extract_strided_slice %1 {offsets = [0, 256], sizes = [24, 128], strides = [1, 1]} : vector<24x384xbf16> to vector<24x128xbf16>
    %cst_55 = arith.constant dense<0.000000e+00> : vector<16x128xf32>
    %142 = tpu.matmul %135, %141, %cst_55 {dimension_numbers = #tpu.dot_dimension_numbers<[1], [0], [0], [1], [0, 0, 1, 1], [], []>} : vector<16x24xbf16>, vector<24x128xbf16>, vector<16x128xf32> -> vector<16x128xf32>
    %143 = arith.maximumf %140, %142 : vector<16x128xf32>
    %144 = vector.broadcast %2 : vector<1x128xf32> to vector<16x128xf32>
    %145 = arith.addf %143, %144 : vector<16x128xf32>
    %cst_56 = arith.constant 0.000000e+00 : f32
    %146 = vector.broadcast %cst_56 : f32 to vector<16x128xf32>
    %147 = arith.maximumf %145, %146 : vector<16x128xf32>
    %148 = arith.truncf %147 : vector<16x128xf32> to vector<16x128xbf16>
    %149 = vector.extract_strided_slice %148 {offsets = [0, 0], sizes = [16, 32], strides = [1, 1]} : vector<16x128xbf16> to vector<16x32xbf16>
    %c384 = arith.constant 384 : index
    %c0_57 = arith.constant 0 : index
    %150 = vector.load %arg11[%c384, %c0_57] : memref<640x32xbf16, #tpu.memory_space<vmem>>, vector<16x32xbf16>
    tpu.vector_store %arg11[%c384, %c0_57], %149 {strides = array<i32>} : memref<640x32xbf16, #tpu.memory_space<vmem>>, vector<16x32xbf16>,
    %151 = vector.extract_strided_slice %148 {offsets = [0, 32], sizes = [16, 32], strides = [1, 1]} : vector<16x128xbf16> to vector<16x32xbf16>
    %c400 = arith.constant 400 : index
    %c0_58 = arith.constant 0 : index
    %152 = vector.load %arg11[%c400, %c0_58] : memref<640x32xbf16, #tpu.memory_space<vmem>>, vector<16x32xbf16>
    tpu.vector_store %arg11[%c400, %c0_58], %151 {strides = array<i32>} : memref<640x32xbf16, #tpu.memory_space<vmem>>, vector<16x32xbf16>,
    %153 = vector.extract_strided_slice %148 {offsets = [0, 64], sizes = [16, 32], strides = [1, 1]} : vector<16x128xbf16> to vector<16x32xbf16>
    %c416 = arith.constant 416 : index
    %c0_59 = arith.constant 0 : index
    %154 = vector.load %arg11[%c416, %c0_59] : memref<640x32xbf16, #tpu.memory_space<vmem>>, vector<16x32xbf16>
    tpu.vector_store %arg11[%c416, %c0_59], %153 {strides = array<i32>} : memref<640x32xbf16, #tpu.memory_space<vmem>>, vector<16x32xbf16>,
    %155 = vector.extract_strided_slice %148 {offsets = [0, 96], sizes = [16, 32], strides = [1, 1]} : vector<16x128xbf16> to vector<16x32xbf16>
    %c432 = arith.constant 432 : index
    %c0_60 = arith.constant 0 : index
    %156 = vector.load %arg11[%c432, %c0_60] : memref<640x32xbf16, #tpu.memory_space<vmem>>, vector<16x32xbf16>
    tpu.vector_store %arg11[%c432, %c0_60], %155 {strides = array<i32>} : memref<640x32xbf16, #tpu.memory_space<vmem>>, vector<16x32xbf16>,
    %157 = vector.extract_strided_slice %0 {offsets = [0, 84], sizes = [16, 24], strides = [1, 1]} : vector<16x144xbf16> to vector<16x24xbf16>
    %158 = vector.extract_strided_slice %1 {offsets = [0, 0], sizes = [24, 128], strides = [1, 1]} : vector<24x384xbf16> to vector<24x128xbf16>
    %cst_61 = arith.constant dense<0.000000e+00> : vector<16x128xf32>
    %159 = tpu.matmul %157, %158, %cst_61 {dimension_numbers = #tpu.dot_dimension_numbers<[1], [0], [0], [1], [0, 0, 1, 1], [], []>} : vector<16x24xbf16>, vector<24x128xbf16>, vector<16x128xf32> -> vector<16x128xf32>
    %160 = vector.extract_strided_slice %1 {offsets = [0, 128], sizes = [24, 128], strides = [1, 1]} : vector<24x384xbf16> to vector<24x128xbf16>
    %cst_62 = arith.constant dense<0.000000e+00> : vector<16x128xf32>
    %161 = tpu.matmul %157, %160, %cst_62 {dimension_numbers = #tpu.dot_dimension_numbers<[1], [0], [0], [1], [0, 0, 1, 1], [], []>} : vector<16x24xbf16>, vector<24x128xbf16>, vector<16x128xf32> -> vector<16x128xf32>
    %162 = arith.maximumf %159, %161 : vector<16x128xf32>
    %163 = vector.extract_strided_slice %1 {offsets = [0, 256], sizes = [24, 128], strides = [1, 1]} : vector<24x384xbf16> to vector<24x128xbf16>
    %cst_63 = arith.constant dense<0.000000e+00> : vector<16x128xf32>
    %164 = tpu.matmul %157, %163, %cst_63 {dimension_numbers = #tpu.dot_dimension_numbers<[1], [0], [0], [1], [0, 0, 1, 1], [], []>} : vector<16x24xbf16>, vector<24x128xbf16>, vector<16x128xf32> -> vector<16x128xf32>
    %165 = arith.maximumf %162, %164 : vector<16x128xf32>
    %166 = vector.broadcast %2 : vector<1x128xf32> to vector<16x128xf32>
    %167 = arith.addf %165, %166 : vector<16x128xf32>
    %cst_64 = arith.constant 0.000000e+00 : f32
    %168 = vector.broadcast %cst_64 : f32 to vector<16x128xf32>
    %169 = arith.maximumf %167, %168 : vector<16x128xf32>
    %170 = arith.truncf %169 : vector<16x128xf32> to vector<16x128xbf16>
    %171 = vector.extract_strided_slice %170 {offsets = [0, 0], sizes = [16, 32], strides = [1, 1]} : vector<16x128xbf16> to vector<16x32xbf16>
    %c448 = arith.constant 448 : index
    %c0_65 = arith.constant 0 : index
    %172 = vector.load %arg11[%c448, %c0_65] : memref<640x32xbf16, #tpu.memory_space<vmem>>, vector<16x32xbf16>
    tpu.vector_store %arg11[%c448, %c0_65], %171 {strides = array<i32>} : memref<640x32xbf16, #tpu.memory_space<vmem>>, vector<16x32xbf16>,
    %173 = vector.extract_strided_slice %170 {offsets = [0, 32], sizes = [16, 32], strides = [1, 1]} : vector<16x128xbf16> to vector<16x32xbf16>
    %c464 = arith.constant 464 : index
    %c0_66 = arith.constant 0 : index
    %174 = vector.load %arg11[%c464, %c0_66] : memref<640x32xbf16, #tpu.memory_space<vmem>>, vector<16x32xbf16>
    tpu.vector_store %arg11[%c464, %c0_66], %173 {strides = array<i32>} : memref<640x32xbf16, #tpu.memory_space<vmem>>, vector<16x32xbf16>,
    %175 = vector.extract_strided_slice %170 {offsets = [0, 64], sizes = [16, 32], strides = [1, 1]} : vector<16x128xbf16> to vector<16x32xbf16>
    %c480 = arith.constant 480 : index
    %c0_67 = arith.constant 0 : index
    %176 = vector.load %arg11[%c480, %c0_67] : memref<640x32xbf16, #tpu.memory_space<vmem>>, vector<16x32xbf16>
    tpu.vector_store %arg11[%c480, %c0_67], %175 {strides = array<i32>} : memref<640x32xbf16, #tpu.memory_space<vmem>>, vector<16x32xbf16>,
    %177 = vector.extract_strided_slice %170 {offsets = [0, 96], sizes = [16, 32], strides = [1, 1]} : vector<16x128xbf16> to vector<16x32xbf16>
    %c496 = arith.constant 496 : index
    %c0_68 = arith.constant 0 : index
    %178 = vector.load %arg11[%c496, %c0_68] : memref<640x32xbf16, #tpu.memory_space<vmem>>, vector<16x32xbf16>
    tpu.vector_store %arg11[%c496, %c0_68], %177 {strides = array<i32>} : memref<640x32xbf16, #tpu.memory_space<vmem>>, vector<16x32xbf16>,
    %179 = vector.extract_strided_slice %0 {offsets = [0, 96], sizes = [16, 24], strides = [1, 1]} : vector<16x144xbf16> to vector<16x24xbf16>
    %180 = vector.extract_strided_slice %1 {offsets = [0, 0], sizes = [24, 128], strides = [1, 1]} : vector<24x384xbf16> to vector<24x128xbf16>
    %cst_69 = arith.constant dense<0.000000e+00> : vector<16x128xf32>
    %181 = tpu.matmul %179, %180, %cst_69 {dimension_numbers = #tpu.dot_dimension_numbers<[1], [0], [0], [1], [0, 0, 1, 1], [], []>} : vector<16x24xbf16>, vector<24x128xbf16>, vector<16x128xf32> -> vector<16x128xf32>
    %182 = vector.extract_strided_slice %1 {offsets = [0, 128], sizes = [24, 128], strides = [1, 1]} : vector<24x384xbf16> to vector<24x128xbf16>
    %cst_70 = arith.constant dense<0.000000e+00> : vector<16x128xf32>
    %183 = tpu.matmul %179, %182, %cst_70 {dimension_numbers = #tpu.dot_dimension_numbers<[1], [0], [0], [1], [0, 0, 1, 1], [], []>} : vector<16x24xbf16>, vector<24x128xbf16>, vector<16x128xf32> -> vector<16x128xf32>
    %184 = arith.maximumf %181, %183 : vector<16x128xf32>
    %185 = vector.extract_strided_slice %1 {offsets = [0, 256], sizes = [24, 128], strides = [1, 1]} : vector<24x384xbf16> to vector<24x128xbf16>
    %cst_71 = arith.constant dense<0.000000e+00> : vector<16x128xf32>
    %186 = tpu.matmul %179, %185, %cst_71 {dimension_numbers = #tpu.dot_dimension_numbers<[1], [0], [0], [1], [0, 0, 1, 1], [], []>} : vector<16x24xbf16>, vector<24x128xbf16>, vector<16x128xf32> -> vector<16x128xf32>
    %187 = arith.maximumf %184, %186 : vector<16x128xf32>
    %188 = vector.broadcast %2 : vector<1x128xf32> to vector<16x128xf32>
    %189 = arith.addf %187, %188 : vector<16x128xf32>
    %cst_72 = arith.constant 0.000000e+00 : f32
    %190 = vector.broadcast %cst_72 : f32 to vector<16x128xf32>
    %191 = arith.maximumf %189, %190 : vector<16x128xf32>
    %192 = arith.truncf %191 : vector<16x128xf32> to vector<16x128xbf16>
    %193 = vector.extract_strided_slice %192 {offsets = [0, 0], sizes = [16, 32], strides = [1, 1]} : vector<16x128xbf16> to vector<16x32xbf16>
    %c512 = arith.constant 512 : index
    %c0_73 = arith.constant 0 : index
    %194 = vector.load %arg11[%c512, %c0_73] : memref<640x32xbf16, #tpu.memory_space<vmem>>, vector<16x32xbf16>
    tpu.vector_store %arg11[%c512, %c0_73], %193 {strides = array<i32>} : memref<640x32xbf16, #tpu.memory_space<vmem>>, vector<16x32xbf16>,
    %195 = vector.extract_strided_slice %192 {offsets = [0, 32], sizes = [16, 32], strides = [1, 1]} : vector<16x128xbf16> to vector<16x32xbf16>
    %c528 = arith.constant 528 : index
    %c0_74 = arith.constant 0 : index
    %196 = vector.load %arg11[%c528, %c0_74] : memref<640x32xbf16, #tpu.memory_space<vmem>>, vector<16x32xbf16>
    tpu.vector_store %arg11[%c528, %c0_74], %195 {strides = array<i32>} : memref<640x32xbf16, #tpu.memory_space<vmem>>, vector<16x32xbf16>,
    %197 = vector.extract_strided_slice %192 {offsets = [0, 64], sizes = [16, 32], strides = [1, 1]} : vector<16x128xbf16> to vector<16x32xbf16>
    %c544 = arith.constant 544 : index
    %c0_75 = arith.constant 0 : index
    %198 = vector.load %arg11[%c544, %c0_75] : memref<640x32xbf16, #tpu.memory_space<vmem>>, vector<16x32xbf16>
    tpu.vector_store %arg11[%c544, %c0_75], %197 {strides = array<i32>} : memref<640x32xbf16, #tpu.memory_space<vmem>>, vector<16x32xbf16>,
    %199 = vector.extract_strided_slice %192 {offsets = [0, 96], sizes = [16, 32], strides = [1, 1]} : vector<16x128xbf16> to vector<16x32xbf16>
    %c560 = arith.constant 560 : index
    %c0_76 = arith.constant 0 : index
    %200 = vector.load %arg11[%c560, %c0_76] : memref<640x32xbf16, #tpu.memory_space<vmem>>, vector<16x32xbf16>
    tpu.vector_store %arg11[%c560, %c0_76], %199 {strides = array<i32>} : memref<640x32xbf16, #tpu.memory_space<vmem>>, vector<16x32xbf16>,
    %201 = vector.extract_strided_slice %0 {offsets = [0, 108], sizes = [16, 24], strides = [1, 1]} : vector<16x144xbf16> to vector<16x24xbf16>
    %202 = vector.extract_strided_slice %1 {offsets = [0, 0], sizes = [24, 128], strides = [1, 1]} : vector<24x384xbf16> to vector<24x128xbf16>
    %cst_77 = arith.constant dense<0.000000e+00> : vector<16x128xf32>
    %203 = tpu.matmul %201, %202, %cst_77 {dimension_numbers = #tpu.dot_dimension_numbers<[1], [0], [0], [1], [0, 0, 1, 1], [], []>} : vector<16x24xbf16>, vector<24x128xbf16>, vector<16x128xf32> -> vector<16x128xf32>
    %204 = vector.extract_strided_slice %1 {offsets = [0, 128], sizes = [24, 128], strides = [1, 1]} : vector<24x384xbf16> to vector<24x128xbf16>
    %cst_78 = arith.constant dense<0.000000e+00> : vector<16x128xf32>
    %205 = tpu.matmul %201, %204, %cst_78 {dimension_numbers = #tpu.dot_dimension_numbers<[1], [0], [0], [1], [0, 0, 1, 1], [], []>} : vector<16x24xbf16>, vector<24x128xbf16>, vector<16x128xf32> -> vector<16x128xf32>
    %206 = arith.maximumf %203, %205 : vector<16x128xf32>
    %207 = vector.extract_strided_slice %1 {offsets = [0, 256], sizes = [24, 128], strides = [1, 1]} : vector<24x384xbf16> to vector<24x128xbf16>
    %cst_79 = arith.constant dense<0.000000e+00> : vector<16x128xf32>
    %208 = tpu.matmul %201, %207, %cst_79 {dimension_numbers = #tpu.dot_dimension_numbers<[1], [0], [0], [1], [0, 0, 1, 1], [], []>} : vector<16x24xbf16>, vector<24x128xbf16>, vector<16x128xf32> -> vector<16x128xf32>
    %209 = arith.maximumf %206, %208 : vector<16x128xf32>
    %210 = vector.broadcast %2 : vector<1x128xf32> to vector<16x128xf32>
    %211 = arith.addf %209, %210 : vector<16x128xf32>
    %cst_80 = arith.constant 0.000000e+00 : f32
    %212 = vector.broadcast %cst_80 : f32 to vector<16x128xf32>
    %213 = arith.maximumf %211, %212 : vector<16x128xf32>
    %214 = arith.truncf %213 : vector<16x128xf32> to vector<16x128xbf16>
    %215 = vector.extract_strided_slice %214 {offsets = [0, 0], sizes = [16, 32], strides = [1, 1]} : vector<16x128xbf16> to vector<16x32xbf16>
    %c576 = arith.constant 576 : index
    %c0_81 = arith.constant 0 : index
    %216 = vector.load %arg11[%c576, %c0_81] : memref<640x32xbf16, #tpu.memory_space<vmem>>, vector<16x32xbf16>
    tpu.vector_store %arg11[%c576, %c0_81], %215 {strides = array<i32>} : memref<640x32xbf16, #tpu.memory_space<vmem>>, vector<16x32xbf16>,
    %217 = vector.extract_strided_slice %214 {offsets = [0, 32], sizes = [16, 32], strides = [1, 1]} : vector<16x128xbf16> to vector<16x32xbf16>
    %c592 = arith.constant 592 : index
    %c0_82 = arith.constant 0 : index
    %218 = vector.load %arg11[%c592, %c0_82] : memref<640x32xbf16, #tpu.memory_space<vmem>>, vector<16x32xbf16>
    tpu.vector_store %arg11[%c592, %c0_82], %217 {strides = array<i32>} : memref<640x32xbf16, #tpu.memory_space<vmem>>, vector<16x32xbf16>,
    %219 = vector.extract_strided_slice %214 {offsets = [0, 64], sizes = [16, 32], strides = [1, 1]} : vector<16x128xbf16> to vector<16x32xbf16>
    %c608 = arith.constant 608 : index
    %c0_83 = arith.constant 0 : index
    %220 = vector.load %arg11[%c608, %c0_83] : memref<640x32xbf16, #tpu.memory_space<vmem>>, vector<16x32xbf16>
    tpu.vector_store %arg11[%c608, %c0_83], %219 {strides = array<i32>} : memref<640x32xbf16, #tpu.memory_space<vmem>>, vector<16x32xbf16>,
    %221 = vector.extract_strided_slice %214 {offsets = [0, 96], sizes = [16, 32], strides = [1, 1]} : vector<16x128xbf16> to vector<16x32xbf16>
    %c624 = arith.constant 624 : index
    %c0_84 = arith.constant 0 : index
    %222 = vector.load %arg11[%c624, %c0_84] : memref<640x32xbf16, #tpu.memory_space<vmem>>, vector<16x32xbf16>
    tpu.vector_store %arg11[%c624, %c0_84], %221 {strides = array<i32>} : memref<640x32xbf16, #tpu.memory_space<vmem>>, vector<16x32xbf16>,
    %c0_85 = arith.constant 0 : index
    %c0_86 = arith.constant 0 : index
    %223 = vector.load %arg11[%c0_85, %c0_86] : memref<640x32xbf16, #tpu.memory_space<vmem>>, vector<48x32xbf16>
    %c0_87 = arith.constant 0 : index
    %c0_88 = arith.constant 0 : index
    %224 = vector.load %arg12[%c0_87, %c0_88] : memref<528x256xbf16, #tpu.memory_space<vmem>>, vector<48x32xbf16>
    tpu.vector_store %arg12[%c0_87, %c0_88], %223 {strides = array<i32>} : memref<528x256xbf16, #tpu.memory_space<vmem>>, vector<48x32xbf16>,
    %c48_89 = arith.constant 48 : index
    %c0_90 = arith.constant 0 : index
    %225 = vector.load %arg11[%c48_89, %c0_90] : memref<640x32xbf16, #tpu.memory_space<vmem>>, vector<48x32xbf16>
    %c48_91 = arith.constant 48 : index
    %c0_92 = arith.constant 0 : index
    %226 = vector.load %arg12[%c48_91, %c0_92] : memref<528x256xbf16, #tpu.memory_space<vmem>>, vector<48x32xbf16>
    tpu.vector_store %arg12[%c48_91, %c0_92], %225 {strides = array<i32>} : memref<528x256xbf16, #tpu.memory_space<vmem>>, vector<48x32xbf16>,
    %c96_93 = arith.constant 96 : index
    %c0_94 = arith.constant 0 : index
    %227 = vector.load %arg11[%c96_93, %c0_94] : memref<640x32xbf16, #tpu.memory_space<vmem>>, vector<48x32xbf16>
    %c96_95 = arith.constant 96 : index
    %c0_96 = arith.constant 0 : index
    %228 = vector.load %arg12[%c96_95, %c0_96] : memref<528x256xbf16, #tpu.memory_space<vmem>>, vector<48x32xbf16>
    tpu.vector_store %arg12[%c96_95, %c0_96], %227 {strides = array<i32>} : memref<528x256xbf16, #tpu.memory_space<vmem>>, vector<48x32xbf16>,
    %c144_97 = arith.constant 144 : index
    %c0_98 = arith.constant 0 : index
    %229 = vector.load %arg11[%c144_97, %c0_98] : memref<640x32xbf16, #tpu.memory_space<vmem>>, vector<48x32xbf16>
    %c144_99 = arith.constant 144 : index
    %c0_100 = arith.constant 0 : index
    %230 = vector.load %arg12[%c144_99, %c0_100] : memref<528x256xbf16, #tpu.memory_space<vmem>>, vector<48x32xbf16>
    tpu.vector_store %arg12[%c144_99, %c0_100], %229 {strides = array<i32>} : memref<528x256xbf16, #tpu.memory_space<vmem>>, vector<48x32xbf16>,
    %c192_101 = arith.constant 192 : index
    %c0_102 = arith.constant 0 : index
    %231 = vector.load %arg11[%c192_101, %c0_102] : memref<640x32xbf16, #tpu.memory_space<vmem>>, vector<48x32xbf16>
    %c192_103 = arith.constant 192 : index
    %c0_104 = arith.constant 0 : index
    %232 = vector.load %arg12[%c192_103, %c0_104] : memref<528x256xbf16, #tpu.memory_space<vmem>>, vector<48x32xbf16>
    tpu.vector_store %arg12[%c192_103, %c0_104], %231 {strides = array<i32>} : memref<528x256xbf16, #tpu.memory_space<vmem>>, vector<48x32xbf16>,
    %c240_105 = arith.constant 240 : index
    %c0_106 = arith.constant 0 : index
    %233 = vector.load %arg11[%c240_105, %c0_106] : memref<640x32xbf16, #tpu.memory_space<vmem>>, vector<48x32xbf16>
    %c240_107 = arith.constant 240 : index
    %c0_108 = arith.constant 0 : index
    %234 = vector.load %arg12[%c240_107, %c0_108] : memref<528x256xbf16, #tpu.memory_space<vmem>>, vector<48x32xbf16>
    tpu.vector_store %arg12[%c240_107, %c0_108], %233 {strides = array<i32>} : memref<528x256xbf16, #tpu.memory_space<vmem>>, vector<48x32xbf16>,
    %c288_109 = arith.constant 288 : index
    %c0_110 = arith.constant 0 : index
    %235 = vector.load %arg11[%c288_109, %c0_110] : memref<640x32xbf16, #tpu.memory_space<vmem>>, vector<48x32xbf16>
    %c288_111 = arith.constant 288 : index
    %c0_112 = arith.constant 0 : index
    %236 = vector.load %arg12[%c288_111, %c0_112] : memref<528x256xbf16, #tpu.memory_space<vmem>>, vector<48x32xbf16>
    tpu.vector_store %arg12[%c288_111, %c0_112], %235 {strides = array<i32>} : memref<528x256xbf16, #tpu.memory_space<vmem>>, vector<48x32xbf16>,
    %c336_113 = arith.constant 336 : index
    %c0_114 = arith.constant 0 : index
    %237 = vector.load %arg11[%c336_113, %c0_114] : memref<640x32xbf16, #tpu.memory_space<vmem>>, vector<48x32xbf16>
    %c336_115 = arith.constant 336 : index
    %c0_116 = arith.constant 0 : index
    %238 = vector.load %arg12[%c336_115, %c0_116] : memref<528x256xbf16, #tpu.memory_space<vmem>>, vector<48x32xbf16>
    tpu.vector_store %arg12[%c336_115, %c0_116], %237 {strides = array<i32>} : memref<528x256xbf16, #tpu.memory_space<vmem>>, vector<48x32xbf16>,
    %c384_117 = arith.constant 384 : index
    %c0_118 = arith.constant 0 : index
    %239 = vector.load %arg11[%c384_117, %c0_118] : memref<640x32xbf16, #tpu.memory_space<vmem>>, vector<48x32xbf16>
    %c384_119 = arith.constant 384 : index
    %c0_120 = arith.constant 0 : index
    %240 = vector.load %arg12[%c384_119, %c0_120] : memref<528x256xbf16, #tpu.memory_space<vmem>>, vector<48x32xbf16>
    tpu.vector_store %arg12[%c384_119, %c0_120], %239 {strides = array<i32>} : memref<528x256xbf16, #tpu.memory_space<vmem>>, vector<48x32xbf16>,
    %c432_121 = arith.constant 432 : index
    %c0_122 = arith.constant 0 : index
    %241 = vector.load %arg11[%c432_121, %c0_122] : memref<640x32xbf16, #tpu.memory_space<vmem>>, vector<48x32xbf16>
    %c432_123 = arith.constant 432 : index
    %c0_124 = arith.constant 0 : index
    %242 = vector.load %arg12[%c432_123, %c0_124] : memref<528x256xbf16, #tpu.memory_space<vmem>>, vector<48x32xbf16>
    tpu.vector_store %arg12[%c432_123, %c0_124], %241 {strides = array<i32>} : memref<528x256xbf16, #tpu.memory_space<vmem>>, vector<48x32xbf16>,
    %c480_125 = arith.constant 480 : index
    %c0_126 = arith.constant 0 : index
    %243 = vector.load %arg11[%c480_125, %c0_126] : memref<640x32xbf16, #tpu.memory_space<vmem>>, vector<48x32xbf16>
    %c480_127 = arith.constant 480 : index
    %c0_128 = arith.constant 0 : index
    %244 = vector.load %arg12[%c480_127, %c0_128] : memref<528x256xbf16, #tpu.memory_space<vmem>>, vector<48x32xbf16>
    tpu.vector_store %arg12[%c480_127, %c0_128], %243 {strides = array<i32>} : memref<528x256xbf16, #tpu.memory_space<vmem>>, vector<48x32xbf16>,
    %c16_129 = arith.constant 16 : index
    %c0_130 = arith.constant 0 : index
    %245 = vector.load %arg11[%c16_129, %c0_130] : memref<640x32xbf16, #tpu.memory_space<vmem>>, vector<48x32xbf16>
    %c0_131 = arith.constant 0 : index
    %c32_132 = arith.constant 32 : index
    %246 = vector.load %arg12[%c0_131, %c32_132] : memref<528x256xbf16, #tpu.memory_space<vmem>>, vector<48x32xbf16>
    tpu.vector_store %arg12[%c0_131, %c32_132], %245 {strides = array<i32>} : memref<528x256xbf16, #tpu.memory_space<vmem>>, vector<48x32xbf16>,
    %c64_133 = arith.constant 64 : index
    %c0_134 = arith.constant 0 : index
    %247 = vector.load %arg11[%c64_133, %c0_134] : memref<640x32xbf16, #tpu.memory_space<vmem>>, vector<48x32xbf16>
    %c48_135 = arith.constant 48 : index
    %c32_136 = arith.constant 32 : index
    %248 = vector.load %arg12[%c48_135, %c32_136] : memref<528x256xbf16, #tpu.memory_space<vmem>>, vector<48x32xbf16>
    tpu.vector_store %arg12[%c48_135, %c32_136], %247 {strides = array<i32>} : memref<528x256xbf16, #tpu.memory_space<vmem>>, vector<48x32xbf16>,
    %c112_137 = arith.constant 112 : index
    %c0_138 = arith.constant 0 : index
    %249 = vector.load %arg11[%c112_137, %c0_138] : memref<640x32xbf16, #tpu.memory_space<vmem>>, vector<48x32xbf16>
    %c96_139 = arith.constant 96 : index
    %c32_140 = arith.constant 32 : index
    %250 = vector.load %arg12[%c96_139, %c32_140] : memref<528x256xbf16, #tpu.memory_space<vmem>>, vector<48x32xbf16>
    tpu.vector_store %arg12[%c96_139, %c32_140], %249 {strides = array<i32>} : memref<528x256xbf16, #tpu.memory_space<vmem>>, vector<48x32xbf16>,
    %c160_141 = arith.constant 160 : index
    %c0_142 = arith.constant 0 : index
    %251 = vector.load %arg11[%c160_141, %c0_142] : memref<640x32xbf16, #tpu.memory_space<vmem>>, vector<48x32xbf16>
    %c144_143 = arith.constant 144 : index
    %c32_144 = arith.constant 32 : index
    %252 = vector.load %arg12[%c144_143, %c32_144] : memref<528x256xbf16, #tpu.memory_space<vmem>>, vector<48x32xbf16>
    tpu.vector_store %arg12[%c144_143, %c32_144], %251 {strides = array<i32>} : memref<528x256xbf16, #tpu.memory_space<vmem>>, vector<48x32xbf16>,
    %c208_145 = arith.constant 208 : index
    %c0_146 = arith.constant 0 : index
    %253 = vector.load %arg11[%c208_145, %c0_146] : memref<640x32xbf16, #tpu.memory_space<vmem>>, vector<48x32xbf16>
    %c192_147 = arith.constant 192 : index
    %c32_148 = arith.constant 32 : index
    %254 = vector.load %arg12[%c192_147, %c32_148] : memref<528x256xbf16, #tpu.memory_space<vmem>>, vector<48x32xbf16>
    tpu.vector_store %arg12[%c192_147, %c32_148], %253 {strides = array<i32>} : memref<528x256xbf16, #tpu.memory_space<vmem>>, vector<48x32xbf16>,
    %c256_149 = arith.constant 256 : index
    %c0_150 = arith.constant 0 : index
    %255 = vector.load %arg11[%c256_149, %c0_150] : memref<640x32xbf16, #tpu.memory_space<vmem>>, vector<48x32xbf16>
    %c240_151 = arith.constant 240 : index
    %c32_152 = arith.constant 32 : index
    %256 = vector.load %arg12[%c240_151, %c32_152] : memref<528x256xbf16, #tpu.memory_space<vmem>>, vector<48x32xbf16>
    tpu.vector_store %arg12[%c240_151, %c32_152], %255 {strides = array<i32>} : memref<528x256xbf16, #tpu.memory_space<vmem>>, vector<48x32xbf16>,
    %c304_153 = arith.constant 304 : index
    %c0_154 = arith.constant 0 : index
    %257 = vector.load %arg11[%c304_153, %c0_154] : memref<640x32xbf16, #tpu.memory_space<vmem>>, vector<48x32xbf16>
    %c288_155 = arith.constant 288 : index
    %c32_156 = arith.constant 32 : index
    %258 = vector.load %arg12[%c288_155, %c32_156] : memref<528x256xbf16, #tpu.memory_space<vmem>>, vector<48x32xbf16>
    tpu.vector_store %arg12[%c288_155, %c32_156], %257 {strides = array<i32>} : memref<528x256xbf16, #tpu.memory_space<vmem>>, vector<48x32xbf16>,
    %c352_157 = arith.constant 352 : index
    %c0_158 = arith.constant 0 : index
    %259 = vector.load %arg11[%c352_157, %c0_158] : memref<640x32xbf16, #tpu.memory_space<vmem>>, vector<48x32xbf16>
    %c336_159 = arith.constant 336 : index
    %c32_160 = arith.constant 32 : index
    %260 = vector.load %arg12[%c336_159, %c32_160] : memref<528x256xbf16, #tpu.memory_space<vmem>>, vector<48x32xbf16>
    tpu.vector_store %arg12[%c336_159, %c32_160], %259 {strides = array<i32>} : memref<528x256xbf16, #tpu.memory_space<vmem>>, vector<48x32xbf16>,
    %c400_161 = arith.constant 400 : index
    %c0_162 = arith.constant 0 : index
    %261 = vector.load %arg11[%c400_161, %c0_162] : memref<640x32xbf16, #tpu.memory_space<vmem>>, vector<48x32xbf16>
    %c384_163 = arith.constant 384 : index
    %c32_164 = arith.constant 32 : index
    %262 = vector.load %arg12[%c384_163, %c32_164] : memref<528x256xbf16, #tpu.memory_space<vmem>>, vector<48x32xbf16>
    tpu.vector_store %arg12[%c384_163, %c32_164], %261 {strides = array<i32>} : memref<528x256xbf16, #tpu.memory_space<vmem>>, vector<48x32xbf16>,
    %c448_165 = arith.constant 448 : index
    %c0_166 = arith.constant 0 : index
    %263 = vector.load %arg11[%c448_165, %c0_166] : memref<640x32xbf16, #tpu.memory_space<vmem>>, vector<48x32xbf16>
    %c432_167 = arith.constant 432 : index
    %c32_168 = arith.constant 32 : index
    %264 = vector.load %arg12[%c432_167, %c32_168] : memref<528x256xbf16, #tpu.memory_space<vmem>>, vector<48x32xbf16>
    tpu.vector_store %arg12[%c432_167, %c32_168], %263 {strides = array<i32>} : memref<528x256xbf16, #tpu.memory_space<vmem>>, vector<48x32xbf16>,
    %c496_169 = arith.constant 496 : index
    %c0_170 = arith.constant 0 : index
    %265 = vector.load %arg11[%c496_169, %c0_170] : memref<640x32xbf16, #tpu.memory_space<vmem>>, vector<48x32xbf16>
    %c480_171 = arith.constant 480 : index
    %c32_172 = arith.constant 32 : index
    %266 = vector.load %arg12[%c480_171, %c32_172] : memref<528x256xbf16, #tpu.memory_space<vmem>>, vector<48x32xbf16>
    tpu.vector_store %arg12[%c480_171, %c32_172], %265 {strides = array<i32>} : memref<528x256xbf16, #tpu.memory_space<vmem>>, vector<48x32xbf16>,
    %c32_173 = arith.constant 32 : index
    %c0_174 = arith.constant 0 : index
    %267 = vector.load %arg11[%c32_173, %c0_174] : memref<640x32xbf16, #tpu.memory_space<vmem>>, vector<48x32xbf16>
    %c0_175 = arith.constant 0 : index
    %c64_176 = arith.constant 64 : index
    %268 = vector.load %arg12[%c0_175, %c64_176] : memref<528x256xbf16, #tpu.memory_space<vmem>>, vector<48x32xbf16>
    tpu.vector_store %arg12[%c0_175, %c64_176], %267 {strides = array<i32>} : memref<528x256xbf16, #tpu.memory_space<vmem>>, vector<48x32xbf16>,
    %c80_177 = arith.constant 80 : index
    %c0_178 = arith.constant 0 : index
    %269 = vector.load %arg11[%c80_177, %c0_178] : memref<640x32xbf16, #tpu.memory_space<vmem>>, vector<48x32xbf16>
    %c48_179 = arith.constant 48 : index
    %c64_180 = arith.constant 64 : index
    %270 = vector.load %arg12[%c48_179, %c64_180] : memref<528x256xbf16, #tpu.memory_space<vmem>>, vector<48x32xbf16>
    tpu.vector_store %arg12[%c48_179, %c64_180], %269 {strides = array<i32>} : memref<528x256xbf16, #tpu.memory_space<vmem>>, vector<48x32xbf16>,
    %c128_181 = arith.constant 128 : index
    %c0_182 = arith.constant 0 : index
    %271 = vector.load %arg11[%c128_181, %c0_182] : memref<640x32xbf16, #tpu.memory_space<vmem>>, vector<48x32xbf16>
    %c96_183 = arith.constant 96 : index
    %c64_184 = arith.constant 64 : index
    %272 = vector.load %arg12[%c96_183, %c64_184] : memref<528x256xbf16, #tpu.memory_space<vmem>>, vector<48x32xbf16>
    tpu.vector_store %arg12[%c96_183, %c64_184], %271 {strides = array<i32>} : memref<528x256xbf16, #tpu.memory_space<vmem>>, vector<48x32xbf16>,
    %c176_185 = arith.constant 176 : index
    %c0_186 = arith.constant 0 : index
    %273 = vector.load %arg11[%c176_185, %c0_186] : memref<640x32xbf16, #tpu.memory_space<vmem>>, vector<48x32xbf16>
    %c144_187 = arith.constant 144 : index
    %c64_188 = arith.constant 64 : index
    %274 = vector.load %arg12[%c144_187, %c64_188] : memref<528x256xbf16, #tpu.memory_space<vmem>>, vector<48x32xbf16>
    tpu.vector_store %arg12[%c144_187, %c64_188], %273 {strides = array<i32>} : memref<528x256xbf16, #tpu.memory_space<vmem>>, vector<48x32xbf16>,
    %c224_189 = arith.constant 224 : index
    %c0_190 = arith.constant 0 : index
    %275 = vector.load %arg11[%c224_189, %c0_190] : memref<640x32xbf16, #tpu.memory_space<vmem>>, vector<48x32xbf16>
    %c192_191 = arith.constant 192 : index
    %c64_192 = arith.constant 64 : index
    %276 = vector.load %arg12[%c192_191, %c64_192] : memref<528x256xbf16, #tpu.memory_space<vmem>>, vector<48x32xbf16>
    tpu.vector_store %arg12[%c192_191, %c64_192], %275 {strides = array<i32>} : memref<528x256xbf16, #tpu.memory_space<vmem>>, vector<48x32xbf16>,
    %c272_193 = arith.constant 272 : index
    %c0_194 = arith.constant 0 : index
    %277 = vector.load %arg11[%c272_193, %c0_194] : memref<640x32xbf16, #tpu.memory_space<vmem>>, vector<48x32xbf16>
    %c240_195 = arith.constant 240 : index
    %c64_196 = arith.constant 64 : index
    %278 = vector.load %arg12[%c240_195, %c64_196] : memref<528x256xbf16, #tpu.memory_space<vmem>>, vector<48x32xbf16>
    tpu.vector_store %arg12[%c240_195, %c64_196], %277 {strides = array<i32>} : memref<528x256xbf16, #tpu.memory_space<vmem>>, vector<48x32xbf16>,
    %c320_197 = arith.constant 320 : index
    %c0_198 = arith.constant 0 : index
    %279 = vector.load %arg11[%c320_197, %c0_198] : memref<640x32xbf16, #tpu.memory_space<vmem>>, vector<48x32xbf16>
    %c288_199 = arith.constant 288 : index
    %c64_200 = arith.constant 64 : index
    %280 = vector.load %arg12[%c288_199, %c64_200] : memref<528x256xbf16, #tpu.memory_space<vmem>>, vector<48x32xbf16>
    tpu.vector_store %arg12[%c288_199, %c64_200], %279 {strides = array<i32>} : memref<528x256xbf16, #tpu.memory_space<vmem>>, vector<48x32xbf16>,
    %c368_201 = arith.constant 368 : index
    %c0_202 = arith.constant 0 : index
    %281 = vector.load %arg11[%c368_201, %c0_202] : memref<640x32xbf16, #tpu.memory_space<vmem>>, vector<48x32xbf16>
    %c336_203 = arith.constant 336 : index
    %c64_204 = arith.constant 64 : index
    %282 = vector.load %arg12[%c336_203, %c64_204] : memref<528x256xbf16, #tpu.memory_space<vmem>>, vector<48x32xbf16>
    tpu.vector_store %arg12[%c336_203, %c64_204], %281 {strides = array<i32>} : memref<528x256xbf16, #tpu.memory_space<vmem>>, vector<48x32xbf16>,
    %c416_205 = arith.constant 416 : index
    %c0_206 = arith.constant 0 : index
    %283 = vector.load %arg11[%c416_205, %c0_206] : memref<640x32xbf16, #tpu.memory_space<vmem>>, vector<48x32xbf16>
    %c384_207 = arith.constant 384 : index
    %c64_208 = arith.constant 64 : index
    %284 = vector.load %arg12[%c384_207, %c64_208] : memref<528x256xbf16, #tpu.memory_space<vmem>>, vector<48x32xbf16>
    tpu.vector_store %arg12[%c384_207, %c64_208], %283 {strides = array<i32>} : memref<528x256xbf16, #tpu.memory_space<vmem>>, vector<48x32xbf16>,
    %c464_209 = arith.constant 464 : index
    %c0_210 = arith.constant 0 : index
    %285 = vector.load %arg11[%c464_209, %c0_210] : memref<640x32xbf16, #tpu.memory_space<vmem>>, vector<48x32xbf16>
    %c432_211 = arith.constant 432 : index
    %c64_212 = arith.constant 64 : index
    %286 = vector.load %arg12[%c432_211, %c64_212] : memref<528x256xbf16, #tpu.memory_space<vmem>>, vector<48x32xbf16>
    tpu.vector_store %arg12[%c432_211, %c64_212], %285 {strides = array<i32>} : memref<528x256xbf16, #tpu.memory_space<vmem>>, vector<48x32xbf16>,
    %c512_213 = arith.constant 512 : index
    %c0_214 = arith.constant 0 : index
    %287 = vector.load %arg11[%c512_213, %c0_214] : memref<640x32xbf16, #tpu.memory_space<vmem>>, vector<48x32xbf16>
    %c480_215 = arith.constant 480 : index
    %c64_216 = arith.constant 64 : index
    %288 = vector.load %arg12[%c480_215, %c64_216] : memref<528x256xbf16, #tpu.memory_space<vmem>>, vector<48x32xbf16>
    tpu.vector_store %arg12[%c480_215, %c64_216], %287 {strides = array<i32>} : memref<528x256xbf16, #tpu.memory_space<vmem>>, vector<48x32xbf16>,
    %c48_217 = arith.constant 48 : index
    %c0_218 = arith.constant 0 : index
    %289 = vector.load %arg11[%c48_217, %c0_218] : memref<640x32xbf16, #tpu.memory_space<vmem>>, vector<48x32xbf16>
    %c0_219 = arith.constant 0 : index
    %c96_220 = arith.constant 96 : index
    %290 = vector.load %arg12[%c0_219, %c96_220] : memref<528x256xbf16, #tpu.memory_space<vmem>>, vector<48x32xbf16>
    tpu.vector_store %arg12[%c0_219, %c96_220], %289 {strides = array<i32>} : memref<528x256xbf16, #tpu.memory_space<vmem>>, vector<48x32xbf16>,
    %c96_221 = arith.constant 96 : index
    %c0_222 = arith.constant 0 : index
    %291 = vector.load %arg11[%c96_221, %c0_222] : memref<640x32xbf16, #tpu.memory_space<vmem>>, vector<48x32xbf16>
    %c48_223 = arith.constant 48 : index
    %c96_224 = arith.constant 96 : index
    %292 = vector.load %arg12[%c48_223, %c96_224] : memref<528x256xbf16, #tpu.memory_space<vmem>>, vector<48x32xbf16>
    tpu.vector_store %arg12[%c48_223, %c96_224], %291 {strides = array<i32>} : memref<528x256xbf16, #tpu.memory_space<vmem>>, vector<48x32xbf16>,
    %c144_225 = arith.constant 144 : index
    %c0_226 = arith.constant 0 : index
    %293 = vector.load %arg11[%c144_225, %c0_226] : memref<640x32xbf16, #tpu.memory_space<vmem>>, vector<48x32xbf16>
    %c96_227 = arith.constant 96 : index
    %c96_228 = arith.constant 96 : index
    %294 = vector.load %arg12[%c96_227, %c96_228] : memref<528x256xbf16, #tpu.memory_space<vmem>>, vector<48x32xbf16>
    tpu.vector_store %arg12[%c96_227, %c96_228], %293 {strides = array<i32>} : memref<528x256xbf16, #tpu.memory_space<vmem>>, vector<48x32xbf16>,
    %c192_229 = arith.constant 192 : index
    %c0_230 = arith.constant 0 : index
    %295 = vector.load %arg11[%c192_229, %c0_230] : memref<640x32xbf16, #tpu.memory_space<vmem>>, vector<48x32xbf16>
    %c144_231 = arith.constant 144 : index
    %c96_232 = arith.constant 96 : index
    %296 = vector.load %arg12[%c144_231, %c96_232] : memref<528x256xbf16, #tpu.memory_space<vmem>>, vector<48x32xbf16>
    tpu.vector_store %arg12[%c144_231, %c96_232], %295 {strides = array<i32>} : memref<528x256xbf16, #tpu.memory_space<vmem>>, vector<48x32xbf16>,
    %c240_233 = arith.constant 240 : index
    %c0_234 = arith.constant 0 : index
    %297 = vector.load %arg11[%c240_233, %c0_234] : memref<640x32xbf16, #tpu.memory_space<vmem>>, vector<48x32xbf16>
    %c192_235 = arith.constant 192 : index
    %c96_236 = arith.constant 96 : index
    %298 = vector.load %arg12[%c192_235, %c96_236] : memref<528x256xbf16, #tpu.memory_space<vmem>>, vector<48x32xbf16>
    tpu.vector_store %arg12[%c192_235, %c96_236], %297 {strides = array<i32>} : memref<528x256xbf16, #tpu.memory_space<vmem>>, vector<48x32xbf16>,
    %c288_237 = arith.constant 288 : index
    %c0_238 = arith.constant 0 : index
    %299 = vector.load %arg11[%c288_237, %c0_238] : memref<640x32xbf16, #tpu.memory_space<vmem>>, vector<48x32xbf16>
    %c240_239 = arith.constant 240 : index
    %c96_240 = arith.constant 96 : index
    %300 = vector.load %arg12[%c240_239, %c96_240] : memref<528x256xbf16, #tpu.memory_space<vmem>>, vector<48x32xbf16>
    tpu.vector_store %arg12[%c240_239, %c96_240], %299 {strides = array<i32>} : memref<528x256xbf16, #tpu.memory_space<vmem>>, vector<48x32xbf16>,
    %c336_241 = arith.constant 336 : index
    %c0_242 = arith.constant 0 : index
    %301 = vector.load %arg11[%c336_241, %c0_242] : memref<640x32xbf16, #tpu.memory_space<vmem>>, vector<48x32xbf16>
    %c288_243 = arith.constant 288 : index
    %c96_244 = arith.constant 96 : index
    %302 = vector.load %arg12[%c288_243, %c96_244] : memref<528x256xbf16, #tpu.memory_space<vmem>>, vector<48x32xbf16>
    tpu.vector_store %arg12[%c288_243, %c96_244], %301 {strides = array<i32>} : memref<528x256xbf16, #tpu.memory_space<vmem>>, vector<48x32xbf16>,
    %c384_245 = arith.constant 384 : index
    %c0_246 = arith.constant 0 : index
    %303 = vector.load %arg11[%c384_245, %c0_246] : memref<640x32xbf16, #tpu.memory_space<vmem>>, vector<48x32xbf16>
    %c336_247 = arith.constant 336 : index
    %c96_248 = arith.constant 96 : index
    %304 = vector.load %arg12[%c336_247, %c96_248] : memref<528x256xbf16, #tpu.memory_space<vmem>>, vector<48x32xbf16>
    tpu.vector_store %arg12[%c336_247, %c96_248], %303 {strides = array<i32>} : memref<528x256xbf16, #tpu.memory_space<vmem>>, vector<48x32xbf16>,
    %c432_249 = arith.constant 432 : index
    %c0_250 = arith.constant 0 : index
    %305 = vector.load %arg11[%c432_249, %c0_250] : memref<640x32xbf16, #tpu.memory_space<vmem>>, vector<48x32xbf16>
    %c384_251 = arith.constant 384 : index
    %c96_252 = arith.constant 96 : index
    %306 = vector.load %arg12[%c384_251, %c96_252] : memref<528x256xbf16, #tpu.memory_space<vmem>>, vector<48x32xbf16>
    tpu.vector_store %arg12[%c384_251, %c96_252], %305 {strides = array<i32>} : memref<528x256xbf16, #tpu.memory_space<vmem>>, vector<48x32xbf16>,
    %c480_253 = arith.constant 480 : index
    %c0_254 = arith.constant 0 : index
    %307 = vector.load %arg11[%c480_253, %c0_254] : memref<640x32xbf16, #tpu.memory_space<vmem>>, vector<48x32xbf16>
    %c432_255 = arith.constant 432 : index
    %c96_256 = arith.constant 96 : index
    %308 = vector.load %arg12[%c432_255, %c96_256] : memref<528x256xbf16, #tpu.memory_space<vmem>>, vector<48x32xbf16>
    tpu.vector_store %arg12[%c432_255, %c96_256], %307 {strides = array<i32>} : memref<528x256xbf16, #tpu.memory_space<vmem>>, vector<48x32xbf16>,
    %c528_257 = arith.constant 528 : index
    %c0_258 = arith.constant 0 : index
    %309 = vector.load %arg11[%c528_257, %c0_258] : memref<640x32xbf16, #tpu.memory_space<vmem>>, vector<48x32xbf16>
    %c480_259 = arith.constant 480 : index
    %c96_260 = arith.constant 96 : index
    %310 = vector.load %arg12[%c480_259, %c96_260] : memref<528x256xbf16, #tpu.memory_space<vmem>>, vector<48x32xbf16>
    tpu.vector_store %arg12[%c480_259, %c96_260], %309 {strides = array<i32>} : memref<528x256xbf16, #tpu.memory_space<vmem>>, vector<48x32xbf16>,
    %c64_261 = arith.constant 64 : index
    %c0_262 = arith.constant 0 : index
    %311 = vector.load %arg11[%c64_261, %c0_262] : memref<640x32xbf16, #tpu.memory_space<vmem>>, vector<48x32xbf16>
    %c0_263 = arith.constant 0 : index
    %c128_264 = arith.constant 128 : index
    %312 = vector.load %arg12[%c0_263, %c128_264] : memref<528x256xbf16, #tpu.memory_space<vmem>>, vector<48x32xbf16>
    tpu.vector_store %arg12[%c0_263, %c128_264], %311 {strides = array<i32>} : memref<528x256xbf16, #tpu.memory_space<vmem>>, vector<48x32xbf16>,
    %c112_265 = arith.constant 112 : index
    %c0_266 = arith.constant 0 : index
    %313 = vector.load %arg11[%c112_265, %c0_266] : memref<640x32xbf16, #tpu.memory_space<vmem>>, vector<48x32xbf16>
    %c48_267 = arith.constant 48 : index
    %c128_268 = arith.constant 128 : index
    %314 = vector.load %arg12[%c48_267, %c128_268] : memref<528x256xbf16, #tpu.memory_space<vmem>>, vector<48x32xbf16>
    tpu.vector_store %arg12[%c48_267, %c128_268], %313 {strides = array<i32>} : memref<528x256xbf16, #tpu.memory_space<vmem>>, vector<48x32xbf16>,
    %c160_269 = arith.constant 160 : index
    %c0_270 = arith.constant 0 : index
    %315 = vector.load %arg11[%c160_269, %c0_270] : memref<640x32xbf16, #tpu.memory_space<vmem>>, vector<48x32xbf16>
    %c96_271 = arith.constant 96 : index
    %c128_272 = arith.constant 128 : index
    %316 = vector.load %arg12[%c96_271, %c128_272] : memref<528x256xbf16, #tpu.memory_space<vmem>>, vector<48x32xbf16>
    tpu.vector_store %arg12[%c96_271, %c128_272], %315 {strides = array<i32>} : memref<528x256xbf16, #tpu.memory_space<vmem>>, vector<48x32xbf16>,
    %c208_273 = arith.constant 208 : index
    %c0_274 = arith.constant 0 : index
    %317 = vector.load %arg11[%c208_273, %c0_274] : memref<640x32xbf16, #tpu.memory_space<vmem>>, vector<48x32xbf16>
    %c144_275 = arith.constant 144 : index
    %c128_276 = arith.constant 128 : index
    %318 = vector.load %arg12[%c144_275, %c128_276] : memref<528x256xbf16, #tpu.memory_space<vmem>>, vector<48x32xbf16>
    tpu.vector_store %arg12[%c144_275, %c128_276], %317 {strides = array<i32>} : memref<528x256xbf16, #tpu.memory_space<vmem>>, vector<48x32xbf16>,
    %c256_277 = arith.constant 256 : index
    %c0_278 = arith.constant 0 : index
    %319 = vector.load %arg11[%c256_277, %c0_278] : memref<640x32xbf16, #tpu.memory_space<vmem>>, vector<48x32xbf16>
    %c192_279 = arith.constant 192 : index
    %c128_280 = arith.constant 128 : index
    %320 = vector.load %arg12[%c192_279, %c128_280] : memref<528x256xbf16, #tpu.memory_space<vmem>>, vector<48x32xbf16>
    tpu.vector_store %arg12[%c192_279, %c128_280], %319 {strides = array<i32>} : memref<528x256xbf16, #tpu.memory_space<vmem>>, vector<48x32xbf16>,
    %c304_281 = arith.constant 304 : index
    %c0_282 = arith.constant 0 : index
    %321 = vector.load %arg11[%c304_281, %c0_282] : memref<640x32xbf16, #tpu.memory_space<vmem>>, vector<48x32xbf16>
    %c240_283 = arith.constant 240 : index
    %c128_284 = arith.constant 128 : index
    %322 = vector.load %arg12[%c240_283, %c128_284] : memref<528x256xbf16, #tpu.memory_space<vmem>>, vector<48x32xbf16>
    tpu.vector_store %arg12[%c240_283, %c128_284], %321 {strides = array<i32>} : memref<528x256xbf16, #tpu.memory_space<vmem>>, vector<48x32xbf16>,
    %c352_285 = arith.constant 352 : index
    %c0_286 = arith.constant 0 : index
    %323 = vector.load %arg11[%c352_285, %c0_286] : memref<640x32xbf16, #tpu.memory_space<vmem>>, vector<48x32xbf16>
    %c288_287 = arith.constant 288 : index
    %c128_288 = arith.constant 128 : index
    %324 = vector.load %arg12[%c288_287, %c128_288] : memref<528x256xbf16, #tpu.memory_space<vmem>>, vector<48x32xbf16>
    tpu.vector_store %arg12[%c288_287, %c128_288], %323 {strides = array<i32>} : memref<528x256xbf16, #tpu.memory_space<vmem>>, vector<48x32xbf16>,
    %c400_289 = arith.constant 400 : index
    %c0_290 = arith.constant 0 : index
    %325 = vector.load %arg11[%c400_289, %c0_290] : memref<640x32xbf16, #tpu.memory_space<vmem>>, vector<48x32xbf16>
    %c336_291 = arith.constant 336 : index
    %c128_292 = arith.constant 128 : index
    %326 = vector.load %arg12[%c336_291, %c128_292] : memref<528x256xbf16, #tpu.memory_space<vmem>>, vector<48x32xbf16>
    tpu.vector_store %arg12[%c336_291, %c128_292], %325 {strides = array<i32>} : memref<528x256xbf16, #tpu.memory_space<vmem>>, vector<48x32xbf16>,
    %c448_293 = arith.constant 448 : index
    %c0_294 = arith.constant 0 : index
    %327 = vector.load %arg11[%c448_293, %c0_294] : memref<640x32xbf16, #tpu.memory_space<vmem>>, vector<48x32xbf16>
    %c384_295 = arith.constant 384 : index
    %c128_296 = arith.constant 128 : index
    %328 = vector.load %arg12[%c384_295, %c128_296] : memref<528x256xbf16, #tpu.memory_space<vmem>>, vector<48x32xbf16>
    tpu.vector_store %arg12[%c384_295, %c128_296], %327 {strides = array<i32>} : memref<528x256xbf16, #tpu.memory_space<vmem>>, vector<48x32xbf16>,
    %c496_297 = arith.constant 496 : index
    %c0_298 = arith.constant 0 : index
    %329 = vector.load %arg11[%c496_297, %c0_298] : memref<640x32xbf16, #tpu.memory_space<vmem>>, vector<48x32xbf16>
    %c432_299 = arith.constant 432 : index
    %c128_300 = arith.constant 128 : index
    %330 = vector.load %arg12[%c432_299, %c128_300] : memref<528x256xbf16, #tpu.memory_space<vmem>>, vector<48x32xbf16>
    tpu.vector_store %arg12[%c432_299, %c128_300], %329 {strides = array<i32>} : memref<528x256xbf16, #tpu.memory_space<vmem>>, vector<48x32xbf16>,
    %c544_301 = arith.constant 544 : index
    %c0_302 = arith.constant 0 : index
    %331 = vector.load %arg11[%c544_301, %c0_302] : memref<640x32xbf16, #tpu.memory_space<vmem>>, vector<48x32xbf16>
    %c480_303 = arith.constant 480 : index
    %c128_304 = arith.constant 128 : index
    %332 = vector.load %arg12[%c480_303, %c128_304] : memref<528x256xbf16, #tpu.memory_space<vmem>>, vector<48x32xbf16>
    tpu.vector_store %arg12[%c480_303, %c128_304], %331 {strides = array<i32>} : memref<528x256xbf16, #tpu.memory_space<vmem>>, vector<48x32xbf16>,
    %c80_305 = arith.constant 80 : index
    %c0_306 = arith.constant 0 : index
    %333 = vector.load %arg11[%c80_305, %c0_306] : memref<640x32xbf16, #tpu.memory_space<vmem>>, vector<48x32xbf16>
    %c0_307 = arith.constant 0 : index
    %c160_308 = arith.constant 160 : index
    %334 = vector.load %arg12[%c0_307, %c160_308] : memref<528x256xbf16, #tpu.memory_space<vmem>>, vector<48x32xbf16>
    tpu.vector_store %arg12[%c0_307, %c160_308], %333 {strides = array<i32>} : memref<528x256xbf16, #tpu.memory_space<vmem>>, vector<48x32xbf16>,
    %c128_309 = arith.constant 128 : index
    %c0_310 = arith.constant 0 : index
    %335 = vector.load %arg11[%c128_309, %c0_310] : memref<640x32xbf16, #tpu.memory_space<vmem>>, vector<48x32xbf16>
    %c48_311 = arith.constant 48 : index
    %c160_312 = arith.constant 160 : index
    %336 = vector.load %arg12[%c48_311, %c160_312] : memref<528x256xbf16, #tpu.memory_space<vmem>>, vector<48x32xbf16>
    tpu.vector_store %arg12[%c48_311, %c160_312], %335 {strides = array<i32>} : memref<528x256xbf16, #tpu.memory_space<vmem>>, vector<48x32xbf16>,
    %c176_313 = arith.constant 176 : index
    %c0_314 = arith.constant 0 : index
    %337 = vector.load %arg11[%c176_313, %c0_314] : memref<640x32xbf16, #tpu.memory_space<vmem>>, vector<48x32xbf16>
    %c96_315 = arith.constant 96 : index
    %c160_316 = arith.constant 160 : index
    %338 = vector.load %arg12[%c96_315, %c160_316] : memref<528x256xbf16, #tpu.memory_space<vmem>>, vector<48x32xbf16>
    tpu.vector_store %arg12[%c96_315, %c160_316], %337 {strides = array<i32>} : memref<528x256xbf16, #tpu.memory_space<vmem>>, vector<48x32xbf16>,
    %c224_317 = arith.constant 224 : index
    %c0_318 = arith.constant 0 : index
    %339 = vector.load %arg11[%c224_317, %c0_318] : memref<640x32xbf16, #tpu.memory_space<vmem>>, vector<48x32xbf16>
    %c144_319 = arith.constant 144 : index
    %c160_320 = arith.constant 160 : index
    %340 = vector.load %arg12[%c144_319, %c160_320] : memref<528x256xbf16, #tpu.memory_space<vmem>>, vector<48x32xbf16>
    tpu.vector_store %arg12[%c144_319, %c160_320], %339 {strides = array<i32>} : memref<528x256xbf16, #tpu.memory_space<vmem>>, vector<48x32xbf16>,
    %c272_321 = arith.constant 272 : index
    %c0_322 = arith.constant 0 : index
    %341 = vector.load %arg11[%c272_321, %c0_322] : memref<640x32xbf16, #tpu.memory_space<vmem>>, vector<48x32xbf16>
    %c192_323 = arith.constant 192 : index
    %c160_324 = arith.constant 160 : index
    %342 = vector.load %arg12[%c192_323, %c160_324] : memref<528x256xbf16, #tpu.memory_space<vmem>>, vector<48x32xbf16>
    tpu.vector_store %arg12[%c192_323, %c160_324], %341 {strides = array<i32>} : memref<528x256xbf16, #tpu.memory_space<vmem>>, vector<48x32xbf16>,
    %c320_325 = arith.constant 320 : index
    %c0_326 = arith.constant 0 : index
    %343 = vector.load %arg11[%c320_325, %c0_326] : memref<640x32xbf16, #tpu.memory_space<vmem>>, vector<48x32xbf16>
    %c240_327 = arith.constant 240 : index
    %c160_328 = arith.constant 160 : index
    %344 = vector.load %arg12[%c240_327, %c160_328] : memref<528x256xbf16, #tpu.memory_space<vmem>>, vector<48x32xbf16>
    tpu.vector_store %arg12[%c240_327, %c160_328], %343 {strides = array<i32>} : memref<528x256xbf16, #tpu.memory_space<vmem>>, vector<48x32xbf16>,
    %c368_329 = arith.constant 368 : index
    %c0_330 = arith.constant 0 : index
    %345 = vector.load %arg11[%c368_329, %c0_330] : memref<640x32xbf16, #tpu.memory_space<vmem>>, vector<48x32xbf16>
    %c288_331 = arith.constant 288 : index
    %c160_332 = arith.constant 160 : index
    %346 = vector.load %arg12[%c288_331, %c160_332] : memref<528x256xbf16, #tpu.memory_space<vmem>>, vector<48x32xbf16>
    tpu.vector_store %arg12[%c288_331, %c160_332], %345 {strides = array<i32>} : memref<528x256xbf16, #tpu.memory_space<vmem>>, vector<48x32xbf16>,
    %c416_333 = arith.constant 416 : index
    %c0_334 = arith.constant 0 : index
    %347 = vector.load %arg11[%c416_333, %c0_334] : memref<640x32xbf16, #tpu.memory_space<vmem>>, vector<48x32xbf16>
    %c336_335 = arith.constant 336 : index
    %c160_336 = arith.constant 160 : index
    %348 = vector.load %arg12[%c336_335, %c160_336] : memref<528x256xbf16, #tpu.memory_space<vmem>>, vector<48x32xbf16>
    tpu.vector_store %arg12[%c336_335, %c160_336], %347 {strides = array<i32>} : memref<528x256xbf16, #tpu.memory_space<vmem>>, vector<48x32xbf16>,
    %c464_337 = arith.constant 464 : index
    %c0_338 = arith.constant 0 : index
    %349 = vector.load %arg11[%c464_337, %c0_338] : memref<640x32xbf16, #tpu.memory_space<vmem>>, vector<48x32xbf16>
    %c384_339 = arith.constant 384 : index
    %c160_340 = arith.constant 160 : index
    %350 = vector.load %arg12[%c384_339, %c160_340] : memref<528x256xbf16, #tpu.memory_space<vmem>>, vector<48x32xbf16>
    tpu.vector_store %arg12[%c384_339, %c160_340], %349 {strides = array<i32>} : memref<528x256xbf16, #tpu.memory_space<vmem>>, vector<48x32xbf16>,
    %c512_341 = arith.constant 512 : index
    %c0_342 = arith.constant 0 : index
    %351 = vector.load %arg11[%c512_341, %c0_342] : memref<640x32xbf16, #tpu.memory_space<vmem>>, vector<48x32xbf16>
    %c432_343 = arith.constant 432 : index
    %c160_344 = arith.constant 160 : index
    %352 = vector.load %arg12[%c432_343, %c160_344] : memref<528x256xbf16, #tpu.memory_space<vmem>>, vector<48x32xbf16>
    tpu.vector_store %arg12[%c432_343, %c160_344], %351 {strides = array<i32>} : memref<528x256xbf16, #tpu.memory_space<vmem>>, vector<48x32xbf16>,
    %c560_345 = arith.constant 560 : index
    %c0_346 = arith.constant 0 : index
    %353 = vector.load %arg11[%c560_345, %c0_346] : memref<640x32xbf16, #tpu.memory_space<vmem>>, vector<48x32xbf16>
    %c480_347 = arith.constant 480 : index
    %c160_348 = arith.constant 160 : index
    %354 = vector.load %arg12[%c480_347, %c160_348] : memref<528x256xbf16, #tpu.memory_space<vmem>>, vector<48x32xbf16>
    tpu.vector_store %arg12[%c480_347, %c160_348], %353 {strides = array<i32>} : memref<528x256xbf16, #tpu.memory_space<vmem>>, vector<48x32xbf16>,
    %c96_349 = arith.constant 96 : index
    %c0_350 = arith.constant 0 : index
    %355 = vector.load %arg11[%c96_349, %c0_350] : memref<640x32xbf16, #tpu.memory_space<vmem>>, vector<48x32xbf16>
    %c0_351 = arith.constant 0 : index
    %c192_352 = arith.constant 192 : index
    %356 = vector.load %arg12[%c0_351, %c192_352] : memref<528x256xbf16, #tpu.memory_space<vmem>>, vector<48x32xbf16>
    tpu.vector_store %arg12[%c0_351, %c192_352], %355 {strides = array<i32>} : memref<528x256xbf16, #tpu.memory_space<vmem>>, vector<48x32xbf16>,
    %c144_353 = arith.constant 144 : index
    %c0_354 = arith.constant 0 : index
    %357 = vector.load %arg11[%c144_353, %c0_354] : memref<640x32xbf16, #tpu.memory_space<vmem>>, vector<48x32xbf16>
    %c48_355 = arith.constant 48 : index
    %c192_356 = arith.constant 192 : index
    %358 = vector.load %arg12[%c48_355, %c192_356] : memref<528x256xbf16, #tpu.memory_space<vmem>>, vector<48x32xbf16>
    tpu.vector_store %arg12[%c48_355, %c192_356], %357 {strides = array<i32>} : memref<528x256xbf16, #tpu.memory_space<vmem>>, vector<48x32xbf16>,
    %c192_357 = arith.constant 192 : index
    %c0_358 = arith.constant 0 : index
    %359 = vector.load %arg11[%c192_357, %c0_358] : memref<640x32xbf16, #tpu.memory_space<vmem>>, vector<48x32xbf16>
    %c96_359 = arith.constant 96 : index
    %c192_360 = arith.constant 192 : index
    %360 = vector.load %arg12[%c96_359, %c192_360] : memref<528x256xbf16, #tpu.memory_space<vmem>>, vector<48x32xbf16>
    tpu.vector_store %arg12[%c96_359, %c192_360], %359 {strides = array<i32>} : memref<528x256xbf16, #tpu.memory_space<vmem>>, vector<48x32xbf16>,
    %c240_361 = arith.constant 240 : index
    %c0_362 = arith.constant 0 : index
    %361 = vector.load %arg11[%c240_361, %c0_362] : memref<640x32xbf16, #tpu.memory_space<vmem>>, vector<48x32xbf16>
    %c144_363 = arith.constant 144 : index
    %c192_364 = arith.constant 192 : index
    %362 = vector.load %arg12[%c144_363, %c192_364] : memref<528x256xbf16, #tpu.memory_space<vmem>>, vector<48x32xbf16>
    tpu.vector_store %arg12[%c144_363, %c192_364], %361 {strides = array<i32>} : memref<528x256xbf16, #tpu.memory_space<vmem>>, vector<48x32xbf16>,
    %c288_365 = arith.constant 288 : index
    %c0_366 = arith.constant 0 : index
    %363 = vector.load %arg11[%c288_365, %c0_366] : memref<640x32xbf16, #tpu.memory_space<vmem>>, vector<48x32xbf16>
    %c192_367 = arith.constant 192 : index
    %c192_368 = arith.constant 192 : index
    %364 = vector.load %arg12[%c192_367, %c192_368] : memref<528x256xbf16, #tpu.memory_space<vmem>>, vector<48x32xbf16>
    tpu.vector_store %arg12[%c192_367, %c192_368], %363 {strides = array<i32>} : memref<528x256xbf16, #tpu.memory_space<vmem>>, vector<48x32xbf16>,
    %c336_369 = arith.constant 336 : index
    %c0_370 = arith.constant 0 : index
    %365 = vector.load %arg11[%c336_369, %c0_370] : memref<640x32xbf16, #tpu.memory_space<vmem>>, vector<48x32xbf16>
    %c240_371 = arith.constant 240 : index
    %c192_372 = arith.constant 192 : index
    %366 = vector.load %arg12[%c240_371, %c192_372] : memref<528x256xbf16, #tpu.memory_space<vmem>>, vector<48x32xbf16>
    tpu.vector_store %arg12[%c240_371, %c192_372], %365 {strides = array<i32>} : memref<528x256xbf16, #tpu.memory_space<vmem>>, vector<48x32xbf16>,
    %c384_373 = arith.constant 384 : index
    %c0_374 = arith.constant 0 : index
    %367 = vector.load %arg11[%c384_373, %c0_374] : memref<640x32xbf16, #tpu.memory_space<vmem>>, vector<48x32xbf16>
    %c288_375 = arith.constant 288 : index
    %c192_376 = arith.constant 192 : index
    %368 = vector.load %arg12[%c288_375, %c192_376] : memref<528x256xbf16, #tpu.memory_space<vmem>>, vector<48x32xbf16>
    tpu.vector_store %arg12[%c288_375, %c192_376], %367 {strides = array<i32>} : memref<528x256xbf16, #tpu.memory_space<vmem>>, vector<48x32xbf16>,
    %c432_377 = arith.constant 432 : index
    %c0_378 = arith.constant 0 : index
    %369 = vector.load %arg11[%c432_377, %c0_378] : memref<640x32xbf16, #tpu.memory_space<vmem>>, vector<48x32xbf16>
    %c336_379 = arith.constant 336 : index
    %c192_380 = arith.constant 192 : index
    %370 = vector.load %arg12[%c336_379, %c192_380] : memref<528x256xbf16, #tpu.memory_space<vmem>>, vector<48x32xbf16>
    tpu.vector_store %arg12[%c336_379, %c192_380], %369 {strides = array<i32>} : memref<528x256xbf16, #tpu.memory_space<vmem>>, vector<48x32xbf16>,
    %c480_381 = arith.constant 480 : index
    %c0_382 = arith.constant 0 : index
    %371 = vector.load %arg11[%c480_381, %c0_382] : memref<640x32xbf16, #tpu.memory_space<vmem>>, vector<48x32xbf16>
    %c384_383 = arith.constant 384 : index
    %c192_384 = arith.constant 192 : index
    %372 = vector.load %arg12[%c384_383, %c192_384] : memref<528x256xbf16, #tpu.memory_space<vmem>>, vector<48x32xbf16>
    tpu.vector_store %arg12[%c384_383, %c192_384], %371 {strides = array<i32>} : memref<528x256xbf16, #tpu.memory_space<vmem>>, vector<48x32xbf16>,
    %c528_385 = arith.constant 528 : index
    %c0_386 = arith.constant 0 : index
    %373 = vector.load %arg11[%c528_385, %c0_386] : memref<640x32xbf16, #tpu.memory_space<vmem>>, vector<48x32xbf16>
    %c432_387 = arith.constant 432 : index
    %c192_388 = arith.constant 192 : index
    %374 = vector.load %arg12[%c432_387, %c192_388] : memref<528x256xbf16, #tpu.memory_space<vmem>>, vector<48x32xbf16>
    tpu.vector_store %arg12[%c432_387, %c192_388], %373 {strides = array<i32>} : memref<528x256xbf16, #tpu.memory_space<vmem>>, vector<48x32xbf16>,
    %c576_389 = arith.constant 576 : index
    %c0_390 = arith.constant 0 : index
    %375 = vector.load %arg11[%c576_389, %c0_390] : memref<640x32xbf16, #tpu.memory_space<vmem>>, vector<48x32xbf16>
    %c480_391 = arith.constant 480 : index
    %c192_392 = arith.constant 192 : index
    %376 = vector.load %arg12[%c480_391, %c192_392] : memref<528x256xbf16, #tpu.memory_space<vmem>>, vector<48x32xbf16>
    tpu.vector_store %arg12[%c480_391, %c192_392], %375 {strides = array<i32>} : memref<528x256xbf16, #tpu.memory_space<vmem>>, vector<48x32xbf16>,
    %c112_393 = arith.constant 112 : index
    %c0_394 = arith.constant 0 : index
    %377 = vector.load %arg11[%c112_393, %c0_394] : memref<640x32xbf16, #tpu.memory_space<vmem>>, vector<48x32xbf16>
    %c0_395 = arith.constant 0 : index
    %c224_396 = arith.constant 224 : index
    %378 = vector.load %arg12[%c0_395, %c224_396] : memref<528x256xbf16, #tpu.memory_space<vmem>>, vector<48x32xbf16>
    tpu.vector_store %arg12[%c0_395, %c224_396], %377 {strides = array<i32>} : memref<528x256xbf16, #tpu.memory_space<vmem>>, vector<48x32xbf16>,
    %c160_397 = arith.constant 160 : index
    %c0_398 = arith.constant 0 : index
    %379 = vector.load %arg11[%c160_397, %c0_398] : memref<640x32xbf16, #tpu.memory_space<vmem>>, vector<48x32xbf16>
    %c48_399 = arith.constant 48 : index
    %c224_400 = arith.constant 224 : index
    %380 = vector.load %arg12[%c48_399, %c224_400] : memref<528x256xbf16, #tpu.memory_space<vmem>>, vector<48x32xbf16>
    tpu.vector_store %arg12[%c48_399, %c224_400], %379 {strides = array<i32>} : memref<528x256xbf16, #tpu.memory_space<vmem>>, vector<48x32xbf16>,
    %c208_401 = arith.constant 208 : index
    %c0_402 = arith.constant 0 : index
    %381 = vector.load %arg11[%c208_401, %c0_402] : memref<640x32xbf16, #tpu.memory_space<vmem>>, vector<48x32xbf16>
    %c96_403 = arith.constant 96 : index
    %c224_404 = arith.constant 224 : index
    %382 = vector.load %arg12[%c96_403, %c224_404] : memref<528x256xbf16, #tpu.memory_space<vmem>>, vector<48x32xbf16>
    tpu.vector_store %arg12[%c96_403, %c224_404], %381 {strides = array<i32>} : memref<528x256xbf16, #tpu.memory_space<vmem>>, vector<48x32xbf16>,
    %c256_405 = arith.constant 256 : index
    %c0_406 = arith.constant 0 : index
    %383 = vector.load %arg11[%c256_405, %c0_406] : memref<640x32xbf16, #tpu.memory_space<vmem>>, vector<48x32xbf16>
    %c144_407 = arith.constant 144 : index
    %c224_408 = arith.constant 224 : index
    %384 = vector.load %arg12[%c144_407, %c224_408] : memref<528x256xbf16, #tpu.memory_space<vmem>>, vector<48x32xbf16>
    tpu.vector_store %arg12[%c144_407, %c224_408], %383 {strides = array<i32>} : memref<528x256xbf16, #tpu.memory_space<vmem>>, vector<48x32xbf16>,
    %c304_409 = arith.constant 304 : index
    %c0_410 = arith.constant 0 : index
    %385 = vector.load %arg11[%c304_409, %c0_410] : memref<640x32xbf16, #tpu.memory_space<vmem>>, vector<48x32xbf16>
    %c192_411 = arith.constant 192 : index
    %c224_412 = arith.constant 224 : index
    %386 = vector.load %arg12[%c192_411, %c224_412] : memref<528x256xbf16, #tpu.memory_space<vmem>>, vector<48x32xbf16>
    tpu.vector_store %arg12[%c192_411, %c224_412], %385 {strides = array<i32>} : memref<528x256xbf16, #tpu.memory_space<vmem>>, vector<48x32xbf16>,
    %c352_413 = arith.constant 352 : index
    %c0_414 = arith.constant 0 : index
    %387 = vector.load %arg11[%c352_413, %c0_414] : memref<640x32xbf16, #tpu.memory_space<vmem>>, vector<48x32xbf16>
    %c240_415 = arith.constant 240 : index
    %c224_416 = arith.constant 224 : index
    %388 = vector.load %arg12[%c240_415, %c224_416] : memref<528x256xbf16, #tpu.memory_space<vmem>>, vector<48x32xbf16>
    tpu.vector_store %arg12[%c240_415, %c224_416], %387 {strides = array<i32>} : memref<528x256xbf16, #tpu.memory_space<vmem>>, vector<48x32xbf16>,
    %c400_417 = arith.constant 400 : index
    %c0_418 = arith.constant 0 : index
    %389 = vector.load %arg11[%c400_417, %c0_418] : memref<640x32xbf16, #tpu.memory_space<vmem>>, vector<48x32xbf16>
    %c288_419 = arith.constant 288 : index
    %c224_420 = arith.constant 224 : index
    %390 = vector.load %arg12[%c288_419, %c224_420] : memref<528x256xbf16, #tpu.memory_space<vmem>>, vector<48x32xbf16>
    tpu.vector_store %arg12[%c288_419, %c224_420], %389 {strides = array<i32>} : memref<528x256xbf16, #tpu.memory_space<vmem>>, vector<48x32xbf16>,
    %c448_421 = arith.constant 448 : index
    %c0_422 = arith.constant 0 : index
    %391 = vector.load %arg11[%c448_421, %c0_422] : memref<640x32xbf16, #tpu.memory_space<vmem>>, vector<48x32xbf16>
    %c336_423 = arith.constant 336 : index
    %c224_424 = arith.constant 224 : index
    %392 = vector.load %arg12[%c336_423, %c224_424] : memref<528x256xbf16, #tpu.memory_space<vmem>>, vector<48x32xbf16>
    tpu.vector_store %arg12[%c336_423, %c224_424], %391 {strides = array<i32>} : memref<528x256xbf16, #tpu.memory_space<vmem>>, vector<48x32xbf16>,
    %c496_425 = arith.constant 496 : index
    %c0_426 = arith.constant 0 : index
    %393 = vector.load %arg11[%c496_425, %c0_426] : memref<640x32xbf16, #tpu.memory_space<vmem>>, vector<48x32xbf16>
    %c384_427 = arith.constant 384 : index
    %c224_428 = arith.constant 224 : index
    %394 = vector.load %arg12[%c384_427, %c224_428] : memref<528x256xbf16, #tpu.memory_space<vmem>>, vector<48x32xbf16>
    tpu.vector_store %arg12[%c384_427, %c224_428], %393 {strides = array<i32>} : memref<528x256xbf16, #tpu.memory_space<vmem>>, vector<48x32xbf16>,
    %c544_429 = arith.constant 544 : index
    %c0_430 = arith.constant 0 : index
    %395 = vector.load %arg11[%c544_429, %c0_430] : memref<640x32xbf16, #tpu.memory_space<vmem>>, vector<48x32xbf16>
    %c432_431 = arith.constant 432 : index
    %c224_432 = arith.constant 224 : index
    %396 = vector.load %arg12[%c432_431, %c224_432] : memref<528x256xbf16, #tpu.memory_space<vmem>>, vector<48x32xbf16>
    tpu.vector_store %arg12[%c432_431, %c224_432], %395 {strides = array<i32>} : memref<528x256xbf16, #tpu.memory_space<vmem>>, vector<48x32xbf16>,
    %c592_433 = arith.constant 592 : index
    %c0_434 = arith.constant 0 : index
    %397 = vector.load %arg11[%c592_433, %c0_434] : memref<640x32xbf16, #tpu.memory_space<vmem>>, vector<48x32xbf16>
    %c480_435 = arith.constant 480 : index
    %c224_436 = arith.constant 224 : index
    %398 = vector.load %arg12[%c480_435, %c224_436] : memref<528x256xbf16, #tpu.memory_space<vmem>>, vector<48x32xbf16>
    tpu.vector_store %arg12[%c480_435, %c224_436], %397 {strides = array<i32>} : memref<528x256xbf16, #tpu.memory_space<vmem>>, vector<48x32xbf16>,
    %c0_437 = arith.constant 0 : index
    %c0_438 = arith.constant 0 : index
    %399 = vector.load %arg3[%c0_437, %c0_438] : memref<256x64xbf16, #tpu.memory_space<vmem>>, vector<256x64xbf16>
    %c0_439 = arith.constant 0 : index
    %c0_440 = arith.constant 0 : index
    %400 = vector.load %arg7[%c0_439, %c0_440] : memref<1x64xf32, #tpu.memory_space<vmem>>, vector<1x64xf32>
    %c0_441 = arith.constant 0 : index
    %c0_442 = arith.constant 0 : index
    %401 = vector.load %arg12[%c0_441, %c0_442] : memref<528x256xbf16, #tpu.memory_space<vmem>>, vector<16x256xbf16>
    %cst_443 = arith.constant dense<0.000000e+00> : vector<16x64xf32>
    %402 = tpu.matmul %401, %399, %cst_443 {dimension_numbers = #tpu.dot_dimension_numbers<[1], [0], [0], [1], [0, 0, 1, 1], [], []>} : vector<16x256xbf16>, vector<256x64xbf16>, vector<16x64xf32> -> vector<16x64xf32>
    %c16_444 = arith.constant 16 : index
    %c0_445 = arith.constant 0 : index
    %403 = vector.load %arg12[%c16_444, %c0_445] : memref<528x256xbf16, #tpu.memory_space<vmem>>, vector<16x256xbf16>
    %cst_446 = arith.constant dense<0.000000e+00> : vector<16x64xf32>
    %404 = tpu.matmul %403, %399, %cst_446 {dimension_numbers = #tpu.dot_dimension_numbers<[1], [0], [0], [1], [0, 0, 1, 1], [], []>} : vector<16x256xbf16>, vector<256x64xbf16>, vector<16x64xf32> -> vector<16x64xf32>
    %405 = arith.maximumf %402, %404 : vector<16x64xf32>
    %c32_447 = arith.constant 32 : index
    %c0_448 = arith.constant 0 : index
    %406 = vector.load %arg12[%c32_447, %c0_448] : memref<528x256xbf16, #tpu.memory_space<vmem>>, vector<16x256xbf16>
    %cst_449 = arith.constant dense<0.000000e+00> : vector<16x64xf32>
    %407 = tpu.matmul %406, %399, %cst_449 {dimension_numbers = #tpu.dot_dimension_numbers<[1], [0], [0], [1], [0, 0, 1, 1], [], []>} : vector<16x256xbf16>, vector<256x64xbf16>, vector<16x64xf32> -> vector<16x64xf32>
    %408 = arith.maximumf %405, %407 : vector<16x64xf32>
    %409 = vector.broadcast %400 : vector<1x64xf32> to vector<16x64xf32>
    %410 = arith.addf %408, %409 : vector<16x64xf32>
    %cst_450 = arith.constant 0.000000e+00 : f32
    %411 = vector.broadcast %cst_450 : f32 to vector<16x64xf32>
    %412 = arith.maximumf %410, %411 : vector<16x64xf32>
    %413 = arith.truncf %412 : vector<16x64xf32> to vector<16x64xbf16>
    %c0_451 = arith.constant 0 : index
    %c0_452 = arith.constant 0 : index
    %414 = vector.load %arg13[%c0_451, %c0_452] : memref<176x64xbf16, #tpu.memory_space<vmem>>, vector<16x64xbf16>
    tpu.vector_store %arg13[%c0_451, %c0_452], %413 {strides = array<i32>} : memref<176x64xbf16, #tpu.memory_space<vmem>>, vector<16x64xbf16>,
    %c48_453 = arith.constant 48 : index
    %c0_454 = arith.constant 0 : index
    %415 = vector.load %arg12[%c48_453, %c0_454] : memref<528x256xbf16, #tpu.memory_space<vmem>>, vector<16x256xbf16>
    %cst_455 = arith.constant dense<0.000000e+00> : vector<16x64xf32>
    %416 = tpu.matmul %415, %399, %cst_455 {dimension_numbers = #tpu.dot_dimension_numbers<[1], [0], [0], [1], [0, 0, 1, 1], [], []>} : vector<16x256xbf16>, vector<256x64xbf16>, vector<16x64xf32> -> vector<16x64xf32>
    %c64_456 = arith.constant 64 : index
    %c0_457 = arith.constant 0 : index
    %417 = vector.load %arg12[%c64_456, %c0_457] : memref<528x256xbf16, #tpu.memory_space<vmem>>, vector<16x256xbf16>
    %cst_458 = arith.constant dense<0.000000e+00> : vector<16x64xf32>
    %418 = tpu.matmul %417, %399, %cst_458 {dimension_numbers = #tpu.dot_dimension_numbers<[1], [0], [0], [1], [0, 0, 1, 1], [], []>} : vector<16x256xbf16>, vector<256x64xbf16>, vector<16x64xf32> -> vector<16x64xf32>
    %419 = arith.maximumf %416, %418 : vector<16x64xf32>
    %c80_459 = arith.constant 80 : index
    %c0_460 = arith.constant 0 : index
    %420 = vector.load %arg12[%c80_459, %c0_460] : memref<528x256xbf16, #tpu.memory_space<vmem>>, vector<16x256xbf16>
    %cst_461 = arith.constant dense<0.000000e+00> : vector<16x64xf32>
    %421 = tpu.matmul %420, %399, %cst_461 {dimension_numbers = #tpu.dot_dimension_numbers<[1], [0], [0], [1], [0, 0, 1, 1], [], []>} : vector<16x256xbf16>, vector<256x64xbf16>, vector<16x64xf32> -> vector<16x64xf32>
    %422 = arith.maximumf %419, %421 : vector<16x64xf32>
    %423 = vector.broadcast %400 : vector<1x64xf32> to vector<16x64xf32>
    %424 = arith.addf %422, %423 : vector<16x64xf32>
    %cst_462 = arith.constant 0.000000e+00 : f32
    %425 = vector.broadcast %cst_462 : f32 to vector<16x64xf32>
    %426 = arith.maximumf %424, %425 : vector<16x64xf32>
    %427 = arith.truncf %426 : vector<16x64xf32> to vector<16x64xbf16>
    %c16_463 = arith.constant 16 : index
    %c0_464 = arith.constant 0 : index
    %428 = vector.load %arg13[%c16_463, %c0_464] : memref<176x64xbf16, #tpu.memory_space<vmem>>, vector<16x64xbf16>
    tpu.vector_store %arg13[%c16_463, %c0_464], %427 {strides = array<i32>} : memref<176x64xbf16, #tpu.memory_space<vmem>>, vector<16x64xbf16>,
    %c96_465 = arith.constant 96 : index
    %c0_466 = arith.constant 0 : index
    %429 = vector.load %arg12[%c96_465, %c0_466] : memref<528x256xbf16, #tpu.memory_space<vmem>>, vector<16x256xbf16>
    %cst_467 = arith.constant dense<0.000000e+00> : vector<16x64xf32>
    %430 = tpu.matmul %429, %399, %cst_467 {dimension_numbers = #tpu.dot_dimension_numbers<[1], [0], [0], [1], [0, 0, 1, 1], [], []>} : vector<16x256xbf16>, vector<256x64xbf16>, vector<16x64xf32> -> vector<16x64xf32>
    %c112_468 = arith.constant 112 : index
    %c0_469 = arith.constant 0 : index
    %431 = vector.load %arg12[%c112_468, %c0_469] : memref<528x256xbf16, #tpu.memory_space<vmem>>, vector<16x256xbf16>
    %cst_470 = arith.constant dense<0.000000e+00> : vector<16x64xf32>
    %432 = tpu.matmul %431, %399, %cst_470 {dimension_numbers = #tpu.dot_dimension_numbers<[1], [0], [0], [1], [0, 0, 1, 1], [], []>} : vector<16x256xbf16>, vector<256x64xbf16>, vector<16x64xf32> -> vector<16x64xf32>
    %433 = arith.maximumf %430, %432 : vector<16x64xf32>
    %c128_471 = arith.constant 128 : index
    %c0_472 = arith.constant 0 : index
    %434 = vector.load %arg12[%c128_471, %c0_472] : memref<528x256xbf16, #tpu.memory_space<vmem>>, vector<16x256xbf16>
    %cst_473 = arith.constant dense<0.000000e+00> : vector<16x64xf32>
    %435 = tpu.matmul %434, %399, %cst_473 {dimension_numbers = #tpu.dot_dimension_numbers<[1], [0], [0], [1], [0, 0, 1, 1], [], []>} : vector<16x256xbf16>, vector<256x64xbf16>, vector<16x64xf32> -> vector<16x64xf32>
    %436 = arith.maximumf %433, %435 : vector<16x64xf32>
    %437 = vector.broadcast %400 : vector<1x64xf32> to vector<16x64xf32>
    %438 = arith.addf %436, %437 : vector<16x64xf32>
    %cst_474 = arith.constant 0.000000e+00 : f32
    %439 = vector.broadcast %cst_474 : f32 to vector<16x64xf32>
    %440 = arith.maximumf %438, %439 : vector<16x64xf32>
    %441 = arith.truncf %440 : vector<16x64xf32> to vector<16x64xbf16>
    %c32_475 = arith.constant 32 : index
    %c0_476 = arith.constant 0 : index
    %442 = vector.load %arg13[%c32_475, %c0_476] : memref<176x64xbf16, #tpu.memory_space<vmem>>, vector<16x64xbf16>
    tpu.vector_store %arg13[%c32_475, %c0_476], %441 {strides = array<i32>} : memref<176x64xbf16, #tpu.memory_space<vmem>>, vector<16x64xbf16>,
    %c144_477 = arith.constant 144 : index
    %c0_478 = arith.constant 0 : index
    %443 = vector.load %arg12[%c144_477, %c0_478] : memref<528x256xbf16, #tpu.memory_space<vmem>>, vector<16x256xbf16>
    %cst_479 = arith.constant dense<0.000000e+00> : vector<16x64xf32>
    %444 = tpu.matmul %443, %399, %cst_479 {dimension_numbers = #tpu.dot_dimension_numbers<[1], [0], [0], [1], [0, 0, 1, 1], [], []>} : vector<16x256xbf16>, vector<256x64xbf16>, vector<16x64xf32> -> vector<16x64xf32>
    %c160_480 = arith.constant 160 : index
    %c0_481 = arith.constant 0 : index
    %445 = vector.load %arg12[%c160_480, %c0_481] : memref<528x256xbf16, #tpu.memory_space<vmem>>, vector<16x256xbf16>
    %cst_482 = arith.constant dense<0.000000e+00> : vector<16x64xf32>
    %446 = tpu.matmul %445, %399, %cst_482 {dimension_numbers = #tpu.dot_dimension_numbers<[1], [0], [0], [1], [0, 0, 1, 1], [], []>} : vector<16x256xbf16>, vector<256x64xbf16>, vector<16x64xf32> -> vector<16x64xf32>
    %447 = arith.maximumf %444, %446 : vector<16x64xf32>
    %c176_483 = arith.constant 176 : index
    %c0_484 = arith.constant 0 : index
    %448 = vector.load %arg12[%c176_483, %c0_484] : memref<528x256xbf16, #tpu.memory_space<vmem>>, vector<16x256xbf16>
    %cst_485 = arith.constant dense<0.000000e+00> : vector<16x64xf32>
    %449 = tpu.matmul %448, %399, %cst_485 {dimension_numbers = #tpu.dot_dimension_numbers<[1], [0], [0], [1], [0, 0, 1, 1], [], []>} : vector<16x256xbf16>, vector<256x64xbf16>, vector<16x64xf32> -> vector<16x64xf32>
    %450 = arith.maximumf %447, %449 : vector<16x64xf32>
    %451 = vector.broadcast %400 : vector<1x64xf32> to vector<16x64xf32>
    %452 = arith.addf %450, %451 : vector<16x64xf32>
    %cst_486 = arith.constant 0.000000e+00 : f32
    %453 = vector.broadcast %cst_486 : f32 to vector<16x64xf32>
    %454 = arith.maximumf %452, %453 : vector<16x64xf32>
    %455 = arith.truncf %454 : vector<16x64xf32> to vector<16x64xbf16>
    %c48_487 = arith.constant 48 : index
    %c0_488 = arith.constant 0 : index
    %456 = vector.load %arg13[%c48_487, %c0_488] : memref<176x64xbf16, #tpu.memory_space<vmem>>, vector<16x64xbf16>
    tpu.vector_store %arg13[%c48_487, %c0_488], %455 {strides = array<i32>} : memref<176x64xbf16, #tpu.memory_space<vmem>>, vector<16x64xbf16>,
    %c192_489 = arith.constant 192 : index
    %c0_490 = arith.constant 0 : index
    %457 = vector.load %arg12[%c192_489, %c0_490] : memref<528x256xbf16, #tpu.memory_space<vmem>>, vector<16x256xbf16>
    %cst_491 = arith.constant dense<0.000000e+00> : vector<16x64xf32>
    %458 = tpu.matmul %457, %399, %cst_491 {dimension_numbers = #tpu.dot_dimension_numbers<[1], [0], [0], [1], [0, 0, 1, 1], [], []>} : vector<16x256xbf16>, vector<256x64xbf16>, vector<16x64xf32> -> vector<16x64xf32>
    %c208_492 = arith.constant 208 : index
    %c0_493 = arith.constant 0 : index
    %459 = vector.load %arg12[%c208_492, %c0_493] : memref<528x256xbf16, #tpu.memory_space<vmem>>, vector<16x256xbf16>
    %cst_494 = arith.constant dense<0.000000e+00> : vector<16x64xf32>
    %460 = tpu.matmul %459, %399, %cst_494 {dimension_numbers = #tpu.dot_dimension_numbers<[1], [0], [0], [1], [0, 0, 1, 1], [], []>} : vector<16x256xbf16>, vector<256x64xbf16>, vector<16x64xf32> -> vector<16x64xf32>
    %461 = arith.maximumf %458, %460 : vector<16x64xf32>
    %c224_495 = arith.constant 224 : index
    %c0_496 = arith.constant 0 : index
    %462 = vector.load %arg12[%c224_495, %c0_496] : memref<528x256xbf16, #tpu.memory_space<vmem>>, vector<16x256xbf16>
    %cst_497 = arith.constant dense<0.000000e+00> : vector<16x64xf32>
    %463 = tpu.matmul %462, %399, %cst_497 {dimension_numbers = #tpu.dot_dimension_numbers<[1], [0], [0], [1], [0, 0, 1, 1], [], []>} : vector<16x256xbf16>, vector<256x64xbf16>, vector<16x64xf32> -> vector<16x64xf32>
    %464 = arith.maximumf %461, %463 : vector<16x64xf32>
    %465 = vector.broadcast %400 : vector<1x64xf32> to vector<16x64xf32>
    %466 = arith.addf %464, %465 : vector<16x64xf32>
    %cst_498 = arith.constant 0.000000e+00 : f32
    %467 = vector.broadcast %cst_498 : f32 to vector<16x64xf32>
    %468 = arith.maximumf %466, %467 : vector<16x64xf32>
    %469 = arith.truncf %468 : vector<16x64xf32> to vector<16x64xbf16>
    %c64_499 = arith.constant 64 : index
    %c0_500 = arith.constant 0 : index
    %470 = vector.load %arg13[%c64_499, %c0_500] : memref<176x64xbf16, #tpu.memory_space<vmem>>, vector<16x64xbf16>
    tpu.vector_store %arg13[%c64_499, %c0_500], %469 {strides = array<i32>} : memref<176x64xbf16, #tpu.memory_space<vmem>>, vector<16x64xbf16>,
    %c240_501 = arith.constant 240 : index
    %c0_502 = arith.constant 0 : index
    %471 = vector.load %arg12[%c240_501, %c0_502] : memref<528x256xbf16, #tpu.memory_space<vmem>>, vector<16x256xbf16>
    %cst_503 = arith.constant dense<0.000000e+00> : vector<16x64xf32>
    %472 = tpu.matmul %471, %399, %cst_503 {dimension_numbers = #tpu.dot_dimension_numbers<[1], [0], [0], [1], [0, 0, 1, 1], [], []>} : vector<16x256xbf16>, vector<256x64xbf16>, vector<16x64xf32> -> vector<16x64xf32>
    %c256_504 = arith.constant 256 : index
    %c0_505 = arith.constant 0 : index
    %473 = vector.load %arg12[%c256_504, %c0_505] : memref<528x256xbf16, #tpu.memory_space<vmem>>, vector<16x256xbf16>
    %cst_506 = arith.constant dense<0.000000e+00> : vector<16x64xf32>
    %474 = tpu.matmul %473, %399, %cst_506 {dimension_numbers = #tpu.dot_dimension_numbers<[1], [0], [0], [1], [0, 0, 1, 1], [], []>} : vector<16x256xbf16>, vector<256x64xbf16>, vector<16x64xf32> -> vector<16x64xf32>
    %475 = arith.maximumf %472, %474 : vector<16x64xf32>
    %c272_507 = arith.constant 272 : index
    %c0_508 = arith.constant 0 : index
    %476 = vector.load %arg12[%c272_507, %c0_508] : memref<528x256xbf16, #tpu.memory_space<vmem>>, vector<16x256xbf16>
    %cst_509 = arith.constant dense<0.000000e+00> : vector<16x64xf32>
    %477 = tpu.matmul %476, %399, %cst_509 {dimension_numbers = #tpu.dot_dimension_numbers<[1], [0], [0], [1], [0, 0, 1, 1], [], []>} : vector<16x256xbf16>, vector<256x64xbf16>, vector<16x64xf32> -> vector<16x64xf32>
    %478 = arith.maximumf %475, %477 : vector<16x64xf32>
    %479 = vector.broadcast %400 : vector<1x64xf32> to vector<16x64xf32>
    %480 = arith.addf %478, %479 : vector<16x64xf32>
    %cst_510 = arith.constant 0.000000e+00 : f32
    %481 = vector.broadcast %cst_510 : f32 to vector<16x64xf32>
    %482 = arith.maximumf %480, %481 : vector<16x64xf32>
    %483 = arith.truncf %482 : vector<16x64xf32> to vector<16x64xbf16>
    %c80_511 = arith.constant 80 : index
    %c0_512 = arith.constant 0 : index
    %484 = vector.load %arg13[%c80_511, %c0_512] : memref<176x64xbf16, #tpu.memory_space<vmem>>, vector<16x64xbf16>
    tpu.vector_store %arg13[%c80_511, %c0_512], %483 {strides = array<i32>} : memref<176x64xbf16, #tpu.memory_space<vmem>>, vector<16x64xbf16>,
    %c288_513 = arith.constant 288 : index
    %c0_514 = arith.constant 0 : index
    %485 = vector.load %arg12[%c288_513, %c0_514] : memref<528x256xbf16, #tpu.memory_space<vmem>>, vector<16x256xbf16>
    %cst_515 = arith.constant dense<0.000000e+00> : vector<16x64xf32>
    %486 = tpu.matmul %485, %399, %cst_515 {dimension_numbers = #tpu.dot_dimension_numbers<[1], [0], [0], [1], [0, 0, 1, 1], [], []>} : vector<16x256xbf16>, vector<256x64xbf16>, vector<16x64xf32> -> vector<16x64xf32>
    %c304_516 = arith.constant 304 : index
    %c0_517 = arith.constant 0 : index
    %487 = vector.load %arg12[%c304_516, %c0_517] : memref<528x256xbf16, #tpu.memory_space<vmem>>, vector<16x256xbf16>
    %cst_518 = arith.constant dense<0.000000e+00> : vector<16x64xf32>
    %488 = tpu.matmul %487, %399, %cst_518 {dimension_numbers = #tpu.dot_dimension_numbers<[1], [0], [0], [1], [0, 0, 1, 1], [], []>} : vector<16x256xbf16>, vector<256x64xbf16>, vector<16x64xf32> -> vector<16x64xf32>
    %489 = arith.maximumf %486, %488 : vector<16x64xf32>
    %c320_519 = arith.constant 320 : index
    %c0_520 = arith.constant 0 : index
    %490 = vector.load %arg12[%c320_519, %c0_520] : memref<528x256xbf16, #tpu.memory_space<vmem>>, vector<16x256xbf16>
    %cst_521 = arith.constant dense<0.000000e+00> : vector<16x64xf32>
    %491 = tpu.matmul %490, %399, %cst_521 {dimension_numbers = #tpu.dot_dimension_numbers<[1], [0], [0], [1], [0, 0, 1, 1], [], []>} : vector<16x256xbf16>, vector<256x64xbf16>, vector<16x64xf32> -> vector<16x64xf32>
    %492 = arith.maximumf %489, %491 : vector<16x64xf32>
    %493 = vector.broadcast %400 : vector<1x64xf32> to vector<16x64xf32>
    %494 = arith.addf %492, %493 : vector<16x64xf32>
    %cst_522 = arith.constant 0.000000e+00 : f32
    %495 = vector.broadcast %cst_522 : f32 to vector<16x64xf32>
    %496 = arith.maximumf %494, %495 : vector<16x64xf32>
    %497 = arith.truncf %496 : vector<16x64xf32> to vector<16x64xbf16>
    %c96_523 = arith.constant 96 : index
    %c0_524 = arith.constant 0 : index
    %498 = vector.load %arg13[%c96_523, %c0_524] : memref<176x64xbf16, #tpu.memory_space<vmem>>, vector<16x64xbf16>
    tpu.vector_store %arg13[%c96_523, %c0_524], %497 {strides = array<i32>} : memref<176x64xbf16, #tpu.memory_space<vmem>>, vector<16x64xbf16>,
    %c336_525 = arith.constant 336 : index
    %c0_526 = arith.constant 0 : index
    %499 = vector.load %arg12[%c336_525, %c0_526] : memref<528x256xbf16, #tpu.memory_space<vmem>>, vector<16x256xbf16>
    %cst_527 = arith.constant dense<0.000000e+00> : vector<16x64xf32>
    %500 = tpu.matmul %499, %399, %cst_527 {dimension_numbers = #tpu.dot_dimension_numbers<[1], [0], [0], [1], [0, 0, 1, 1], [], []>} : vector<16x256xbf16>, vector<256x64xbf16>, vector<16x64xf32> -> vector<16x64xf32>
    %c352_528 = arith.constant 352 : index
    %c0_529 = arith.constant 0 : index
    %501 = vector.load %arg12[%c352_528, %c0_529] : memref<528x256xbf16, #tpu.memory_space<vmem>>, vector<16x256xbf16>
    %cst_530 = arith.constant dense<0.000000e+00> : vector<16x64xf32>
    %502 = tpu.matmul %501, %399, %cst_530 {dimension_numbers = #tpu.dot_dimension_numbers<[1], [0], [0], [1], [0, 0, 1, 1], [], []>} : vector<16x256xbf16>, vector<256x64xbf16>, vector<16x64xf32> -> vector<16x64xf32>
    %503 = arith.maximumf %500, %502 : vector<16x64xf32>
    %c368_531 = arith.constant 368 : index
    %c0_532 = arith.constant 0 : index
    %504 = vector.load %arg12[%c368_531, %c0_532] : memref<528x256xbf16, #tpu.memory_space<vmem>>, vector<16x256xbf16>
    %cst_533 = arith.constant dense<0.000000e+00> : vector<16x64xf32>
    %505 = tpu.matmul %504, %399, %cst_533 {dimension_numbers = #tpu.dot_dimension_numbers<[1], [0], [0], [1], [0, 0, 1, 1], [], []>} : vector<16x256xbf16>, vector<256x64xbf16>, vector<16x64xf32> -> vector<16x64xf32>
    %506 = arith.maximumf %503, %505 : vector<16x64xf32>
    %507 = vector.broadcast %400 : vector<1x64xf32> to vector<16x64xf32>
    %508 = arith.addf %506, %507 : vector<16x64xf32>
    %cst_534 = arith.constant 0.000000e+00 : f32
    %509 = vector.broadcast %cst_534 : f32 to vector<16x64xf32>
    %510 = arith.maximumf %508, %509 : vector<16x64xf32>
    %511 = arith.truncf %510 : vector<16x64xf32> to vector<16x64xbf16>
    %c112_535 = arith.constant 112 : index
    %c0_536 = arith.constant 0 : index
    %512 = vector.load %arg13[%c112_535, %c0_536] : memref<176x64xbf16, #tpu.memory_space<vmem>>, vector<16x64xbf16>
    tpu.vector_store %arg13[%c112_535, %c0_536], %511 {strides = array<i32>} : memref<176x64xbf16, #tpu.memory_space<vmem>>, vector<16x64xbf16>,
    %c384_537 = arith.constant 384 : index
    %c0_538 = arith.constant 0 : index
    %513 = vector.load %arg12[%c384_537, %c0_538] : memref<528x256xbf16, #tpu.memory_space<vmem>>, vector<16x256xbf16>
    %cst_539 = arith.constant dense<0.000000e+00> : vector<16x64xf32>
    %514 = tpu.matmul %513, %399, %cst_539 {dimension_numbers = #tpu.dot_dimension_numbers<[1], [0], [0], [1], [0, 0, 1, 1], [], []>} : vector<16x256xbf16>, vector<256x64xbf16>, vector<16x64xf32> -> vector<16x64xf32>
    %c400_540 = arith.constant 400 : index
    %c0_541 = arith.constant 0 : index
    %515 = vector.load %arg12[%c400_540, %c0_541] : memref<528x256xbf16, #tpu.memory_space<vmem>>, vector<16x256xbf16>
    %cst_542 = arith.constant dense<0.000000e+00> : vector<16x64xf32>
    %516 = tpu.matmul %515, %399, %cst_542 {dimension_numbers = #tpu.dot_dimension_numbers<[1], [0], [0], [1], [0, 0, 1, 1], [], []>} : vector<16x256xbf16>, vector<256x64xbf16>, vector<16x64xf32> -> vector<16x64xf32>
    %517 = arith.maximumf %514, %516 : vector<16x64xf32>
    %c416_543 = arith.constant 416 : index
    %c0_544 = arith.constant 0 : index
    %518 = vector.load %arg12[%c416_543, %c0_544] : memref<528x256xbf16, #tpu.memory_space<vmem>>, vector<16x256xbf16>
    %cst_545 = arith.constant dense<0.000000e+00> : vector<16x64xf32>
    %519 = tpu.matmul %518, %399, %cst_545 {dimension_numbers = #tpu.dot_dimension_numbers<[1], [0], [0], [1], [0, 0, 1, 1], [], []>} : vector<16x256xbf16>, vector<256x64xbf16>, vector<16x64xf32> -> vector<16x64xf32>
    %520 = arith.maximumf %517, %519 : vector<16x64xf32>
    %521 = vector.broadcast %400 : vector<1x64xf32> to vector<16x64xf32>
    %522 = arith.addf %520, %521 : vector<16x64xf32>
    %cst_546 = arith.constant 0.000000e+00 : f32
    %523 = vector.broadcast %cst_546 : f32 to vector<16x64xf32>
    %524 = arith.maximumf %522, %523 : vector<16x64xf32>
    %525 = arith.truncf %524 : vector<16x64xf32> to vector<16x64xbf16>
    %c128_547 = arith.constant 128 : index
    %c0_548 = arith.constant 0 : index
    %526 = vector.load %arg13[%c128_547, %c0_548] : memref<176x64xbf16, #tpu.memory_space<vmem>>, vector<16x64xbf16>
    tpu.vector_store %arg13[%c128_547, %c0_548], %525 {strides = array<i32>} : memref<176x64xbf16, #tpu.memory_space<vmem>>, vector<16x64xbf16>,
    %c432_549 = arith.constant 432 : index
    %c0_550 = arith.constant 0 : index
    %527 = vector.load %arg12[%c432_549, %c0_550] : memref<528x256xbf16, #tpu.memory_space<vmem>>, vector<16x256xbf16>
    %cst_551 = arith.constant dense<0.000000e+00> : vector<16x64xf32>
    %528 = tpu.matmul %527, %399, %cst_551 {dimension_numbers = #tpu.dot_dimension_numbers<[1], [0], [0], [1], [0, 0, 1, 1], [], []>} : vector<16x256xbf16>, vector<256x64xbf16>, vector<16x64xf32> -> vector<16x64xf32>
    %c448_552 = arith.constant 448 : index
    %c0_553 = arith.constant 0 : index
    %529 = vector.load %arg12[%c448_552, %c0_553] : memref<528x256xbf16, #tpu.memory_space<vmem>>, vector<16x256xbf16>
    %cst_554 = arith.constant dense<0.000000e+00> : vector<16x64xf32>
    %530 = tpu.matmul %529, %399, %cst_554 {dimension_numbers = #tpu.dot_dimension_numbers<[1], [0], [0], [1], [0, 0, 1, 1], [], []>} : vector<16x256xbf16>, vector<256x64xbf16>, vector<16x64xf32> -> vector<16x64xf32>
    %531 = arith.maximumf %528, %530 : vector<16x64xf32>
    %c464_555 = arith.constant 464 : index
    %c0_556 = arith.constant 0 : index
    %532 = vector.load %arg12[%c464_555, %c0_556] : memref<528x256xbf16, #tpu.memory_space<vmem>>, vector<16x256xbf16>
    %cst_557 = arith.constant dense<0.000000e+00> : vector<16x64xf32>
    %533 = tpu.matmul %532, %399, %cst_557 {dimension_numbers = #tpu.dot_dimension_numbers<[1], [0], [0], [1], [0, 0, 1, 1], [], []>} : vector<16x256xbf16>, vector<256x64xbf16>, vector<16x64xf32> -> vector<16x64xf32>
    %534 = arith.maximumf %531, %533 : vector<16x64xf32>
    %535 = vector.broadcast %400 : vector<1x64xf32> to vector<16x64xf32>
    %536 = arith.addf %534, %535 : vector<16x64xf32>
    %cst_558 = arith.constant 0.000000e+00 : f32
    %537 = vector.broadcast %cst_558 : f32 to vector<16x64xf32>
    %538 = arith.maximumf %536, %537 : vector<16x64xf32>
    %539 = arith.truncf %538 : vector<16x64xf32> to vector<16x64xbf16>
    %c144_559 = arith.constant 144 : index
    %c0_560 = arith.constant 0 : index
    %540 = vector.load %arg13[%c144_559, %c0_560] : memref<176x64xbf16, #tpu.memory_space<vmem>>, vector<16x64xbf16>
    tpu.vector_store %arg13[%c144_559, %c0_560], %539 {strides = array<i32>} : memref<176x64xbf16, #tpu.memory_space<vmem>>, vector<16x64xbf16>,
    %c480_561 = arith.constant 480 : index
    %c0_562 = arith.constant 0 : index
    %541 = vector.load %arg12[%c480_561, %c0_562] : memref<528x256xbf16, #tpu.memory_space<vmem>>, vector<16x256xbf16>
    %cst_563 = arith.constant dense<0.000000e+00> : vector<16x64xf32>
    %542 = tpu.matmul %541, %399, %cst_563 {dimension_numbers = #tpu.dot_dimension_numbers<[1], [0], [0], [1], [0, 0, 1, 1], [], []>} : vector<16x256xbf16>, vector<256x64xbf16>, vector<16x64xf32> -> vector<16x64xf32>
    %c496_564 = arith.constant 496 : index
    %c0_565 = arith.constant 0 : index
    %543 = vector.load %arg12[%c496_564, %c0_565] : memref<528x256xbf16, #tpu.memory_space<vmem>>, vector<16x256xbf16>
    %cst_566 = arith.constant dense<0.000000e+00> : vector<16x64xf32>
    %544 = tpu.matmul %543, %399, %cst_566 {dimension_numbers = #tpu.dot_dimension_numbers<[1], [0], [0], [1], [0, 0, 1, 1], [], []>} : vector<16x256xbf16>, vector<256x64xbf16>, vector<16x64xf32> -> vector<16x64xf32>
    %545 = arith.maximumf %542, %544 : vector<16x64xf32>
    %c512_567 = arith.constant 512 : index
    %c0_568 = arith.constant 0 : index
    %546 = vector.load %arg12[%c512_567, %c0_568] : memref<528x256xbf16, #tpu.memory_space<vmem>>, vector<16x256xbf16>
    %cst_569 = arith.constant dense<0.000000e+00> : vector<16x64xf32>
    %547 = tpu.matmul %546, %399, %cst_569 {dimension_numbers = #tpu.dot_dimension_numbers<[1], [0], [0], [1], [0, 0, 1, 1], [], []>} : vector<16x256xbf16>, vector<256x64xbf16>, vector<16x64xf32> -> vector<16x64xf32>
    %548 = arith.maximumf %545, %547 : vector<16x64xf32>
    %549 = vector.broadcast %400 : vector<1x64xf32> to vector<16x64xf32>
    %550 = arith.addf %548, %549 : vector<16x64xf32>
    %cst_570 = arith.constant 0.000000e+00 : f32
    %551 = vector.broadcast %cst_570 : f32 to vector<16x64xf32>
    %552 = arith.maximumf %550, %551 : vector<16x64xf32>
    %553 = arith.truncf %552 : vector<16x64xf32> to vector<16x64xbf16>
    %c160_571 = arith.constant 160 : index
    %c0_572 = arith.constant 0 : index
    %554 = vector.load %arg13[%c160_571, %c0_572] : memref<176x64xbf16, #tpu.memory_space<vmem>>, vector<16x64xbf16>
    tpu.vector_store %arg13[%c160_571, %c0_572], %553 {strides = array<i32>} : memref<176x64xbf16, #tpu.memory_space<vmem>>, vector<16x64xbf16>,
    %c0_573 = arith.constant 0 : index
    %c0_574 = arith.constant 0 : index
    %555 = vector.load %arg13[%c0_573, %c0_574] : memref<176x64xbf16, #tpu.memory_space<vmem>>, vector<48x64xbf16>
    %c0_575 = arith.constant 0 : index
    %c0_576 = arith.constant 0 : index
    %556 = vector.load %arg14[%c0_575, %c0_576] : memref<48x512xbf16, #tpu.memory_space<vmem>>, vector<48x64xbf16>
    tpu.vector_store %arg14[%c0_575, %c0_576], %555 {strides = array<i32>} : memref<48x512xbf16, #tpu.memory_space<vmem>>, vector<48x64xbf16>,
    %c16_577 = arith.constant 16 : index
    %c0_578 = arith.constant 0 : index
    %557 = vector.load %arg13[%c16_577, %c0_578] : memref<176x64xbf16, #tpu.memory_space<vmem>>, vector<48x64xbf16>
    %c0_579 = arith.constant 0 : index
    %c64_580 = arith.constant 64 : index
    %558 = vector.load %arg14[%c0_579, %c64_580] : memref<48x512xbf16, #tpu.memory_space<vmem>>, vector<48x64xbf16>
    tpu.vector_store %arg14[%c0_579, %c64_580], %557 {strides = array<i32>} : memref<48x512xbf16, #tpu.memory_space<vmem>>, vector<48x64xbf16>,
    %c32_581 = arith.constant 32 : index
    %c0_582 = arith.constant 0 : index
    %559 = vector.load %arg13[%c32_581, %c0_582] : memref<176x64xbf16, #tpu.memory_space<vmem>>, vector<48x64xbf16>
    %c0_583 = arith.constant 0 : index
    %c128_584 = arith.constant 128 : index
    %560 = vector.load %arg14[%c0_583, %c128_584] : memref<48x512xbf16, #tpu.memory_space<vmem>>, vector<48x64xbf16>
    tpu.vector_store %arg14[%c0_583, %c128_584], %559 {strides = array<i32>} : memref<48x512xbf16, #tpu.memory_space<vmem>>, vector<48x64xbf16>,
    %c48_585 = arith.constant 48 : index
    %c0_586 = arith.constant 0 : index
    %561 = vector.load %arg13[%c48_585, %c0_586] : memref<176x64xbf16, #tpu.memory_space<vmem>>, vector<48x64xbf16>
    %c0_587 = arith.constant 0 : index
    %c192_588 = arith.constant 192 : index
    %562 = vector.load %arg14[%c0_587, %c192_588] : memref<48x512xbf16, #tpu.memory_space<vmem>>, vector<48x64xbf16>
    tpu.vector_store %arg14[%c0_587, %c192_588], %561 {strides = array<i32>} : memref<48x512xbf16, #tpu.memory_space<vmem>>, vector<48x64xbf16>,
    %c64_589 = arith.constant 64 : index
    %c0_590 = arith.constant 0 : index
    %563 = vector.load %arg13[%c64_589, %c0_590] : memref<176x64xbf16, #tpu.memory_space<vmem>>, vector<48x64xbf16>
    %c0_591 = arith.constant 0 : index
    %c256_592 = arith.constant 256 : index
    %564 = vector.load %arg14[%c0_591, %c256_592] : memref<48x512xbf16, #tpu.memory_space<vmem>>, vector<48x64xbf16>
    tpu.vector_store %arg14[%c0_591, %c256_592], %563 {strides = array<i32>} : memref<48x512xbf16, #tpu.memory_space<vmem>>, vector<48x64xbf16>,
    %c80_593 = arith.constant 80 : index
    %c0_594 = arith.constant 0 : index
    %565 = vector.load %arg13[%c80_593, %c0_594] : memref<176x64xbf16, #tpu.memory_space<vmem>>, vector<48x64xbf16>
    %c0_595 = arith.constant 0 : index
    %c320_596 = arith.constant 320 : index
    %566 = vector.load %arg14[%c0_595, %c320_596] : memref<48x512xbf16, #tpu.memory_space<vmem>>, vector<48x64xbf16>
    tpu.vector_store %arg14[%c0_595, %c320_596], %565 {strides = array<i32>} : memref<48x512xbf16, #tpu.memory_space<vmem>>, vector<48x64xbf16>,
    %c96_597 = arith.constant 96 : index
    %c0_598 = arith.constant 0 : index
    %567 = vector.load %arg13[%c96_597, %c0_598] : memref<176x64xbf16, #tpu.memory_space<vmem>>, vector<48x64xbf16>
    %c0_599 = arith.constant 0 : index
    %c384_600 = arith.constant 384 : index
    %568 = vector.load %arg14[%c0_599, %c384_600] : memref<48x512xbf16, #tpu.memory_space<vmem>>, vector<48x64xbf16>
    tpu.vector_store %arg14[%c0_599, %c384_600], %567 {strides = array<i32>} : memref<48x512xbf16, #tpu.memory_space<vmem>>, vector<48x64xbf16>,
    %c112_601 = arith.constant 112 : index
    %c0_602 = arith.constant 0 : index
    %569 = vector.load %arg13[%c112_601, %c0_602] : memref<176x64xbf16, #tpu.memory_space<vmem>>, vector<48x64xbf16>
    %c0_603 = arith.constant 0 : index
    %c448_604 = arith.constant 448 : index
    %570 = vector.load %arg14[%c0_603, %c448_604] : memref<48x512xbf16, #tpu.memory_space<vmem>>, vector<48x64xbf16>
    tpu.vector_store %arg14[%c0_603, %c448_604], %569 {strides = array<i32>} : memref<48x512xbf16, #tpu.memory_space<vmem>>, vector<48x64xbf16>,
    %c0_605 = arith.constant 0 : index
    %c0_606 = arith.constant 0 : index
    %571 = vector.load %arg4[%c0_605, %c0_606] : memref<512x128xbf16, #tpu.memory_space<vmem>>, vector<512x128xbf16>
    %c0_607 = arith.constant 0 : index
    %c0_608 = arith.constant 0 : index
    %572 = vector.load %arg8[%c0_607, %c0_608] : memref<1x128xf32, #tpu.memory_space<vmem>>, vector<1x128xf32>
    %c0_609 = arith.constant 0 : index
    %c0_610 = arith.constant 0 : index
    %573 = vector.load %arg14[%c0_609, %c0_610] : memref<48x512xbf16, #tpu.memory_space<vmem>>, vector<16x512xbf16>
    %cst_611 = arith.constant dense<0.000000e+00> : vector<16x128xf32>
    %574 = tpu.matmul %573, %571, %cst_611 {dimension_numbers = #tpu.dot_dimension_numbers<[1], [0], [0], [1], [0, 0, 1, 1], [], []>} : vector<16x512xbf16>, vector<512x128xbf16>, vector<16x128xf32> -> vector<16x128xf32>
    %c16_612 = arith.constant 16 : index
    %c0_613 = arith.constant 0 : index
    %575 = vector.load %arg14[%c16_612, %c0_613] : memref<48x512xbf16, #tpu.memory_space<vmem>>, vector<16x512xbf16>
    %cst_614 = arith.constant dense<0.000000e+00> : vector<16x128xf32>
    %576 = tpu.matmul %575, %571, %cst_614 {dimension_numbers = #tpu.dot_dimension_numbers<[1], [0], [0], [1], [0, 0, 1, 1], [], []>} : vector<16x512xbf16>, vector<512x128xbf16>, vector<16x128xf32> -> vector<16x128xf32>
    %577 = arith.maximumf %574, %576 : vector<16x128xf32>
    %c32_615 = arith.constant 32 : index
    %c0_616 = arith.constant 0 : index
    %578 = vector.load %arg14[%c32_615, %c0_616] : memref<48x512xbf16, #tpu.memory_space<vmem>>, vector<16x512xbf16>
    %cst_617 = arith.constant dense<0.000000e+00> : vector<16x128xf32>
    %579 = tpu.matmul %578, %571, %cst_617 {dimension_numbers = #tpu.dot_dimension_numbers<[1], [0], [0], [1], [0, 0, 1, 1], [], []>} : vector<16x512xbf16>, vector<512x128xbf16>, vector<16x128xf32> -> vector<16x128xf32>
    %580 = arith.maximumf %577, %579 : vector<16x128xf32>
    %581 = vector.broadcast %572 : vector<1x128xf32> to vector<16x128xf32>
    %582 = arith.addf %580, %581 : vector<16x128xf32>
    %cst_618 = arith.constant 0.000000e+00 : f32
    %583 = vector.broadcast %cst_618 : f32 to vector<16x128xf32>
    %584 = arith.maximumf %582, %583 : vector<16x128xf32>
    %585 = arith.truncf %584 : vector<16x128xf32> to vector<16x128xbf16>
    %c0_619 = arith.constant 0 : index
    %c0_620 = arith.constant 0 : index
    %586 = vector.load %arg5[%c0_619, %c0_620] : memref<128x128xbf16, #tpu.memory_space<vmem>>, vector<128x128xbf16>
    %cst_621 = arith.constant dense<0.000000e+00> : vector<16x128xf32>
    %587 = tpu.matmul %585, %586, %cst_621 {dimension_numbers = #tpu.dot_dimension_numbers<[1], [0], [0], [1], [0, 0, 1, 1], [], []>} : vector<16x128xbf16>, vector<128x128xbf16>, vector<16x128xf32> -> vector<16x128xf32>
    %c0_622 = arith.constant 0 : index
    %c0_623 = arith.constant 0 : index
    %588 = vector.load %arg9[%c0_622, %c0_623] : memref<1x128xf32, #tpu.memory_space<vmem>>, vector<1x128xf32>
    %589 = vector.broadcast %588 : vector<1x128xf32> to vector<16x128xf32>
    %590 = arith.addf %587, %589 : vector<16x128xf32>
    %c0_624 = arith.constant 0 : index
    %c0_625 = arith.constant 0 : index
    %591 = vector.load %arg10[%c0_624, %c0_625] : memref<16x128xf32, #tpu.memory_space<vmem>>, vector<16x128xf32>
    tpu.vector_store %arg10[%c0_624, %c0_625], %590 {strides = array<i32>} : memref<16x128xf32, #tpu.memory_space<vmem>>, vector<16x128xf32>,
    return
  }
  func.func @transform_0(%arg0: i32) -> (i32, i32) {
    %c0_i32 = arith.constant 0 : i32
    %c0_i32_0 = arith.constant 0 : i32
    return %arg0, %c0_i32 : i32, i32
  }
  func.func @transform_1(%arg0: i32) -> (i32, i32) {
    %c0_i32 = arith.constant 0 : i32
    %c0_i32_0 = arith.constant 0 : i32
    %c0_i32_1 = arith.constant 0 : i32
    return %c0_i32, %c0_i32_0 : i32, i32
  }
  func.func @transform_2(%arg0: i32) -> (i32, i32) {
    %c0_i32 = arith.constant 0 : i32
    %c0_i32_0 = arith.constant 0 : i32
    %c0_i32_1 = arith.constant 0 : i32
    return %c0_i32, %c0_i32_0 : i32, i32
  }
  func.func @transform_3(%arg0: i32) -> (i32, i32) {
    %c0_i32 = arith.constant 0 : i32
    %c0_i32_0 = arith.constant 0 : i32
    %c0_i32_1 = arith.constant 0 : i32
    return %c0_i32, %c0_i32_0 : i32, i32
  }
  func.func @transform_4(%arg0: i32) -> (i32, i32) {
    %c0_i32 = arith.constant 0 : i32
    %c0_i32_0 = arith.constant 0 : i32
    %c0_i32_1 = arith.constant 0 : i32
    return %c0_i32, %c0_i32_0 : i32, i32
  }
  func.func @transform_5(%arg0: i32) -> (i32, i32) {
    %c0_i32 = arith.constant 0 : i32
    %c0_i32_0 = arith.constant 0 : i32
    %c0_i32_1 = arith.constant 0 : i32
    return %c0_i32, %c0_i32_0 : i32, i32
  }
  func.func @transform_6(%arg0: i32) -> (i32, i32) {
    %c0_i32 = arith.constant 0 : i32
    %c0_i32_0 = arith.constant 0 : i32
    %c0_i32_1 = arith.constant 0 : i32
    return %c0_i32, %c0_i32_0 : i32, i32
  }
  func.func @transform_7(%arg0: i32) -> (i32, i32) {
    %c0_i32 = arith.constant 0 : i32
    %c0_i32_0 = arith.constant 0 : i32
    %c0_i32_1 = arith.constant 0 : i32
    return %c0_i32, %c0_i32_0 : i32, i32
  }
  func.func @transform_8(%arg0: i32) -> (i32, i32) {
    %c0_i32 = arith.constant 0 : i32
    %c0_i32_0 = arith.constant 0 : i32
    %c0_i32_1 = arith.constant 0 : i32
    return %c0_i32, %c0_i32_0 : i32, i32
  }
  func.func @transform_9(%arg0: i32) -> (i32, i32) {
    %c0_i32 = arith.constant 0 : i32
    %c0_i32_0 = arith.constant 0 : i32
    return %arg0, %c0_i32 : i32, i32
  }
}

</mosaic_0001>

<llo_original>
// kernel: cell_cnn_forward.1
$region0: #{cell_cnn_forward.1}
  #allocation0 [shape = 'u32[]', space=smem, size = 0x4, offset = 0x4, fixed_abs, tag = 'smem constant byte address 0x4 - core index']
  #allocation1 [shape = 'u32[144,128]{1,0:T(1,128)}', space=vmem, size = 0x12000, scoped, tag = 'internal scratch']
  #allocation2 [shape = 'bf16[640,32]{1,0:T(16,128)(2,1)}', space=vmem, size = 0x28000, scoped, tag = 'scratch operand']
  #allocation3 [shape = 'bf16[528,256]{1,0:T(16,128)(2,1)}', space=vmem, size = 0x42000, scoped, tag = 'scratch operand']
  #allocation4 [shape = 'bf16[176,64]{1,0:T(16,128)(2,1)}', space=vmem, size = 0xb000, scoped, tag = 'scratch operand']
  #allocation5 [shape = 'bf16[48,512]{1,0:T(16,128)(2,1)}', space=vmem, size = 0xc000, scoped, tag = 'scratch operand']
  %s0 = inlined_call_operand.vmem [shape: bf16[16,144], index: 0, kind: input, shape index: {}]
  %s1 = inlined_call_operand.vmem [shape: bf16[24,384], index: 1, kind: input, shape index: {}]
  %s2 = inlined_call_operand.vmem [shape: bf16[256,64], index: 2, kind: input, shape index: {}]
  %s3 = inlined_call_operand.vmem [shape: bf16[512,128], index: 3, kind: input, shape index: {}]
  %s4 = inlined_call_operand.vmem [shape: bf16[128,128], index: 4, kind: input, shape index: {}]
  %s5 = inlined_call_operand.vmem [shape: f32[1,128], index: 5, kind: input, shape index: {}]
  %s6 = inlined_call_operand.vmem [shape: f32[1,64], index: 6, kind: input, shape index: {}]
  %s7 = inlined_call_operand.vmem [shape: f32[1,128], index: 7, kind: input, shape index: {}]
  %s8 = inlined_call_operand.vmem [shape: f32[1,128], index: 8, kind: input, shape index: {}]
  %s9 = inlined_call_operand.vmem [shape: f32[16,128], index: 9, kind: output, shape index: {}]
  %s10 = sld [smem:[#allocation0]]
  $region46: #{cell_cnn_forward.1} parent=0
    _
  %s12 = ssub.s32 1, %s10
  %s13 = scalar_select 0, %s12, %s10
  // Predicated region
  $region2: #{cell_cnn_forward.1} parent=0 // pred_check
    _
  $region3: #{cell_cnn_forward.1} parent=0 // pred_check_branch
    %15 = sbr.rel (0) target = $region5
  $region4: #{cell_cnn_forward.1} parent=0 // pred_region
    _
  $region5: #{cell_cnn_forward.1} parent=0 // pred_fallthru
    _
  // Predicated region
  $region6: #{cell_cnn_forward.1} parent=0 // pred_check
    _
  $region7: #{cell_cnn_forward.1} parent=0 // pred_check_branch
    %17 = sbr.rel (0) target = $region9
  $region8: #{cell_cnn_forward.1} parent=0 // pred_region
    _
  $region9: #{cell_cnn_forward.1} parent=0 // pred_fallthru
    _
  // Predicated region
  $region10: #{cell_cnn_forward.1} parent=0 // pred_check
    _
  $region11: #{cell_cnn_forward.1} parent=0 // pred_check_branch
    %19 = sbr.rel (0) target = $region13
  $region12: #{cell_cnn_forward.1} parent=0 // pred_region
    _
  $region13: #{cell_cnn_forward.1} parent=0 // pred_fallthru
    _
  // Predicated region
  $region14: #{cell_cnn_forward.1} parent=0 // pred_check
    _
  $region15: #{cell_cnn_forward.1} parent=0 // pred_check_branch
    %21 = sbr.rel (0) target = $region17
  $region16: #{cell_cnn_forward.1} parent=0 // pred_region
    _
  $region17: #{cell_cnn_forward.1} parent=0 // pred_fallthru
    _
  // Predicated region
  $region18: #{cell_cnn_forward.1} parent=0 // pred_check
    _
  $region19: #{cell_cnn_forward.1} parent=0 // pred_check_branch
    %23 = sbr.rel (0) target = $region21
  $region20: #{cell_cnn_forward.1} parent=0 // pred_region
    _
  $region21: #{cell_cnn_forward.1} parent=0 // pred_fallthru
    _
  // Predicated region
  $region22: #{cell_cnn_forward.1} parent=0 // pred_check
    _
  $region23: #{cell_cnn_forward.1} parent=0 // pred_check_branch
    %25 = sbr.rel (0) target = $region25
  $region24: #{cell_cnn_forward.1} parent=0 // pred_region
    _
  $region25: #{cell_cnn_forward.1} parent=0 // pred_fallthru
    _
  // Predicated region
  $region26: #{cell_cnn_forward.1} parent=0 // pred_check
    _
  $region27: #{cell_cnn_forward.1} parent=0 // pred_check_branch
    %27 = sbr.rel (0) target = $region29
  $region28: #{cell_cnn_forward.1} parent=0 // pred_region
    _
  $region29: #{cell_cnn_forward.1} parent=0 // pred_fallthru
    _
  // Predicated region
  $region30: #{cell_cnn_forward.1} parent=0 // pred_check
    _
  $region31: #{cell_cnn_forward.1} parent=0 // pred_check_branch
    %29 = sbr.rel (0) target = $region33
  $region32: #{cell_cnn_forward.1} parent=0 // pred_region
    _
  $region33: #{cell_cnn_forward.1} parent=0 // pred_fallthru
    _
  // Predicated region
  $region34: #{cell_cnn_forward.1} parent=0 // pred_check
    _
  $region35: #{cell_cnn_forward.1} parent=0 // pred_check_branch
    %31 = sbr.rel (0) target = $region37
  $region36: #{cell_cnn_forward.1} parent=0 // pred_region
    _
  $region37: #{cell_cnn_forward.1} parent=0 // pred_fallthru
    _
  %v33 = vld [vmem:[%s0] sm:$0xff]
  %v34 = vld [vmem:[%s0 + $0x8] sm:$0xff]
  %v35 = vld [vmem:[%s1] sm:$0xff]
  %v36 = vld [vmem:[%s1 + $0x8] sm:$0xf]
  %v37 = vld [vmem:[%s1 + $0xc] sm:$0xff]
  %v38 = vld [vmem:[%s1 + $0x14] sm:$0xf]
  %v39 = vld [vmem:[%s1 + $0x18] sm:$0xff]
  %v40 = vld [vmem:[%s1 + $0x20] sm:$0xf]
  %v41 = vld [vmem:[%s5] sm:$0x1]
  %v44 = vunpack.c.l.b16 %v33
  %v45 = vunpack.c.l.b16 %v34
  %v46 = vpack.c.b16 %v45, %v44
  %v50 = vunpack.c.l.b16 %v35
  %v51 = vunpack.c.l.b16 %v37
  %v52 = vunpack.c.l.b16 %v39
  %v53 = vpack.c.b16 %v51, %v50
  %v54 = vpack.c.b16 %v52, %v52
  %vm56 = vcmask 195584
  %v58 = vsel %vm56, %v46, 0
  %vm60 = vcmask 1043456
  %v62 = vsel %vm60, %v54, 0
  %64 = vmatprep.subr.bf16.mxu0 0
  %65 = vmatpush1.bf16.msra.mxu0 %v53
  %66 = vmatprep.subr.bf16.mxu0 0
  %67 = vmatpush1.bf16.msra.mxu0 %v62
  %68 = vmatprep.subr.bf16.mxu0 0
  %69 = vmatpush1.bf16.msra.mxu0 0
  %70 = vmatprep.subr.bf16.mxu0 0
  %71 = vmatpush1.bf16.msra.mxu0 0
  %72 = vmatprep.subr.bf16.mxu0 0
  %73 = vmatpush1.bf16.msra.mxu0 0
  %74 = vmatprep.subr.bf16.mxu0 0
  %75 = vmatpush1.bf16.msra.mxu0 0
  %76 = vmatprep.subr.bf16.mxu0 0
  %77 = vmatpush1.bf16.msra.mxu0 0
  %78 = vmatprep.subr.bf16.mxu0 0
  %79 = vmatpush1.bf16.msra.mxu0 0
  %80 = vmatprep.subr.bf16.mxu0 0
  %81 = vmatpush1.bf16.msra.mxu0 0
  %82 = vmatprep.subr.bf16.mxu0 0
  %83 = vmatpush1.bf16.msra.mxu0 0
  %84 = vmatprep.subr.bf16.mxu0 0
  %85 = vmatpush1.bf16.msra.mxu0 0
  %86 = vmatprep.subr.bf16.mxu0 0
  %87 = vmatpush1.bf16.msra.mxu0 0
  %88 = vmatprep.subr.bf16.mxu0 0
  %89 = vmatpush1.bf16.msra.mxu0 0
  %90 = vmatprep.subr.bf16.mxu0 0
  %91 = vmatpush1.bf16.msra.mxu0 0
  %92 = vmatprep.subr.bf16.mxu0 0
  %93 = vmatpush1.bf16.msra.mxu0 0
  %94 = vmatprep.subr.bf16.mxu0 0
  %95 = vmatpush1.bf16.msra.mxu0 0
  %96 = vmatprep.mubr.bf16.mxu0 0
  %97 = vmatmul.mubr.bf16.gmra.mrb[0].mxu0 %v58
  %v98 = vpop.f32.mrb[0].mxu0
  %v99 = vadd.f32 0.0, %v98
  %v100 = vpop.f32.mrb[0].mxu0
  %v101 = vpop.f32.mrb[0].mxu0
  %v102 = vadd.f32 0.0, %v101
  %v103 = vpop.f32.mrb[0].mxu0
  %104 = vdwg.mxu0
  %v105 = vunpack.c.h.b16 %v35
  %v106 = vunpack.c.h.b16 %v37
  %v107 = vunpack.c.h.b16 %v39
  %v108 = vpack.c.b16 %v106, %v105
  %v109 = vpack.c.b16 %v107, %v107
  %v112 = vsel %vm60, %v109, 0
  %114 = vmatprep.subr.bf16.mxu0 0
  %115 = vmatpush1.bf16.msra.mxu0 %v108
  %116 = vmatprep.subr.bf16.mxu0 0
  %117 = vmatpush1.bf16.msra.mxu0 %v112
  %118 = vmatprep.subr.bf16.mxu0 0
  %119 = vmatpush1.bf16.msra.mxu0 0
  %120 = vmatprep.subr.bf16.mxu0 0
  %121 = vmatpush1.bf16.msra.mxu0 0
  %122 = vmatprep.subr.bf16.mxu0 0
  %123 = vmatpush1.bf16.msra.mxu0 0
  %124 = vmatprep.subr.bf16.mxu0 0
  %125 = vmatpush1.bf16.msra.mxu0 0
  %126 = vmatprep.subr.bf16.mxu0 0
  %127 = vmatpush1.bf16.msra.mxu0 0
  %128 = vmatprep.subr.bf16.mxu0 0
  %129 = vmatpush1.bf16.msra.mxu0 0
  %130 = vmatprep.subr.bf16.mxu0 0
  %131 = vmatpush1.bf16.msra.mxu0 0
  %132 = vmatprep.subr.bf16.mxu0 0
  %133 = vmatpush1.bf16.msra.mxu0 0
  %134 = vmatprep.subr.bf16.mxu0 0
  %135 = vmatpush1.bf16.msra.mxu0 0
  %136 = vmatprep.subr.bf16.mxu0 0
  %137 = vmatpush1.bf16.msra.mxu0 0
  %138 = vmatprep.subr.bf16.mxu0 0
  %139 = vmatpush1.bf16.msra.mxu0 0
  %140 = vmatprep.subr.bf16.mxu0 0
  %141 = vmatpush1.bf16.msra.mxu0 0
  %142 = vmatprep.subr.bf16.mxu0 0
  %143 = vmatpush1.bf16.msra.mxu0 0
  %144 = vmatprep.subr.bf16.mxu0 0
  %145 = vmatpush1.bf16.msra.mxu0 0
  %146 = vmatprep.mubr.bf16.mxu0 0
  %147 = vmatmul.mubr.bf16.gmra.mrb[0].mxu0 %v58
  %v148 = vpop.f32.mrb[0].mxu0
  %v149 = vadd.f32 0.0, %v148
  %v150 = vpop.f32.mrb[0].mxu0
  %v151 = vpop.f32.mrb[0].mxu0
  %v152 = vadd.f32 0.0, %v151
  %v153 = vpop.f32.mrb[0].mxu0
  %154 = vdwg.mxu0
  %v155 = vmax.f32 %v99, %v149
  %v156 = vmax.f32 %v102, %v152
  %v160 = vunpack.c.l.b16 %v36
  %v161 = vunpack.c.l.b16 %v38
  %v162 = vunpack.c.l.b16 %v40
  %v163 = vpack.c.b16 %v161, %v160
  %v164 = vpack.c.b16 %v162, %v162
  %v167 = vsel %vm60, %v164, 0
  %169 = vmatprep.subr.bf16.mxu0 0
  %170 = vmatpush1.bf16.msra.mxu0 %v163
  %171 = vmatprep.subr.bf16.mxu0 0
  %172 = vmatpush1.bf16.msra.mxu0 %v167
  %173 = vmatprep.subr.bf16.mxu0 0
  %174 = vmatpush1.bf16.msra.mxu0 0
  %175 = vmatprep.subr.bf16.mxu0 0
  %176 = vmatpush1.bf16.msra.mxu0 0
  %177 = vmatprep.subr.bf16.mxu0 0
  %178 = vmatpush1.bf16.msra.mxu0 0
  %179 = vmatprep.subr.bf16.mxu0 0
  %180 = vmatpush1.bf16.msra.mxu0 0
  %181 = vmatprep.subr.bf16.mxu0 0
  %182 = vmatpush1.bf16.msra.mxu0 0
  %183 = vmatprep.subr.bf16.mxu0 0
  %184 = vmatpush1.bf16.msra.mxu0 0
  %185 = vmatprep.subr.bf16.mxu0 0
  %186 = vmatpush1.bf16.msra.mxu0 0
  %187 = vmatprep.subr.bf16.mxu0 0
  %188 = vmatpush1.bf16.msra.mxu0 0
  %189 = vmatprep.subr.bf16.mxu0 0
  %190 = vmatpush1.bf16.msra.mxu0 0
  %191 = vmatprep.subr.bf16.mxu0 0
  %192 = vmatpush1.bf16.msra.mxu0 0
  %193 = vmatprep.subr.bf16.mxu0 0
  %194 = vmatpush1.bf16.msra.mxu0 0
  %195 = vmatprep.subr.bf16.mxu0 0
  %196 = vmatpush1.bf16.msra.mxu0 0
  %197 = vmatprep.subr.bf16.mxu0 0
  %198 = vmatpush1.bf16.msra.mxu0 0
  %199 = vmatprep.subr.bf16.mxu0 0
  %200 = vmatpush1.bf16.msra.mxu0 0
  %201 = vmatprep.mubr.bf16.mxu0 0
  %202 = vmatmul.mubr.bf16.gmra.mrb[0].mxu0 %v58
  %v203 = vpop.f32.mrb[0].mxu0
  %v204 = vadd.f32 0.0, %v203
  %v205 = vpop.f32.mrb[0].mxu0
  %v206 = vpop.f32.mrb[0].mxu0
  %v207 = vadd.f32 0.0, %v206
  %v208 = vpop.f32.mrb[0].mxu0
  %209 = vdwg.mxu0
  %v210 = vmax.f32 %v155, %v204
  %v211 = vmax.f32 %v156, %v207
  %v213 = vlaneseq
  %v214 = vshrl.u32 %v213, 7
  %v215 = vsub.s32 0, %v214
  %v216 = vrot.slane %v41, %v215
  %v218 = vadd.f32 %v210, %v216
  %v219 = vadd.f32 %v211, %v216
  %v220 = vmax.f32 %v218, 0.0
  %v221 = vmax.f32 %v219, 0.0
  %v222 = vpack.c.bf16 %v221, %v220
  %vm223 = vcmask 261120
  %224 = vst.msk [vmem:[#allocation2] sm:$0xff] %vm223, %v222
  %226 = vrot.lane.b32.xlu0 %v222, 96
  %v227 = vpop.permute.xlu0 %226
  %229 = vst.msk [vmem:[#allocation2 + $0x8] sm:$0xff] %vm223, %v227
  %230 = vrot.lane.b32.xlu0 %v222, 64
  %v231 = vpop.permute.xlu0 %230
  %233 = vst.msk [vmem:[#allocation2 + $0x10] sm:$0xff] %vm223, %v231
  %234 = vrot.lane.b32.xlu0 %v222, 32
  %v235 = vpop.permute.xlu0 %234
  %237 = vst.msk [vmem:[#allocation2 + $0x18] sm:$0xff] %vm223, %v235
  %238 = vrot.lane.b32.xlu0 %v46, 116
  %v239 = vpop.permute.xlu0 %238
  %v241 = vsel %vm56, %v239, 0
  %243 = vmatprep.subr.bf16.mxu0 0
  %244 = vmatpush1.bf16.msra.mxu0 %v53
  %245 = vmatprep.subr.bf16.mxu0 0
  %246 = vmatpush1.bf16.msra.mxu0 %v62
  %247 = vmatprep.subr.bf16.mxu0 0
  %248 = vmatpush1.bf16.msra.mxu0 0
  %249 = vmatprep.subr.bf16.mxu0 0
  %250 = vmatpush1.bf16.msra.mxu0 0
  %251 = vmatprep.subr.bf16.mxu0 0
  %252 = vmatpush1.bf16.msra.mxu0 0
  %253 = vmatprep.subr.bf16.mxu0 0
  %254 = vmatpush1.bf16.msra.mxu0 0
  %255 = vmatprep.subr.bf16.mxu0 0
  %256 = vmatpush1.bf16.msra.mxu0 0
  %257 = vmatprep.subr.bf16.mxu0 0
  %258 = vmatpush1.bf16.msra.mxu0 0
  %259 = vmatprep.subr.bf16.mxu0 0
  %260 = vmatpush1.bf16.msra.mxu0 0
  %261 = vmatprep.subr.bf16.mxu0 0
  %262 = vmatpush1.bf16.msra.mxu0 0
  %263 = vmatprep.subr.bf16.mxu0 0
  %264 = vmatpush1.bf16.msra.mxu0 0
  %265 = vmatprep.subr.bf16.mxu0 0
  %266 = vmatpush1.bf16.msra.mxu0 0
  %267 = vmatprep.subr.bf16.mxu0 0
  %268 = vmatpush1.bf16.msra.mxu0 0
  %269 = vmatprep.subr.bf16.mxu0 0
  %270 = vmatpush1.bf16.msra.mxu0 0
  %271 = vmatprep.subr.bf16.mxu0 0
  %272 = vmatpush1.bf16.msra.mxu0 0
  %273 = vmatprep.subr.bf16.mxu0 0
  %274 = vmatpush1.bf16.msra.mxu0 0
  %275 = vmatprep.mubr.bf16.mxu0 0
  %276 = vmatmul.mubr.bf16.gmra.mrb[0].mxu0 %v241
  %v277 = vpop.f32.mrb[0].mxu0
  %v278 = vadd.f32 0.0, %v277
  %v279 = vpop.f32.mrb[0].mxu0
  %v280 = vpop.f32.mrb[0].mxu0
  %v281 = vadd.f32 0.0, %v280
  %v282 = vpop.f32.mrb[0].mxu0
  %283 = vdwg.mxu0
  %284 = vmatprep.subr.bf16.mxu0 0
  %285 = vmatpush1.bf16.msra.mxu0 %v108
  %286 = vmatprep.subr.bf16.mxu0 0
  %287 = vmatpush1.bf16.msra.mxu0 %v112
  %288 = vmatprep.subr.bf16.mxu0 0
  %289 = vmatpush1.bf16.msra.mxu0 0
  %290 = vmatprep.subr.bf16.mxu0 0
  %291 = vmatpush1.bf16.msra.mxu0 0
  %292 = vmatprep.subr.bf16.mxu0 0
  %293 = vmatpush1.bf16.msra.mxu0 0
  %294 = vmatprep.subr.bf16.mxu0 0
  %295 = vmatpush1.bf16.msra.mxu0 0
  %296 = vmatprep.subr.bf16.mxu0 0
  %297 = vmatpush1.bf16.msra.mxu0 0
  %298 = vmatprep.subr.bf16.mxu0 0
  %299 = vmatpush1.bf16.msra.mxu0 0
  %300 = vmatprep.subr.bf16.mxu0 0
  %301 = vmatpush1.bf16.msra.mxu0 0
  %302 = vmatprep.subr.bf16.mxu0 0
  %303 = vmatpush1.bf16.msra.mxu0 0
  %304 = vmatprep.subr.bf16.mxu0 0
  %305 = vmatpush1.bf16.msra.mxu0 0
  %306 = vmatprep.subr.bf16.mxu0 0
  %307 = vmatpush1.bf16.msra.mxu0 0
  %308 = vmatprep.subr.bf16.mxu0 0
  %309 = vmatpush1.bf16.msra.mxu0 0
  %310 = vmatprep.subr.bf16.mxu0 0
  %311 = vmatpush1.bf16.msra.mxu0 0
  %312 = vmatprep.subr.bf16.mxu0 0
  %313 = vmatpush1.bf16.msra.mxu0 0
  %314 = vmatprep.subr.bf16.mxu0 0
  %315 = vmatpush1.bf16.msra.mxu0 0
  %316 = vmatprep.mubr.bf16.mxu0 0
  %317 = vmatmul.mubr.bf16.gmra.mrb[0].mxu0 %v241
  %v318 = vpop.f32.mrb[0].mxu0
  %v319 = vadd.f32 0.0, %v318
  %v320 = vpop.f32.mrb[0].mxu0
  %v321 = vpop.f32.mrb[0].mxu0
  %v322 = vadd.f32 0.0, %v321
  %v323 = vpop.f32.mrb[0].mxu0
  %324 = vdwg.mxu0
  %v325 = vmax.f32 %v278, %v319
  %v326 = vmax.f32 %v281, %v322
  %327 = vmatprep.subr.bf16.mxu0 0
  %328 = vmatpush1.bf16.msra.mxu0 %v163
  %329 = vmatprep.subr.bf16.mxu0 0
  %330 = vmatpush1.bf16.msra.mxu0 %v167
  %331 = vmatprep.subr.bf16.mxu0 0
  %332 = vmatpush1.bf16.msra.mxu0 0
  %333 = vmatprep.subr.bf16.mxu0 0
  %334 = vmatpush1.bf16.msra.mxu0 0
  %335 = vmatprep.subr.bf16.mxu0 0
  %336 = vmatpush1.bf16.msra.mxu0 0
  %337 = vmatprep.subr.bf16.mxu0 0
  %338 = vmatpush1.bf16.msra.mxu0 0
  %339 = vmatprep.subr.bf16.mxu0 0
  %340 = vmatpush1.bf16.msra.mxu0 0
  %341 = vmatprep.subr.bf16.mxu0 0
  %342 = vmatpush1.bf16.msra.mxu0 0
  %343 = vmatprep.subr.bf16.mxu0 0
  %344 = vmatpush1.bf16.msra.mxu0 0
  %345 = vmatprep.subr.bf16.mxu0 0
  %346 = vmatpush1.bf16.msra.mxu0 0
  %347 = vmatprep.subr.bf16.mxu0 0
  %348 = vmatpush1.bf16.msra.mxu0 0
  %349 = vmatprep.subr.bf16.mxu0 0
  %350 = vmatpush1.bf16.msra.mxu0 0
  %351 = vmatprep.subr.bf16.mxu0 0
  %352 = vmatpush1.bf16.msra.mxu0 0
  %353 = vmatprep.subr.bf16.mxu0 0
  %354 = vmatpush1.bf16.msra.mxu0 0
  %355 = vmatprep.subr.bf16.mxu0 0
  %356 = vmatpush1.bf16.msra.mxu0 0
  %357 = vmatprep.subr.bf16.mxu0 0
  %358 = vmatpush1.bf16.msra.mxu0 0
  %359 = vmatprep.mubr.bf16.mxu0 0
  %360 = vmatmul.mubr.bf16.gmra.mrb[0].mxu0 %v241
  %v361 = vpop.f32.mrb[0].mxu0
  %v362 = vadd.f32 0.0, %v361
  %v363 = vpop.f32.mrb[0].mxu0
  %v364 = vpop.f32.mrb[0].mxu0
  %v365 = vadd.f32 0.0, %v364
  %v366 = vpop.f32.mrb[0].mxu0
  %367 = vdwg.mxu0
  %v368 = vmax.f32 %v325, %v362
  %v369 = vmax.f32 %v326, %v365
  %v370 = vadd.f32 %v368, %v216
  %v371 = vadd.f32 %v369, %v216
  %v372 = vmax.f32 %v370, 0.0
  %v373 = vmax.f32 %v371, 0.0
  %v374 = vpack.c.bf16 %v373, %v372
  %375 = vst.msk [vmem:[#allocation2 + $0x20] sm:$0xff] %vm223, %v374
  %377 = vrot.lane.b32.xlu0 %v374, 96
  %v378 = vpop.permute.xlu0 %377
  %380 = vst.msk [vmem:[#allocation2 + $0x28] sm:$0xff] %vm223, %v378
  %381 = vrot.lane.b32.xlu0 %v374, 64
  %v382 = vpop.permute.xlu0 %381
  %384 = vst.msk [vmem:[#allocation2 + $0x30] sm:$0xff] %vm223, %v382
  %385 = vrot.lane.b32.xlu0 %v374, 32
  %v386 = vpop.permute.xlu0 %385
  %388 = vst.msk [vmem:[#allocation2 + $0x38] sm:$0xff] %vm223, %v386
  %389 = vrot.lane.b32.xlu0 %v46, 104
  %v390 = vpop.permute.xlu0 %389
  %v392 = vsel %vm56, %v390, 0
  %394 = vmatprep.subr.bf16.mxu0 0
  %395 = vmatpush1.bf16.msra.mxu0 %v53
  %396 = vmatprep.subr.bf16.mxu0 0
  %397 = vmatpush1.bf16.msra.mxu0 %v62
  %398 = vmatprep.subr.bf16.mxu0 0
  %399 = vmatpush1.bf16.msra.mxu0 0
  %400 = vmatprep.subr.bf16.mxu0 0
  %401 = vmatpush1.bf16.msra.mxu0 0
  %402 = vmatprep.subr.bf16.mxu0 0
  %403 = vmatpush1.bf16.msra.mxu0 0
  %404 = vmatprep.subr.bf16.mxu0 0
  %405 = vmatpush1.bf16.msra.mxu0 0
  %406 = vmatprep.subr.bf16.mxu0 0
  %407 = vmatpush1.bf16.msra.mxu0 0
  %408 = vmatprep.subr.bf16.mxu0 0
  %409 = vmatpush1.bf16.msra.mxu0 0
  %410 = vmatprep.subr.bf16.mxu0 0
  %411 = vmatpush1.bf16.msra.mxu0 0
  %412 = vmatprep.subr.bf16.mxu0 0
  %413 = vmatpush1.bf16.msra.mxu0 0
  %414 = vmatprep.subr.bf16.mxu0 0
  %415 = vmatpush1.bf16.msra.mxu0 0
  %416 = vmatprep.subr.bf16.mxu0 0
  %417 = vmatpush1.bf16.msra.mxu0 0
  %418 = vmatprep.subr.bf16.mxu0 0
  %419 = vmatpush1.bf16.msra.mxu0 0
  %420 = vmatprep.subr.bf16.mxu0 0
  %421 = vmatpush1.bf16.msra.mxu0 0
  %422 = vmatprep.subr.bf16.mxu0 0
  %423 = vmatpush1.bf16.msra.mxu0 0
  %424 = vmatprep.subr.bf16.mxu0 0
  %425 = vmatpush1.bf16.msra.mxu0 0
  %426 = vmatprep.mubr.bf16.mxu0 0
  %427 = vmatmul.mubr.bf16.gmra.mrb[0].mxu0 %v392
  %v428 = vpop.f32.mrb[0].mxu0
  %v429 = vadd.f32 0.0, %v428
  %v430 = vpop.f32.mrb[0].mxu0
  %v431 = vpop.f32.mrb[0].mxu0
  %v432 = vadd.f32 0.0, %v431
  %v433 = vpop.f32.mrb[0].mxu0
  %434 = vdwg.mxu0
  %435 = vmatprep.subr.bf16.mxu0 0
  %436 = vmatpush1.bf16.msra.mxu0 %v108
  %437 = vmatprep.subr.bf16.mxu0 0
  %438 = vmatpush1.bf16.msra.mxu0 %v112
  %439 = vmatprep.subr.bf16.mxu0 0
  %440 = vmatpush1.bf16.msra.mxu0 0
  %441 = vmatprep.subr.bf16.mxu0 0
  %442 = vmatpush1.bf16.msra.mxu0 0
  %443 = vmatprep.subr.bf16.mxu0 0
  %444 = vmatpush1.bf16.msra.mxu0 0
  %445 = vmatprep.subr.bf16.mxu0 0
  %446 = vmatpush1.bf16.msra.mxu0 0
  %447 = vmatprep.subr.bf16.mxu0 0
  %448 = vmatpush1.bf16.msra.mxu0 0
  %449 = vmatprep.subr.bf16.mxu0 0
  %450 = vmatpush1.bf16.msra.mxu0 0
  %451 = vmatprep.subr.bf16.mxu0 0
  %452 = vmatpush1.bf16.msra.mxu0 0
  %453 = vmatprep.subr.bf16.mxu0 0
  %454 = vmatpush1.bf16.msra.mxu0 0
  %455 = vmatprep.subr.bf16.mxu0 0
  %456 = vmatpush1.bf16.msra.mxu0 0
  %457 = vmatprep.subr.bf16.mxu0 0
  %458 = vmatpush1.bf16.msra.mxu0 0
  %459 = vmatprep.subr.bf16.mxu0 0
  %460 = vmatpush1.bf16.msra.mxu0 0
  %461 = vmatprep.subr.bf16.mxu0 0
  %462 = vmatpush1.bf16.msra.mxu0 0
  %463 = vmatprep.subr.bf16.mxu0 0
  %464 = vmatpush1.bf16.msra.mxu0 0
  %465 = vmatprep.subr.bf16.mxu0 0
  %466 = vmatpush1.bf16.msra.mxu0 0
  %467 = vmatprep.mubr.bf16.mxu0 0
  %468 = vmatmul.mubr.bf16.gmra.mrb[0].mxu0 %v392
  %v469 = vpop.f32.mrb[0].mxu0
  %v470 = vadd.f32 0.0, %v469
  %v471 = vpop.f32.mrb[0].mxu0
  %v472 = vpop.f32.mrb[0].mxu0
  %v473 = vadd.f32 0.0, %v472
  %v474 = vpop.f32.mrb[0].mxu0
  %475 = vdwg.mxu0
  %v476 = vmax.f32 %v429, %v470
  %v477 = vmax.f32 %v432, %v473
  %478 = vmatprep.subr.bf16.mxu0 0
  %479 = vmatpush1.bf16.msra.mxu0 %v163
  %480 = vmatprep.subr.bf16.mxu0 0
  %481 = vmatpush1.bf16.msra.mxu0 %v167
  %482 = vmatprep.subr.bf16.mxu0 0
  %483 = vmatpush1.bf16.msra.mxu0 0
  %484 = vmatprep.subr.bf16.mxu0 0
  %485 = vmatpush1.bf16.msra.mxu0 0
  %486 = vmatprep.subr.bf16.mxu0 0
  %487 = vmatpush1.bf16.msra.mxu0 0
  %488 = vmatprep.subr.bf16.mxu0 0
  %489 = vmatpush1.bf16.msra.mxu0 0
  %490 = vmatprep.subr.bf16.mxu0 0
  %491 = vmatpush1.bf16.msra.mxu0 0
  %492 = vmatprep.subr.bf16.mxu0 0
  %493 = vmatpush1.bf16.msra.mxu0 0
  %494 = vmatprep.subr.bf16.mxu0 0
  %495 = vmatpush1.bf16.msra.mxu0 0
  %496 = vmatprep.subr.bf16.mxu0 0
  %497 = vmatpush1.bf16.msra.mxu0 0
  %498 = vmatprep.subr.bf16.mxu0 0
  %499 = vmatpush1.bf16.msra.mxu0 0
  %500 = vmatprep.subr.bf16.mxu0 0
  %501 = vmatpush1.bf16.msra.mxu0 0
  %502 = vmatprep.subr.bf16.mxu0 0
  %503 = vmatpush1.bf16.msra.mxu0 0
  %504 = vmatprep.subr.bf16.mxu0 0
  %505 = vmatpush1.bf16.msra.mxu0 0
  %506 = vmatprep.subr.bf16.mxu0 0
  %507 = vmatpush1.bf16.msra.mxu0 0
  %508 = vmatprep.subr.bf16.mxu0 0
  %509 = vmatpush1.bf16.msra.mxu0 0
  %510 = vmatprep.mubr.bf16.mxu0 0
  %511 = vmatmul.mubr.bf16.gmra.mrb[0].mxu0 %v392
  %v512 = vpop.f32.mrb[0].mxu0
  %v513 = vadd.f32 0.0, %v512
  %v514 = vpop.f32.mrb[0].mxu0
  %v515 = vpop.f32.mrb[0].mxu0
  %v516 = vadd.f32 0.0, %v515
  %v517 = vpop.f32.mrb[0].mxu0
  %518 = vdwg.mxu0
  %v519 = vmax.f32 %v476, %v513
  %v520 = vmax.f32 %v477, %v516
  %v521 = vadd.f32 %v519, %v216
  %v522 = vadd.f32 %v520, %v216
  %v523 = vmax.f32 %v521, 0.0
  %v524 = vmax.f32 %v522, 0.0
  %v525 = vpack.c.bf16 %v524, %v523
  %526 = vst.msk [vmem:[#allocation2 + $0x40] sm:$0xff] %vm223, %v525
  %528 = vrot.lane.b32.xlu0 %v525, 96
  %v529 = vpop.permute.xlu0 %528
  %531 = vst.msk [vmem:[#allocation2 + $0x48] sm:$0xff] %vm223, %v529
  %532 = vrot.lane.b32.xlu0 %v525, 64
  %v533 = vpop.permute.xlu0 %532
  %535 = vst.msk [vmem:[#allocation2 + $0x50] sm:$0xff] %vm223, %v533
  %536 = vrot.lane.b32.xlu0 %v525, 32
  %v537 = vpop.permute.xlu0 %536
  %539 = vst.msk [vmem:[#allocation2 + $0x58] sm:$0xff] %vm223, %v537
  %540 = vrot.lane.b32.xlu0 %v46, 92
  %v541 = vpop.permute.xlu0 %540
  %v543 = vsel %vm56, %v541, 0
  %545 = vmatprep.subr.bf16.mxu0 0
  %546 = vmatpush1.bf16.msra.mxu0 %v53
  %547 = vmatprep.subr.bf16.mxu0 0
  %548 = vmatpush1.bf16.msra.mxu0 %v62
  %549 = vmatprep.subr.bf16.mxu0 0
  %550 = vmatpush1.bf16.msra.mxu0 0
  %551 = vmatprep.subr.bf16.mxu0 0
  %552 = vmatpush1.bf16.msra.mxu0 0
  %553 = vmatprep.subr.bf16.mxu0 0
  %554 = vmatpush1.bf16.msra.mxu0 0
  %555 = vmatprep.subr.bf16.mxu0 0
  %556 = vmatpush1.bf16.msra.mxu0 0
  %557 = vmatprep.subr.bf16.mxu0 0
  %558 = vmatpush1.bf16.msra.mxu0 0
  %559 = vmatprep.subr.bf16.mxu0 0
  %560 = vmatpush1.bf16.msra.mxu0 0
  %561 = vmatprep.subr.bf16.mxu0 0
  %562 = vmatpush1.bf16.msra.mxu0 0
  %563 = vmatprep.subr.bf16.mxu0 0
  %564 = vmatpush1.bf16.msra.mxu0 0
  %565 = vmatprep.subr.bf16.mxu0 0
  %566 = vmatpush1.bf16.msra.mxu0 0
  %567 = vmatprep.subr.bf16.mxu0 0
  %568 = vmatpush1.bf16.msra.mxu0 0
  %569 = vmatprep.subr.bf16.mxu0 0
  %570 = vmatpush1.bf16.msra.mxu0 0
  %571 = vmatprep.subr.bf16.mxu0 0
  %572 = vmatpush1.bf16.msra.mxu0 0
  %573 = vmatprep.subr.bf16.mxu0 0
  %574 = vmatpush1.bf16.msra.mxu0 0
  %575 = vmatprep.subr.bf16.mxu0 0
  %576 = vmatpush1.bf16.msra.mxu0 0
  %577 = vmatprep.mubr.bf16.mxu0 0
  %578 = vmatmul.mubr.bf16.gmra.mrb[0].mxu0 %v543
  %v579 = vpop.f32.mrb[0].mxu0
  %v580 = vadd.f32 0.0, %v579
  %v581 = vpop.f32.mrb[0].mxu0
  %v582 = vpop.f32.mrb[0].mxu0
  %v583 = vadd.f32 0.0, %v582
  %v584 = vpop.f32.mrb[0].mxu0
  %585 = vdwg.mxu0
  %586 = vmatprep.subr.bf16.mxu0 0
  %587 = vmatpush1.bf16.msra.mxu0 %v108
  %588 = vmatprep.subr.bf16.mxu0 0
  %589 = vmatpush1.bf16.msra.mxu0 %v112
  %590 = vmatprep.subr.bf16.mxu0 0
  %591 = vmatpush1.bf16.msra.mxu0 0
  %592 = vmatprep.subr.bf16.mxu0 0
  %593 = vmatpush1.bf16.msra.mxu0 0
  %594 = vmatprep.subr.bf16.mxu0 0
  %595 = vmatpush1.bf16.msra.mxu0 0
  %596 = vmatprep.subr.bf16.mxu0 0
  %597 = vmatpush1.bf16.msra.mxu0 0
  %598 = vmatprep.subr.bf16.mxu0 0
  %599 = vmatpush1.bf16.msra.mxu0 0
  %600 = vmatprep.subr.bf16.mxu0 0
  %601 = vmatpush1.bf16.msra.mxu0 0
  %602 = vmatprep.subr.bf16.mxu0 0
  %603 = vmatpush1.bf16.msra.mxu0 0
  %604 = vmatprep.subr.bf16.mxu0 0
  %605 = vmatpush1.bf16.msra.mxu0 0
  %606 = vmatprep.subr.bf16.mxu0 0
  %607 = vmatpush1.bf16.msra.mxu0 0
  %608 = vmatprep.subr.bf16.mxu0 0
  %609 = vmatpush1.bf16.msra.mxu0 0
  %610 = vmatprep.subr.bf16.mxu0 0
  %611 = vmatpush1.bf16.msra.mxu0 0
  %612 = vmatprep.subr.bf16.mxu0 0
  %613 = vmatpush1.bf16.msra.mxu0 0
  %614 = vmatprep.subr.bf16.mxu0 0
  %615 = vmatpush1.bf16.msra.mxu0 0
  %616 = vmatprep.subr.bf16.mxu0 0
  %617 = vmatpush1.bf16.msra.mxu0 0
  %618 = vmatprep.mubr.bf16.mxu0 0
  %619 = vmatmul.mubr.bf16.gmra.mrb[0].mxu0 %v543
  %v620 = vpop.f32.mrb[0].mxu0
  %v621 = vadd.f32 0.0, %v620
  %v622 = vpop.f32.mrb[0].mxu0
  %v623 = vpop.f32.mrb[0].mxu0
  %v624 = vadd.f32 0.0, %v623
  %v625 = vpop.f32.mrb[0].mxu0
  %626 = vdwg.mxu0
  %v627 = vmax.f32 %v580, %v621
  %v628 = vmax.f32 %v583, %v624
  %629 = vmatprep.subr.bf16.mxu0 0
  %630 = vmatpush1.bf16.msra.mxu0 %v163
  %631 = vmatprep.subr.bf16.mxu0 0
  %632 = vmatpush1.bf16.msra.mxu0 %v167
  %633 = vmatprep.subr.bf16.mxu0 0
  %634 = vmatpush1.bf16.msra.mxu0 0
  %635 = vmatprep.subr.bf16.mxu0 0
  %636 = vmatpush1.bf16.msra.mxu0 0
  %637 = vmatprep.subr.bf16.mxu0 0
  %638 = vmatpush1.bf16.msra.mxu0 0
  %639 = vmatprep.subr.bf16.mxu0 0
  %640 = vmatpush1.bf16.msra.mxu0 0
  %641 = vmatprep.subr.bf16.mxu0 0
  %642 = vmatpush1.bf16.msra.mxu0 0
  %643 = vmatprep.subr.bf16.mxu0 0
  %644 = vmatpush1.bf16.msra.mxu0 0
  %645 = vmatprep.subr.bf16.mxu0 0
  %646 = vmatpush1.bf16.msra.mxu0 0
  %647 = vmatprep.subr.bf16.mxu0 0
  %648 = vmatpush1.bf16.msra.mxu0 0
  %649 = vmatprep.subr.bf16.mxu0 0
  %650 = vmatpush1.bf16.msra.mxu0 0
  %651 = vmatprep.subr.bf16.mxu0 0
  %652 = vmatpush1.bf16.msra.mxu0 0
  %653 = vmatprep.subr.bf16.mxu0 0
  %654 = vmatpush1.bf16.msra.mxu0 0
  %655 = vmatprep.subr.bf16.mxu0 0
  %656 = vmatpush1.bf16.msra.mxu0 0
  %657 = vmatprep.subr.bf16.mxu0 0
  %658 = vmatpush1.bf16.msra.mxu0 0
  %659 = vmatprep.subr.bf16.mxu0 0
  %660 = vmatpush1.bf16.msra.mxu0 0
  %661 = vmatprep.mubr.bf16.mxu0 0
  %662 = vmatmul.mubr.bf16.gmra.mrb[0].mxu0 %v543
  %v663 = vpop.f32.mrb[0].mxu0
  %v664 = vadd.f32 0.0, %v663
  %v665 = vpop.f32.mrb[0].mxu0
  %v666 = vpop.f32.mrb[0].mxu0
  %v667 = vadd.f32 0.0, %v666
  %v668 = vpop.f32.mrb[0].mxu0
  %669 = vdwg.mxu0
  %v670 = vmax.f32 %v627, %v664
  %v671 = vmax.f32 %v628, %v667
  %v672 = vadd.f32 %v670, %v216
  %v673 = vadd.f32 %v671, %v216
  %v674 = vmax.f32 %v672, 0.0
  %v675 = vmax.f32 %v673, 0.0
  %v676 = vpack.c.bf16 %v675, %v674
  %677 = vst.msk [vmem:[#allocation2 + $0x60] sm:$0xff] %vm223, %v676
  %679 = vrot.lane.b32.xlu0 %v676, 96
  %v680 = vpop.permute.xlu0 %679
  %682 = vst.msk [vmem:[#allocation2 + $0x68] sm:$0xff] %vm223, %v680
  %683 = vrot.lane.b32.xlu0 %v676, 64
  %v684 = vpop.permute.xlu0 %683
  %686 = vst.msk [vmem:[#allocation2 + $0x70] sm:$0xff] %vm223, %v684
  %687 = vrot.lane.b32.xlu0 %v676, 32
  %v688 = vpop.permute.xlu0 %687
  %690 = vst.msk [vmem:[#allocation2 + $0x78] sm:$0xff] %vm223, %v688
  %691 = vrot.lane.b32.xlu0 %v46, 80
  %v692 = vpop.permute.xlu0 %691
  %v694 = vsel %vm56, %v692, 0
  %696 = vmatprep.subr.bf16.mxu0 0
  %697 = vmatpush1.bf16.msra.mxu0 %v53
  %698 = vmatprep.subr.bf16.mxu0 0
  %699 = vmatpush1.bf16.msra.mxu0 %v62
  %700 = vmatprep.subr.bf16.mxu0 0
  %701 = vmatpush1.bf16.msra.mxu0 0
  %702 = vmatprep.subr.bf16.mxu0 0
  %703 = vmatpush1.bf16.msra.mxu0 0
  %704 = vmatprep.subr.bf16.mxu0 0
  %705 = vmatpush1.bf16.msra.mxu0 0
  %706 = vmatprep.subr.bf16.mxu0 0
  %707 = vmatpush1.bf16.msra.mxu0 0
  %708 = vmatprep.subr.bf16.mxu0 0
  %709 = vmatpush1.bf16.msra.mxu0 0
  %710 = vmatprep.subr.bf16.mxu0 0
  %711 = vmatpush1.bf16.msra.mxu0 0
  %712 = vmatprep.subr.bf16.mxu0 0
  %713 = vmatpush1.bf16.msra.mxu0 0
  %714 = vmatprep.subr.bf16.mxu0 0
  %715 = vmatpush1.bf16.msra.mxu0 0
  %716 = vmatprep.subr.bf16.mxu0 0
  %717 = vmatpush1.bf16.msra.mxu0 0
  %718 = vmatprep.subr.bf16.mxu0 0
  %719 = vmatpush1.bf16.msra.mxu0 0
  %720 = vmatprep.subr.bf16.mxu0 0
  %721 = vmatpush1.bf16.msra.mxu0 0
  %722 = vmatprep.subr.bf16.mxu0 0
  %723 = vmatpush1.bf16.msra.mxu0 0
  %724 = vmatprep.subr.bf16.mxu0 0
  %725 = vmatpush1.bf16.msra.mxu0 0
  %726 = vmatprep.subr.bf16.mxu0 0
  %727 = vmatpush1.bf16.msra.mxu0 0
  %728 = vmatprep.mubr.bf16.mxu0 0
  %729 = vmatmul.mubr.bf16.gmra.mrb[0].mxu0 %v694
  %v730 = vpop.f32.mrb[0].mxu0
  %v731 = vadd.f32 0.0, %v730
  %v732 = vpop.f32.mrb[0].mxu0
  %v733 = vpop.f32.mrb[0].mxu0
  %v734 = vadd.f32 0.0, %v733
  %v735 = vpop.f32.mrb[0].mxu0
  %736 = vdwg.mxu0
  %737 = vmatprep.subr.bf16.mxu0 0
  %738 = vmatpush1.bf16.msra.mxu0 %v108
  %739 = vmatprep.subr.bf16.mxu0 0
  %740 = vmatpush1.bf16.msra.mxu0 %v112
  %741 = vmatprep.subr.bf16.mxu0 0
  %742 = vmatpush1.bf16.msra.mxu0 0
  %743 = vmatprep.subr.bf16.mxu0 0
  %744 = vmatpush1.bf16.msra.mxu0 0
  %745 = vmatprep.subr.bf16.mxu0 0
  %746 = vmatpush1.bf16.msra.mxu0 0
  %747 = vmatprep.subr.bf16.mxu0 0
  %748 = vmatpush1.bf16.msra.mxu0 0
  %749 = vmatprep.subr.bf16.mxu0 0
  %750 = vmatpush1.bf16.msra.mxu0 0
  %751 = vmatprep.subr.bf16.mxu0 0
  %752 = vmatpush1.bf16.msra.mxu0 0
  %753 = vmatprep.subr.bf16.mxu0 0
  %754 = vmatpush1.bf16.msra.mxu0 0
  %755 = vmatprep.subr.bf16.mxu0 0
  %756 = vmatpush1.bf16.msra.mxu0 0
  %757 = vmatprep.subr.bf16.mxu0 0
  %758 = vmatpush1.bf16.msra.mxu0 0
  %759 = vmatprep.subr.bf16.mxu0 0
  %760 = vmatpush1.bf16.msra.mxu0 0
  %761 = vmatprep.subr.bf16.mxu0 0
  %762 = vmatpush1.bf16.msra.mxu0 0
  %763 = vmatprep.subr.bf16.mxu0 0
  %764 = vmatpush1.bf16.msra.mxu0 0
  %765 = vmatprep.subr.bf16.mxu0 0
  %766 = vmatpush1.bf16.msra.mxu0 0
  %767 = vmatprep.subr.bf16.mxu0 0
  %768 = vmatpush1.bf16.msra.mxu0 0
  %769 = vmatprep.mubr.bf16.mxu0 0
  %770 = vmatmul.mubr.bf16.gmra.mrb[0].mxu0 %v694
  %v771 = vpop.f32.mrb[0].mxu0
  %v772 = vadd.f32 0.0, %v771
  %v773 = vpop.f32.mrb[0].mxu0
  %v774 = vpop.f32.mrb[0].mxu0
  %v775 = vadd.f32 0.0, %v774
  %v776 = vpop.f32.mrb[0].mxu0
  %777 = vdwg.mxu0
  %v778 = vmax.f32 %v731, %v772
  %v779 = vmax.f32 %v734, %v775
  %780 = vmatprep.subr.bf16.mxu0 0
  %781 = vmatpush1.bf16.msra.mxu0 %v163
  %782 = vmatprep.subr.bf16.mxu0 0
  %783 = vmatpush1.bf16.msra.mxu0 %v167
  %784 = vmatprep.subr.bf16.mxu0 0
  %785 = vmatpush1.bf16.msra.mxu0 0
  %786 = vmatprep.subr.bf16.mxu0 0
  %787 = vmatpush1.bf16.msra.mxu0 0
  %788 = vmatprep.subr.bf16.mxu0 0
  %789 = vmatpush1.bf16.msra.mxu0 0
  %790 = vmatprep.subr.bf16.mxu0 0
  %791 = vmatpush1.bf16.msra.mxu0 0
  %792 = vmatprep.subr.bf16.mxu0 0
  %793 = vmatpush1.bf16.msra.mxu0 0
  %794 = vmatprep.subr.bf16.mxu0 0
  %795 = vmatpush1.bf16.msra.mxu0 0
  %796 = vmatprep.subr.bf16.mxu0 0
  %797 = vmatpush1.bf16.msra.mxu0 0
  %798 = vmatprep.subr.bf16.mxu0 0
  %799 = vmatpush1.bf16.msra.mxu0 0
  %800 = vmatprep.subr.bf16.mxu0 0
  %801 = vmatpush1.bf16.msra.mxu0 0
  %802 = vmatprep.subr.bf16.mxu0 0
  %803 = vmatpush1.bf16.msra.mxu0 0
  %804 = vmatprep.subr.bf16.mxu0 0
  %805 = vmatpush1.bf16.msra.mxu0 0
  %806 = vmatprep.subr.bf16.mxu0 0
  %807 = vmatpush1.bf16.msra.mxu0 0
  %808 = vmatprep.subr.bf16.mxu0 0
  %809 = vmatpush1.bf16.msra.mxu0 0
  %810 = vmatprep.subr.bf16.mxu0 0
  %811 = vmatpush1.bf16.msra.mxu0 0
  %812 = vmatprep.mubr.bf16.mxu0 0
  %813 = vmatmul.mubr.bf16.gmra.mrb[0].mxu0 %v694
  %v814 = vpop.f32.mrb[0].mxu0
  %v815 = vadd.f32 0.0, %v814
  %v816 = vpop.f32.mrb[0].mxu0
  %v817 = vpop.f32.mrb[0].mxu0
  %v818 = vadd.f32 0.0, %v817
  %v819 = vpop.f32.mrb[0].mxu0
  %820 = vdwg.mxu0
  %v821 = vmax.f32 %v778, %v815
  %v822 = vmax.f32 %v779, %v818
  %v823 = vadd.f32 %v821, %v216
  %v824 = vadd.f32 %v822, %v216
  %v825 = vmax.f32 %v823, 0.0
  %v826 = vmax.f32 %v824, 0.0
  %v827 = vpack.c.bf16 %v826, %v825
  %828 = vst.msk [vmem:[#allocation2 + $0x80] sm:$0xff] %vm223, %v827
  %830 = vrot.lane.b32.xlu0 %v827, 96
  %v831 = vpop.permute.xlu0 %830
  %833 = vst.msk [vmem:[#allocation2 + $0x88] sm:$0xff] %vm223, %v831
  %834 = vrot.lane.b32.xlu0 %v827, 64
  %v835 = vpop.permute.xlu0 %834
  %837 = vst.msk [vmem:[#allocation2 + $0x90] sm:$0xff] %vm223, %v835
  %838 = vrot.lane.b32.xlu0 %v827, 32
  %v839 = vpop.permute.xlu0 %838
  %841 = vst.msk [vmem:[#allocation2 + $0x98] sm:$0xff] %vm223, %v839
  %842 = vrot.lane.b32.xlu0 %v46, 68
  %v843 = vpop.permute.xlu0 %842
  %v845 = vsel %vm56, %v843, 0
  %847 = vmatprep.subr.bf16.mxu0 0
  %848 = vmatpush1.bf16.msra.mxu0 %v53
  %849 = vmatprep.subr.bf16.mxu0 0
  %850 = vmatpush1.bf16.msra.mxu0 %v62
  %851 = vmatprep.subr.bf16.mxu0 0
  %852 = vmatpush1.bf16.msra.mxu0 0
  %853 = vmatprep.subr.bf16.mxu0 0
  %854 = vmatpush1.bf16.msra.mxu0 0
  %855 = vmatprep.subr.bf16.mxu0 0
  %856 = vmatpush1.bf16.msra.mxu0 0
  %857 = vmatprep.subr.bf16.mxu0 0
  %858 = vmatpush1.bf16.msra.mxu0 0
  %859 = vmatprep.subr.bf16.mxu0 0
  %860 = vmatpush1.bf16.msra.mxu0 0
  %861 = vmatprep.subr.bf16.mxu0 0
  %862 = vmatpush1.bf16.msra.mxu0 0
  %863 = vmatprep.subr.bf16.mxu0 0
  %864 = vmatpush1.bf16.msra.mxu0 0
  %865 = vmatprep.subr.bf16.mxu0 0
  %866 = vmatpush1.bf16.msra.mxu0 0
  %867 = vmatprep.subr.bf16.mxu0 0
  %868 = vmatpush1.bf16.msra.mxu0 0
  %869 = vmatprep.subr.bf16.mxu0 0
  %870 = vmatpush1.bf16.msra.mxu0 0
  %871 = vmatprep.subr.bf16.mxu0 0
  %872 = vmatpush1.bf16.msra.mxu0 0
  %873 = vmatprep.subr.bf16.mxu0 0
  %874 = vmatpush1.bf16.msra.mxu0 0
  %875 = vmatprep.subr.bf16.mxu0 0
  %876 = vmatpush1.bf16.msra.mxu0 0
  %877 = vmatprep.subr.bf16.mxu0 0
  %878 = vmatpush1.bf16.msra.mxu0 0
  %879 = vmatprep.mubr.bf16.mxu0 0
  %880 = vmatmul.mubr.bf16.gmra.mrb[0].mxu0 %v845
  %v881 = vpop.f32.mrb[0].mxu0
  %v882 = vadd.f32 0.0, %v881
  %v883 = vpop.f32.mrb[0].mxu0
  %v884 = vpop.f32.mrb[0].mxu0
  %v885 = vadd.f32 0.0, %v884
  %v886 = vpop.f32.mrb[0].mxu0
  %887 = vdwg.mxu0
  %888 = vmatprep.subr.bf16.mxu0 0
  %889 = vmatpush1.bf16.msra.mxu0 %v108
  %890 = vmatprep.subr.bf16.mxu0 0
  %891 = vmatpush1.bf16.msra.mxu0 %v112
  %892 = vmatprep.subr.bf16.mxu0 0
  %893 = vmatpush1.bf16.msra.mxu0 0
  %894 = vmatprep.subr.bf16.mxu0 0
  %895 = vmatpush1.bf16.msra.mxu0 0
  %896 = vmatprep.subr.bf16.mxu0 0
  %897 = vmatpush1.bf16.msra.mxu0 0
  %898 = vmatprep.subr.bf16.mxu0 0
  %899 = vmatpush1.bf16.msra.mxu0 0
  %900 = vmatprep.subr.bf16.mxu0 0
  %901 = vmatpush1.bf16.msra.mxu0 0
  %902 = vmatprep.subr.bf16.mxu0 0
  %903 = vmatpush1.bf16.msra.mxu0 0
  %904 = vmatprep.subr.bf16.mxu0 0
  %905 = vmatpush1.bf16.msra.mxu0 0
  %906 = vmatprep.subr.bf16.mxu0 0
  %907 = vmatpush1.bf16.msra.mxu0 0
  %908 = vmatprep.subr.bf16.mxu0 0
  %909 = vmatpush1.bf16.msra.mxu0 0
  %910 = vmatprep.subr.bf16.mxu0 0
  %911 = vmatpush1.bf16.msra.mxu0 0
  %912 = vmatprep.subr.bf16.mxu0 0
  %913 = vmatpush1.bf16.msra.mxu0 0
  %914 = vmatprep.subr.bf16.mxu0 0
  %915 = vmatpush1.bf16.msra.mxu0 0
  %916 = vmatprep.subr.bf16.mxu0 0
  %917 = vmatpush1.bf16.msra.mxu0 0
  %918 = vmatprep.subr.bf16.mxu0 0
  %919 = vmatpush1.bf16.msra.mxu0 0
  %920 = vmatprep.mubr.bf16.mxu0 0
  %921 = vmatmul.mubr.bf16.gmra.mrb[0].mxu0 %v845
  %v922 = vpop.f32.mrb[0].mxu0
  %v923 = vadd.f32 0.0, %v922
  %v924 = vpop.f32.mrb[0].mxu0
  %v925 = vpop.f32.mrb[0].mxu0
  %v926 = vadd.f32 0.0, %v925
  %v927 = vpop.f32.mrb[0].mxu0
  %928 = vdwg.mxu0
  %v929 = vmax.f32 %v882, %v923
  %v930 = vmax.f32 %v885, %v926
  %931 = vmatprep.subr.bf16.mxu0 0
  %932 = vmatpush1.bf16.msra.mxu0 %v163
  %933 = vmatprep.subr.bf16.mxu0 0
  %934 = vmatpush1.bf16.msra.mxu0 %v167
  %935 = vmatprep.subr.bf16.mxu0 0
  %936 = vmatpush1.bf16.msra.mxu0 0
  %937 = vmatprep.subr.bf16.mxu0 0
  %938 = vmatpush1.bf16.msra.mxu0 0
  %939 = vmatprep.subr.bf16.mxu0 0
  %940 = vmatpush1.bf16.msra.mxu0 0
  %941 = vmatprep.subr.bf16.mxu0 0
  %942 = vmatpush1.bf16.msra.mxu0 0
  %943 = vmatprep.subr.bf16.mxu0 0
  %944 = vmatpush1.bf16.msra.mxu0 0
  %945 = vmatprep.subr.bf16.mxu0 0
  %946 = vmatpush1.bf16.msra.mxu0 0
  %947 = vmatprep.subr.bf16.mxu0 0
  %948 = vmatpush1.bf16.msra.mxu0 0
  %949 = vmatprep.subr.bf16.mxu0 0
  %950 = vmatpush1.bf16.msra.mxu0 0
  %951 = vmatprep.subr.bf16.mxu0 0
  %952 = vmatpush1.bf16.msra.mxu0 0
  %953 = vmatprep.subr.bf16.mxu0 0
  %954 = vmatpush1.bf16.msra.mxu0 0
  %955 = vmatprep.subr.bf16.mxu0 0
  %956 = vmatpush1.bf16.msra.mxu0 0
  %957 = vmatprep.subr.bf16.mxu0 0
  %958 = vmatpush1.bf16.msra.mxu0 0
  %959 = vmatprep.subr.bf16.mxu0 0
  %960 = vmatpush1.bf16.msra.mxu0 0
  %961 = vmatprep.subr.bf16.mxu0 0
  %962 = vmatpush1.bf16.msra.mxu0 0
  %963 = vmatprep.mubr.bf16.mxu0 0
  %964 = vmatmul.mubr.bf16.gmra.mrb[0].mxu0 %v845
  %v965 = vpop.f32.mrb[0].mxu0
  %v966 = vadd.f32 0.0, %v965
  %v967 = vpop.f32.mrb[0].mxu0
  %v968 = vpop.f32.mrb[0].mxu0
  %v969 = vadd.f32 0.0, %v968
  %v970 = vpop.f32.mrb[0].mxu0
  %971 = vdwg.mxu0
  %v972 = vmax.f32 %v929, %v966
  %v973 = vmax.f32 %v930, %v969
  %v974 = vadd.f32 %v972, %v216
  %v975 = vadd.f32 %v973, %v216
  %v976 = vmax.f32 %v974, 0.0
  %v977 = vmax.f32 %v975, 0.0
  %v978 = vpack.c.bf16 %v977, %v976
  %979 = vst.msk [vmem:[#allocation2 + $0xa0] sm:$0xff] %vm223, %v978
  %981 = vrot.lane.b32.xlu0 %v978, 96
  %v982 = vpop.permute.xlu0 %981
  %984 = vst.msk [vmem:[#allocation2 + $0xa8] sm:$0xff] %vm223, %v982
  %985 = vrot.lane.b32.xlu0 %v978, 64
  %v986 = vpop.permute.xlu0 %985
  %988 = vst.msk [vmem:[#allocation2 + $0xb0] sm:$0xff] %vm223, %v986
  %989 = vrot.lane.b32.xlu0 %v978, 32
  %v990 = vpop.permute.xlu0 %989
  %992 = vst.msk [vmem:[#allocation2 + $0xb8] sm:$0xff] %vm223, %v990
  %993 = vrot.lane.b32.xlu0 %v46, 56
  %v994 = vpop.permute.xlu0 %993
  %v996 = vsel %vm56, %v994, 0
  %998 = vmatprep.subr.bf16.mxu0 0
  %999 = vmatpush1.bf16.msra.mxu0 %v53
  %1000 = vmatprep.subr.bf16.mxu0 0
  %1001 = vmatpush1.bf16.msra.mxu0 %v62
  %1002 = vmatprep.subr.bf16.mxu0 0
  %1003 = vmatpush1.bf16.msra.mxu0 0
  %1004 = vmatprep.subr.bf16.mxu0 0
  %1005 = vmatpush1.bf16.msra.mxu0 0
  %1006 = vmatprep.subr.bf16.mxu0 0
  %1007 = vmatpush1.bf16.msra.mxu0 0
  %1008 = vmatprep.subr.bf16.mxu0 0
  %1009 = vmatpush1.bf16.msra.mxu0 0
  %1010 = vmatprep.subr.bf16.mxu0 0
  %1011 = vmatpush1.bf16.msra.mxu0 0
  %1012 = vmatprep.subr.bf16.mxu0 0
  %1013 = vmatpush1.bf16.msra.mxu0 0
  %1014 = vmatprep.subr.bf16.mxu0 0
  %1015 = vmatpush1.bf16.msra.mxu0 0
  %1016 = vmatprep.subr.bf16.mxu0 0
  %1017 = vmatpush1.bf16.msra.mxu0 0
  %1018 = vmatprep.subr.bf16.mxu0 0
  %1019 = vmatpush1.bf16.msra.mxu0 0
  %1020 = vmatprep.subr.bf16.mxu0 0
  %1021 = vmatpush1.bf16.msra.mxu0 0
  %1022 = vmatprep.subr.bf16.mxu0 0
  %1023 = vmatpush1.bf16.msra.mxu0 0
  %1024 = vmatprep.subr.bf16.mxu0 0
  %1025 = vmatpush1.bf16.msra.mxu0 0
  %1026 = vmatprep.subr.bf16.mxu0 0
  %1027 = vmatpush1.bf16.msra.mxu0 0
  %1028 = vmatprep.subr.bf16.mxu0 0
  %1029 = vmatpush1.bf16.msra.mxu0 0
  %1030 = vmatprep.mubr.bf16.mxu0 0
  %1031 = vmatmul.mubr.bf16.gmra.mrb[0].mxu0 %v996
  %v1032 = vpop.f32.mrb[0].mxu0
  %v1033 = vadd.f32 0.0, %v1032
  %v1034 = vpop.f32.mrb[0].mxu0
  %v1035 = vpop.f32.mrb[0].mxu0
  %v1036 = vadd.f32 0.0, %v1035
  %v1037 = vpop.f32.mrb[0].mxu0
  %1038 = vdwg.mxu0
  %1039 = vmatprep.subr.bf16.mxu0 0
  %1040 = vmatpush1.bf16.msra.mxu0 %v108
  %1041 = vmatprep.subr.bf16.mxu0 0
  %1042 = vmatpush1.bf16.msra.mxu0 %v112
  %1043 = vmatprep.subr.bf16.mxu0 0
  %1044 = vmatpush1.bf16.msra.mxu0 0
  %1045 = vmatprep.subr.bf16.mxu0 0
  %1046 = vmatpush1.bf16.msra.mxu0 0
  %1047 = vmatprep.subr.bf16.mxu0 0
  %1048 = vmatpush1.bf16.msra.mxu0 0
  %1049 = vmatprep.subr.bf16.mxu0 0
  %1050 = vmatpush1.bf16.msra.mxu0 0
  %1051 = vmatprep.subr.bf16.mxu0 0
  %1052 = vmatpush1.bf16.msra.mxu0 0
  %1053 = vmatprep.subr.bf16.mxu0 0
  %1054 = vmatpush1.bf16.msra.mxu0 0
  %1055 = vmatprep.subr.bf16.mxu0 0
  %1056 = vmatpush1.bf16.msra.mxu0 0
  %1057 = vmatprep.subr.bf16.mxu0 0
  %1058 = vmatpush1.bf16.msra.mxu0 0
  %1059 = vmatprep.subr.bf16.mxu0 0
  %1060 = vmatpush1.bf16.msra.mxu0 0
  %1061 = vmatprep.subr.bf16.mxu0 0
  %1062 = vmatpush1.bf16.msra.mxu0 0
  %1063 = vmatprep.subr.bf16.mxu0 0
  %1064 = vmatpush1.bf16.msra.mxu0 0
  %1065 = vmatprep.subr.bf16.mxu0 0
  %1066 = vmatpush1.bf16.msra.mxu0 0
  %1067 = vmatprep.subr.bf16.mxu0 0
  %1068 = vmatpush1.bf16.msra.mxu0 0
  %1069 = vmatprep.subr.bf16.mxu0 0
  %1070 = vmatpush1.bf16.msra.mxu0 0
  %1071 = vmatprep.mubr.bf16.mxu0 0
  %1072 = vmatmul.mubr.bf16.gmra.mrb[0].mxu0 %v996
  %v1073 = vpop.f32.mrb[0].mxu0
  %v1074 = vadd.f32 0.0, %v1073
  %v1075 = vpop.f32.mrb[0].mxu0
  %v1076 = vpop.f32.mrb[0].mxu0
  %v1077 = vadd.f32 0.0, %v1076
  %v1078 = vpop.f32.mrb[0].mxu0
  %1079 = vdwg.mxu0
  %v1080 = vmax.f32 %v1033, %v1074
  %v1081 = vmax.f32 %v1036, %v1077
  %1082 = vmatprep.subr.bf16.mxu0 0
  %1083 = vmatpush1.bf16.msra.mxu0 %v163
  %1084 = vmatprep.subr.bf16.mxu0 0
  %1085 = vmatpush1.bf16.msra.mxu0 %v167
  %1086 = vmatprep.subr.bf16.mxu0 0
  %1087 = vmatpush1.bf16.msra.mxu0 0
  %1088 = vmatprep.subr.bf16.mxu0 0
  %1089 = vmatpush1.bf16.msra.mxu0 0
  %1090 = vmatprep.subr.bf16.mxu0 0
  %1091 = vmatpush1.bf16.msra.mxu0 0
  %1092 = vmatprep.subr.bf16.mxu0 0
  %1093 = vmatpush1.bf16.msra.mxu0 0
  %1094 = vmatprep.subr.bf16.mxu0 0
  %1095 = vmatpush1.bf16.msra.mxu0 0
  %1096 = vmatprep.subr.bf16.mxu0 0
  %1097 = vmatpush1.bf16.msra.mxu0 0
  %1098 = vmatprep.subr.bf16.mxu0 0
  %1099 = vmatpush1.bf16.msra.mxu0 0
  %1100 = vmatprep.subr.bf16.mxu0 0
  %1101 = vmatpush1.bf16.msra.mxu0 0
  %1102 = vmatprep.subr.bf16.mxu0 0
  %1103 = vmatpush1.bf16.msra.mxu0 0
  %1104 = vmatprep.subr.bf16.mxu0 0
  %1105 = vmatpush1.bf16.msra.mxu0 0
  %1106 = vmatprep.subr.bf16.mxu0 0
  %1107 = vmatpush1.bf16.msra.mxu0 0
  %1108 = vmatprep.subr.bf16.mxu0 0
  %1109 = vmatpush1.bf16.msra.mxu0 0
  %1110 = vmatprep.subr.bf16.mxu0 0
  %1111 = vmatpush1.bf16.msra.mxu0 0
  %1112 = vmatprep.subr.bf16.mxu0 0
  %1113 = vmatpush1.bf16.msra.mxu0 0
  %1114 = vmatprep.mubr.bf16.mxu0 0
  %1115 = vmatmul.mubr.bf16.gmra.mrb[0].mxu0 %v996
  %v1116 = vpop.f32.mrb[0].mxu0
  %v1117 = vadd.f32 0.0, %v1116
  %v1118 = vpop.f32.mrb[0].mxu0
  %v1119 = vpop.f32.mrb[0].mxu0
  %v1120 = vadd.f32 0.0, %v1119
  %v1121 = vpop.f32.mrb[0].mxu0
  %1122 = vdwg.mxu0
  %v1123 = vmax.f32 %v1080, %v1117
  %v1124 = vmax.f32 %v1081, %v1120
  %v1125 = vadd.f32 %v1123, %v216
  %v1126 = vadd.f32 %v1124, %v216
  %v1127 = vmax.f32 %v1125, 0.0
  %v1128 = vmax.f32 %v1126, 0.0
  %v1129 = vpack.c.bf16 %v1128, %v1127
  %1130 = vst.msk [vmem:[#allocation2 + $0xc0] sm:$0xff] %vm223, %v1129
  %1132 = vrot.lane.b32.xlu0 %v1129, 96
  %v1133 = vpop.permute.xlu0 %1132
  %1135 = vst.msk [vmem:[#allocation2 + $0xc8] sm:$0xff] %vm223, %v1133
  %1136 = vrot.lane.b32.xlu0 %v1129, 64
  %v1137 = vpop.permute.xlu0 %1136
  %1139 = vst.msk [vmem:[#allocation2 + $0xd0] sm:$0xff] %vm223, %v1137
  %1140 = vrot.lane.b32.xlu0 %v1129, 32
  %v1141 = vpop.permute.xlu0 %1140
  %1143 = vst.msk [vmem:[#allocation2 + $0xd8] sm:$0xff] %vm223, %v1141
  %1144 = vrot.lane.b32.xlu0 %v46, 44
  %v1145 = vpop.permute.xlu0 %1144
  %v1147 = vsel %vm56, %v1145, 0
  %1149 = vmatprep.subr.bf16.mxu0 0
  %1150 = vmatpush1.bf16.msra.mxu0 %v53
  %1151 = vmatprep.subr.bf16.mxu0 0
  %1152 = vmatpush1.bf16.msra.mxu0 %v62
  %1153 = vmatprep.subr.bf16.mxu0 0
  %1154 = vmatpush1.bf16.msra.mxu0 0
  %1155 = vmatprep.subr.bf16.mxu0 0
  %1156 = vmatpush1.bf16.msra.mxu0 0
  %1157 = vmatprep.subr.bf16.mxu0 0
  %1158 = vmatpush1.bf16.msra.mxu0 0
  %1159 = vmatprep.subr.bf16.mxu0 0
  %1160 = vmatpush1.bf16.msra.mxu0 0
  %1161 = vmatprep.subr.bf16.mxu0 0
  %1162 = vmatpush1.bf16.msra.mxu0 0
  %1163 = vmatprep.subr.bf16.mxu0 0
  %1164 = vmatpush1.bf16.msra.mxu0 0
  %1165 = vmatprep.subr.bf16.mxu0 0
  %1166 = vmatpush1.bf16.msra.mxu0 0
  %1167 = vmatprep.subr.bf16.mxu0 0
  %1168 = vmatpush1.bf16.msra.mxu0 0
  %1169 = vmatprep.subr.bf16.mxu0 0
  %1170 = vmatpush1.bf16.msra.mxu0 0
  %1171 = vmatprep.subr.bf16.mxu0 0
  %1172 = vmatpush1.bf16.msra.mxu0 0
  %1173 = vmatprep.subr.bf16.mxu0 0
  %1174 = vmatpush1.bf16.msra.mxu0 0
  %1175 = vmatprep.subr.bf16.mxu0 0
  %1176 = vmatpush1.bf16.msra.mxu0 0
  %1177 = vmatprep.subr.bf16.mxu0 0
  %1178 = vmatpush1.bf16.msra.mxu0 0
  %1179 = vmatprep.subr.bf16.mxu0 0
  %1180 = vmatpush1.bf16.msra.mxu0 0
  %1181 = vmatprep.mubr.bf16.mxu0 0
  %1182 = vmatmul.mubr.bf16.gmra.mrb[0].mxu0 %v1147
  %v1183 = vpop.f32.mrb[0].mxu0
  %v1184 = vadd.f32 0.0, %v1183
  %v1185 = vpop.f32.mrb[0].mxu0
  %v1186 = vpop.f32.mrb[0].mxu0
  %v1187 = vadd.f32 0.0, %v1186
  %v1188 = vpop.f32.mrb[0].mxu0
  %1189 = vdwg.mxu0
  %1190 = vmatprep.subr.bf16.mxu0 0
  %1191 = vmatpush1.bf16.msra.mxu0 %v108
  %1192 = vmatprep.subr.bf16.mxu0 0
  %1193 = vmatpush1.bf16.msra.mxu0 %v112
  %1194 = vmatprep.subr.bf16.mxu0 0
  %1195 = vmatpush1.bf16.msra.mxu0 0
  %1196 = vmatprep.subr.bf16.mxu0 0
  %1197 = vmatpush1.bf16.msra.mxu0 0
  %1198 = vmatprep.subr.bf16.mxu0 0
  %1199 = vmatpush1.bf16.msra.mxu0 0
  %1200 = vmatprep.subr.bf16.mxu0 0
  %1201 = vmatpush1.bf16.msra.mxu0 0
  %1202 = vmatprep.subr.bf16.mxu0 0
  %1203 = vmatpush1.bf16.msra.mxu0 0
  %1204 = vmatprep.subr.bf16.mxu0 0
  %1205 = vmatpush1.bf16.msra.mxu0 0
  %1206 = vmatprep.subr.bf16.mxu0 0
  %1207 = vmatpush1.bf16.msra.mxu0 0
  %1208 = vmatprep.subr.bf16.mxu0 0
  %1209 = vmatpush1.bf16.msra.mxu0 0
  %1210 = vmatprep.subr.bf16.mxu0 0
  %1211 = vmatpush1.bf16.msra.mxu0 0
  %1212 = vmatprep.subr.bf16.mxu0 0
  %1213 = vmatpush1.bf16.msra.mxu0 0
  %1214 = vmatprep.subr.bf16.mxu0 0
  %1215 = vmatpush1.bf16.msra.mxu0 0
  %1216 = vmatprep.subr.bf16.mxu0 0
  %1217 = vmatpush1.bf16.msra.mxu0 0
  %1218 = vmatprep.subr.bf16.mxu0 0
  %1219 = vmatpush1.bf16.msra.mxu0 0
  %1220 = vmatprep.subr.bf16.mxu0 0
  %1221 = vmatpush1.bf16.msra.mxu0 0
  %1222 = vmatprep.mubr.bf16.mxu0 0
  %1223 = vmatmul.mubr.bf16.gmra.mrb[0].mxu0 %v1147
  %v1224 = vpop.f32.mrb[0].mxu0
  %v1225 = vadd.f32 0.0, %v1224
  %v1226 = vpop.f32.mrb[0].mxu0
  %v1227 = vpop.f32.mrb[0].mxu0
  %v1228 = vadd.f32 0.0, %v1227
  %v1229 = vpop.f32.mrb[0].mxu0
  %1230 = vdwg.mxu0
  %v1231 = vmax.f32 %v1184, %v1225
  %v1232 = vmax.f32 %v1187, %v1228
  %1233 = vmatprep.subr.bf16.mxu0 0
  %1234 = vmatpush1.bf16.msra.mxu0 %v163
  %1235 = vmatprep.subr.bf16.mxu0 0
  %1236 = vmatpush1.bf16.msra.mxu0 %v167
  %1237 = vmatprep.subr.bf16.mxu0 0
  %1238 = vmatpush1.bf16.msra.mxu0 0
  %1239 = vmatprep.subr.bf16.mxu0 0
  %1240 = vmatpush1.bf16.msra.mxu0 0
  %1241 = vmatprep.subr.bf16.mxu0 0
  %1242 = vmatpush1.bf16.msra.mxu0 0
  %1243 = vmatprep.subr.bf16.mxu0 0
  %1244 = vmatpush1.bf16.msra.mxu0 0
  %1245 = vmatprep.subr.bf16.mxu0 0
  %1246 = vmatpush1.bf16.msra.mxu0 0
  %1247 = vmatprep.subr.bf16.mxu0 0
  %1248 = vmatpush1.bf16.msra.mxu0 0
  %1249 = vmatprep.subr.bf16.mxu0 0
  %1250 = vmatpush1.bf16.msra.mxu0 0
  %1251 = vmatprep.subr.bf16.mxu0 0
  %1252 = vmatpush1.bf16.msra.mxu0 0
  %1253 = vmatprep.subr.bf16.mxu0 0
  %1254 = vmatpush1.bf16.msra.mxu0 0
  %1255 = vmatprep.subr.bf16.mxu0 0
  %1256 = vmatpush1.bf16.msra.mxu0 0
  %1257 = vmatprep.subr.bf16.mxu0 0
  %1258 = vmatpush1.bf16.msra.mxu0 0
  %1259 = vmatprep.subr.bf16.mxu0 0
  %1260 = vmatpush1.bf16.msra.mxu0 0
  %1261 = vmatprep.subr.bf16.mxu0 0
  %1262 = vmatpush1.bf16.msra.mxu0 0
  %1263 = vmatprep.subr.bf16.mxu0 0
  %1264 = vmatpush1.bf16.msra.mxu0 0
  %1265 = vmatprep.mubr.bf16.mxu0 0
  %1266 = vmatmul.mubr.bf16.gmra.mrb[0].mxu0 %v1147
  %v1267 = vpop.f32.mrb[0].mxu0
  %v1268 = vadd.f32 0.0, %v1267
  %v1269 = vpop.f32.mrb[0].mxu0
  %v1270 = vpop.f32.mrb[0].mxu0
  %v1271 = vadd.f32 0.0, %v1270
  %v1272 = vpop.f32.mrb[0].mxu0
  %1273 = vdwg.mxu0
  %v1274 = vmax.f32 %v1231, %v1268
  %v1275 = vmax.f32 %v1232, %v1271
  %v1276 = vadd.f32 %v1274, %v216
  %v1277 = vadd.f32 %v1275, %v216
  %v1278 = vmax.f32 %v1276, 0.0
  %v1279 = vmax.f32 %v1277, 0.0
  %v1280 = vpack.c.bf16 %v1279, %v1278
  %1281 = vst.msk [vmem:[#allocation2 + $0xe0] sm:$0xff] %vm223, %v1280
  %1283 = vrot.lane.b32.xlu0 %v1280, 96
  %v1284 = vpop.permute.xlu0 %1283
  %1286 = vst.msk [vmem:[#allocation2 + $0xe8] sm:$0xff] %vm223, %v1284
  %1287 = vrot.lane.b32.xlu0 %v1280, 64
  %v1288 = vpop.permute.xlu0 %1287
  %1290 = vst.msk [vmem:[#allocation2 + $0xf0] sm:$0xff] %vm223, %v1288
  %1291 = vrot.lane.b32.xlu0 %v1280, 32
  %v1292 = vpop.permute.xlu0 %1291
  %1294 = vst.msk [vmem:[#allocation2 + $0xf8] sm:$0xff] %vm223, %v1292
  %1295 = vrot.lane.b32.xlu0 %v46, 32
  %v1296 = vpop.permute.xlu0 %1295
  %v1298 = vsel %vm56, %v1296, 0
  %1300 = vmatprep.subr.bf16.mxu0 0
  %1301 = vmatpush1.bf16.msra.mxu0 %v53
  %1302 = vmatprep.subr.bf16.mxu0 0
  %1303 = vmatpush1.bf16.msra.mxu0 %v62
  %1304 = vmatprep.subr.bf16.mxu0 0
  %1305 = vmatpush1.bf16.msra.mxu0 0
  %1306 = vmatprep.subr.bf16.mxu0 0
  %1307 = vmatpush1.bf16.msra.mxu0 0
  %1308 = vmatprep.subr.bf16.mxu0 0
  %1309 = vmatpush1.bf16.msra.mxu0 0
  %1310 = vmatprep.subr.bf16.mxu0 0
  %1311 = vmatpush1.bf16.msra.mxu0 0
  %1312 = vmatprep.subr.bf16.mxu0 0
  %1313 = vmatpush1.bf16.msra.mxu0 0
  %1314 = vmatprep.subr.bf16.mxu0 0
  %1315 = vmatpush1.bf16.msra.mxu0 0
  %1316 = vmatprep.subr.bf16.mxu0 0
  %1317 = vmatpush1.bf16.msra.mxu0 0
  %1318 = vmatprep.subr.bf16.mxu0 0
  %1319 = vmatpush1.bf16.msra.mxu0 0
  %1320 = vmatprep.subr.bf16.mxu0 0
  %1321 = vmatpush1.bf16.msra.mxu0 0
  %1322 = vmatprep.subr.bf16.mxu0 0
  %1323 = vmatpush1.bf16.msra.mxu0 0
  %1324 = vmatprep.subr.bf16.mxu0 0
  %1325 = vmatpush1.bf16.msra.mxu0 0
  %1326 = vmatprep.subr.bf16.mxu0 0
  %1327 = vmatpush1.bf16.msra.mxu0 0
  %1328 = vmatprep.subr.bf16.mxu0 0
  %1329 = vmatpush1.bf16.msra.mxu0 0
  %1330 = vmatprep.subr.bf16.mxu0 0
  %1331 = vmatpush1.bf16.msra.mxu0 0
  %1332 = vmatprep.mubr.bf16.mxu0 0
  %1333 = vmatmul.mubr.bf16.gmra.mrb[0].mxu0 %v1298
  %v1334 = vpop.f32.mrb[0].mxu0
  %v1335 = vadd.f32 0.0, %v1334
  %v1336 = vpop.f32.mrb[0].mxu0
  %v1337 = vpop.f32.mrb[0].mxu0
  %v1338 = vadd.f32 0.0, %v1337
  %v1339 = vpop.f32.mrb[0].mxu0
  %1340 = vdwg.mxu0
  %1341 = vmatprep.subr.bf16.mxu0 0
  %1342 = vmatpush1.bf16.msra.mxu0 %v108
  %1343 = vmatprep.subr.bf16.mxu0 0
  %1344 = vmatpush1.bf16.msra.mxu0 %v112
  %1345 = vmatprep.subr.bf16.mxu0 0
  %1346 = vmatpush1.bf16.msra.mxu0 0
  %1347 = vmatprep.subr.bf16.mxu0 0
  %1348 = vmatpush1.bf16.msra.mxu0 0
  %1349 = vmatprep.subr.bf16.mxu0 0
  %1350 = vmatpush1.bf16.msra.mxu0 0
  %1351 = vmatprep.subr.bf16.mxu0 0
  %1352 = vmatpush1.bf16.msra.mxu0 0
  %1353 = vmatprep.subr.bf16.mxu0 0
  %1354 = vmatpush1.bf16.msra.mxu0 0
  %1355 = vmatprep.subr.bf16.mxu0 0
  %1356 = vmatpush1.bf16.msra.mxu0 0
  %1357 = vmatprep.subr.bf16.mxu0 0
  %1358 = vmatpush1.bf16.msra.mxu0 0
  %1359 = vmatprep.subr.bf16.mxu0 0
  %1360 = vmatpush1.bf16.msra.mxu0 0
  %1361 = vmatprep.subr.bf16.mxu0 0
  %1362 = vmatpush1.bf16.msra.mxu0 0
  %1363 = vmatprep.subr.bf16.mxu0 0
  %1364 = vmatpush1.bf16.msra.mxu0 0
  %1365 = vmatprep.subr.bf16.mxu0 0
  %1366 = vmatpush1.bf16.msra.mxu0 0
  %1367 = vmatprep.subr.bf16.mxu0 0
  %1368 = vmatpush1.bf16.msra.mxu0 0
  %1369 = vmatprep.subr.bf16.mxu0 0
  %1370 = vmatpush1.bf16.msra.mxu0 0
  %1371 = vmatprep.subr.bf16.mxu0 0
  %1372 = vmatpush1.bf16.msra.mxu0 0
  %1373 = vmatprep.mubr.bf16.mxu0 0
  %1374 = vmatmul.mubr.bf16.gmra.mrb[0].mxu0 %v1298
  %v1375 = vpop.f32.mrb[0].mxu0
  %v1376 = vadd.f32 0.0, %v1375
  %v1377 = vpop.f32.mrb[0].mxu0
  %v1378 = vpop.f32.mrb[0].mxu0
  %v1379 = vadd.f32 0.0, %v1378
  %v1380 = vpop.f32.mrb[0].mxu0
  %1381 = vdwg.mxu0
  %v1382 = vmax.f32 %v1335, %v1376
  %v1383 = vmax.f32 %v1338, %v1379
  %1384 = vmatprep.subr.bf16.mxu0 0
  %1385 = vmatpush1.bf16.msra.mxu0 %v163
  %1386 = vmatprep.subr.bf16.mxu0 0
  %1387 = vmatpush1.bf16.msra.mxu0 %v167
  %1388 = vmatprep.subr.bf16.mxu0 0
  %1389 = vmatpush1.bf16.msra.mxu0 0
  %1390 = vmatprep.subr.bf16.mxu0 0
  %1391 = vmatpush1.bf16.msra.mxu0 0
  %1392 = vmatprep.subr.bf16.mxu0 0
  %1393 = vmatpush1.bf16.msra.mxu0 0
  %1394 = vmatprep.subr.bf16.mxu0 0
  %1395 = vmatpush1.bf16.msra.mxu0 0
  %1396 = vmatprep.subr.bf16.mxu0 0
  %1397 = vmatpush1.bf16.msra.mxu0 0
  %1398 = vmatprep.subr.bf16.mxu0 0
  %1399 = vmatpush1.bf16.msra.mxu0 0
  %1400 = vmatprep.subr.bf16.mxu0 0
  %1401 = vmatpush1.bf16.msra.mxu0 0
  %1402 = vmatprep.subr.bf16.mxu0 0
  %1403 = vmatpush1.bf16.msra.mxu0 0
  %1404 = vmatprep.subr.bf16.mxu0 0
  %1405 = vmatpush1.bf16.msra.mxu0 0
  %1406 = vmatprep.subr.bf16.mxu0 0
  %1407 = vmatpush1.bf16.msra.mxu0 0
  %1408 = vmatprep.subr.bf16.mxu0 0
  %1409 = vmatpush1.bf16.msra.mxu0 0
  %1410 = vmatprep.subr.bf16.mxu0 0
  %1411 = vmatpush1.bf16.msra.mxu0 0
  %1412 = vmatprep.subr.bf16.mxu0 0
  %1413 = vmatpush1.bf16.msra.mxu0 0
  %1414 = vmatprep.subr.bf16.mxu0 0
  %1415 = vmatpush1.bf16.msra.mxu0 0
  %1416 = vmatprep.mubr.bf16.mxu0 0
  %1417 = vmatmul.mubr.bf16.gmra.mrb[0].mxu0 %v1298
  %v1418 = vpop.f32.mrb[0].mxu0
  %v1419 = vadd.f32 0.0, %v1418
  %v1420 = vpop.f32.mrb[0].mxu0
  %v1421 = vpop.f32.mrb[0].mxu0
  %v1422 = vadd.f32 0.0, %v1421
  %v1423 = vpop.f32.mrb[0].mxu0
  %1424 = vdwg.mxu0
  %v1425 = vmax.f32 %v1382, %v1419
  %v1426 = vmax.f32 %v1383, %v1422
  %v1427 = vadd.f32 %v1425, %v216
  %v1428 = vadd.f32 %v1426, %v216
  %v1429 = vmax.f32 %v1427, 0.0
  %v1430 = vmax.f32 %v1428, 0.0
  %v1431 = vpack.c.bf16 %v1430, %v1429
  %1432 = vst.msk [vmem:[#allocation2 + $0x100] sm:$0xff] %vm223, %v1431
  %1434 = vrot.lane.b32.xlu0 %v1431, 96
  %v1435 = vpop.permute.xlu0 %1434
  %1437 = vst.msk [vmem:[#allocation2 + $0x108] sm:$0xff] %vm223, %v1435
  %1438 = vrot.lane.b32.xlu0 %v1431, 64
  %v1439 = vpop.permute.xlu0 %1438
  %1441 = vst.msk [vmem:[#allocation2 + $0x110] sm:$0xff] %vm223, %v1439
  %1442 = vrot.lane.b32.xlu0 %v1431, 32
  %v1443 = vpop.permute.xlu0 %1442
  %1445 = vst.msk [vmem:[#allocation2 + $0x118] sm:$0xff] %vm223, %v1443
  %v1446 = vunpack.c.h.b16 %v33
  %v1447 = vunpack.c.h.b16 %v34
  %v1448 = vpack.c.b16 %v1447, %v1446
  %1449 = vrot.lane.b32.xlu0 %v46, 20
  %v1450 = vpop.permute.xlu0 %1449
  %1451 = vrot.lane.b32.xlu0 %v1448, 20
  %v1452 = vpop.permute.xlu0 %1451
  %vm1453 = vcmask 162816
  %v1454 = vsel %vm1453, %v1450, %v1452
  %v1456 = vsel %vm56, %v1454, 0
  %1458 = vmatprep.subr.bf16.mxu0 0
  %1459 = vmatpush1.bf16.msra.mxu0 %v53
  %1460 = vmatprep.subr.bf16.mxu0 0
  %1461 = vmatpush1.bf16.msra.mxu0 %v62
  %1462 = vmatprep.subr.bf16.mxu0 0
  %1463 = vmatpush1.bf16.msra.mxu0 0
  %1464 = vmatprep.subr.bf16.mxu0 0
  %1465 = vmatpush1.bf16.msra.mxu0 0
  %1466 = vmatprep.subr.bf16.mxu0 0
  %1467 = vmatpush1.bf16.msra.mxu0 0
  %1468 = vmatprep.subr.bf16.mxu0 0
  %1469 = vmatpush1.bf16.msra.mxu0 0
  %1470 = vmatprep.subr.bf16.mxu0 0
  %1471 = vmatpush1.bf16.msra.mxu0 0
  %1472 = vmatprep.subr.bf16.mxu0 0
  %1473 = vmatpush1.bf16.msra.mxu0 0
  %1474 = vmatprep.subr.bf16.mxu0 0
  %1475 = vmatpush1.bf16.msra.mxu0 0
  %1476 = vmatprep.subr.bf16.mxu0 0
  %1477 = vmatpush1.bf16.msra.mxu0 0
  %1478 = vmatprep.subr.bf16.mxu0 0
  %1479 = vmatpush1.bf16.msra.mxu0 0
  %1480 = vmatprep.subr.bf16.mxu0 0
  %1481 = vmatpush1.bf16.msra.mxu0 0
  %1482 = vmatprep.subr.bf16.mxu0 0
  %1483 = vmatpush1.bf16.msra.mxu0 0
  %1484 = vmatprep.subr.bf16.mxu0 0
  %1485 = vmatpush1.bf16.msra.mxu0 0
  %1486 = vmatprep.subr.bf16.mxu0 0
  %1487 = vmatpush1.bf16.msra.mxu0 0
  %1488 = vmatprep.subr.bf16.mxu0 0
  %1489 = vmatpush1.bf16.msra.mxu0 0
  %1490 = vmatprep.mubr.bf16.mxu0 0
  %1491 = vmatmul.mubr.bf16.gmra.mrb[0].mxu0 %v1456
  %v1492 = vpop.f32.mrb[0].mxu0
  %v1493 = vadd.f32 0.0, %v1492
  %v1494 = vpop.f32.mrb[0].mxu0
  %v1495 = vpop.f32.mrb[0].mxu0
  %v1496 = vadd.f32 0.0, %v1495
  %v1497 = vpop.f32.mrb[0].mxu0
  %1498 = vdwg.mxu0
  %1499 = vmatprep.subr.bf16.mxu0 0
  %1500 = vmatpush1.bf16.msra.mxu0 %v108
  %1501 = vmatprep.subr.bf16.mxu0 0
  %1502 = vmatpush1.bf16.msra.mxu0 %v112
  %1503 = vmatprep.subr.bf16.mxu0 0
  %1504 = vmatpush1.bf16.msra.mxu0 0
  %1505 = vmatprep.subr.bf16.mxu0 0
  %1506 = vmatpush1.bf16.msra.mxu0 0
  %1507 = vmatprep.subr.bf16.mxu0 0
  %1508 = vmatpush1.bf16.msra.mxu0 0
  %1509 = vmatprep.subr.bf16.mxu0 0
  %1510 = vmatpush1.bf16.msra.mxu0 0
  %1511 = vmatprep.subr.bf16.mxu0 0
  %1512 = vmatpush1.bf16.msra.mxu0 0
  %1513 = vmatprep.subr.bf16.mxu0 0
  %1514 = vmatpush1.bf16.msra.mxu0 0
  %1515 = vmatprep.subr.bf16.mxu0 0
  %1516 = vmatpush1.bf16.msra.mxu0 0
  %1517 = vmatprep.subr.bf16.mxu0 0
  %1518 = vmatpush1.bf16.msra.mxu0 0
  %1519 = vmatprep.subr.bf16.mxu0 0
  %1520 = vmatpush1.bf16.msra.mxu0 0
  %1521 = vmatprep.subr.bf16.mxu0 0
  %1522 = vmatpush1.bf16.msra.mxu0 0
  %1523 = vmatprep.subr.bf16.mxu0 0
  %1524 = vmatpush1.bf16.msra.mxu0 0
  %1525 = vmatprep.subr.bf16.mxu0 0
  %1526 = vmatpush1.bf16.msra.mxu0 0
  %1527 = vmatprep.subr.bf16.mxu0 0
  %1528 = vmatpush1.bf16.msra.mxu0 0
  %1529 = vmatprep.subr.bf16.mxu0 0
  %1530 = vmatpush1.bf16.msra.mxu0 0
  %1531 = vmatprep.mubr.bf16.mxu0 0
  %1532 = vmatmul.mubr.bf16.gmra.mrb[0].mxu0 %v1456
  %v1533 = vpop.f32.mrb[0].mxu0
  %v1534 = vadd.f32 0.0, %v1533
  %v1535 = vpop.f32.mrb[0].mxu0
  %v1536 = vpop.f32.mrb[0].mxu0
  %v1537 = vadd.f32 0.0, %v1536
  %v1538 = vpop.f32.mrb[0].mxu0
  %1539 = vdwg.mxu0
  %v1540 = vmax.f32 %v1493, %v1534
  %v1541 = vmax.f32 %v1496, %v1537
  %1542 = vmatprep.subr.bf16.mxu0 0
  %1543 = vmatpush1.bf16.msra.mxu0 %v163
  %1544 = vmatprep.subr.bf16.mxu0 0
  %1545 = vmatpush1.bf16.msra.mxu0 %v167
  %1546 = vmatprep.subr.bf16.mxu0 0
  %1547 = vmatpush1.bf16.msra.mxu0 0
  %1548 = vmatprep.subr.bf16.mxu0 0
  %1549 = vmatpush1.bf16.msra.mxu0 0
  %1550 = vmatprep.subr.bf16.mxu0 0
  %1551 = vmatpush1.bf16.msra.mxu0 0
  %1552 = vmatprep.subr.bf16.mxu0 0
  %1553 = vmatpush1.bf16.msra.mxu0 0
  %1554 = vmatprep.subr.bf16.mxu0 0
  %1555 = vmatpush1.bf16.msra.mxu0 0
  %1556 = vmatprep.subr.bf16.mxu0 0
  %1557 = vmatpush1.bf16.msra.mxu0 0
  %1558 = vmatprep.subr.bf16.mxu0 0
  %1559 = vmatpush1.bf16.msra.mxu0 0
  %1560 = vmatprep.subr.bf16.mxu0 0
  %1561 = vmatpush1.bf16.msra.mxu0 0
  %1562 = vmatprep.subr.bf16.mxu0 0
  %1563 = vmatpush1.bf16.msra.mxu0 0
  %1564 = vmatprep.subr.bf16.mxu0 0
  %1565 = vmatpush1.bf16.msra.mxu0 0
  %1566 = vmatprep.subr.bf16.mxu0 0
  %1567 = vmatpush1.bf16.msra.mxu0 0
  %1568 = vmatprep.subr.bf16.mxu0 0
  %1569 = vmatpush1.bf16.msra.mxu0 0
  %1570 = vmatprep.subr.bf16.mxu0 0
  %1571 = vmatpush1.bf16.msra.mxu0 0
  %1572 = vmatprep.subr.bf16.mxu0 0
  %1573 = vmatpush1.bf16.msra.mxu0 0
  %1574 = vmatprep.mubr.bf16.mxu0 0
  %1575 = vmatmul.mubr.bf16.gmra.mrb[0].mxu0 %v1456
  %v1576 = vpop.f32.mrb[0].mxu0
  %v1577 = vadd.f32 0.0, %v1576
  %v1578 = vpop.f32.mrb[0].mxu0
  %v1579 = vpop.f32.mrb[0].mxu0
  %v1580 = vadd.f32 0.0, %v1579
  %v1581 = vpop.f32.mrb[0].mxu0
  %1582 = vdwg.mxu0
  %v1583 = vmax.f32 %v1540, %v1577
  %v1584 = vmax.f32 %v1541, %v1580
  %v1585 = vadd.f32 %v1583, %v216
  %v1586 = vadd.f32 %v1584, %v216
  %v1587 = vmax.f32 %v1585, 0.0
  %v1588 = vmax.f32 %v1586, 0.0
  %v1589 = vpack.c.bf16 %v1588, %v1587
  %1590 = vst.msk [vmem:[#allocation2 + $0x120] sm:$0xff] %vm223, %v1589
  %1592 = vrot.lane.b32.xlu0 %v1589, 96
  %v1593 = vpop.permute.xlu0 %1592
  %1595 = vst.msk [vmem:[#allocation2 + $0x128] sm:$0xff] %vm223, %v1593
  %1596 = vrot.lane.b32.xlu0 %v1589, 64
  %v1597 = vpop.permute.xlu0 %1596
  %1599 = vst.msk [vmem:[#allocation2 + $0x130] sm:$0xff] %vm223, %v1597
  %1600 = vrot.lane.b32.xlu0 %v1589, 32
  %v1601 = vpop.permute.xlu0 %1600
  %1603 = vst.msk [vmem:[#allocation2 + $0x138] sm:$0xff] %vm223, %v1601
  %v1604 = vld [vmem:[#allocation2] sm:$0xff]
  %v1605 = vld [vmem:[#allocation2 + $0x8] sm:$0xff]
  %v1606 = vld [vmem:[#allocation2 + $0x10] sm:$0xff]
  %1607 = vst.msk [vmem:[#allocation3] sm:$0xff] %vm223, %v1604
  %1608 = vst.msk [vmem:[#allocation3 + $0x10] sm:$0xff] %vm223, %v1605
  %1609 = vst.msk [vmem:[#allocation3 + $0x20] sm:$0xff] %vm223, %v1606
  %v1610 = vld [vmem:[#allocation2 + $0x18] sm:$0xff]
  %v1611 = vld [vmem:[#allocation2 + $0x20] sm:$0xff]
  %v1612 = vld [vmem:[#allocation2 + $0x28] sm:$0xff]
  %1613 = vst.msk [vmem:[#allocation3 + $0x30] sm:$0xff] %vm223, %v1610
  %1614 = vst.msk [vmem:[#allocation3 + $0x40] sm:$0xff] %vm223, %v1611
  %1615 = vst.msk [vmem:[#allocation3 + $0x50] sm:$0xff] %vm223, %v1612
  %v1616 = vld [vmem:[#allocation2 + $0x30] sm:$0xff]
  %v1617 = vld [vmem:[#allocation2 + $0x38] sm:$0xff]
  %v1618 = vld [vmem:[#allocation2 + $0x40] sm:$0xff]
  %1619 = vst.msk [vmem:[#allocation3 + $0x60] sm:$0xff] %vm223, %v1616
  %1620 = vst.msk [vmem:[#allocation3 + $0x70] sm:$0xff] %vm223, %v1617
  %1621 = vst.msk [vmem:[#allocation3 + $0x80] sm:$0xff] %vm223, %v1618
  %v1622 = vld [vmem:[#allocation2 + $0x48] sm:$0xff]
  %v1623 = vld [vmem:[#allocation2 + $0x50] sm:$0xff]
  %v1624 = vld [vmem:[#allocation2 + $0x58] sm:$0xff]
  %1625 = vst.msk [vmem:[#allocation3 + $0x90] sm:$0xff] %vm223, %v1622
  %1626 = vst.msk [vmem:[#allocation3 + $0xa0] sm:$0xff] %vm223, %v1623
  %1627 = vst.msk [vmem:[#allocation3 + $0xb0] sm:$0xff] %vm223, %v1624
  %v1628 = vld [vmem:[#allocation2 + $0x60] sm:$0xff]
  %v1629 = vld [vmem:[#allocation2 + $0x68] sm:$0xff]
  %v1630 = vld [vmem:[#allocation2 + $0x70] sm:$0xff]
  %1631 = vst.msk [vmem:[#allocation3 + $0xc0] sm:$0xff] %vm223, %v1628
  %1632 = vst.msk [vmem:[#allocation3 + $0xd0] sm:$0xff] %vm223, %v1629
  %1633 = vst.msk [vmem:[#allocation3 + $0xe0] sm:$0xff] %vm223, %v1630
  %v1634 = vld [vmem:[#allocation2 + $0x78] sm:$0xff]
  %v1635 = vld [vmem:[#allocation2 + $0x80] sm:$0xff]
  %v1636 = vld [vmem:[#allocation2 + $0x88] sm:$0xff]
  %1637 = vst.msk [vmem:[#allocation3 + $0xf0] sm:$0xff] %vm223, %v1634
  %1638 = vst.msk [vmem:[#allocation3 + $0x100] sm:$0xff] %vm223, %v1635
  %1639 = vst.msk [vmem:[#allocation3 + $0x110] sm:$0xff] %vm223, %v1636
  %v1640 = vld [vmem:[#allocation2 + $0x90] sm:$0xff]
  %v1641 = vld [vmem:[#allocation2 + $0x98] sm:$0xff]
  %v1642 = vld [vmem:[#allocation2 + $0xa0] sm:$0xff]
  %1643 = vst.msk [vmem:[#allocation3 + $0x120] sm:$0xff] %vm223, %v1640
  %1644 = vst.msk [vmem:[#allocation3 + $0x130] sm:$0xff] %vm223, %v1641
  %1645 = vst.msk [vmem:[#allocation3 + $0x140] sm:$0xff] %vm223, %v1642
  %v1646 = vld [vmem:[#allocation2 + $0xa8] sm:$0xff]
  %v1647 = vld [vmem:[#allocation2 + $0xb0] sm:$0xff]
  %v1648 = vld [vmem:[#allocation2 + $0xb8] sm:$0xff]
  %1649 = vst.msk [vmem:[#allocation3 + $0x150] sm:$0xff] %vm223, %v1646
  %1650 = vst.msk [vmem:[#allocation3 + $0x160] sm:$0xff] %vm223, %v1647
  %1651 = vst.msk [vmem:[#allocation3 + $0x170] sm:$0xff] %vm223, %v1648
  %v1652 = vld [vmem:[#allocation2 + $0xc0] sm:$0xff]
  %v1653 = vld [vmem:[#allocation2 + $0xc8] sm:$0xff]
  %v1654 = vld [vmem:[#allocation2 + $0xd0] sm:$0xff]
  %1655 = vst.msk [vmem:[#allocation3 + $0x180] sm:$0xff] %vm223, %v1652
  %1656 = vst.msk [vmem:[#allocation3 + $0x190] sm:$0xff] %vm223, %v1653
  %1657 = vst.msk [vmem:[#allocation3 + $0x1a0] sm:$0xff] %vm223, %v1654
  %v1658 = vld [vmem:[#allocation2 + $0xd8] sm:$0xff]
  %v1659 = vld [vmem:[#allocation2 + $0xe0] sm:$0xff]
  %v1660 = vld [vmem:[#allocation2 + $0xe8] sm:$0xff]
  %1661 = vst.msk [vmem:[#allocation3 + $0x1b0] sm:$0xff] %vm223, %v1658
  %1662 = vst.msk [vmem:[#allocation3 + $0x1c0] sm:$0xff] %vm223, %v1659
  %1663 = vst.msk [vmem:[#allocation3 + $0x1d0] sm:$0xff] %vm223, %v1660
  %v1664 = vld [vmem:[#allocation2 + $0xf0] sm:$0xff]
  %v1665 = vld [vmem:[#allocation2 + $0xf8] sm:$0xff]
  %v1666 = vld [vmem:[#allocation2 + $0x100] sm:$0xff]
  %1667 = vst.msk [vmem:[#allocation3 + $0x1e0] sm:$0xff] %vm223, %v1664
  %1668 = vst.msk [vmem:[#allocation3 + $0x1f0] sm:$0xff] %vm223, %v1665
  %1669 = vst.msk [vmem:[#allocation3 + $0x200] sm:$0xff] %vm223, %v1666
  %v1670 = vld [vmem:[#allocation2 + $0x8] sm:$0xff]
  %v1671 = vld [vmem:[#allocation2 + $0x10] sm:$0xff]
  %v1672 = vld [vmem:[#allocation2 + $0x18] sm:$0xff]
  %1676 = vrot.lane.b32.xlu0 %v1670, 32
  %v1677 = vpop.permute.xlu0 %1676
  %1678 = vrot.lane.b32.xlu0 %v1671, 32
  %v1679 = vpop.permute.xlu0 %1678
  %1680 = vrot.lane.b32.xlu0 %v1672, 32
  %v1681 = vpop.permute.xlu0 %1680
  %vm1685 = vcmask 523520
  %1686 = vst.msk [vmem:[#allocation3] sm:$0xff] %vm1685, %v1677
  %1687 = vst.msk [vmem:[#allocation3 + $0x10] sm:$0xff] %vm1685, %v1679
  %1688 = vst.msk [vmem:[#allocation3 + $0x20] sm:$0xff] %vm1685, %v1681
  %v1689 = vld [vmem:[#allocation2 + $0x20] sm:$0xff]
  %v1690 = vld [vmem:[#allocation2 + $0x28] sm:$0xff]
  %v1691 = vld [vmem:[#allocation2 + $0x30] sm:$0xff]
  %1695 = vrot.lane.b32.xlu0 %v1689, 32
  %v1696 = vpop.permute.xlu0 %1695
  %1697 = vrot.lane.b32.xlu0 %v1690, 32
  %v1698 = vpop.permute.xlu0 %1697
  %1699 = vrot.lane.b32.xlu0 %v1691, 32
  %v1700 = vpop.permute.xlu0 %1699
  %1704 = vst.msk [vmem:[#allocation3 + $0x30] sm:$0xff] %vm1685, %v1696
  %1705 = vst.msk [vmem:[#allocation3 + $0x40] sm:$0xff] %vm1685, %v1698
  %1706 = vst.msk [vmem:[#allocation3 + $0x50] sm:$0xff] %vm1685, %v1700
  %v1707 = vld [vmem:[#allocation2 + $0x38] sm:$0xff]
  %v1708 = vld [vmem:[#allocation2 + $0x40] sm:$0xff]
  %v1709 = vld [vmem:[#allocation2 + $0x48] sm:$0xff]
  %1713 = vrot.lane.b32.xlu0 %v1707, 32
  %v1714 = vpop.permute.xlu0 %1713
  %1715 = vrot.lane.b32.xlu0 %v1708, 32
  %v1716 = vpop.permute.xlu0 %1715
  %1717 = vrot.lane.b32.xlu0 %v1709, 32
  %v1718 = vpop.permute.xlu0 %1717
  %1722 = vst.msk [vmem:[#allocation3 + $0x60] sm:$0xff] %vm1685, %v1714
  %1723 = vst.msk [vmem:[#allocation3 + $0x70] sm:$0xff] %vm1685, %v1716
  %1724 = vst.msk [vmem:[#allocation3 + $0x80] sm:$0xff] %vm1685, %v1718
  %v1725 = vld [vmem:[#allocation2 + $0x50] sm:$0xff]
  %v1726 = vld [vmem:[#allocation2 + $0x58] sm:$0xff]
  %v1727 = vld [vmem:[#allocation2 + $0x60] sm:$0xff]
  %1731 = vrot.lane.b32.xlu0 %v1725, 32
  %v1732 = vpop.permute.xlu0 %1731
  %1733 = vrot.lane.b32.xlu0 %v1726, 32
  %v1734 = vpop.permute.xlu0 %1733
  %1735 = vrot.lane.b32.xlu0 %v1727, 32
  %v1736 = vpop.permute.xlu0 %1735
  %1740 = vst.msk [vmem:[#allocation3 + $0x90] sm:$0xff] %vm1685, %v1732
  %1741 = vst.msk [vmem:[#allocation3 + $0xa0] sm:$0xff] %vm1685, %v1734
  %1742 = vst.msk [vmem:[#allocation3 + $0xb0] sm:$0xff] %vm1685, %v1736
  %v1743 = vld [vmem:[#allocation2 + $0x68] sm:$0xff]
  %v1744 = vld [vmem:[#allocation2 + $0x70] sm:$0xff]
  %v1745 = vld [vmem:[#allocation2 + $0x78] sm:$0xff]
  %1749 = vrot.lane.b32.xlu0 %v1743, 32
  %v1750 = vpop.permute.xlu0 %1749
  %1751 = vrot.lane.b32.xlu0 %v1744, 32
  %v1752 = vpop.permute.xlu0 %1751
  %1753 = vrot.lane.b32.xlu0 %v1745, 32
  %v1754 = vpop.permute.xlu0 %1753
  %1758 = vst.msk [vmem:[#allocation3 + $0xc0] sm:$0xff] %vm1685, %v1750
  %1759 = vst.msk [vmem:[#allocation3 + $0xd0] sm:$0xff] %vm1685, %v1752
  %1760 = vst.msk [vmem:[#allocation3 + $0xe0] sm:$0xff] %vm1685, %v1754
  %v1761 = vld [vmem:[#allocation2 + $0x80] sm:$0xff]
  %v1762 = vld [vmem:[#allocation2 + $0x88] sm:$0xff]
  %v1763 = vld [vmem:[#allocation2 + $0x90] sm:$0xff]
  %1767 = vrot.lane.b32.xlu0 %v1761, 32
  %v1768 = vpop.permute.xlu0 %1767
  %1769 = vrot.lane.b32.xlu0 %v1762, 32
  %v1770 = vpop.permute.xlu0 %1769
  %1771 = vrot.lane.b32.xlu0 %v1763, 32
  %v1772 = vpop.permute.xlu0 %1771
  %1776 = vst.msk [vmem:[#allocation3 + $0xf0] sm:$0xff] %vm1685, %v1768
  %1777 = vst.msk [vmem:[#allocation3 + $0x100] sm:$0xff] %vm1685, %v1770
  %1778 = vst.msk [vmem:[#allocation3 + $0x110] sm:$0xff] %vm1685, %v1772
  %v1779 = vld [vmem:[#allocation2 + $0x98] sm:$0xff]
  %v1780 = vld [vmem:[#allocation2 + $0xa0] sm:$0xff]
  %v1781 = vld [vmem:[#allocation2 + $0xa8] sm:$0xff]
  %1785 = vrot.lane.b32.xlu0 %v1779, 32
  %v1786 = vpop.permute.xlu0 %1785
  %1787 = vrot.lane.b32.xlu0 %v1780, 32
  %v1788 = vpop.permute.xlu0 %1787
  %1789 = vrot.lane.b32.xlu0 %v1781, 32
  %v1790 = vpop.permute.xlu0 %1789
  %1794 = vst.msk [vmem:[#allocation3 + $0x120] sm:$0xff] %vm1685, %v1786
  %1795 = vst.msk [vmem:[#allocation3 + $0x130] sm:$0xff] %vm1685, %v1788
  %1796 = vst.msk [vmem:[#allocation3 + $0x140] sm:$0xff] %vm1685, %v1790
  %v1797 = vld [vmem:[#allocation2 + $0xb0] sm:$0xff]
  %v1798 = vld [vmem:[#allocation2 + $0xb8] sm:$0xff]
  %v1799 = vld [vmem:[#allocation2 + $0xc0] sm:$0xff]
  %1803 = vrot.lane.b32.xlu0 %v1797, 32
  %v1804 = vpop.permute.xlu0 %1803
  %1805 = vrot.lane.b32.xlu0 %v1798, 32
  %v1806 = vpop.permute.xlu0 %1805
  %1807 = vrot.lane.b32.xlu0 %v1799, 32
  %v1808 = vpop.permute.xlu0 %1807
  %1812 = vst.msk [vmem:[#allocation3 + $0x150] sm:$0xff] %vm1685, %v1804
  %1813 = vst.msk [vmem:[#allocation3 + $0x160] sm:$0xff] %vm1685, %v1806
  %1814 = vst.msk [vmem:[#allocation3 + $0x170] sm:$0xff] %vm1685, %v1808
  %v1815 = vld [vmem:[#allocation2 + $0xc8] sm:$0xff]
  %v1816 = vld [vmem:[#allocation2 + $0xd0] sm:$0xff]
  %v1817 = vld [vmem:[#allocation2 + $0xd8] sm:$0xff]
  %1821 = vrot.lane.b32.xlu0 %v1815, 32
  %v1822 = vpop.permute.xlu0 %1821
  %1823 = vrot.lane.b32.xlu0 %v1816, 32
  %v1824 = vpop.permute.xlu0 %1823
  %1825 = vrot.lane.b32.xlu0 %v1817, 32
  %v1826 = vpop.permute.xlu0 %1825
  %1830 = vst.msk [vmem:[#allocation3 + $0x180] sm:$0xff] %vm1685, %v1822
  %1831 = vst.msk [vmem:[#allocation3 + $0x190] sm:$0xff] %vm1685, %v1824
  %1832 = vst.msk [vmem:[#allocation3 + $0x1a0] sm:$0xff] %vm1685, %v1826
  %v1833 = vld [vmem:[#allocation2 + $0xe0] sm:$0xff]
  %v1834 = vld [vmem:[#allocation2 + $0xe8] sm:$0xff]
  %v1835 = vld [vmem:[#allocation2 + $0xf0] sm:$0xff]
  %1839 = vrot.lane.b32.xlu0 %v1833, 32
  %v1840 = vpop.permute.xlu0 %1839
  %1841 = vrot.lane.b32.xlu0 %v1834, 32
  %v1842 = vpop.permute.xlu0 %1841
  %1843 = vrot.lane.b32.xlu0 %v1835, 32
  %v1844 = vpop.permute.xlu0 %1843
  %1848 = vst.msk [vmem:[#allocation3 + $0x1b0] sm:$0xff] %vm1685, %v1840
  %1849 = vst.msk [vmem:[#allocation3 + $0x1c0] sm:$0xff] %vm1685, %v1842
  %1850 = vst.msk [vmem:[#allocation3 + $0x1d0] sm:$0xff] %vm1685, %v1844
  %v1851 = vld [vmem:[#allocation2 + $0xf8] sm:$0xff]
  %v1852 = vld [vmem:[#allocation2 + $0x100] sm:$0xff]
  %v1853 = vld [vmem:[#allocation2 + $0x108] sm:$0xff]
  %1857 = vrot.lane.b32.xlu0 %v1851, 32
  %v1858 = vpop.permute.xlu0 %1857
  %1859 = vrot.lane.b32.xlu0 %v1852, 32
  %v1860 = vpop.permute.xlu0 %1859
  %1861 = vrot.lane.b32.xlu0 %v1853, 32
  %v1862 = vpop.permute.xlu0 %1861
  %1866 = vst.msk [vmem:[#allocation3 + $0x1e0] sm:$0xff] %vm1685, %v1858
  %1867 = vst.msk [vmem:[#allocation3 + $0x1f0] sm:$0xff] %vm1685, %v1860
  %1868 = vst.msk [vmem:[#allocation3 + $0x200] sm:$0xff] %vm1685, %v1862
  %v1869 = vld [vmem:[#allocation2 + $0x10] sm:$0xff]
  %v1870 = vld [vmem:[#allocation2 + $0x18] sm:$0xff]
  %v1871 = vld [vmem:[#allocation2 + $0x20] sm:$0xff]
  %1875 = vrot.lane.b32.xlu0 %v1869, 64
  %v1876 = vpop.permute.xlu0 %1875
  %1877 = vrot.lane.b32.xlu0 %v1870, 64
  %v1878 = vpop.permute.xlu0 %1877
  %1879 = vrot.lane.b32.xlu0 %v1871, 64
  %v1880 = vpop.permute.xlu0 %1879
  %vm1884 = vcmask 785920
  %1885 = vst.msk [vmem:[#allocation3] sm:$0xff] %vm1884, %v1876
  %1886 = vst.msk [vmem:[#allocation3 + $0x10] sm:$0xff] %vm1884, %v1878
  %1887 = vst.msk [vmem:[#allocation3 + $0x20] sm:$0xff] %vm1884, %v1880
  %v1888 = vld [vmem:[#allocation2 + $0x28] sm:$0xff]
  %v1889 = vld [vmem:[#allocation2 + $0x30] sm:$0xff]
  %v1890 = vld [vmem:[#allocation2 + $0x38] sm:$0xff]
  %1894 = vrot.lane.b32.xlu0 %v1888, 64
  %v1895 = vpop.permute.xlu0 %1894
  %1896 = vrot.lane.b32.xlu0 %v1889, 64
  %v1897 = vpop.permute.xlu0 %1896
  %1898 = vrot.lane.b32.xlu0 %v1890, 64
  %v1899 = vpop.permute.xlu0 %1898
  %1903 = vst.msk [vmem:[#allocation3 + $0x30] sm:$0xff] %vm1884, %v1895
  %1904 = vst.msk [vmem:[#allocation3 + $0x40] sm:$0xff] %vm1884, %v1897
  %1905 = vst.msk [vmem:[#allocation3 + $0x50] sm:$0xff] %vm1884, %v1899
  %v1906 = vld [vmem:[#allocation2 + $0x40] sm:$0xff]
  %v1907 = vld [vmem:[#allocation2 + $0x48] sm:$0xff]
  %v1908 = vld [vmem:[#allocation2 + $0x50] sm:$0xff]
  %1912 = vrot.lane.b32.xlu0 %v1906, 64
  %v1913 = vpop.permute.xlu0 %1912
  %1914 = vrot.lane.b32.xlu0 %v1907, 64
  %v1915 = vpop.permute.xlu0 %1914
  %1916 = vrot.lane.b32.xlu0 %v1908, 64
  %v1917 = vpop.permute.xlu0 %1916
  %1921 = vst.msk [vmem:[#allocation3 + $0x60] sm:$0xff] %vm1884, %v1913
  %1922 = vst.msk [vmem:[#allocation3 + $0x70] sm:$0xff] %vm1884, %v1915
  %1923 = vst.msk [vmem:[#allocation3 + $0x80] sm:$0xff] %vm1884, %v1917
  %v1924 = vld [vmem:[#allocation2 + $0x58] sm:$0xff]
  %v1925 = vld [vmem:[#allocation2 + $0x60] sm:$0xff]
  %v1926 = vld [vmem:[#allocation2 + $0x68] sm:$0xff]
  %1930 = vrot.lane.b32.xlu0 %v1924, 64
  %v1931 = vpop.permute.xlu0 %1930
  %1932 = vrot.lane.b32.xlu0 %v1925, 64
  %v1933 = vpop.permute.xlu0 %1932
  %1934 = vrot.lane.b32.xlu0 %v1926, 64
  %v1935 = vpop.permute.xlu0 %1934
  %1939 = vst.msk [vmem:[#allocation3 + $0x90] sm:$0xff] %vm1884, %v1931
  %1940 = vst.msk [vmem:[#allocation3 + $0xa0] sm:$0xff] %vm1884, %v1933
  %1941 = vst.msk [vmem:[#allocation3 + $0xb0] sm:$0xff] %vm1884, %v1935
  %v1942 = vld [vmem:[#allocation2 + $0x70] sm:$0xff]
  %v1943 = vld [vmem:[#allocation2 + $0x78] sm:$0xff]
  %v1944 = vld [vmem:[#allocation2 + $0x80] sm:$0xff]
  %1948 = vrot.lane.b32.xlu0 %v1942, 64
  %v1949 = vpop.permute.xlu0 %1948
  %1950 = vrot.lane.b32.xlu0 %v1943, 64
  %v1951 = vpop.permute.xlu0 %1950
  %1952 = vrot.lane.b32.xlu0 %v1944, 64
  %v1953 = vpop.permute.xlu0 %1952
  %1957 = vst.msk [vmem:[#allocation3 + $0xc0] sm:$0xff] %vm1884, %v1949
  %1958 = vst.msk [vmem:[#allocation3 + $0xd0] sm:$0xff] %vm1884, %v1951
  %1959 = vst.msk [vmem:[#allocation3 + $0xe0] sm:$0xff] %vm1884, %v1953
  %v1960 = vld [vmem:[#allocation2 + $0x88] sm:$0xff]
  %v1961 = vld [vmem:[#allocation2 + $0x90] sm:$0xff]
  %v1962 = vld [vmem:[#allocation2 + $0x98] sm:$0xff]
  %1966 = vrot.lane.b32.xlu0 %v1960, 64
  %v1967 = vpop.permute.xlu0 %1966
  %1968 = vrot.lane.b32.xlu0 %v1961, 64
  %v1969 = vpop.permute.xlu0 %1968
  %1970 = vrot.lane.b32.xlu0 %v1962, 64
  %v1971 = vpop.permute.xlu0 %1970
  %1975 = vst.msk [vmem:[#allocation3 + $0xf0] sm:$0xff] %vm1884, %v1967
  %1976 = vst.msk [vmem:[#allocation3 + $0x100] sm:$0xff] %vm1884, %v1969
  %1977 = vst.msk [vmem:[#allocation3 + $0x110] sm:$0xff] %vm1884, %v1971
  %v1978 = vld [vmem:[#allocation2 + $0xa0] sm:$0xff]
  %v1979 = vld [vmem:[#allocation2 + $0xa8] sm:$0xff]
  %v1980 = vld [vmem:[#allocation2 + $0xb0] sm:$0xff]
  %1984 = vrot.lane.b32.xlu0 %v1978, 64
  %v1985 = vpop.permute.xlu0 %1984
  %1986 = vrot.lane.b32.xlu0 %v1979, 64
  %v1987 = vpop.permute.xlu0 %1986
  %1988 = vrot.lane.b32.xlu0 %v1980, 64
  %v1989 = vpop.permute.xlu0 %1988
  %1993 = vst.msk [vmem:[#allocation3 + $0x120] sm:$0xff] %vm1884, %v1985
  %1994 = vst.msk [vmem:[#allocation3 + $0x130] sm:$0xff] %vm1884, %v1987
  %1995 = vst.msk [vmem:[#allocation3 + $0x140] sm:$0xff] %vm1884, %v1989
  %v1996 = vld [vmem:[#allocation2 + $0xb8] sm:$0xff]
  %v1997 = vld [vmem:[#allocation2 + $0xc0] sm:$0xff]
  %v1998 = vld [vmem:[#allocation2 + $0xc8] sm:$0xff]
  %2002 = vrot.lane.b32.xlu0 %v1996, 64
  %v2003 = vpop.permute.xlu0 %2002
  %2004 = vrot.lane.b32.xlu0 %v1997, 64
  %v2005 = vpop.permute.xlu0 %2004
  %2006 = vrot.lane.b32.xlu0 %v1998, 64
  %v2007 = vpop.permute.xlu0 %2006
  %2011 = vst.msk [vmem:[#allocation3 + $0x150] sm:$0xff] %vm1884, %v2003
  %2012 = vst.msk [vmem:[#allocation3 + $0x160] sm:$0xff] %vm1884, %v2005
  %2013 = vst.msk [vmem:[#allocation3 + $0x170] sm:$0xff] %vm1884, %v2007
  %v2014 = vld [vmem:[#allocation2 + $0xd0] sm:$0xff]
  %v2015 = vld [vmem:[#allocation2 + $0xd8] sm:$0xff]
  %v2016 = vld [vmem:[#allocation2 + $0xe0] sm:$0xff]
  %2020 = vrot.lane.b32.xlu0 %v2014, 64
  %v2021 = vpop.permute.xlu0 %2020
  %2022 = vrot.lane.b32.xlu0 %v2015, 64
  %v2023 = vpop.permute.xlu0 %2022
  %2024 = vrot.lane.b32.xlu0 %v2016, 64
  %v2025 = vpop.permute.xlu0 %2024
  %2029 = vst.msk [vmem:[#allocation3 + $0x180] sm:$0xff] %vm1884, %v2021
  %2030 = vst.msk [vmem:[#allocation3 + $0x190] sm:$0xff] %vm1884, %v2023
  %2031 = vst.msk [vmem:[#allocation3 + $0x1a0] sm:$0xff] %vm1884, %v2025
  %v2032 = vld [vmem:[#allocation2 + $0xe8] sm:$0xff]
  %v2033 = vld [vmem:[#allocation2 + $0xf0] sm:$0xff]
  %v2034 = vld [vmem:[#allocation2 + $0xf8] sm:$0xff]
  %2038 = vrot.lane.b32.xlu0 %v2032, 64
  %v2039 = vpop.permute.xlu0 %2038
  %2040 = vrot.lane.b32.xlu0 %v2033, 64
  %v2041 = vpop.permute.xlu0 %2040
  %2042 = vrot.lane.b32.xlu0 %v2034, 64
  %v2043 = vpop.permute.xlu0 %2042
  %2047 = vst.msk [vmem:[#allocation3 + $0x1b0] sm:$0xff] %vm1884, %v2039
  %2048 = vst.msk [vmem:[#allocation3 + $0x1c0] sm:$0xff] %vm1884, %v2041
  %2049 = vst.msk [vmem:[#allocation3 + $0x1d0] sm:$0xff] %vm1884, %v2043
  %v2050 = vld [vmem:[#allocation2 + $0x100] sm:$0xff]
  %v2051 = vld [vmem:[#allocation2 + $0x108] sm:$0xff]
  %v2052 = vld [vmem:[#allocation2 + $0x110] sm:$0xff]
  %2056 = vrot.lane.b32.xlu0 %v2050, 64
  %v2057 = vpop.permute.xlu0 %2056
  %2058 = vrot.lane.b32.xlu0 %v2051, 64
  %v2059 = vpop.permute.xlu0 %2058
  %2060 = vrot.lane.b32.xlu0 %v2052, 64
  %v2061 = vpop.permute.xlu0 %2060
  %2065 = vst.msk [vmem:[#allocation3 + $0x1e0] sm:$0xff] %vm1884, %v2057
  %2066 = vst.msk [vmem:[#allocation3 + $0x1f0] sm:$0xff] %vm1884, %v2059
  %2067 = vst.msk [vmem:[#allocation3 + $0x200] sm:$0xff] %vm1884, %v2061
  %v2068 = vld [vmem:[#allocation2 + $0x18] sm:$0xff]
  %v2069 = vld [vmem:[#allocation2 + $0x20] sm:$0xff]
  %v2070 = vld [vmem:[#allocation2 + $0x28] sm:$0xff]
  %2074 = vrot.lane.b32.xlu0 %v2068, 96
  %v2075 = vpop.permute.xlu0 %2074
  %2076 = vrot.lane.b32.xlu0 %v2069, 96
  %v2077 = vpop.permute.xlu0 %2076
  %2078 = vrot.lane.b32.xlu0 %v2070, 96
  %v2079 = vpop.permute.xlu0 %2078
  %vm2083 = vcmask 1048320
  %2084 = vst.msk [vmem:[#allocation3] sm:$0xff] %vm2083, %v2075
  %2085 = vst.msk [vmem:[#allocation3 + $0x10] sm:$0xff] %vm2083, %v2077
  %2086 = vst.msk [vmem:[#allocation3 + $0x20] sm:$0xff] %vm2083, %v2079
  %v2087 = vld [vmem:[#allocation2 + $0x30] sm:$0xff]
  %v2088 = vld [vmem:[#allocation2 + $0x38] sm:$0xff]
  %v2089 = vld [vmem:[#allocation2 + $0x40] sm:$0xff]
  %2093 = vrot.lane.b32.xlu0 %v2087, 96
  %v2094 = vpop.permute.xlu0 %2093
  %2095 = vrot.lane.b32.xlu0 %v2088, 96
  %v2096 = vpop.permute.xlu0 %2095
  %2097 = vrot.lane.b32.xlu0 %v2089, 96
  %v2098 = vpop.permute.xlu0 %2097
  %2102 = vst.msk [vmem:[#allocation3 + $0x30] sm:$0xff] %vm2083, %v2094
  %2103 = vst.msk [vmem:[#allocation3 + $0x40] sm:$0xff] %vm2083, %v2096
  %2104 = vst.msk [vmem:[#allocation3 + $0x50] sm:$0xff] %vm2083, %v2098
  %v2105 = vld [vmem:[#allocation2 + $0x48] sm:$0xff]
  %v2106 = vld [vmem:[#allocation2 + $0x50] sm:$0xff]
  %v2107 = vld [vmem:[#allocation2 + $0x58] sm:$0xff]
  %2111 = vrot.lane.b32.xlu0 %v2105, 96
  %v2112 = vpop.permute.xlu0 %2111
  %2113 = vrot.lane.b32.xlu0 %v2106, 96
  %v2114 = vpop.permute.xlu0 %2113
  %2115 = vrot.lane.b32.xlu0 %v2107, 96
  %v2116 = vpop.permute.xlu0 %2115
  %2120 = vst.msk [vmem:[#allocation3 + $0x60] sm:$0xff] %vm2083, %v2112
  %2121 = vst.msk [vmem:[#allocation3 + $0x70] sm:$0xff] %vm2083, %v2114
  %2122 = vst.msk [vmem:[#allocation3 + $0x80] sm:$0xff] %vm2083, %v2116
  %v2123 = vld [vmem:[#allocation2 + $0x60] sm:$0xff]
  %v2124 = vld [vmem:[#allocation2 + $0x68] sm:$0xff]
  %v2125 = vld [vmem:[#allocation2 + $0x70] sm:$0xff]
  %2129 = vrot.lane.b32.xlu0 %v2123, 96
  %v2130 = vpop.permute.xlu0 %2129
  %2131 = vrot.lane.b32.xlu0 %v2124, 96
  %v2132 = vpop.permute.xlu0 %2131
  %2133 = vrot.lane.b32.xlu0 %v2125, 96
  %v2134 = vpop.permute.xlu0 %2133
  %2138 = vst.msk [vmem:[#allocation3 + $0x90] sm:$0xff] %vm2083, %v2130
  %2139 = vst.msk [vmem:[#allocation3 + $0xa0] sm:$0xff] %vm2083, %v2132
  %2140 = vst.msk [vmem:[#allocation3 + $0xb0] sm:$0xff] %vm2083, %v2134
  %v2141 = vld [vmem:[#allocation2 + $0x78] sm:$0xff]
  %v2142 = vld [vmem:[#allocation2 + $0x80] sm:$0xff]
  %v2143 = vld [vmem:[#allocation2 + $0x88] sm:$0xff]
  %2147 = vrot.lane.b32.xlu0 %v2141, 96
  %v2148 = vpop.permute.xlu0 %2147
  %2149 = vrot.lane.b32.xlu0 %v2142, 96
  %v2150 = vpop.permute.xlu0 %2149
  %2151 = vrot.lane.b32.xlu0 %v2143, 96
  %v2152 = vpop.permute.xlu0 %2151
  %2156 = vst.msk [vmem:[#allocation3 + $0xc0] sm:$0xff] %vm2083, %v2148
  %2157 = vst.msk [vmem:[#allocation3 + $0xd0] sm:$0xff] %vm2083, %v2150
  %2158 = vst.msk [vmem:[#allocation3 + $0xe0] sm:$0xff] %vm2083, %v2152
  %v2159 = vld [vmem:[#allocation2 + $0x90] sm:$0xff]
  %v2160 = vld [vmem:[#allocation2 + $0x98] sm:$0xff]
  %v2161 = vld [vmem:[#allocation2 + $0xa0] sm:$0xff]
  %2165 = vrot.lane.b32.xlu0 %v2159, 96
  %v2166 = vpop.permute.xlu0 %2165
  %2167 = vrot.lane.b32.xlu0 %v2160, 96
  %v2168 = vpop.permute.xlu0 %2167
  %2169 = vrot.lane.b32.xlu0 %v2161, 96
  %v2170 = vpop.permute.xlu0 %2169
  %2174 = vst.msk [vmem:[#allocation3 + $0xf0] sm:$0xff] %vm2083, %v2166
  %2175 = vst.msk [vmem:[#allocation3 + $0x100] sm:$0xff] %vm2083, %v2168
  %2176 = vst.msk [vmem:[#allocation3 + $0x110] sm:$0xff] %vm2083, %v2170
  %v2177 = vld [vmem:[#allocation2 + $0xa8] sm:$0xff]
  %v2178 = vld [vmem:[#allocation2 + $0xb0] sm:$0xff]
  %v2179 = vld [vmem:[#allocation2 + $0xb8] sm:$0xff]
  %2183 = vrot.lane.b32.xlu0 %v2177, 96
  %v2184 = vpop.permute.xlu0 %2183
  %2185 = vrot.lane.b32.xlu0 %v2178, 96
  %v2186 = vpop.permute.xlu0 %2185
  %2187 = vrot.lane.b32.xlu0 %v2179, 96
  %v2188 = vpop.permute.xlu0 %2187
  %2192 = vst.msk [vmem:[#allocation3 + $0x120] sm:$0xff] %vm2083, %v2184
  %2193 = vst.msk [vmem:[#allocation3 + $0x130] sm:$0xff] %vm2083, %v2186
  %2194 = vst.msk [vmem:[#allocation3 + $0x140] sm:$0xff] %vm2083, %v2188
  %v2195 = vld [vmem:[#allocation2 + $0xc0] sm:$0xff]
  %v2196 = vld [vmem:[#allocation2 + $0xc8] sm:$0xff]
  %v2197 = vld [vmem:[#allocation2 + $0xd0] sm:$0xff]
  %2201 = vrot.lane.b32.xlu0 %v2195, 96
  %v2202 = vpop.permute.xlu0 %2201
  %2203 = vrot.lane.b32.xlu0 %v2196, 96
  %v2204 = vpop.permute.xlu0 %2203
  %2205 = vrot.lane.b32.xlu0 %v2197, 96
  %v2206 = vpop.permute.xlu0 %2205
  %2210 = vst.msk [vmem:[#allocation3 + $0x150] sm:$0xff] %vm2083, %v2202
  %2211 = vst.msk [vmem:[#allocation3 + $0x160] sm:$0xff] %vm2083, %v2204
  %2212 = vst.msk [vmem:[#allocation3 + $0x170] sm:$0xff] %vm2083, %v2206
  %v2213 = vld [vmem:[#allocation2 + $0xd8] sm:$0xff]
  %v2214 = vld [vmem:[#allocation2 + $0xe0] sm:$0xff]
  %v2215 = vld [vmem:[#allocation2 + $0xe8] sm:$0xff]
  %2219 = vrot.lane.b32.xlu0 %v2213, 96
  %v2220 = vpop.permute.xlu0 %2219
  %2221 = vrot.lane.b32.xlu0 %v2214, 96
  %v2222 = vpop.permute.xlu0 %2221
  %2223 = vrot.lane.b32.xlu0 %v2215, 96
  %v2224 = vpop.permute.xlu0 %2223
  %2228 = vst.msk [vmem:[#allocation3 + $0x180] sm:$0xff] %vm2083, %v2220
  %2229 = vst.msk [vmem:[#allocation3 + $0x190] sm:$0xff] %vm2083, %v2222
  %2230 = vst.msk [vmem:[#allocation3 + $0x1a0] sm:$0xff] %vm2083, %v2224
  %v2231 = vld [vmem:[#allocation2 + $0xf0] sm:$0xff]
  %v2232 = vld [vmem:[#allocation2 + $0xf8] sm:$0xff]
  %v2233 = vld [vmem:[#allocation2 + $0x100] sm:$0xff]
  %2237 = vrot.lane.b32.xlu0 %v2231, 96
  %v2238 = vpop.permute.xlu0 %2237
  %2239 = vrot.lane.b32.xlu0 %v2232, 96
  %v2240 = vpop.permute.xlu0 %2239
  %2241 = vrot.lane.b32.xlu0 %v2233, 96
  %v2242 = vpop.permute.xlu0 %2241
  %2246 = vst.msk [vmem:[#allocation3 + $0x1b0] sm:$0xff] %vm2083, %v2238
  %2247 = vst.msk [vmem:[#allocation3 + $0x1c0] sm:$0xff] %vm2083, %v2240
  %2248 = vst.msk [vmem:[#allocation3 + $0x1d0] sm:$0xff] %vm2083, %v2242
  %v2249 = vld [vmem:[#allocation2 + $0x108] sm:$0xff]
  %v2250 = vld [vmem:[#allocation2 + $0x110] sm:$0xff]
  %v2251 = vld [vmem:[#allocation2 + $0x118] sm:$0xff]
  %2255 = vrot.lane.b32.xlu0 %v2249, 96
  %v2256 = vpop.permute.xlu0 %2255
  %2257 = vrot.lane.b32.xlu0 %v2250, 96
  %v2258 = vpop.permute.xlu0 %2257
  %2259 = vrot.lane.b32.xlu0 %v2251, 96
  %v2260 = vpop.permute.xlu0 %2259
  %2264 = vst.msk [vmem:[#allocation3 + $0x1e0] sm:$0xff] %vm2083, %v2256
  %2265 = vst.msk [vmem:[#allocation3 + $0x1f0] sm:$0xff] %vm2083, %v2258
  %2266 = vst.msk [vmem:[#allocation3 + $0x200] sm:$0xff] %vm2083, %v2260
  %v2267 = vld [vmem:[#allocation2 + $0x20] sm:$0xff]
  %v2268 = vld [vmem:[#allocation2 + $0x28] sm:$0xff]
  %v2269 = vld [vmem:[#allocation2 + $0x30] sm:$0xff]
  %2270 = vst.msk [vmem:[#allocation3 + $0x8] sm:$0xff] %vm223, %v2267
  %2271 = vst.msk [vmem:[#allocation3 + $0x18] sm:$0xff] %vm223, %v2268
  %2272 = vst.msk [vmem:[#allocation3 + $0x28] sm:$0xff] %vm223, %v2269
  %v2273 = vld [vmem:[#allocation2 + $0x38] sm:$0xff]
  %v2274 = vld [vmem:[#allocation2 + $0x40] sm:$0xff]
  %v2275 = vld [vmem:[#allocation2 + $0x48] sm:$0xff]
  %2276 = vst.msk [vmem:[#allocation3 + $0x38] sm:$0xff] %vm223, %v2273
  %2277 = vst.msk [vmem:[#allocation3 + $0x48] sm:$0xff] %vm223, %v2274
  %2278 = vst.msk [vmem:[#allocation3 + $0x58] sm:$0xff] %vm223, %v2275
  %v2279 = vld [vmem:[#allocation2 + $0x50] sm:$0xff]
  %v2280 = vld [vmem:[#allocation2 + $0x58] sm:$0xff]
  %v2281 = vld [vmem:[#allocation2 + $0x60] sm:$0xff]
  %2282 = vst.msk [vmem:[#allocation3 + $0x68] sm:$0xff] %vm223, %v2279
  %2283 = vst.msk [vmem:[#allocation3 + $0x78] sm:$0xff] %vm223, %v2280
  %2284 = vst.msk [vmem:[#allocation3 + $0x88] sm:$0xff] %vm223, %v2281
  %v2285 = vld [vmem:[#allocation2 + $0x68] sm:$0xff]
  %v2286 = vld [vmem:[#allocation2 + $0x70] sm:$0xff]
  %v2287 = vld [vmem:[#allocation2 + $0x78] sm:$0xff]
  %2288 = vst.msk [vmem:[#allocation3 + $0x98] sm:$0xff] %vm223, %v2285
  %2289 = vst.msk [vmem:[#allocation3 + $0xa8] sm:$0xff] %vm223, %v2286
  %2290 = vst.msk [vmem:[#allocation3 + $0xb8] sm:$0xff] %vm223, %v2287
  %v2291 = vld [vmem:[#allocation2 + $0x80] sm:$0xff]
  %v2292 = vld [vmem:[#allocation2 + $0x88] sm:$0xff]
  %v2293 = vld [vmem:[#allocation2 + $0x90] sm:$0xff]
  %2294 = vst.msk [vmem:[#allocation3 + $0xc8] sm:$0xff] %vm223, %v2291
  %2295 = vst.msk [vmem:[#allocation3 + $0xd8] sm:$0xff] %vm223, %v2292
  %2296 = vst.msk [vmem:[#allocation3 + $0xe8] sm:$0xff] %vm223, %v2293
  %v2297 = vld [vmem:[#allocation2 + $0x98] sm:$0xff]
  %v2298 = vld [vmem:[#allocation2 + $0xa0] sm:$0xff]
  %v2299 = vld [vmem:[#allocation2 + $0xa8] sm:$0xff]
  %2300 = vst.msk [vmem:[#allocation3 + $0xf8] sm:$0xff] %vm223, %v2297
  %2301 = vst.msk [vmem:[#allocation3 + $0x108] sm:$0xff] %vm223, %v2298
  %2302 = vst.msk [vmem:[#allocation3 + $0x118] sm:$0xff] %vm223, %v2299
  %v2303 = vld [vmem:[#allocation2 + $0xb0] sm:$0xff]
  %v2304 = vld [vmem:[#allocation2 + $0xb8] sm:$0xff]
  %v2305 = vld [vmem:[#allocation2 + $0xc0] sm:$0xff]
  %2306 = vst.msk [vmem:[#allocation3 + $0x128] sm:$0xff] %vm223, %v2303
  %2307 = vst.msk [vmem:[#allocation3 + $0x138] sm:$0xff] %vm223, %v2304
  %2308 = vst.msk [vmem:[#allocation3 + $0x148] sm:$0xff] %vm223, %v2305
  %v2309 = vld [vmem:[#allocation2 + $0xc8] sm:$0xff]
  %v2310 = vld [vmem:[#allocation2 + $0xd0] sm:$0xff]
  %v2311 = vld [vmem:[#allocation2 + $0xd8] sm:$0xff]
  %2312 = vst.msk [vmem:[#allocation3 + $0x158] sm:$0xff] %vm223, %v2309
  %2313 = vst.msk [vmem:[#allocation3 + $0x168] sm:$0xff] %vm223, %v2310
  %2314 = vst.msk [vmem:[#allocation3 + $0x178] sm:$0xff] %vm223, %v2311
  %v2315 = vld [vmem:[#allocation2 + $0xe0] sm:$0xff]
  %v2316 = vld [vmem:[#allocation2 + $0xe8] sm:$0xff]
  %v2317 = vld [vmem:[#allocation2 + $0xf0] sm:$0xff]
  %2318 = vst.msk [vmem:[#allocation3 + $0x188] sm:$0xff] %vm223, %v2315
  %2319 = vst.msk [vmem:[#allocation3 + $0x198] sm:$0xff] %vm223, %v2316
  %2320 = vst.msk [vmem:[#allocation3 + $0x1a8] sm:$0xff] %vm223, %v2317
  %v2321 = vld [vmem:[#allocation2 + $0xf8] sm:$0xff]
  %v2322 = vld [vmem:[#allocation2 + $0x100] sm:$0xff]
  %v2323 = vld [vmem:[#allocation2 + $0x108] sm:$0xff]
  %2324 = vst.msk [vmem:[#allocation3 + $0x1b8] sm:$0xff] %vm223, %v2321
  %2325 = vst.msk [vmem:[#allocation3 + $0x1c8] sm:$0xff] %vm223, %v2322
  %2326 = vst.msk [vmem:[#allocation3 + $0x1d8] sm:$0xff] %vm223, %v2323
  %v2327 = vld [vmem:[#allocation2 + $0x110] sm:$0xff]
  %v2328 = vld [vmem:[#allocation2 + $0x118] sm:$0xff]
  %v2329 = vld [vmem:[#allocation2 + $0x120] sm:$0xff]
  %2330 = vst.msk [vmem:[#allocation3 + $0x1e8] sm:$0xff] %vm223, %v2327
  %2331 = vst.msk [vmem:[#allocation3 + $0x1f8] sm:$0xff] %vm223, %v2328
  %2332 = vst.msk [vmem:[#allocation3 + $0x208] sm:$0xff] %vm223, %v2329
  %v2333 = vld [vmem:[#allocation2 + $0x28] sm:$0xff]
  %v2334 = vld [vmem:[#allocation2 + $0x30] sm:$0xff]
  %v2335 = vld [vmem:[#allocation2 + $0x38] sm:$0xff]
  %2339 = vrot.lane.b32.xlu0 %v2333, 32
  %v2340 = vpop.permute.xlu0 %2339
  %2341 = vrot.lane.b32.xlu0 %v2334, 32
  %v2342 = vpop.permute.xlu0 %2341
  %2343 = vrot.lane.b32.xlu0 %v2335, 32
  %v2344 = vpop.permute.xlu0 %2343
  %2348 = vst.msk [vmem:[#allocation3 + $0x8] sm:$0xff] %vm1685, %v2340
  %2349 = vst.msk [vmem:[#allocation3 + $0x18] sm:$0xff] %vm1685, %v2342
  %2350 = vst.msk [vmem:[#allocation3 + $0x28] sm:$0xff] %vm1685, %v2344
  %v2351 = vld [vmem:[#allocation2 + $0x40] sm:$0xff]
  %v2352 = vld [vmem:[#allocation2 + $0x48] sm:$0xff]
  %v2353 = vld [vmem:[#allocation2 + $0x50] sm:$0xff]
  %2357 = vrot.lane.b32.xlu0 %v2351, 32
  %v2358 = vpop.permute.xlu0 %2357
  %2359 = vrot.lane.b32.xlu0 %v2352, 32
  %v2360 = vpop.permute.xlu0 %2359
  %2361 = vrot.lane.b32.xlu0 %v2353, 32
  %v2362 = vpop.permute.xlu0 %2361
  %2366 = vst.msk [vmem:[#allocation3 + $0x38] sm:$0xff] %vm1685, %v2358
  %2367 = vst.msk [vmem:[#allocation3 + $0x48] sm:$0xff] %vm1685, %v2360
  %2368 = vst.msk [vmem:[#allocation3 + $0x58] sm:$0xff] %vm1685, %v2362
  %v2369 = vld [vmem:[#allocation2 + $0x58] sm:$0xff]
  %v2370 = vld [vmem:[#allocation2 + $0x60] sm:$0xff]
  %v2371 = vld [vmem:[#allocation2 + $0x68] sm:$0xff]
  %2375 = vrot.lane.b32.xlu0 %v2369, 32
  %v2376 = vpop.permute.xlu0 %2375
  %2377 = vrot.lane.b32.xlu0 %v2370, 32
  %v2378 = vpop.permute.xlu0 %2377
  %2379 = vrot.lane.b32.xlu0 %v2371, 32
  %v2380 = vpop.permute.xlu0 %2379
  %2384 = vst.msk [vmem:[#allocation3 + $0x68] sm:$0xff] %vm1685, %v2376
  %2385 = vst.msk [vmem:[#allocation3 + $0x78] sm:$0xff] %vm1685, %v2378
  %2386 = vst.msk [vmem:[#allocation3 + $0x88] sm:$0xff] %vm1685, %v2380
  %v2387 = vld [vmem:[#allocation2 + $0x70] sm:$0xff]
  %v2388 = vld [vmem:[#allocation2 + $0x78] sm:$0xff]
  %v2389 = vld [vmem:[#allocation2 + $0x80] sm:$0xff]
  %2393 = vrot.lane.b32.xlu0 %v2387, 32
  %v2394 = vpop.permute.xlu0 %2393
  %2395 = vrot.lane.b32.xlu0 %v2388, 32
  %v2396 = vpop.permute.xlu0 %2395
  %2397 = vrot.lane.b32.xlu0 %v2389, 32
  %v2398 = vpop.permute.xlu0 %2397
  %2402 = vst.msk [vmem:[#allocation3 + $0x98] sm:$0xff] %vm1685, %v2394
  %2403 = vst.msk [vmem:[#allocation3 + $0xa8] sm:$0xff] %vm1685, %v2396
  %2404 = vst.msk [vmem:[#allocation3 + $0xb8] sm:$0xff] %vm1685, %v2398
  %v2405 = vld [vmem:[#allocation2 + $0x88] sm:$0xff]
  %v2406 = vld [vmem:[#allocation2 + $0x90] sm:$0xff]
  %v2407 = vld [vmem:[#allocation2 + $0x98] sm:$0xff]
  %2411 = vrot.lane.b32.xlu0 %v2405, 32
  %v2412 = vpop.permute.xlu0 %2411
  %2413 = vrot.lane.b32.xlu0 %v2406, 32
  %v2414 = vpop.permute.xlu0 %2413
  %2415 = vrot.lane.b32.xlu0 %v2407, 32
  %v2416 = vpop.permute.xlu0 %2415
  %2420 = vst.msk [vmem:[#allocation3 + $0xc8] sm:$0xff] %vm1685, %v2412
  %2421 = vst.msk [vmem:[#allocation3 + $0xd8] sm:$0xff] %vm1685, %v2414
  %2422 = vst.msk [vmem:[#allocation3 + $0xe8] sm:$0xff] %vm1685, %v2416
  %v2423 = vld [vmem:[#allocation2 + $0xa0] sm:$0xff]
  %v2424 = vld [vmem:[#allocation2 + $0xa8] sm:$0xff]
  %v2425 = vld [vmem:[#allocation2 + $0xb0] sm:$0xff]
  %2429 = vrot.lane.b32.xlu0 %v2423, 32
  %v2430 = vpop.permute.xlu0 %2429
  %2431 = vrot.lane.b32.xlu0 %v2424, 32
  %v2432 = vpop.permute.xlu0 %2431
  %2433 = vrot.lane.b32.xlu0 %v2425, 32
  %v2434 = vpop.permute.xlu0 %2433
  %2438 = vst.msk [vmem:[#allocation3 + $0xf8] sm:$0xff] %vm1685, %v2430
  %2439 = vst.msk [vmem:[#allocation3 + $0x108] sm:$0xff] %vm1685, %v2432
  %2440 = vst.msk [vmem:[#allocation3 + $0x118] sm:$0xff] %vm1685, %v2434
  %v2441 = vld [vmem:[#allocation2 + $0xb8] sm:$0xff]
  %v2442 = vld [vmem:[#allocation2 + $0xc0] sm:$0xff]
  %v2443 = vld [vmem:[#allocation2 + $0xc8] sm:$0xff]
  %2447 = vrot.lane.b32.xlu0 %v2441, 32
  %v2448 = vpop.permute.xlu0 %2447
  %2449 = vrot.lane.b32.xlu0 %v2442, 32
  %v2450 = vpop.permute.xlu0 %2449
  %2451 = vrot.lane.b32.xlu0 %v2443, 32
  %v2452 = vpop.permute.xlu0 %2451
  %2456 = vst.msk [vmem:[#allocation3 + $0x128] sm:$0xff] %vm1685, %v2448
  %2457 = vst.msk [vmem:[#allocation3 + $0x138] sm:$0xff] %vm1685, %v2450
  %2458 = vst.msk [vmem:[#allocation3 + $0x148] sm:$0xff] %vm1685, %v2452
  %v2459 = vld [vmem:[#allocation2 + $0xd0] sm:$0xff]
  %v2460 = vld [vmem:[#allocation2 + $0xd8] sm:$0xff]
  %v2461 = vld [vmem:[#allocation2 + $0xe0] sm:$0xff]
  %2465 = vrot.lane.b32.xlu0 %v2459, 32
  %v2466 = vpop.permute.xlu0 %2465
  %2467 = vrot.lane.b32.xlu0 %v2460, 32
  %v2468 = vpop.permute.xlu0 %2467
  %2469 = vrot.lane.b32.xlu0 %v2461, 32
  %v2470 = vpop.permute.xlu0 %2469
  %2474 = vst.msk [vmem:[#allocation3 + $0x158] sm:$0xff] %vm1685, %v2466
  %2475 = vst.msk [vmem:[#allocation3 + $0x168] sm:$0xff] %vm1685, %v2468
  %2476 = vst.msk [vmem:[#allocation3 + $0x178] sm:$0xff] %vm1685, %v2470
  %v2477 = vld [vmem:[#allocation2 + $0xe8] sm:$0xff]
  %v2478 = vld [vmem:[#allocation2 + $0xf0] sm:$0xff]
  %v2479 = vld [vmem:[#allocation2 + $0xf8] sm:$0xff]
  %2483 = vrot.lane.b32.xlu0 %v2477, 32
  %v2484 = vpop.permute.xlu0 %2483
  %2485 = vrot.lane.b32.xlu0 %v2478, 32
  %v2486 = vpop.permute.xlu0 %2485
  %2487 = vrot.lane.b32.xlu0 %v2479, 32
  %v2488 = vpop.permute.xlu0 %2487
  %2492 = vst.msk [vmem:[#allocation3 + $0x188] sm:$0xff] %vm1685, %v2484
  %2493 = vst.msk [vmem:[#allocation3 + $0x198] sm:$0xff] %vm1685, %v2486
  %2494 = vst.msk [vmem:[#allocation3 + $0x1a8] sm:$0xff] %vm1685, %v2488
  %v2495 = vld [vmem:[#allocation2 + $0x100] sm:$0xff]
  %v2496 = vld [vmem:[#allocation2 + $0x108] sm:$0xff]
  %v2497 = vld [vmem:[#allocation2 + $0x110] sm:$0xff]
  %2501 = vrot.lane.b32.xlu0 %v2495, 32
  %v2502 = vpop.permute.xlu0 %2501
  %2503 = vrot.lane.b32.xlu0 %v2496, 32
  %v2504 = vpop.permute.xlu0 %2503
  %2505 = vrot.lane.b32.xlu0 %v2497, 32
  %v2506 = vpop.permute.xlu0 %2505
  %2510 = vst.msk [vmem:[#allocation3 + $0x1b8] sm:$0xff] %vm1685, %v2502
  %2511 = vst.msk [vmem:[#allocation3 + $0x1c8] sm:$0xff] %vm1685, %v2504
  %2512 = vst.msk [vmem:[#allocation3 + $0x1d8] sm:$0xff] %vm1685, %v2506
  %v2513 = vld [vmem:[#allocation2 + $0x118] sm:$0xff]
  %v2514 = vld [vmem:[#allocation2 + $0x120] sm:$0xff]
  %v2515 = vld [vmem:[#allocation2 + $0x128] sm:$0xff]
  %2519 = vrot.lane.b32.xlu0 %v2513, 32
  %v2520 = vpop.permute.xlu0 %2519
  %2521 = vrot.lane.b32.xlu0 %v2514, 32
  %v2522 = vpop.permute.xlu0 %2521
  %2523 = vrot.lane.b32.xlu0 %v2515, 32
  %v2524 = vpop.permute.xlu0 %2523
  %2528 = vst.msk [vmem:[#allocation3 + $0x1e8] sm:$0xff] %vm1685, %v2520
  %2529 = vst.msk [vmem:[#allocation3 + $0x1f8] sm:$0xff] %vm1685, %v2522
  %2530 = vst.msk [vmem:[#allocation3 + $0x208] sm:$0xff] %vm1685, %v2524
  %v2531 = vld [vmem:[#allocation2 + $0x30] sm:$0xff]
  %v2532 = vld [vmem:[#allocation2 + $0x38] sm:$0xff]
  %v2533 = vld [vmem:[#allocation2 + $0x40] sm:$0xff]
  %2537 = vrot.lane.b32.xlu0 %v2531, 64
  %v2538 = vpop.permute.xlu0 %2537
  %2539 = vrot.lane.b32.xlu0 %v2532, 64
  %v2540 = vpop.permute.xlu0 %2539
  %2541 = vrot.lane.b32.xlu0 %v2533, 64
  %v2542 = vpop.permute.xlu0 %2541
  %2546 = vst.msk [vmem:[#allocation3 + $0x8] sm:$0xff] %vm1884, %v2538
  %2547 = vst.msk [vmem:[#allocation3 + $0x18] sm:$0xff] %vm1884, %v2540
  %2548 = vst.msk [vmem:[#allocation3 + $0x28] sm:$0xff] %vm1884, %v2542
  %v2549 = vld [vmem:[#allocation2 + $0x48] sm:$0xff]
  %v2550 = vld [vmem:[#allocation2 + $0x50] sm:$0xff]
  %v2551 = vld [vmem:[#allocation2 + $0x58] sm:$0xff]
  %2555 = vrot.lane.b32.xlu0 %v2549, 64
  %v2556 = vpop.permute.xlu0 %2555
  %2557 = vrot.lane.b32.xlu0 %v2550, 64
  %v2558 = vpop.permute.xlu0 %2557
  %2559 = vrot.lane.b32.xlu0 %v2551, 64
  %v2560 = vpop.permute.xlu0 %2559
  %2564 = vst.msk [vmem:[#allocation3 + $0x38] sm:$0xff] %vm1884, %v2556
  %2565 = vst.msk [vmem:[#allocation3 + $0x48] sm:$0xff] %vm1884, %v2558
  %2566 = vst.msk [vmem:[#allocation3 + $0x58] sm:$0xff] %vm1884, %v2560
  %v2567 = vld [vmem:[#allocation2 + $0x60] sm:$0xff]
  %v2568 = vld [vmem:[#allocation2 + $0x68] sm:$0xff]
  %v2569 = vld [vmem:[#allocation2 + $0x70] sm:$0xff]
  %2573 = vrot.lane.b32.xlu0 %v2567, 64
  %v2574 = vpop.permute.xlu0 %2573
  %2575 = vrot.lane.b32.xlu0 %v2568, 64
  %v2576 = vpop.permute.xlu0 %2575
  %2577 = vrot.lane.b32.xlu0 %v2569, 64
  %v2578 = vpop.permute.xlu0 %2577
  %2582 = vst.msk [vmem:[#allocation3 + $0x68] sm:$0xff] %vm1884, %v2574
  %2583 = vst.msk [vmem:[#allocation3 + $0x78] sm:$0xff] %vm1884, %v2576
  %2584 = vst.msk [vmem:[#allocation3 + $0x88] sm:$0xff] %vm1884, %v2578
  %v2585 = vld [vmem:[#allocation2 + $0x78] sm:$0xff]
  %v2586 = vld [vmem:[#allocation2 + $0x80] sm:$0xff]
  %v2587 = vld [vmem:[#allocation2 + $0x88] sm:$0xff]
  %2591 = vrot.lane.b32.xlu0 %v2585, 64
  %v2592 = vpop.permute.xlu0 %2591
  %2593 = vrot.lane.b32.xlu0 %v2586, 64
  %v2594 = vpop.permute.xlu0 %2593
  %2595 = vrot.lane.b32.xlu0 %v2587, 64
  %v2596 = vpop.permute.xlu0 %2595
  %2600 = vst.msk [vmem:[#allocation3 + $0x98] sm:$0xff] %vm1884, %v2592
  %2601 = vst.msk [vmem:[#allocation3 + $0xa8] sm:$0xff] %vm1884, %v2594
  %2602 = vst.msk [vmem:[#allocation3 + $0xb8] sm:$0xff] %vm1884, %v2596
  %v2603 = vld [vmem:[#allocation2 + $0x90] sm:$0xff]
  %v2604 = vld [vmem:[#allocation2 + $0x98] sm:$0xff]
  %v2605 = vld [vmem:[#allocation2 + $0xa0] sm:$0xff]
  %2609 = vrot.lane.b32.xlu0 %v2603, 64
  %v2610 = vpop.permute.xlu0 %2609
  %2611 = vrot.lane.b32.xlu0 %v2604, 64
  %v2612 = vpop.permute.xlu0 %2611
  %2613 = vrot.lane.b32.xlu0 %v2605, 64
  %v2614 = vpop.permute.xlu0 %2613
  %2618 = vst.msk [vmem:[#allocation3 + $0xc8] sm:$0xff] %vm1884, %v2610
  %2619 = vst.msk [vmem:[#allocation3 + $0xd8] sm:$0xff] %vm1884, %v2612
  %2620 = vst.msk [vmem:[#allocation3 + $0xe8] sm:$0xff] %vm1884, %v2614
  %v2621 = vld [vmem:[#allocation2 + $0xa8] sm:$0xff]
  %v2622 = vld [vmem:[#allocation2 + $0xb0] sm:$0xff]
  %v2623 = vld [vmem:[#allocation2 + $0xb8] sm:$0xff]
  %2627 = vrot.lane.b32.xlu0 %v2621, 64
  %v2628 = vpop.permute.xlu0 %2627
  %2629 = vrot.lane.b32.xlu0 %v2622, 64
  %v2630 = vpop.permute.xlu0 %2629
  %2631 = vrot.lane.b32.xlu0 %v2623, 64
  %v2632 = vpop.permute.xlu0 %2631
  %2636 = vst.msk [vmem:[#allocation3 + $0xf8] sm:$0xff] %vm1884, %v2628
  %2637 = vst.msk [vmem:[#allocation3 + $0x108] sm:$0xff] %vm1884, %v2630
  %2638 = vst.msk [vmem:[#allocation3 + $0x118] sm:$0xff] %vm1884, %v2632
  %v2639 = vld [vmem:[#allocation2 + $0xc0] sm:$0xff]
  %v2640 = vld [vmem:[#allocation2 + $0xc8] sm:$0xff]
  %v2641 = vld [vmem:[#allocation2 + $0xd0] sm:$0xff]
  %2645 = vrot.lane.b32.xlu0 %v2639, 64
  %v2646 = vpop.permute.xlu0 %2645
  %2647 = vrot.lane.b32.xlu0 %v2640, 64
  %v2648 = vpop.permute.xlu0 %2647
  %2649 = vrot.lane.b32.xlu0 %v2641, 64
  %v2650 = vpop.permute.xlu0 %2649
  %2654 = vst.msk [vmem:[#allocation3 + $0x128] sm:$0xff] %vm1884, %v2646
  %2655 = vst.msk [vmem:[#allocation3 + $0x138] sm:$0xff] %vm1884, %v2648
  %2656 = vst.msk [vmem:[#allocation3 + $0x148] sm:$0xff] %vm1884, %v2650
  %v2657 = vld [vmem:[#allocation2 + $0xd8] sm:$0xff]
  %v2658 = vld [vmem:[#allocation2 + $0xe0] sm:$0xff]
  %v2659 = vld [vmem:[#allocation2 + $0xe8] sm:$0xff]
  %2663 = vrot.lane.b32.xlu0 %v2657, 64
  %v2664 = vpop.permute.xlu0 %2663
  %2665 = vrot.lane.b32.xlu0 %v2658, 64
  %v2666 = vpop.permute.xlu0 %2665
  %2667 = vrot.lane.b32.xlu0 %v2659, 64
  %v2668 = vpop.permute.xlu0 %2667
  %2672 = vst.msk [vmem:[#allocation3 + $0x158] sm:$0xff] %vm1884, %v2664
  %2673 = vst.msk [vmem:[#allocation3 + $0x168] sm:$0xff] %vm1884, %v2666
  %2674 = vst.msk [vmem:[#allocation3 + $0x178] sm:$0xff] %vm1884, %v2668
  %v2675 = vld [vmem:[#allocation2 + $0xf0] sm:$0xff]
  %v2676 = vld [vmem:[#allocation2 + $0xf8] sm:$0xff]
  %v2677 = vld [vmem:[#allocation2 + $0x100] sm:$0xff]
  %2681 = vrot.lane.b32.xlu0 %v2675, 64
  %v2682 = vpop.permute.xlu0 %2681
  %2683 = vrot.lane.b32.xlu0 %v2676, 64
  %v2684 = vpop.permute.xlu0 %2683
  %2685 = vrot.lane.b32.xlu0 %v2677, 64
  %v2686 = vpop.permute.xlu0 %2685
  %2690 = vst.msk [vmem:[#allocation3 + $0x188] sm:$0xff] %vm1884, %v2682
  %2691 = vst.msk [vmem:[#allocation3 + $0x198] sm:$0xff] %vm1884, %v2684
  %2692 = vst.msk [vmem:[#allocation3 + $0x1a8] sm:$0xff] %vm1884, %v2686
  %v2693 = vld [vmem:[#allocation2 + $0x108] sm:$0xff]
  %v2694 = vld [vmem:[#allocation2 + $0x110] sm:$0xff]
  %v2695 = vld [vmem:[#allocation2 + $0x118] sm:$0xff]
  %2699 = vrot.lane.b32.xlu0 %v2693, 64
  %v2700 = vpop.permute.xlu0 %2699
  %2701 = vrot.lane.b32.xlu0 %v2694, 64
  %v2702 = vpop.permute.xlu0 %2701
  %2703 = vrot.lane.b32.xlu0 %v2695, 64
  %v2704 = vpop.permute.xlu0 %2703
  %2708 = vst.msk [vmem:[#allocation3 + $0x1b8] sm:$0xff] %vm1884, %v2700
  %2709 = vst.msk [vmem:[#allocation3 + $0x1c8] sm:$0xff] %vm1884, %v2702
  %2710 = vst.msk [vmem:[#allocation3 + $0x1d8] sm:$0xff] %vm1884, %v2704
  %v2711 = vld [vmem:[#allocation2 + $0x120] sm:$0xff]
  %v2712 = vld [vmem:[#allocation2 + $0x128] sm:$0xff]
  %v2713 = vld [vmem:[#allocation2 + $0x130] sm:$0xff]
  %2717 = vrot.lane.b32.xlu0 %v2711, 64
  %v2718 = vpop.permute.xlu0 %2717
  %2719 = vrot.lane.b32.xlu0 %v2712, 64
  %v2720 = vpop.permute.xlu0 %2719
  %2721 = vrot.lane.b32.xlu0 %v2713, 64
  %v2722 = vpop.permute.xlu0 %2721
  %2726 = vst.msk [vmem:[#allocation3 + $0x1e8] sm:$0xff] %vm1884, %v2718
  %2727 = vst.msk [vmem:[#allocation3 + $0x1f8] sm:$0xff] %vm1884, %v2720
  %2728 = vst.msk [vmem:[#allocation3 + $0x208] sm:$0xff] %vm1884, %v2722
  %v2729 = vld [vmem:[#allocation2 + $0x38] sm:$0xff]
  %v2730 = vld [vmem:[#allocation2 + $0x40] sm:$0xff]
  %v2731 = vld [vmem:[#allocation2 + $0x48] sm:$0xff]
  %2735 = vrot.lane.b32.xlu0 %v2729, 96
  %v2736 = vpop.permute.xlu0 %2735
  %2737 = vrot.lane.b32.xlu0 %v2730, 96
  %v2738 = vpop.permute.xlu0 %2737
  %2739 = vrot.lane.b32.xlu0 %v2731, 96
  %v2740 = vpop.permute.xlu0 %2739
  %2744 = vst.msk [vmem:[#allocation3 + $0x8] sm:$0xff] %vm2083, %v2736
  %2745 = vst.msk [vmem:[#allocation3 + $0x18] sm:$0xff] %vm2083, %v2738
  %2746 = vst.msk [vmem:[#allocation3 + $0x28] sm:$0xff] %vm2083, %v2740
  %v2747 = vld [vmem:[#allocation2 + $0x50] sm:$0xff]
  %v2748 = vld [vmem:[#allocation2 + $0x58] sm:$0xff]
  %v2749 = vld [vmem:[#allocation2 + $0x60] sm:$0xff]
  %2753 = vrot.lane.b32.xlu0 %v2747, 96
  %v2754 = vpop.permute.xlu0 %2753
  %2755 = vrot.lane.b32.xlu0 %v2748, 96
  %v2756 = vpop.permute.xlu0 %2755
  %2757 = vrot.lane.b32.xlu0 %v2749, 96
  %v2758 = vpop.permute.xlu0 %2757
  %2762 = vst.msk [vmem:[#allocation3 + $0x38] sm:$0xff] %vm2083, %v2754
  %2763 = vst.msk [vmem:[#allocation3 + $0x48] sm:$0xff] %vm2083, %v2756
  %2764 = vst.msk [vmem:[#allocation3 + $0x58] sm:$0xff] %vm2083, %v2758
  %v2765 = vld [vmem:[#allocation2 + $0x68] sm:$0xff]
  %v2766 = vld [vmem:[#allocation2 + $0x70] sm:$0xff]
  %v2767 = vld [vmem:[#allocation2 + $0x78] sm:$0xff]
  %2771 = vrot.lane.b32.xlu0 %v2765, 96
  %v2772 = vpop.permute.xlu0 %2771
  %2773 = vrot.lane.b32.xlu0 %v2766, 96
  %v2774 = vpop.permute.xlu0 %2773
  %2775 = vrot.lane.b32.xlu0 %v2767, 96
  %v2776 = vpop.permute.xlu0 %2775
  %2780 = vst.msk [vmem:[#allocation3 + $0x68] sm:$0xff] %vm2083, %v2772
  %2781 = vst.msk [vmem:[#allocation3 + $0x78] sm:$0xff] %vm2083, %v2774
  %2782 = vst.msk [vmem:[#allocation3 + $0x88] sm:$0xff] %vm2083, %v2776
  %v2783 = vld [vmem:[#allocation2 + $0x80] sm:$0xff]
  %v2784 = vld [vmem:[#allocation2 + $0x88] sm:$0xff]
  %v2785 = vld [vmem:[#allocation2 + $0x90] sm:$0xff]
  %2789 = vrot.lane.b32.xlu0 %v2783, 96
  %v2790 = vpop.permute.xlu0 %2789
  %2791 = vrot.lane.b32.xlu0 %v2784, 96
  %v2792 = vpop.permute.xlu0 %2791
  %2793 = vrot.lane.b32.xlu0 %v2785, 96
  %v2794 = vpop.permute.xlu0 %2793
  %2798 = vst.msk [vmem:[#allocation3 + $0x98] sm:$0xff] %vm2083, %v2790
  %2799 = vst.msk [vmem:[#allocation3 + $0xa8] sm:$0xff] %vm2083, %v2792
  %2800 = vst.msk [vmem:[#allocation3 + $0xb8] sm:$0xff] %vm2083, %v2794
  %v2801 = vld [vmem:[#allocation2 + $0x98] sm:$0xff]
  %v2802 = vld [vmem:[#allocation2 + $0xa0] sm:$0xff]
  %v2803 = vld [vmem:[#allocation2 + $0xa8] sm:$0xff]
  %2807 = vrot.lane.b32.xlu0 %v2801, 96
  %v2808 = vpop.permute.xlu0 %2807
  %2809 = vrot.lane.b32.xlu0 %v2802, 96
  %v2810 = vpop.permute.xlu0 %2809
  %2811 = vrot.lane.b32.xlu0 %v2803, 96
  %v2812 = vpop.permute.xlu0 %2811
  %2816 = vst.msk [vmem:[#allocation3 + $0xc8] sm:$0xff] %vm2083, %v2808
  %2817 = vst.msk [vmem:[#allocation3 + $0xd8] sm:$0xff] %vm2083, %v2810
  %2818 = vst.msk [vmem:[#allocation3 + $0xe8] sm:$0xff] %vm2083, %v2812
  %v2819 = vld [vmem:[#allocation2 + $0xb0] sm:$0xff]
  %v2820 = vld [vmem:[#allocation2 + $0xb8] sm:$0xff]
  %v2821 = vld [vmem:[#allocation2 + $0xc0] sm:$0xff]
  %2825 = vrot.lane.b32.xlu0 %v2819, 96
  %v2826 = vpop.permute.xlu0 %2825
  %2827 = vrot.lane.b32.xlu0 %v2820, 96
  %v2828 = vpop.permute.xlu0 %2827
  %2829 = vrot.lane.b32.xlu0 %v2821, 96
  %v2830 = vpop.permute.xlu0 %2829
  %2834 = vst.msk [vmem:[#allocation3 + $0xf8] sm:$0xff] %vm2083, %v2826
  %2835 = vst.msk [vmem:[#allocation3 + $0x108] sm:$0xff] %vm2083, %v2828
  %2836 = vst.msk [vmem:[#allocation3 + $0x118] sm:$0xff] %vm2083, %v2830
  %v2837 = vld [vmem:[#allocation2 + $0xc8] sm:$0xff]
  %v2838 = vld [vmem:[#allocation2 + $0xd0] sm:$0xff]
  %v2839 = vld [vmem:[#allocation2 + $0xd8] sm:$0xff]
  %2843 = vrot.lane.b32.xlu0 %v2837, 96
  %v2844 = vpop.permute.xlu0 %2843
  %2845 = vrot.lane.b32.xlu0 %v2838, 96
  %v2846 = vpop.permute.xlu0 %2845
  %2847 = vrot.lane.b32.xlu0 %v2839, 96
  %v2848 = vpop.permute.xlu0 %2847
  %2852 = vst.msk [vmem:[#allocation3 + $0x128] sm:$0xff] %vm2083, %v2844
  %2853 = vst.msk [vmem:[#allocation3 + $0x138] sm:$0xff] %vm2083, %v2846
  %2854 = vst.msk [vmem:[#allocation3 + $0x148] sm:$0xff] %vm2083, %v2848
  %v2855 = vld [vmem:[#allocation2 + $0xe0] sm:$0xff]
  %v2856 = vld [vmem:[#allocation2 + $0xe8] sm:$0xff]
  %v2857 = vld [vmem:[#allocation2 + $0xf0] sm:$0xff]
  %2861 = vrot.lane.b32.xlu0 %v2855, 96
  %v2862 = vpop.permute.xlu0 %2861
  %2863 = vrot.lane.b32.xlu0 %v2856, 96
  %v2864 = vpop.permute.xlu0 %2863
  %2865 = vrot.lane.b32.xlu0 %v2857, 96
  %v2866 = vpop.permute.xlu0 %2865
  %2870 = vst.msk [vmem:[#allocation3 + $0x158] sm:$0xff] %vm2083, %v2862
  %2871 = vst.msk [vmem:[#allocation3 + $0x168] sm:$0xff] %vm2083, %v2864
  %2872 = vst.msk [vmem:[#allocation3 + $0x178] sm:$0xff] %vm2083, %v2866
  %v2873 = vld [vmem:[#allocation2 + $0xf8] sm:$0xff]
  %v2874 = vld [vmem:[#allocation2 + $0x100] sm:$0xff]
  %v2875 = vld [vmem:[#allocation2 + $0x108] sm:$0xff]
  %2879 = vrot.lane.b32.xlu0 %v2873, 96
  %v2880 = vpop.permute.xlu0 %2879
  %2881 = vrot.lane.b32.xlu0 %v2874, 96
  %v2882 = vpop.permute.xlu0 %2881
  %2883 = vrot.lane.b32.xlu0 %v2875, 96
  %v2884 = vpop.permute.xlu0 %2883
  %2888 = vst.msk [vmem:[#allocation3 + $0x188] sm:$0xff] %vm2083, %v2880
  %2889 = vst.msk [vmem:[#allocation3 + $0x198] sm:$0xff] %vm2083, %v2882
  %2890 = vst.msk [vmem:[#allocation3 + $0x1a8] sm:$0xff] %vm2083, %v2884
  %v2891 = vld [vmem:[#allocation2 + $0x110] sm:$0xff]
  %v2892 = vld [vmem:[#allocation2 + $0x118] sm:$0xff]
  %v2893 = vld [vmem:[#allocation2 + $0x120] sm:$0xff]
  %2897 = vrot.lane.b32.xlu0 %v2891, 96
  %v2898 = vpop.permute.xlu0 %2897
  %2899 = vrot.lane.b32.xlu0 %v2892, 96
  %v2900 = vpop.permute.xlu0 %2899
  %2901 = vrot.lane.b32.xlu0 %v2893, 96
  %v2902 = vpop.permute.xlu0 %2901
  %2906 = vst.msk [vmem:[#allocation3 + $0x1b8] sm:$0xff] %vm2083, %v2898
  %2907 = vst.msk [vmem:[#allocation3 + $0x1c8] sm:$0xff] %vm2083, %v2900
  %2908 = vst.msk [vmem:[#allocation3 + $0x1d8] sm:$0xff] %vm2083, %v2902
  %v2909 = vld [vmem:[#allocation2 + $0x128] sm:$0xff]
  %v2910 = vld [vmem:[#allocation2 + $0x130] sm:$0xff]
  %v2911 = vld [vmem:[#allocation2 + $0x138] sm:$0xff]
  %2915 = vrot.lane.b32.xlu0 %v2909, 96
  %v2916 = vpop.permute.xlu0 %2915
  %2917 = vrot.lane.b32.xlu0 %v2910, 96
  %v2918 = vpop.permute.xlu0 %2917
  %2919 = vrot.lane.b32.xlu0 %v2911, 96
  %v2920 = vpop.permute.xlu0 %2919
  %2924 = vst.msk [vmem:[#allocation3 + $0x1e8] sm:$0xff] %vm2083, %v2916
  %2925 = vst.msk [vmem:[#allocation3 + $0x1f8] sm:$0xff] %vm2083, %v2918
  %2926 = vst.msk [vmem:[#allocation3 + $0x208] sm:$0xff] %vm2083, %v2920
  %v2927 = vld [vmem:[%s2] sm:$0xf]
  %v2928 = vld [vmem:[%s2 + $0x4] sm:$0xf]
  %v2929 = vld [vmem:[%s2 + $0x8] sm:$0xf]
  %v2930 = vld [vmem:[%s2 + $0xc] sm:$0xf]
  %v2931 = vld [vmem:[%s2 + $0x10] sm:$0xf]
  %v2932 = vld [vmem:[%s2 + $0x14] sm:$0xf]
  %v2933 = vld [vmem:[%s2 + $0x18] sm:$0xf]
  %v2934 = vld [vmem:[%s2 + $0x1c] sm:$0xf]
  %v2935 = vld [vmem:[%s2 + $0x20] sm:$0xf]
  %v2936 = vld [vmem:[%s2 + $0x24] sm:$0xf]
  %v2937 = vld [vmem:[%s2 + $0x28] sm:$0xf]
  %v2938 = vld [vmem:[%s2 + $0x2c] sm:$0xf]
  %v2939 = vld [vmem:[%s2 + $0x30] sm:$0xf]
  %v2940 = vld [vmem:[%s2 + $0x34] sm:$0xf]
  %v2941 = vld [vmem:[%s2 + $0x38] sm:$0xf]
  %v2942 = vld [vmem:[%s2 + $0x3c] sm:$0xf]
  %v2943 = vld [vmem:[%s2 + $0x40] sm:$0xf]
  %v2944 = vld [vmem:[%s2 + $0x44] sm:$0xf]
  %v2945 = vld [vmem:[%s2 + $0x48] sm:$0xf]
  %v2946 = vld [vmem:[%s2 + $0x4c] sm:$0xf]
  %v2947 = vld [vmem:[%s2 + $0x50] sm:$0xf]
  %v2948 = vld [vmem:[%s2 + $0x54] sm:$0xf]
  %v2949 = vld [vmem:[%s2 + $0x58] sm:$0xf]
  %v2950 = vld [vmem:[%s2 + $0x5c] sm:$0xf]
  %v2951 = vld [vmem:[%s2 + $0x60] sm:$0xf]
  %v2952 = vld [vmem:[%s2 + $0x64] sm:$0xf]
  %v2953 = vld [vmem:[%s2 + $0x68] sm:$0xf]
  %v2954 = vld [vmem:[%s2 + $0x6c] sm:$0xf]
  %v2955 = vld [vmem:[%s2 + $0x70] sm:$0xf]
  %v2956 = vld [vmem:[%s2 + $0x74] sm:$0xf]
  %v2957 = vld [vmem:[%s2 + $0x78] sm:$0xf]
  %v2958 = vld [vmem:[%s2 + $0x7c] sm:$0xf]
  %v2959 = vld [vmem:[%s6] sm:$0x1]
  %v2960 = vld [vmem:[#allocation3] sm:$0xff]
  %v2961 = vld [vmem:[#allocation3 + $0x8] sm:$0xff]
  %v2994 = vunpack.c.l.b16 %v2927
  %v2995 = vunpack.c.l.b16 %v2928
  %v2996 = vunpack.c.l.b16 %v2929
  %v2997 = vunpack.c.l.b16 %v2930
  %v2998 = vunpack.c.l.b16 %v2931
  %v2999 = vunpack.c.l.b16 %v2932
  %v3000 = vunpack.c.l.b16 %v2933
  %v3001 = vunpack.c.l.b16 %v2934
  %v3002 = vunpack.c.l.b16 %v2935
  %v3003 = vunpack.c.l.b16 %v2936
  %v3004 = vunpack.c.l.b16 %v2937
  %v3005 = vunpack.c.l.b16 %v2938
  %v3006 = vunpack.c.l.b16 %v2939
  %v3007 = vunpack.c.l.b16 %v2940
  %v3008 = vunpack.c.l.b16 %v2941
  %v3009 = vunpack.c.l.b16 %v2942
  %v3010 = vunpack.c.l.b16 %v2943
  %v3011 = vunpack.c.l.b16 %v2944
  %v3012 = vunpack.c.l.b16 %v2945
  %v3013 = vunpack.c.l.b16 %v2946
  %v3014 = vunpack.c.l.b16 %v2947
  %v3015 = vunpack.c.l.b16 %v2948
  %v3016 = vunpack.c.l.b16 %v2949
  %v3017 = vunpack.c.l.b16 %v2950
  %v3018 = vunpack.c.l.b16 %v2951
  %v3019 = vunpack.c.l.b16 %v2952
  %v3020 = vunpack.c.l.b16 %v2953
  %v3021 = vunpack.c.l.b16 %v2954
  %v3022 = vunpack.c.l.b16 %v2955
  %v3023 = vunpack.c.l.b16 %v2956
  %v3024 = vunpack.c.l.b16 %v2957
  %v3025 = vunpack.c.l.b16 %v2958
  %v3026 = vpack.c.b16 %v2995, %v2994
  %v3027 = vpack.c.b16 %v2997, %v2996
  %v3028 = vpack.c.b16 %v2999, %v2998
  %v3029 = vpack.c.b16 %v3001, %v3000
  %v3030 = vpack.c.b16 %v3003, %v3002
  %v3031 = vpack.c.b16 %v3005, %v3004
  %v3032 = vpack.c.b16 %v3007, %v3006
  %v3033 = vpack.c.b16 %v3009, %v3008
  %v3034 = vpack.c.b16 %v3011, %v3010
  %v3035 = vpack.c.b16 %v3013, %v3012
  %v3036 = vpack.c.b16 %v3015, %v3014
  %v3037 = vpack.c.b16 %v3017, %v3016
  %v3038 = vpack.c.b16 %v3019, %v3018
  %v3039 = vpack.c.b16 %v3021, %v3020
  %v3040 = vpack.c.b16 %v3023, %v3022
  %v3041 = vpack.c.b16 %v3025, %v3024
  %3058 = vmatprep.subr.bf16.mxu0 0
  %3059 = vmatpush1.bf16.msra.mxu0 %v3026
  %3060 = vmatprep.subr.bf16.mxu0 0
  %3061 = vmatpush1.bf16.msra.mxu0 %v3027
  %3062 = vmatprep.subr.bf16.mxu0 0
  %3063 = vmatpush1.bf16.msra.mxu0 %v3028
  %3064 = vmatprep.subr.bf16.mxu0 0
  %3065 = vmatpush1.bf16.msra.mxu0 %v3029
  %3066 = vmatprep.subr.bf16.mxu0 0
  %3067 = vmatpush1.bf16.msra.mxu0 %v3030
  %3068 = vmatprep.subr.bf16.mxu0 0
  %3069 = vmatpush1.bf16.msra.mxu0 %v3031
  %3070 = vmatprep.subr.bf16.mxu0 0
  %3071 = vmatpush1.bf16.msra.mxu0 %v3032
  %3072 = vmatprep.subr.bf16.mxu0 0
  %3073 = vmatpush1.bf16.msra.mxu0 %v3033
  %3074 = vmatprep.subr.bf16.mxu0 0
  %3075 = vmatpush1.bf16.msra.mxu0 %v3034
  %3076 = vmatprep.subr.bf16.mxu0 0
  %3077 = vmatpush1.bf16.msra.mxu0 %v3035
  %3078 = vmatprep.subr.bf16.mxu0 0
  %3079 = vmatpush1.bf16.msra.mxu0 %v3036
  %3080 = vmatprep.subr.bf16.mxu0 0
  %3081 = vmatpush1.bf16.msra.mxu0 %v3037
  %3082 = vmatprep.subr.bf16.mxu0 0
  %3083 = vmatpush1.bf16.msra.mxu0 %v3038
  %3084 = vmatprep.subr.bf16.mxu0 0
  %3085 = vmatpush1.bf16.msra.mxu0 %v3039
  %3086 = vmatprep.subr.bf16.mxu0 0
  %3087 = vmatpush1.bf16.msra.mxu0 %v3040
  %3088 = vmatprep.subr.bf16.mxu0 0
  %3089 = vmatpush1.bf16.msra.mxu0 %v3041
  %3090 = vmatprep.mubr.bf16.mxu0 %v2961
  %3091 = vmatmul.mubr.bf16.gmra.mrb[0].mxu0 %v2960
  %v3092 = vpop.f32.mrb[0].mxu0
  %v3093 = vadd.f32 0.0, %v3092
  %v3094 = vpop.f32.mrb[0].mxu0
  %v3095 = vpop.f32.mrb[0].mxu0
  %v3096 = vadd.f32 0.0, %v3095
  %v3097 = vpop.f32.mrb[0].mxu0
  %3098 = vdwg.mxu0
  %v3099 = vld [vmem:[#allocation3 + $0x10] sm:$0xff]
  %v3100 = vld [vmem:[#allocation3 + $0x18] sm:$0xff]
  %3101 = vmatprep.subr.bf16.mxu0 0
  %3102 = vmatpush1.bf16.msra.mxu0 %v3026
  %3103 = vmatprep.subr.bf16.mxu0 0
  %3104 = vmatpush1.bf16.msra.mxu0 %v3027
  %3105 = vmatprep.subr.bf16.mxu0 0
  %3106 = vmatpush1.bf16.msra.mxu0 %v3028
  %3107 = vmatprep.subr.bf16.mxu0 0
  %3108 = vmatpush1.bf16.msra.mxu0 %v3029
  %3109 = vmatprep.subr.bf16.mxu0 0
  %3110 = vmatpush1.bf16.msra.mxu0 %v3030
  %3111 = vmatprep.subr.bf16.mxu0 0
  %3112 = vmatpush1.bf16.msra.mxu0 %v3031
  %3113 = vmatprep.subr.bf16.mxu0 0
  %3114 = vmatpush1.bf16.msra.mxu0 %v3032
  %3115 = vmatprep.subr.bf16.mxu0 0
  %3116 = vmatpush1.bf16.msra.mxu0 %v3033
  %3117 = vmatprep.subr.bf16.mxu0 0
  %3118 = vmatpush1.bf16.msra.mxu0 %v3034
  %3119 = vmatprep.subr.bf16.mxu0 0
  %3120 = vmatpush1.bf16.msra.mxu0 %v3035
  %3121 = vmatprep.subr.bf16.mxu0 0
  %3122 = vmatpush1.bf16.msra.mxu0 %v3036
  %3123 = vmatprep.subr.bf16.mxu0 0
  %3124 = vmatpush1.bf16.msra.mxu0 %v3037
  %3125 = vmatprep.subr.bf16.mxu0 0
  %3126 = vmatpush1.bf16.msra.mxu0 %v3038
  %3127 = vmatprep.subr.bf16.mxu0 0
  %3128 = vmatpush1.bf16.msra.mxu0 %v3039
  %3129 = vmatprep.subr.bf16.mxu0 0
  %3130 = vmatpush1.bf16.msra.mxu0 %v3040
  %3131 = vmatprep.subr.bf16.mxu0 0
  %3132 = vmatpush1.bf16.msra.mxu0 %v3041
  %3133 = vmatprep.mubr.bf16.mxu0 %v3100
  %3134 = vmatmul.mubr.bf16.gmra.mrb[0].mxu0 %v3099
  %v3135 = vpop.f32.mrb[0].mxu0
  %v3136 = vadd.f32 0.0, %v3135
  %v3137 = vpop.f32.mrb[0].mxu0
  %v3138 = vpop.f32.mrb[0].mxu0
  %v3139 = vadd.f32 0.0, %v3138
  %v3140 = vpop.f32.mrb[0].mxu0
  %3141 = vdwg.mxu0
  %v3142 = vmax.f32 %v3093, %v3136
  %v3143 = vmax.f32 %v3096, %v3139
  %v3144 = vld [vmem:[#allocation3 + $0x20] sm:$0xff]
  %v3145 = vld [vmem:[#allocation3 + $0x28] sm:$0xff]
  %3146 = vmatprep.subr.bf16.mxu0 0
  %3147 = vmatpush1.bf16.msra.mxu0 %v3026
  %3148 = vmatprep.subr.bf16.mxu0 0
  %3149 = vmatpush1.bf16.msra.mxu0 %v3027
  %3150 = vmatprep.subr.bf16.mxu0 0
  %3151 = vmatpush1.bf16.msra.mxu0 %v3028
  %3152 = vmatprep.subr.bf16.mxu0 0
  %3153 = vmatpush1.bf16.msra.mxu0 %v3029
  %3154 = vmatprep.subr.bf16.mxu0 0
  %3155 = vmatpush1.bf16.msra.mxu0 %v3030
  %3156 = vmatprep.subr.bf16.mxu0 0
  %3157 = vmatpush1.bf16.msra.mxu0 %v3031
  %3158 = vmatprep.subr.bf16.mxu0 0
  %3159 = vmatpush1.bf16.msra.mxu0 %v3032
  %3160 = vmatprep.subr.bf16.mxu0 0
  %3161 = vmatpush1.bf16.msra.mxu0 %v3033
  %3162 = vmatprep.subr.bf16.mxu0 0
  %3163 = vmatpush1.bf16.msra.mxu0 %v3034
  %3164 = vmatprep.subr.bf16.mxu0 0
  %3165 = vmatpush1.bf16.msra.mxu0 %v3035
  %3166 = vmatprep.subr.bf16.mxu0 0
  %3167 = vmatpush1.bf16.msra.mxu0 %v3036
  %3168 = vmatprep.subr.bf16.mxu0 0
  %3169 = vmatpush1.bf16.msra.mxu0 %v3037
  %3170 = vmatprep.subr.bf16.mxu0 0
  %3171 = vmatpush1.bf16.msra.mxu0 %v3038
  %3172 = vmatprep.subr.bf16.mxu0 0
  %3173 = vmatpush1.bf16.msra.mxu0 %v3039
  %3174 = vmatprep.subr.bf16.mxu0 0
  %3175 = vmatpush1.bf16.msra.mxu0 %v3040
  %3176 = vmatprep.subr.bf16.mxu0 0
  %3177 = vmatpush1.bf16.msra.mxu0 %v3041
  %3178 = vmatprep.mubr.bf16.mxu0 %v3145
  %3179 = vmatmul.mubr.bf16.gmra.mrb[0].mxu0 %v3144
  %v3180 = vpop.f32.mrb[0].mxu0
  %v3181 = vadd.f32 0.0, %v3180
  %v3182 = vpop.f32.mrb[0].mxu0
  %v3183 = vpop.f32.mrb[0].mxu0
  %v3184 = vadd.f32 0.0, %v3183
  %v3185 = vpop.f32.mrb[0].mxu0
  %3186 = vdwg.mxu0
  %v3187 = vmax.f32 %v3142, %v3181
  %v3188 = vmax.f32 %v3143, %v3184
  %v3190 = vlaneseq
  %v3191 = vshrl.u32 %v3190, 7
  %v3192 = vsub.s32 0, %v3191
  %v3193 = vrot.slane %v2959, %v3192
  %v3195 = vadd.f32 %v3187, %v3193
  %v3196 = vadd.f32 %v3188, %v3193
  %v3197 = vmax.f32 %v3195, 0.0
  %v3198 = vmax.f32 %v3196, 0.0
  %v3199 = vpack.c.bf16 %v3198, %v3197
  %vm3200 = vcmask 523264
  %3201 = vst.msk [vmem:[#allocation4] sm:$0xff] %vm3200, %v3199
  %v3202 = vld [vmem:[#allocation3 + $0x30] sm:$0xff]
  %v3203 = vld [vmem:[#allocation3 + $0x38] sm:$0xff]
  %3204 = vmatprep.subr.bf16.mxu0 0
  %3205 = vmatpush1.bf16.msra.mxu0 %v3026
  %3206 = vmatprep.subr.bf16.mxu0 0
  %3207 = vmatpush1.bf16.msra.mxu0 %v3027
  %3208 = vmatprep.subr.bf16.mxu0 0
  %3209 = vmatpush1.bf16.msra.mxu0 %v3028
  %3210 = vmatprep.subr.bf16.mxu0 0
  %3211 = vmatpush1.bf16.msra.mxu0 %v3029
  %3212 = vmatprep.subr.bf16.mxu0 0
  %3213 = vmatpush1.bf16.msra.mxu0 %v3030
  %3214 = vmatprep.subr.bf16.mxu0 0
  %3215 = vmatpush1.bf16.msra.mxu0 %v3031
  %3216 = vmatprep.subr.bf16.mxu0 0
  %3217 = vmatpush1.bf16.msra.mxu0 %v3032
  %3218 = vmatprep.subr.bf16.mxu0 0
  %3219 = vmatpush1.bf16.msra.mxu0 %v3033
  %3220 = vmatprep.subr.bf16.mxu0 0
  %3221 = vmatpush1.bf16.msra.mxu0 %v3034
  %3222 = vmatprep.subr.bf16.mxu0 0
  %3223 = vmatpush1.bf16.msra.mxu0 %v3035
  %3224 = vmatprep.subr.bf16.mxu0 0
  %3225 = vmatpush1.bf16.msra.mxu0 %v3036
  %3226 = vmatprep.subr.bf16.mxu0 0
  %3227 = vmatpush1.bf16.msra.mxu0 %v3037
  %3228 = vmatprep.subr.bf16.mxu0 0
  %3229 = vmatpush1.bf16.msra.mxu0 %v3038
  %3230 = vmatprep.subr.bf16.mxu0 0
  %3231 = vmatpush1.bf16.msra.mxu0 %v3039
  %3232 = vmatprep.subr.bf16.mxu0 0
  %3233 = vmatpush1.bf16.msra.mxu0 %v3040
  %3234 = vmatprep.subr.bf16.mxu0 0
  %3235 = vmatpush1.bf16.msra.mxu0 %v3041
  %3236 = vmatprep.mubr.bf16.mxu0 %v3203
  %3237 = vmatmul.mubr.bf16.gmra.mrb[0].mxu0 %v3202
  %v3238 = vpop.f32.mrb[0].mxu0
  %v3239 = vadd.f32 0.0, %v3238
  %v3240 = vpop.f32.mrb[0].mxu0
  %v3241 = vpop.f32.mrb[0].mxu0
  %v3242 = vadd.f32 0.0, %v3241
  %v3243 = vpop.f32.mrb[0].mxu0
  %3244 = vdwg.mxu0
  %v3245 = vld [vmem:[#allocation3 + $0x40] sm:$0xff]
  %v3246 = vld [vmem:[#allocation3 + $0x48] sm:$0xff]
  %3247 = vmatprep.subr.bf16.mxu0 0
  %3248 = vmatpush1.bf16.msra.mxu0 %v3026
  %3249 = vmatprep.subr.bf16.mxu0 0
  %3250 = vmatpush1.bf16.msra.mxu0 %v3027
  %3251 = vmatprep.subr.bf16.mxu0 0
  %3252 = vmatpush1.bf16.msra.mxu0 %v3028
  %3253 = vmatprep.subr.bf16.mxu0 0
  %3254 = vmatpush1.bf16.msra.mxu0 %v3029
  %3255 = vmatprep.subr.bf16.mxu0 0
  %3256 = vmatpush1.bf16.msra.mxu0 %v3030
  %3257 = vmatprep.subr.bf16.mxu0 0
  %3258 = vmatpush1.bf16.msra.mxu0 %v3031
  %3259 = vmatprep.subr.bf16.mxu0 0
  %3260 = vmatpush1.bf16.msra.mxu0 %v3032
  %3261 = vmatprep.subr.bf16.mxu0 0
  %3262 = vmatpush1.bf16.msra.mxu0 %v3033
  %3263 = vmatprep.subr.bf16.mxu0 0
  %3264 = vmatpush1.bf16.msra.mxu0 %v3034
  %3265 = vmatprep.subr.bf16.mxu0 0
  %3266 = vmatpush1.bf16.msra.mxu0 %v3035
  %3267 = vmatprep.subr.bf16.mxu0 0
  %3268 = vmatpush1.bf16.msra.mxu0 %v3036
  %3269 = vmatprep.subr.bf16.mxu0 0
  %3270 = vmatpush1.bf16.msra.mxu0 %v3037
  %3271 = vmatprep.subr.bf16.mxu0 0
  %3272 = vmatpush1.bf16.msra.mxu0 %v3038
  %3273 = vmatprep.subr.bf16.mxu0 0
  %3274 = vmatpush1.bf16.msra.mxu0 %v3039
  %3275 = vmatprep.subr.bf16.mxu0 0
  %3276 = vmatpush1.bf16.msra.mxu0 %v3040
  %3277 = vmatprep.subr.bf16.mxu0 0
  %3278 = vmatpush1.bf16.msra.mxu0 %v3041
  %3279 = vmatprep.mubr.bf16.mxu0 %v3246
  %3280 = vmatmul.mubr.bf16.gmra.mrb[0].mxu0 %v3245
  %v3281 = vpop.f32.mrb[0].mxu0
  %v3282 = vadd.f32 0.0, %v3281
  %v3283 = vpop.f32.mrb[0].mxu0
  %v3284 = vpop.f32.mrb[0].mxu0
  %v3285 = vadd.f32 0.0, %v3284
  %v3286 = vpop.f32.mrb[0].mxu0
  %3287 = vdwg.mxu0
  %v3288 = vmax.f32 %v3239, %v3282
  %v3289 = vmax.f32 %v3242, %v3285
  %v3290 = vld [vmem:[#allocation3 + $0x50] sm:$0xff]
  %v3291 = vld [vmem:[#allocation3 + $0x58] sm:$0xff]
  %3292 = vmatprep.subr.bf16.mxu0 0
  %3293 = vmatpush1.bf16.msra.mxu0 %v3026
  %3294 = vmatprep.subr.bf16.mxu0 0
  %3295 = vmatpush1.bf16.msra.mxu0 %v3027
  %3296 = vmatprep.subr.bf16.mxu0 0
  %3297 = vmatpush1.bf16.msra.mxu0 %v3028
  %3298 = vmatprep.subr.bf16.mxu0 0
  %3299 = vmatpush1.bf16.msra.mxu0 %v3029
  %3300 = vmatprep.subr.bf16.mxu0 0
  %3301 = vmatpush1.bf16.msra.mxu0 %v3030
  %3302 = vmatprep.subr.bf16.mxu0 0
  %3303 = vmatpush1.bf16.msra.mxu0 %v3031
  %3304 = vmatprep.subr.bf16.mxu0 0
  %3305 = vmatpush1.bf16.msra.mxu0 %v3032
  %3306 = vmatprep.subr.bf16.mxu0 0
  %3307 = vmatpush1.bf16.msra.mxu0 %v3033
  %3308 = vmatprep.subr.bf16.mxu0 0
  %3309 = vmatpush1.bf16.msra.mxu0 %v3034
  %3310 = vmatprep.subr.bf16.mxu0 0
  %3311 = vmatpush1.bf16.msra.mxu0 %v3035
  %3312 = vmatprep.subr.bf16.mxu0 0
  %3313 = vmatpush1.bf16.msra.mxu0 %v3036
  %3314 = vmatprep.subr.bf16.mxu0 0
  %3315 = vmatpush1.bf16.msra.mxu0 %v3037
  %3316 = vmatprep.subr.bf16.mxu0 0
  %3317 = vmatpush1.bf16.msra.mxu0 %v3038
  %3318 = vmatprep.subr.bf16.mxu0 0
  %3319 = vmatpush1.bf16.msra.mxu0 %v3039
  %3320 = vmatprep.subr.bf16.mxu0 0
  %3321 = vmatpush1.bf16.msra.mxu0 %v3040
  %3322 = vmatprep.subr.bf16.mxu0 0
  %3323 = vmatpush1.bf16.msra.mxu0 %v3041
  %3324 = vmatprep.mubr.bf16.mxu0 %v3291
  %3325 = vmatmul.mubr.bf16.gmra.mrb[0].mxu0 %v3290
  %v3326 = vpop.f32.mrb[0].mxu0
  %v3327 = vadd.f32 0.0, %v3326
  %v3328 = vpop.f32.mrb[0].mxu0
  %v3329 = vpop.f32.mrb[0].mxu0
  %v3330 = vadd.f32 0.0, %v3329
  %v3331 = vpop.f32.mrb[0].mxu0
  %3332 = vdwg.mxu0
  %v3333 = vmax.f32 %v3288, %v3327
  %v3334 = vmax.f32 %v3289, %v3330
  %v3335 = vadd.f32 %v3333, %v3193
  %v3336 = vadd.f32 %v3334, %v3193
  %v3337 = vmax.f32 %v3335, 0.0
  %v3338 = vmax.f32 %v3336, 0.0
  %v3339 = vpack.c.bf16 %v3338, %v3337
  %3340 = vst.msk [vmem:[#allocation4 + $0x8] sm:$0xff] %vm3200, %v3339
  %v3341 = vld [vmem:[#allocation3 + $0x60] sm:$0xff]
  %v3342 = vld [vmem:[#allocation3 + $0x68] sm:$0xff]
  %3343 = vmatprep.subr.bf16.mxu0 0
  %3344 = vmatpush1.bf16.msra.mxu0 %v3026
  %3345 = vmatprep.subr.bf16.mxu0 0
  %3346 = vmatpush1.bf16.msra.mxu0 %v3027
  %3347 = vmatprep.subr.bf16.mxu0 0
  %3348 = vmatpush1.bf16.msra.mxu0 %v3028
  %3349 = vmatprep.subr.bf16.mxu0 0
  %3350 = vmatpush1.bf16.msra.mxu0 %v3029
  %3351 = vmatprep.subr.bf16.mxu0 0
  %3352 = vmatpush1.bf16.msra.mxu0 %v3030
  %3353 = vmatprep.subr.bf16.mxu0 0
  %3354 = vmatpush1.bf16.msra.mxu0 %v3031
  %3355 = vmatprep.subr.bf16.mxu0 0
  %3356 = vmatpush1.bf16.msra.mxu0 %v3032
  %3357 = vmatprep.subr.bf16.mxu0 0
  %3358 = vmatpush1.bf16.msra.mxu0 %v3033
  %3359 = vmatprep.subr.bf16.mxu0 0
  %3360 = vmatpush1.bf16.msra.mxu0 %v3034
  %3361 = vmatprep.subr.bf16.mxu0 0
  %3362 = vmatpush1.bf16.msra.mxu0 %v3035
  %3363 = vmatprep.subr.bf16.mxu0 0
  %3364 = vmatpush1.bf16.msra.mxu0 %v3036
  %3365 = vmatprep.subr.bf16.mxu0 0
  %3366 = vmatpush1.bf16.msra.mxu0 %v3037
  %3367 = vmatprep.subr.bf16.mxu0 0
  %3368 = vmatpush1.bf16.msra.mxu0 %v3038
  %3369 = vmatprep.subr.bf16.mxu0 0
  %3370 = vmatpush1.bf16.msra.mxu0 %v3039
  %3371 = vmatprep.subr.bf16.mxu0 0
  %3372 = vmatpush1.bf16.msra.mxu0 %v3040
  %3373 = vmatprep.subr.bf16.mxu0 0
  %3374 = vmatpush1.bf16.msra.mxu0 %v3041
  %3375 = vmatprep.mubr.bf16.mxu0 %v3342
  %3376 = vmatmul.mubr.bf16.gmra.mrb[0].mxu0 %v3341
  %v3377 = vpop.f32.mrb[0].mxu0
  %v3378 = vadd.f32 0.0, %v3377
  %v3379 = vpop.f32.mrb[0].mxu0
  %v3380 = vpop.f32.mrb[0].mxu0
  %v3381 = vadd.f32 0.0, %v3380
  %v3382 = vpop.f32.mrb[0].mxu0
  %3383 = vdwg.mxu0
  %v3384 = vld [vmem:[#allocation3 + $0x70] sm:$0xff]
  %v3385 = vld [vmem:[#allocation3 + $0x78] sm:$0xff]
  %3386 = vmatprep.subr.bf16.mxu0 0
  %3387 = vmatpush1.bf16.msra.mxu0 %v3026
  %3388 = vmatprep.subr.bf16.mxu0 0
  %3389 = vmatpush1.bf16.msra.mxu0 %v3027
  %3390 = vmatprep.subr.bf16.mxu0 0
  %3391 = vmatpush1.bf16.msra.mxu0 %v3028
  %3392 = vmatprep.subr.bf16.mxu0 0
  %3393 = vmatpush1.bf16.msra.mxu0 %v3029
  %3394 = vmatprep.subr.bf16.mxu0 0
  %3395 = vmatpush1.bf16.msra.mxu0 %v3030
  %3396 = vmatprep.subr.bf16.mxu0 0
  %3397 = vmatpush1.bf16.msra.mxu0 %v3031
  %3398 = vmatprep.subr.bf16.mxu0 0
  %3399 = vmatpush1.bf16.msra.mxu0 %v3032
  %3400 = vmatprep.subr.bf16.mxu0 0
  %3401 = vmatpush1.bf16.msra.mxu0 %v3033
  %3402 = vmatprep.subr.bf16.mxu0 0
  %3403 = vmatpush1.bf16.msra.mxu0 %v3034
  %3404 = vmatprep.subr.bf16.mxu0 0
  %3405 = vmatpush1.bf16.msra.mxu0 %v3035
  %3406 = vmatprep.subr.bf16.mxu0 0
  %3407 = vmatpush1.bf16.msra.mxu0 %v3036
  %3408 = vmatprep.subr.bf16.mxu0 0
  %3409 = vmatpush1.bf16.msra.mxu0 %v3037
  %3410 = vmatprep.subr.bf16.mxu0 0
  %3411 = vmatpush1.bf16.msra.mxu0 %v3038
  %3412 = vmatprep.subr.bf16.mxu0 0
  %3413 = vmatpush1.bf16.msra.mxu0 %v3039
  %3414 = vmatprep.subr.bf16.mxu0 0
  %3415 = vmatpush1.bf16.msra.mxu0 %v3040
  %3416 = vmatprep.subr.bf16.mxu0 0
  %3417 = vmatpush1.bf16.msra.mxu0 %v3041
  %3418 = vmatprep.mubr.bf16.mxu0 %v3385
  %3419 = vmatmul.mubr.bf16.gmra.mrb[0].mxu0 %v3384
  %v3420 = vpop.f32.mrb[0].mxu0
  %v3421 = vadd.f32 0.0, %v3420
  %v3422 = vpop.f32.mrb[0].mxu0
  %v3423 = vpop.f32.mrb[0].mxu0
  %v3424 = vadd.f32 0.0, %v3423
  %v3425 = vpop.f32.mrb[0].mxu0
  %3426 = vdwg.mxu0
  %v3427 = vmax.f32 %v3378, %v3421
  %v3428 = vmax.f32 %v3381, %v3424
  %v3429 = vld [vmem:[#allocation3 + $0x80] sm:$0xff]
  %v3430 = vld [vmem:[#allocation3 + $0x88] sm:$0xff]
  %3431 = vmatprep.subr.bf16.mxu0 0
  %3432 = vmatpush1.bf16.msra.mxu0 %v3026
  %3433 = vmatprep.subr.bf16.mxu0 0
  %3434 = vmatpush1.bf16.msra.mxu0 %v3027
  %3435 = vmatprep.subr.bf16.mxu0 0
  %3436 = vmatpush1.bf16.msra.mxu0 %v3028
  %3437 = vmatprep.subr.bf16.mxu0 0
  %3438 = vmatpush1.bf16.msra.mxu0 %v3029
  %3439 = vmatprep.subr.bf16.mxu0 0
  %3440 = vmatpush1.bf16.msra.mxu0 %v3030
  %3441 = vmatprep.subr.bf16.mxu0 0
  %3442 = vmatpush1.bf16.msra.mxu0 %v3031
  %3443 = vmatprep.subr.bf16.mxu0 0
  %3444 = vmatpush1.bf16.msra.mxu0 %v3032
  %3445 = vmatprep.subr.bf16.mxu0 0
  %3446 = vmatpush1.bf16.msra.mxu0 %v3033
  %3447 = vmatprep.subr.bf16.mxu0 0
  %3448 = vmatpush1.bf16.msra.mxu0 %v3034
  %3449 = vmatprep.subr.bf16.mxu0 0
  %3450 = vmatpush1.bf16.msra.mxu0 %v3035
  %3451 = vmatprep.subr.bf16.mxu0 0
  %3452 = vmatpush1.bf16.msra.mxu0 %v3036
  %3453 = vmatprep.subr.bf16.mxu0 0
  %3454 = vmatpush1.bf16.msra.mxu0 %v3037
  %3455 = vmatprep.subr.bf16.mxu0 0
  %3456 = vmatpush1.bf16.msra.mxu0 %v3038
  %3457 = vmatprep.subr.bf16.mxu0 0
  %3458 = vmatpush1.bf16.msra.mxu0 %v3039
  %3459 = vmatprep.subr.bf16.mxu0 0
  %3460 = vmatpush1.bf16.msra.mxu0 %v3040
  %3461 = vmatprep.subr.bf16.mxu0 0
  %3462 = vmatpush1.bf16.msra.mxu0 %v3041
  %3463 = vmatprep.mubr.bf16.mxu0 %v3430
  %3464 = vmatmul.mubr.bf16.gmra.mrb[0].mxu0 %v3429
  %v3465 = vpop.f32.mrb[0].mxu0
  %v3466 = vadd.f32 0.0, %v3465
  %v3467 = vpop.f32.mrb[0].mxu0
  %v3468 = vpop.f32.mrb[0].mxu0
  %v3469 = vadd.f32 0.0, %v3468
  %v3470 = vpop.f32.mrb[0].mxu0
  %3471 = vdwg.mxu0
  %v3472 = vmax.f32 %v3427, %v3466
  %v3473 = vmax.f32 %v3428, %v3469
  %v3474 = vadd.f32 %v3472, %v3193
  %v3475 = vadd.f32 %v3473, %v3193
  %v3476 = vmax.f32 %v3474, 0.0
  %v3477 = vmax.f32 %v3475, 0.0
  %v3478 = vpack.c.bf16 %v3477, %v3476
  %3479 = vst.msk [vmem:[#allocation4 + $0x10] sm:$0xff] %vm3200, %v3478
  %v3480 = vld [vmem:[#allocation3 + $0x90] sm:$0xff]
  %v3481 = vld [vmem:[#allocation3 + $0x98] sm:$0xff]
  %3482 = vmatprep.subr.bf16.mxu0 0
  %3483 = vmatpush1.bf16.msra.mxu0 %v3026
  %3484 = vmatprep.subr.bf16.mxu0 0
  %3485 = vmatpush1.bf16.msra.mxu0 %v3027
  %3486 = vmatprep.subr.bf16.mxu0 0
  %3487 = vmatpush1.bf16.msra.mxu0 %v3028
  %3488 = vmatprep.subr.bf16.mxu0 0
  %3489 = vmatpush1.bf16.msra.mxu0 %v3029
  %3490 = vmatprep.subr.bf16.mxu0 0
  %3491 = vmatpush1.bf16.msra.mxu0 %v3030
  %3492 = vmatprep.subr.bf16.mxu0 0
  %3493 = vmatpush1.bf16.msra.mxu0 %v3031
  %3494 = vmatprep.subr.bf16.mxu0 0
  %3495 = vmatpush1.bf16.msra.mxu0 %v3032
  %3496 = vmatprep.subr.bf16.mxu0 0
  %3497 = vmatpush1.bf16.msra.mxu0 %v3033
  %3498 = vmatprep.subr.bf16.mxu0 0
  %3499 = vmatpush1.bf16.msra.mxu0 %v3034
  %3500 = vmatprep.subr.bf16.mxu0 0
  %3501 = vmatpush1.bf16.msra.mxu0 %v3035
  %3502 = vmatprep.subr.bf16.mxu0 0
  %3503 = vmatpush1.bf16.msra.mxu0 %v3036
  %3504 = vmatprep.subr.bf16.mxu0 0
  %3505 = vmatpush1.bf16.msra.mxu0 %v3037
  %3506 = vmatprep.subr.bf16.mxu0 0
  %3507 = vmatpush1.bf16.msra.mxu0 %v3038
  %3508 = vmatprep.subr.bf16.mxu0 0
  %3509 = vmatpush1.bf16.msra.mxu0 %v3039
  %3510 = vmatprep.subr.bf16.mxu0 0
  %3511 = vmatpush1.bf16.msra.mxu0 %v3040
  %3512 = vmatprep.subr.bf16.mxu0 0
  %3513 = vmatpush1.bf16.msra.mxu0 %v3041
  %3514 = vmatprep.mubr.bf16.mxu0 %v3481
  %3515 = vmatmul.mubr.bf16.gmra.mrb[0].mxu0 %v3480
  %v3516 = vpop.f32.mrb[0].mxu0
  %v3517 = vadd.f32 0.0, %v3516
  %v3518 = vpop.f32.mrb[0].mxu0
  %v3519 = vpop.f32.mrb[0].mxu0
  %v3520 = vadd.f32 0.0, %v3519
  %v3521 = vpop.f32.mrb[0].mxu0
  %3522 = vdwg.mxu0
  %v3523 = vld [vmem:[#allocation3 + $0xa0] sm:$0xff]
  %v3524 = vld [vmem:[#allocation3 + $0xa8] sm:$0xff]
  %3525 = vmatprep.subr.bf16.mxu0 0
  %3526 = vmatpush1.bf16.msra.mxu0 %v3026
  %3527 = vmatprep.subr.bf16.mxu0 0
  %3528 = vmatpush1.bf16.msra.mxu0 %v3027
  %3529 = vmatprep.subr.bf16.mxu0 0
  %3530 = vmatpush1.bf16.msra.mxu0 %v3028
  %3531 = vmatprep.subr.bf16.mxu0 0
  %3532 = vmatpush1.bf16.msra.mxu0 %v3029
  %3533 = vmatprep.subr.bf16.mxu0 0
  %3534 = vmatpush1.bf16.msra.mxu0 %v3030
  %3535 = vmatprep.subr.bf16.mxu0 0
  %3536 = vmatpush1.bf16.msra.mxu0 %v3031
  %3537 = vmatprep.subr.bf16.mxu0 0
  %3538 = vmatpush1.bf16.msra.mxu0 %v3032
  %3539 = vmatprep.subr.bf16.mxu0 0
  %3540 = vmatpush1.bf16.msra.mxu0 %v3033
  %3541 = vmatprep.subr.bf16.mxu0 0
  %3542 = vmatpush1.bf16.msra.mxu0 %v3034
  %3543 = vmatprep.subr.bf16.mxu0 0
  %3544 = vmatpush1.bf16.msra.mxu0 %v3035
  %3545 = vmatprep.subr.bf16.mxu0 0
  %3546 = vmatpush1.bf16.msra.mxu0 %v3036
  %3547 = vmatprep.subr.bf16.mxu0 0
  %3548 = vmatpush1.bf16.msra.mxu0 %v3037
  %3549 = vmatprep.subr.bf16.mxu0 0
  %3550 = vmatpush1.bf16.msra.mxu0 %v3038
  %3551 = vmatprep.subr.bf16.mxu0 0
  %3552 = vmatpush1.bf16.msra.mxu0 %v3039
  %3553 = vmatprep.subr.bf16.mxu0 0
  %3554 = vmatpush1.bf16.msra.mxu0 %v3040
  %3555 = vmatprep.subr.bf16.mxu0 0
  %3556 = vmatpush1.bf16.msra.mxu0 %v3041
  %3557 = vmatprep.mubr.bf16.mxu0 %v3524
  %3558 = vmatmul.mubr.bf16.gmra.mrb[0].mxu0 %v3523
  %v3559 = vpop.f32.mrb[0].mxu0
  %v3560 = vadd.f32 0.0, %v3559
  %v3561 = vpop.f32.mrb[0].mxu0
  %v3562 = vpop.f32.mrb[0].mxu0
  %v3563 = vadd.f32 0.0, %v3562
  %v3564 = vpop.f32.mrb[0].mxu0
  %3565 = vdwg.mxu0
  %v3566 = vmax.f32 %v3517, %v3560
  %v3567 = vmax.f32 %v3520, %v3563
  %v3568 = vld [vmem:[#allocation3 + $0xb0] sm:$0xff]
  %v3569 = vld [vmem:[#allocation3 + $0xb8] sm:$0xff]
  %3570 = vmatprep.subr.bf16.mxu0 0
  %3571 = vmatpush1.bf16.msra.mxu0 %v3026
  %3572 = vmatprep.subr.bf16.mxu0 0
  %3573 = vmatpush1.bf16.msra.mxu0 %v3027
  %3574 = vmatprep.subr.bf16.mxu0 0
  %3575 = vmatpush1.bf16.msra.mxu0 %v3028
  %3576 = vmatprep.subr.bf16.mxu0 0
  %3577 = vmatpush1.bf16.msra.mxu0 %v3029
  %3578 = vmatprep.subr.bf16.mxu0 0
  %3579 = vmatpush1.bf16.msra.mxu0 %v3030
  %3580 = vmatprep.subr.bf16.mxu0 0
  %3581 = vmatpush1.bf16.msra.mxu0 %v3031
  %3582 = vmatprep.subr.bf16.mxu0 0
  %3583 = vmatpush1.bf16.msra.mxu0 %v3032
  %3584 = vmatprep.subr.bf16.mxu0 0
  %3585 = vmatpush1.bf16.msra.mxu0 %v3033
  %3586 = vmatprep.subr.bf16.mxu0 0
  %3587 = vmatpush1.bf16.msra.mxu0 %v3034
  %3588 = vmatprep.subr.bf16.mxu0 0
  %3589 = vmatpush1.bf16.msra.mxu0 %v3035
  %3590 = vmatprep.subr.bf16.mxu0 0
  %3591 = vmatpush1.bf16.msra.mxu0 %v3036
  %3592 = vmatprep.subr.bf16.mxu0 0
  %3593 = vmatpush1.bf16.msra.mxu0 %v3037
  %3594 = vmatprep.subr.bf16.mxu0 0
  %3595 = vmatpush1.bf16.msra.mxu0 %v3038
  %3596 = vmatprep.subr.bf16.mxu0 0
  %3597 = vmatpush1.bf16.msra.mxu0 %v3039
  %3598 = vmatprep.subr.bf16.mxu0 0
  %3599 = vmatpush1.bf16.msra.mxu0 %v3040
  %3600 = vmatprep.subr.bf16.mxu0 0
  %3601 = vmatpush1.bf16.msra.mxu0 %v3041
  %3602 = vmatprep.mubr.bf16.mxu0 %v3569
  %3603 = vmatmul.mubr.bf16.gmra.mrb[0].mxu0 %v3568
  %v3604 = vpop.f32.mrb[0].mxu0
  %v3605 = vadd.f32 0.0, %v3604
  %v3606 = vpop.f32.mrb[0].mxu0
  %v3607 = vpop.f32.mrb[0].mxu0
  %v3608 = vadd.f32 0.0, %v3607
  %v3609 = vpop.f32.mrb[0].mxu0
  %3610 = vdwg.mxu0
  %v3611 = vmax.f32 %v3566, %v3605
  %v3612 = vmax.f32 %v3567, %v3608
  %v3613 = vadd.f32 %v3611, %v3193
  %v3614 = vadd.f32 %v3612, %v3193
  %v3615 = vmax.f32 %v3613, 0.0
  %v3616 = vmax.f32 %v3614, 0.0
  %v3617 = vpack.c.bf16 %v3616, %v3615
  %3618 = vst.msk [vmem:[#allocation4 + $0x18] sm:$0xff] %vm3200, %v3617
  %v3619 = vld [vmem:[#allocation3 + $0xc0] sm:$0xff]
  %v3620 = vld [vmem:[#allocation3 + $0xc8] sm:$0xff]
  %3621 = vmatprep.subr.bf16.mxu0 0
  %3622 = vmatpush1.bf16.msra.mxu0 %v3026
  %3623 = vmatprep.subr.bf16.mxu0 0
  %3624 = vmatpush1.bf16.msra.mxu0 %v3027
  %3625 = vmatprep.subr.bf16.mxu0 0
  %3626 = vmatpush1.bf16.msra.mxu0 %v3028
  %3627 = vmatprep.subr.bf16.mxu0 0
  %3628 = vmatpush1.bf16.msra.mxu0 %v3029
  %3629 = vmatprep.subr.bf16.mxu0 0
  %3630 = vmatpush1.bf16.msra.mxu0 %v3030
  %3631 = vmatprep.subr.bf16.mxu0 0
  %3632 = vmatpush1.bf16.msra.mxu0 %v3031
  %3633 = vmatprep.subr.bf16.mxu0 0
  %3634 = vmatpush1.bf16.msra.mxu0 %v3032
  %3635 = vmatprep.subr.bf16.mxu0 0
  %3636 = vmatpush1.bf16.msra.mxu0 %v3033
  %3637 = vmatprep.subr.bf16.mxu0 0
  %3638 = vmatpush1.bf16.msra.mxu0 %v3034
  %3639 = vmatprep.subr.bf16.mxu0 0
  %3640 = vmatpush1.bf16.msra.mxu0 %v3035
  %3641 = vmatprep.subr.bf16.mxu0 0
  %3642 = vmatpush1.bf16.msra.mxu0 %v3036
  %3643 = vmatprep.subr.bf16.mxu0 0
  %3644 = vmatpush1.bf16.msra.mxu0 %v3037
  %3645 = vmatprep.subr.bf16.mxu0 0
  %3646 = vmatpush1.bf16.msra.mxu0 %v3038
  %3647 = vmatprep.subr.bf16.mxu0 0
  %3648 = vmatpush1.bf16.msra.mxu0 %v3039
  %3649 = vmatprep.subr.bf16.mxu0 0
  %3650 = vmatpush1.bf16.msra.mxu0 %v3040
  %3651 = vmatprep.subr.bf16.mxu0 0
  %3652 = vmatpush1.bf16.msra.mxu0 %v3041
  %3653 = vmatprep.mubr.bf16.mxu0 %v3620
  %3654 = vmatmul.mubr.bf16.gmra.mrb[0].mxu0 %v3619
  %v3655 = vpop.f32.mrb[0].mxu0
  %v3656 = vadd.f32 0.0, %v3655
  %v3657 = vpop.f32.mrb[0].mxu0
  %v3658 = vpop.f32.mrb[0].mxu0
  %v3659 = vadd.f32 0.0, %v3658
  %v3660 = vpop.f32.mrb[0].mxu0
  %3661 = vdwg.mxu0
  %v3662 = vld [vmem:[#allocation3 + $0xd0] sm:$0xff]
  %v3663 = vld [vmem:[#allocation3 + $0xd8] sm:$0xff]
  %3664 = vmatprep.subr.bf16.mxu0 0
  %3665 = vmatpush1.bf16.msra.mxu0 %v3026
  %3666 = vmatprep.subr.bf16.mxu0 0
  %3667 = vmatpush1.bf16.msra.mxu0 %v3027
  %3668 = vmatprep.subr.bf16.mxu0 0
  %3669 = vmatpush1.bf16.msra.mxu0 %v3028
  %3670 = vmatprep.subr.bf16.mxu0 0
  %3671 = vmatpush1.bf16.msra.mxu0 %v3029
  %3672 = vmatprep.subr.bf16.mxu0 0
  %3673 = vmatpush1.bf16.msra.mxu0 %v3030
  %3674 = vmatprep.subr.bf16.mxu0 0
  %3675 = vmatpush1.bf16.msra.mxu0 %v3031
  %3676 = vmatprep.subr.bf16.mxu0 0
  %3677 = vmatpush1.bf16.msra.mxu0 %v3032
  %3678 = vmatprep.subr.bf16.mxu0 0
  %3679 = vmatpush1.bf16.msra.mxu0 %v3033
  %3680 = vmatprep.subr.bf16.mxu0 0
  %3681 = vmatpush1.bf16.msra.mxu0 %v3034
  %3682 = vmatprep.subr.bf16.mxu0 0
  %3683 = vmatpush1.bf16.msra.mxu0 %v3035
  %3684 = vmatprep.subr.bf16.mxu0 0
  %3685 = vmatpush1.bf16.msra.mxu0 %v3036
  %3686 = vmatprep.subr.bf16.mxu0 0
  %3687 = vmatpush1.bf16.msra.mxu0 %v3037
  %3688 = vmatprep.subr.bf16.mxu0 0
  %3689 = vmatpush1.bf16.msra.mxu0 %v3038
  %3690 = vmatprep.subr.bf16.mxu0 0
  %3691 = vmatpush1.bf16.msra.mxu0 %v3039
  %3692 = vmatprep.subr.bf16.mxu0 0
  %3693 = vmatpush1.bf16.msra.mxu0 %v3040
  %3694 = vmatprep.subr.bf16.mxu0 0
  %3695 = vmatpush1.bf16.msra.mxu0 %v3041
  %3696 = vmatprep.mubr.bf16.mxu0 %v3663
  %3697 = vmatmul.mubr.bf16.gmra.mrb[0].mxu0 %v3662
  %v3698 = vpop.f32.mrb[0].mxu0
  %v3699 = vadd.f32 0.0, %v3698
  %v3700 = vpop.f32.mrb[0].mxu0
  %v3701 = vpop.f32.mrb[0].mxu0
  %v3702 = vadd.f32 0.0, %v3701
  %v3703 = vpop.f32.mrb[0].mxu0
  %3704 = vdwg.mxu0
  %v3705 = vmax.f32 %v3656, %v3699
  %v3706 = vmax.f32 %v3659, %v3702
  %v3707 = vld [vmem:[#allocation3 + $0xe0] sm:$0xff]
  %v3708 = vld [vmem:[#allocation3 + $0xe8] sm:$0xff]
  %3709 = vmatprep.subr.bf16.mxu0 0
  %3710 = vmatpush1.bf16.msra.mxu0 %v3026
  %3711 = vmatprep.subr.bf16.mxu0 0
  %3712 = vmatpush1.bf16.msra.mxu0 %v3027
  %3713 = vmatprep.subr.bf16.mxu0 0
  %3714 = vmatpush1.bf16.msra.mxu0 %v3028
  %3715 = vmatprep.subr.bf16.mxu0 0
  %3716 = vmatpush1.bf16.msra.mxu0 %v3029
  %3717 = vmatprep.subr.bf16.mxu0 0
  %3718 = vmatpush1.bf16.msra.mxu0 %v3030
  %3719 = vmatprep.subr.bf16.mxu0 0
  %3720 = vmatpush1.bf16.msra.mxu0 %v3031
  %3721 = vmatprep.subr.bf16.mxu0 0
  %3722 = vmatpush1.bf16.msra.mxu0 %v3032
  %3723 = vmatprep.subr.bf16.mxu0 0
  %3724 = vmatpush1.bf16.msra.mxu0 %v3033
  %3725 = vmatprep.subr.bf16.mxu0 0
  %3726 = vmatpush1.bf16.msra.mxu0 %v3034
  %3727 = vmatprep.subr.bf16.mxu0 0
  %3728 = vmatpush1.bf16.msra.mxu0 %v3035
  %3729 = vmatprep.subr.bf16.mxu0 0
  %3730 = vmatpush1.bf16.msra.mxu0 %v3036
  %3731 = vmatprep.subr.bf16.mxu0 0
  %3732 = vmatpush1.bf16.msra.mxu0 %v3037
  %3733 = vmatprep.subr.bf16.mxu0 0
  %3734 = vmatpush1.bf16.msra.mxu0 %v3038
  %3735 = vmatprep.subr.bf16.mxu0 0
  %3736 = vmatpush1.bf16.msra.mxu0 %v3039
  %3737 = vmatprep.subr.bf16.mxu0 0
  %3738 = vmatpush1.bf16.msra.mxu0 %v3040
  %3739 = vmatprep.subr.bf16.mxu0 0
  %3740 = vmatpush1.bf16.msra.mxu0 %v3041
  %3741 = vmatprep.mubr.bf16.mxu0 %v3708
  %3742 = vmatmul.mubr.bf16.gmra.mrb[0].mxu0 %v3707
  %v3743 = vpop.f32.mrb[0].mxu0
  %v3744 = vadd.f32 0.0, %v3743
  %v3745 = vpop.f32.mrb[0].mxu0
  %v3746 = vpop.f32.mrb[0].mxu0
  %v3747 = vadd.f32 0.0, %v3746
  %v3748 = vpop.f32.mrb[0].mxu0
  %3749 = vdwg.mxu0
  %v3750 = vmax.f32 %v3705, %v3744
  %v3751 = vmax.f32 %v3706, %v3747
  %v3752 = vadd.f32 %v3750, %v3193
  %v3753 = vadd.f32 %v3751, %v3193
  %v3754 = vmax.f32 %v3752, 0.0
  %v3755 = vmax.f32 %v3753, 0.0
  %v3756 = vpack.c.bf16 %v3755, %v3754
  %3757 = vst.msk [vmem:[#allocation4 + $0x20] sm:$0xff] %vm3200, %v3756
  %v3758 = vld [vmem:[#allocation3 + $0xf0] sm:$0xff]
  %v3759 = vld [vmem:[#allocation3 + $0xf8] sm:$0xff]
  %3760 = vmatprep.subr.bf16.mxu0 0
  %3761 = vmatpush1.bf16.msra.mxu0 %v3026
  %3762 = vmatprep.subr.bf16.mxu0 0
  %3763 = vmatpush1.bf16.msra.mxu0 %v3027
  %3764 = vmatprep.subr.bf16.mxu0 0
  %3765 = vmatpush1.bf16.msra.mxu0 %v3028
  %3766 = vmatprep.subr.bf16.mxu0 0
  %3767 = vmatpush1.bf16.msra.mxu0 %v3029
  %3768 = vmatprep.subr.bf16.mxu0 0
  %3769 = vmatpush1.bf16.msra.mxu0 %v3030
  %3770 = vmatprep.subr.bf16.mxu0 0
  %3771 = vmatpush1.bf16.msra.mxu0 %v3031
  %3772 = vmatprep.subr.bf16.mxu0 0
  %3773 = vmatpush1.bf16.msra.mxu0 %v3032
  %3774 = vmatprep.subr.bf16.mxu0 0
  %3775 = vmatpush1.bf16.msra.mxu0 %v3033
  %3776 = vmatprep.subr.bf16.mxu0 0
  %3777 = vmatpush1.bf16.msra.mxu0 %v3034
  %3778 = vmatprep.subr.bf16.mxu0 0
  %3779 = vmatpush1.bf16.msra.mxu0 %v3035
  %3780 = vmatprep.subr.bf16.mxu0 0
  %3781 = vmatpush1.bf16.msra.mxu0 %v3036
  %3782 = vmatprep.subr.bf16.mxu0 0
  %3783 = vmatpush1.bf16.msra.mxu0 %v3037
  %3784 = vmatprep.subr.bf16.mxu0 0
  %3785 = vmatpush1.bf16.msra.mxu0 %v3038
  %3786 = vmatprep.subr.bf16.mxu0 0
  %3787 = vmatpush1.bf16.msra.mxu0 %v3039
  %3788 = vmatprep.subr.bf16.mxu0 0
  %3789 = vmatpush1.bf16.msra.mxu0 %v3040
  %3790 = vmatprep.subr.bf16.mxu0 0
  %3791 = vmatpush1.bf16.msra.mxu0 %v3041
  %3792 = vmatprep.mubr.bf16.mxu0 %v3759
  %3793 = vmatmul.mubr.bf16.gmra.mrb[0].mxu0 %v3758
  %v3794 = vpop.f32.mrb[0].mxu0
  %v3795 = vadd.f32 0.0, %v3794
  %v3796 = vpop.f32.mrb[0].mxu0
  %v3797 = vpop.f32.mrb[0].mxu0
  %v3798 = vadd.f32 0.0, %v3797
  %v3799 = vpop.f32.mrb[0].mxu0
  %3800 = vdwg.mxu0
  %v3801 = vld [vmem:[#allocation3 + $0x100] sm:$0xff]
  %v3802 = vld [vmem:[#allocation3 + $0x108] sm:$0xff]
  %3803 = vmatprep.subr.bf16.mxu0 0
  %3804 = vmatpush1.bf16.msra.mxu0 %v3026
  %3805 = vmatprep.subr.bf16.mxu0 0
  %3806 = vmatpush1.bf16.msra.mxu0 %v3027
  %3807 = vmatprep.subr.bf16.mxu0 0
  %3808 = vmatpush1.bf16.msra.mxu0 %v3028
  %3809 = vmatprep.subr.bf16.mxu0 0
  %3810 = vmatpush1.bf16.msra.mxu0 %v3029
  %3811 = vmatprep.subr.bf16.mxu0 0
  %3812 = vmatpush1.bf16.msra.mxu0 %v3030
  %3813 = vmatprep.subr.bf16.mxu0 0
  %3814 = vmatpush1.bf16.msra.mxu0 %v3031
  %3815 = vmatprep.subr.bf16.mxu0 0
  %3816 = vmatpush1.bf16.msra.mxu0 %v3032
  %3817 = vmatprep.subr.bf16.mxu0 0
  %3818 = vmatpush1.bf16.msra.mxu0 %v3033
  %3819 = vmatprep.subr.bf16.mxu0 0
  %3820 = vmatpush1.bf16.msra.mxu0 %v3034
  %3821 = vmatprep.subr.bf16.mxu0 0
  %3822 = vmatpush1.bf16.msra.mxu0 %v3035
  %3823 = vmatprep.subr.bf16.mxu0 0
  %3824 = vmatpush1.bf16.msra.mxu0 %v3036
  %3825 = vmatprep.subr.bf16.mxu0 0
  %3826 = vmatpush1.bf16.msra.mxu0 %v3037
  %3827 = vmatprep.subr.bf16.mxu0 0
  %3828 = vmatpush1.bf16.msra.mxu0 %v3038
  %3829 = vmatprep.subr.bf16.mxu0 0
  %3830 = vmatpush1.bf16.msra.mxu0 %v3039
  %3831 = vmatprep.subr.bf16.mxu0 0
  %3832 = vmatpush1.bf16.msra.mxu0 %v3040
  %3833 = vmatprep.subr.bf16.mxu0 0
  %3834 = vmatpush1.bf16.msra.mxu0 %v3041
  %3835 = vmatprep.mubr.bf16.mxu0 %v3802
  %3836 = vmatmul.mubr.bf16.gmra.mrb[0].mxu0 %v3801
  %v3837 = vpop.f32.mrb[0].mxu0
  %v3838 = vadd.f32 0.0, %v3837
  %v3839 = vpop.f32.mrb[0].mxu0
  %v3840 = vpop.f32.mrb[0].mxu0
  %v3841 = vadd.f32 0.0, %v3840
  %v3842 = vpop.f32.mrb[0].mxu0
  %3843 = vdwg.mxu0
  %v3844 = vmax.f32 %v3795, %v3838
  %v3845 = vmax.f32 %v3798, %v3841
  %v3846 = vld [vmem:[#allocation3 + $0x110] sm:$0xff]
  %v3847 = vld [vmem:[#allocation3 + $0x118] sm:$0xff]
  %3848 = vmatprep.subr.bf16.mxu0 0
  %3849 = vmatpush1.bf16.msra.mxu0 %v3026
  %3850 = vmatprep.subr.bf16.mxu0 0
  %3851 = vmatpush1.bf16.msra.mxu0 %v3027
  %3852 = vmatprep.subr.bf16.mxu0 0
  %3853 = vmatpush1.bf16.msra.mxu0 %v3028
  %3854 = vmatprep.subr.bf16.mxu0 0
  %3855 = vmatpush1.bf16.msra.mxu0 %v3029
  %3856 = vmatprep.subr.bf16.mxu0 0
  %3857 = vmatpush1.bf16.msra.mxu0 %v3030
  %3858 = vmatprep.subr.bf16.mxu0 0
  %3859 = vmatpush1.bf16.msra.mxu0 %v3031
  %3860 = vmatprep.subr.bf16.mxu0 0
  %3861 = vmatpush1.bf16.msra.mxu0 %v3032
  %3862 = vmatprep.subr.bf16.mxu0 0
  %3863 = vmatpush1.bf16.msra.mxu0 %v3033
  %3864 = vmatprep.subr.bf16.mxu0 0
  %3865 = vmatpush1.bf16.msra.mxu0 %v3034
  %3866 = vmatprep.subr.bf16.mxu0 0
  %3867 = vmatpush1.bf16.msra.mxu0 %v3035
  %3868 = vmatprep.subr.bf16.mxu0 0
  %3869 = vmatpush1.bf16.msra.mxu0 %v3036
  %3870 = vmatprep.subr.bf16.mxu0 0
  %3871 = vmatpush1.bf16.msra.mxu0 %v3037
  %3872 = vmatprep.subr.bf16.mxu0 0
  %3873 = vmatpush1.bf16.msra.mxu0 %v3038
  %3874 = vmatprep.subr.bf16.mxu0 0
  %3875 = vmatpush1.bf16.msra.mxu0 %v3039
  %3876 = vmatprep.subr.bf16.mxu0 0
  %3877 = vmatpush1.bf16.msra.mxu0 %v3040
  %3878 = vmatprep.subr.bf16.mxu0 0
  %3879 = vmatpush1.bf16.msra.mxu0 %v3041
  %3880 = vmatprep.mubr.bf16.mxu0 %v3847
  %3881 = vmatmul.mubr.bf16.gmra.mrb[0].mxu0 %v3846
  %v3882 = vpop.f32.mrb[0].mxu0
  %v3883 = vadd.f32 0.0, %v3882
  %v3884 = vpop.f32.mrb[0].mxu0
  %v3885 = vpop.f32.mrb[0].mxu0
  %v3886 = vadd.f32 0.0, %v3885
  %v3887 = vpop.f32.mrb[0].mxu0
  %3888 = vdwg.mxu0
  %v3889 = vmax.f32 %v3844, %v3883
  %v3890 = vmax.f32 %v3845, %v3886
  %v3891 = vadd.f32 %v3889, %v3193
  %v3892 = vadd.f32 %v3890, %v3193
  %v3893 = vmax.f32 %v3891, 0.0
  %v3894 = vmax.f32 %v3892, 0.0
  %v3895 = vpack.c.bf16 %v3894, %v3893
  %3896 = vst.msk [vmem:[#allocation4 + $0x28] sm:$0xff] %vm3200, %v3895
  %v3897 = vld [vmem:[#allocation3 + $0x120] sm:$0xff]
  %v3898 = vld [vmem:[#allocation3 + $0x128] sm:$0xff]
  %3899 = vmatprep.subr.bf16.mxu0 0
  %3900 = vmatpush1.bf16.msra.mxu0 %v3026
  %3901 = vmatprep.subr.bf16.mxu0 0
  %3902 = vmatpush1.bf16.msra.mxu0 %v3027
  %3903 = vmatprep.subr.bf16.mxu0 0
  %3904 = vmatpush1.bf16.msra.mxu0 %v3028
  %3905 = vmatprep.subr.bf16.mxu0 0
  %3906 = vmatpush1.bf16.msra.mxu0 %v3029
  %3907 = vmatprep.subr.bf16.mxu0 0
  %3908 = vmatpush1.bf16.msra.mxu0 %v3030
  %3909 = vmatprep.subr.bf16.mxu0 0
  %3910 = vmatpush1.bf16.msra.mxu0 %v3031
  %3911 = vmatprep.subr.bf16.mxu0 0
  %3912 = vmatpush1.bf16.msra.mxu0 %v3032
  %3913 = vmatprep.subr.bf16.mxu0 0
  %3914 = vmatpush1.bf16.msra.mxu0 %v3033
  %3915 = vmatprep.subr.bf16.mxu0 0
  %3916 = vmatpush1.bf16.msra.mxu0 %v3034
  %3917 = vmatprep.subr.bf16.mxu0 0
  %3918 = vmatpush1.bf16.msra.mxu0 %v3035
  %3919 = vmatprep.subr.bf16.mxu0 0
  %3920 = vmatpush1.bf16.msra.mxu0 %v3036
  %3921 = vmatprep.subr.bf16.mxu0 0
  %3922 = vmatpush1.bf16.msra.mxu0 %v3037
  %3923 = vmatprep.subr.bf16.mxu0 0
  %3924 = vmatpush1.bf16.msra.mxu0 %v3038
  %3925 = vmatprep.subr.bf16.mxu0 0
  %3926 = vmatpush1.bf16.msra.mxu0 %v3039
  %3927 = vmatprep.subr.bf16.mxu0 0
  %3928 = vmatpush1.bf16.msra.mxu0 %v3040
  %3929 = vmatprep.subr.bf16.mxu0 0
  %3930 = vmatpush1.bf16.msra.mxu0 %v3041
  %3931 = vmatprep.mubr.bf16.mxu0 %v3898
  %3932 = vmatmul.mubr.bf16.gmra.mrb[0].mxu0 %v3897
  %v3933 = vpop.f32.mrb[0].mxu0
  %v3934 = vadd.f32 0.0, %v3933
  %v3935 = vpop.f32.mrb[0].mxu0
  %v3936 = vpop.f32.mrb[0].mxu0
  %v3937 = vadd.f32 0.0, %v3936
  %v3938 = vpop.f32.mrb[0].mxu0
  %3939 = vdwg.mxu0
  %v3940 = vld [vmem:[#allocation3 + $0x130] sm:$0xff]
  %v3941 = vld [vmem:[#allocation3 + $0x138] sm:$0xff]
  %3942 = vmatprep.subr.bf16.mxu0 0
  %3943 = vmatpush1.bf16.msra.mxu0 %v3026
  %3944 = vmatprep.subr.bf16.mxu0 0
  %3945 = vmatpush1.bf16.msra.mxu0 %v3027
  %3946 = vmatprep.subr.bf16.mxu0 0
  %3947 = vmatpush1.bf16.msra.mxu0 %v3028
  %3948 = vmatprep.subr.bf16.mxu0 0
  %3949 = vmatpush1.bf16.msra.mxu0 %v3029
  %3950 = vmatprep.subr.bf16.mxu0 0
  %3951 = vmatpush1.bf16.msra.mxu0 %v3030
  %3952 = vmatprep.subr.bf16.mxu0 0
  %3953 = vmatpush1.bf16.msra.mxu0 %v3031
  %3954 = vmatprep.subr.bf16.mxu0 0
  %3955 = vmatpush1.bf16.msra.mxu0 %v3032
  %3956 = vmatprep.subr.bf16.mxu0 0
  %3957 = vmatpush1.bf16.msra.mxu0 %v3033
  %3958 = vmatprep.subr.bf16.mxu0 0
  %3959 = vmatpush1.bf16.msra.mxu0 %v3034
  %3960 = vmatprep.subr.bf16.mxu0 0
  %3961 = vmatpush1.bf16.msra.mxu0 %v3035
  %3962 = vmatprep.subr.bf16.mxu0 0
  %3963 = vmatpush1.bf16.msra.mxu0 %v3036
  %3964 = vmatprep.subr.bf16.mxu0 0
  %3965 = vmatpush1.bf16.msra.mxu0 %v3037
  %3966 = vmatprep.subr.bf16.mxu0 0
  %3967 = vmatpush1.bf16.msra.mxu0 %v3038
  %3968 = vmatprep.subr.bf16.mxu0 0
  %3969 = vmatpush1.bf16.msra.mxu0 %v3039
  %3970 = vmatprep.subr.bf16.mxu0 0
  %3971 = vmatpush1.bf16.msra.mxu0 %v3040
  %3972 = vmatprep.subr.bf16.mxu0 0
  %3973 = vmatpush1.bf16.msra.mxu0 %v3041
  %3974 = vmatprep.mubr.bf16.mxu0 %v3941
  %3975 = vmatmul.mubr.bf16.gmra.mrb[0].mxu0 %v3940
  %v3976 = vpop.f32.mrb[0].mxu0
  %v3977 = vadd.f32 0.0, %v3976
  %v3978 = vpop.f32.mrb[0].mxu0
  %v3979 = vpop.f32.mrb[0].mxu0
  %v3980 = vadd.f32 0.0, %v3979
  %v3981 = vpop.f32.mrb[0].mxu0
  %3982 = vdwg.mxu0
  %v3983 = vmax.f32 %v3934, %v3977
  %v3984 = vmax.f32 %v3937, %v3980
  %v3985 = vld [vmem:[#allocation3 + $0x140] sm:$0xff]
  %v3986 = vld [vmem:[#allocation3 + $0x148] sm:$0xff]
  %3987 = vmatprep.subr.bf16.mxu0 0
  %3988 = vmatpush1.bf16.msra.mxu0 %v3026
  %3989 = vmatprep.subr.bf16.mxu0 0
  %3990 = vmatpush1.bf16.msra.mxu0 %v3027
  %3991 = vmatprep.subr.bf16.mxu0 0
  %3992 = vmatpush1.bf16.msra.mxu0 %v3028
  %3993 = vmatprep.subr.bf16.mxu0 0
  %3994 = vmatpush1.bf16.msra.mxu0 %v3029
  %3995 = vmatprep.subr.bf16.mxu0 0
  %3996 = vmatpush1.bf16.msra.mxu0 %v3030
  %3997 = vmatprep.subr.bf16.mxu0 0
  %3998 = vmatpush1.bf16.msra.mxu0 %v3031
  %3999 = vmatprep.subr.bf16.mxu0 0
  %4000 = vmatpush1.bf16.msra.mxu0 %v3032
  %4001 = vmatprep.subr.bf16.mxu0 0
  %4002 = vmatpush1.bf16.msra.mxu0 %v3033
  %4003 = vmatprep.subr.bf16.mxu0 0
  %4004 = vmatpush1.bf16.msra.mxu0 %v3034
  %4005 = vmatprep.subr.bf16.mxu0 0
  %4006 = vmatpush1.bf16.msra.mxu0 %v3035
  %4007 = vmatprep.subr.bf16.mxu0 0
  %4008 = vmatpush1.bf16.msra.mxu0 %v3036
  %4009 = vmatprep.subr.bf16.mxu0 0
  %4010 = vmatpush1.bf16.msra.mxu0 %v3037
  %4011 = vmatprep.subr.bf16.mxu0 0
  %4012 = vmatpush1.bf16.msra.mxu0 %v3038
  %4013 = vmatprep.subr.bf16.mxu0 0
  %4014 = vmatpush1.bf16.msra.mxu0 %v3039
  %4015 = vmatprep.subr.bf16.mxu0 0
  %4016 = vmatpush1.bf16.msra.mxu0 %v3040
  %4017 = vmatprep.subr.bf16.mxu0 0
  %4018 = vmatpush1.bf16.msra.mxu0 %v3041
  %4019 = vmatprep.mubr.bf16.mxu0 %v3986
  %4020 = vmatmul.mubr.bf16.gmra.mrb[0].mxu0 %v3985
  %v4021 = vpop.f32.mrb[0].mxu0
  %v4022 = vadd.f32 0.0, %v4021
  %v4023 = vpop.f32.mrb[0].mxu0
  %v4024 = vpop.f32.mrb[0].mxu0
  %v4025 = vadd.f32 0.0, %v4024
  %v4026 = vpop.f32.mrb[0].mxu0
  %4027 = vdwg.mxu0
  %v4028 = vmax.f32 %v3983, %v4022
  %v4029 = vmax.f32 %v3984, %v4025
  %v4030 = vadd.f32 %v4028, %v3193
  %v4031 = vadd.f32 %v4029, %v3193
  %v4032 = vmax.f32 %v4030, 0.0
  %v4033 = vmax.f32 %v4031, 0.0
  %v4034 = vpack.c.bf16 %v4033, %v4032
  %4035 = vst.msk [vmem:[#allocation4 + $0x30] sm:$0xff] %vm3200, %v4034
  %v4036 = vld [vmem:[#allocation3 + $0x150] sm:$0xff]
  %v4037 = vld [vmem:[#allocation3 + $0x158] sm:$0xff]
  %4038 = vmatprep.subr.bf16.mxu0 0
  %4039 = vmatpush1.bf16.msra.mxu0 %v3026
  %4040 = vmatprep.subr.bf16.mxu0 0
  %4041 = vmatpush1.bf16.msra.mxu0 %v3027
  %4042 = vmatprep.subr.bf16.mxu0 0
  %4043 = vmatpush1.bf16.msra.mxu0 %v3028
  %4044 = vmatprep.subr.bf16.mxu0 0
  %4045 = vmatpush1.bf16.msra.mxu0 %v3029
  %4046 = vmatprep.subr.bf16.mxu0 0
  %4047 = vmatpush1.bf16.msra.mxu0 %v3030
  %4048 = vmatprep.subr.bf16.mxu0 0
  %4049 = vmatpush1.bf16.msra.mxu0 %v3031
  %4050 = vmatprep.subr.bf16.mxu0 0
  %4051 = vmatpush1.bf16.msra.mxu0 %v3032
  %4052 = vmatprep.subr.bf16.mxu0 0
  %4053 = vmatpush1.bf16.msra.mxu0 %v3033
  %4054 = vmatprep.subr.bf16.mxu0 0
  %4055 = vmatpush1.bf16.msra.mxu0 %v3034
  %4056 = vmatprep.subr.bf16.mxu0 0
  %4057 = vmatpush1.bf16.msra.mxu0 %v3035
  %4058 = vmatprep.subr.bf16.mxu0 0
  %4059 = vmatpush1.bf16.msra.mxu0 %v3036
  %4060 = vmatprep.subr.bf16.mxu0 0
  %4061 = vmatpush1.bf16.msra.mxu0 %v3037
  %4062 = vmatprep.subr.bf16.mxu0 0
  %4063 = vmatpush1.bf16.msra.mxu0 %v3038
  %4064 = vmatprep.subr.bf16.mxu0 0
  %4065 = vmatpush1.bf16.msra.mxu0 %v3039
  %4066 = vmatprep.subr.bf16.mxu0 0
  %4067 = vmatpush1.bf16.msra.mxu0 %v3040
  %4068 = vmatprep.subr.bf16.mxu0 0
  %4069 = vmatpush1.bf16.msra.mxu0 %v3041
  %4070 = vmatprep.mubr.bf16.mxu0 %v4037
  %4071 = vmatmul.mubr.bf16.gmra.mrb[0].mxu0 %v4036
  %v4072 = vpop.f32.mrb[0].mxu0
  %v4073 = vadd.f32 0.0, %v4072
  %v4074 = vpop.f32.mrb[0].mxu0
  %v4075 = vpop.f32.mrb[0].mxu0
  %v4076 = vadd.f32 0.0, %v4075
  %v4077 = vpop.f32.mrb[0].mxu0
  %4078 = vdwg.mxu0
  %v4079 = vld [vmem:[#allocation3 + $0x160] sm:$0xff]
  %v4080 = vld [vmem:[#allocation3 + $0x168] sm:$0xff]
  %4081 = vmatprep.subr.bf16.mxu0 0
  %4082 = vmatpush1.bf16.msra.mxu0 %v3026
  %4083 = vmatprep.subr.bf16.mxu0 0
  %4084 = vmatpush1.bf16.msra.mxu0 %v3027
  %4085 = vmatprep.subr.bf16.mxu0 0
  %4086 = vmatpush1.bf16.msra.mxu0 %v3028
  %4087 = vmatprep.subr.bf16.mxu0 0
  %4088 = vmatpush1.bf16.msra.mxu0 %v3029
  %4089 = vmatprep.subr.bf16.mxu0 0
  %4090 = vmatpush1.bf16.msra.mxu0 %v3030
  %4091 = vmatprep.subr.bf16.mxu0 0
  %4092 = vmatpush1.bf16.msra.mxu0 %v3031
  %4093 = vmatprep.subr.bf16.mxu0 0
  %4094 = vmatpush1.bf16.msra.mxu0 %v3032
  %4095 = vmatprep.subr.bf16.mxu0 0
  %4096 = vmatpush1.bf16.msra.mxu0 %v3033
  %4097 = vmatprep.subr.bf16.mxu0 0
  %4098 = vmatpush1.bf16.msra.mxu0 %v3034
  %4099 = vmatprep.subr.bf16.mxu0 0
  %4100 = vmatpush1.bf16.msra.mxu0 %v3035
  %4101 = vmatprep.subr.bf16.mxu0 0
  %4102 = vmatpush1.bf16.msra.mxu0 %v3036
  %4103 = vmatprep.subr.bf16.mxu0 0
  %4104 = vmatpush1.bf16.msra.mxu0 %v3037
  %4105 = vmatprep.subr.bf16.mxu0 0
  %4106 = vmatpush1.bf16.msra.mxu0 %v3038
  %4107 = vmatprep.subr.bf16.mxu0 0
  %4108 = vmatpush1.bf16.msra.mxu0 %v3039
  %4109 = vmatprep.subr.bf16.mxu0 0
  %4110 = vmatpush1.bf16.msra.mxu0 %v3040
  %4111 = vmatprep.subr.bf16.mxu0 0
  %4112 = vmatpush1.bf16.msra.mxu0 %v3041
  %4113 = vmatprep.mubr.bf16.mxu0 %v4080
  %4114 = vmatmul.mubr.bf16.gmra.mrb[0].mxu0 %v4079
  %v4115 = vpop.f32.mrb[0].mxu0
  %v4116 = vadd.f32 0.0, %v4115
  %v4117 = vpop.f32.mrb[0].mxu0
  %v4118 = vpop.f32.mrb[0].mxu0
  %v4119 = vadd.f32 0.0, %v4118
  %v4120 = vpop.f32.mrb[0].mxu0
  %4121 = vdwg.mxu0
  %v4122 = vmax.f32 %v4073, %v4116
  %v4123 = vmax.f32 %v4076, %v4119
  %v4124 = vld [vmem:[#allocation3 + $0x170] sm:$0xff]
  %v4125 = vld [vmem:[#allocation3 + $0x178] sm:$0xff]
  %4126 = vmatprep.subr.bf16.mxu0 0
  %4127 = vmatpush1.bf16.msra.mxu0 %v3026
  %4128 = vmatprep.subr.bf16.mxu0 0
  %4129 = vmatpush1.bf16.msra.mxu0 %v3027
  %4130 = vmatprep.subr.bf16.mxu0 0
  %4131 = vmatpush1.bf16.msra.mxu0 %v3028
  %4132 = vmatprep.subr.bf16.mxu0 0
  %4133 = vmatpush1.bf16.msra.mxu0 %v3029
  %4134 = vmatprep.subr.bf16.mxu0 0
  %4135 = vmatpush1.bf16.msra.mxu0 %v3030
  %4136 = vmatprep.subr.bf16.mxu0 0
  %4137 = vmatpush1.bf16.msra.mxu0 %v3031
  %4138 = vmatprep.subr.bf16.mxu0 0
  %4139 = vmatpush1.bf16.msra.mxu0 %v3032
  %4140 = vmatprep.subr.bf16.mxu0 0
  %4141 = vmatpush1.bf16.msra.mxu0 %v3033
  %4142 = vmatprep.subr.bf16.mxu0 0
  %4143 = vmatpush1.bf16.msra.mxu0 %v3034
  %4144 = vmatprep.subr.bf16.mxu0 0
  %4145 = vmatpush1.bf16.msra.mxu0 %v3035
  %4146 = vmatprep.subr.bf16.mxu0 0
  %4147 = vmatpush1.bf16.msra.mxu0 %v3036
  %4148 = vmatprep.subr.bf16.mxu0 0
  %4149 = vmatpush1.bf16.msra.mxu0 %v3037
  %4150 = vmatprep.subr.bf16.mxu0 0
  %4151 = vmatpush1.bf16.msra.mxu0 %v3038
  %4152 = vmatprep.subr.bf16.mxu0 0
  %4153 = vmatpush1.bf16.msra.mxu0 %v3039
  %4154 = vmatprep.subr.bf16.mxu0 0
  %4155 = vmatpush1.bf16.msra.mxu0 %v3040
  %4156 = vmatprep.subr.bf16.mxu0 0
  %4157 = vmatpush1.bf16.msra.mxu0 %v3041
  %4158 = vmatprep.mubr.bf16.mxu0 %v4125
  %4159 = vmatmul.mubr.bf16.gmra.mrb[0].mxu0 %v4124
  %v4160 = vpop.f32.mrb[0].mxu0
  %v4161 = vadd.f32 0.0, %v4160
  %v4162 = vpop.f32.mrb[0].mxu0
  %v4163 = vpop.f32.mrb[0].mxu0
  %v4164 = vadd.f32 0.0, %v4163
  %v4165 = vpop.f32.mrb[0].mxu0
  %4166 = vdwg.mxu0
  %v4167 = vmax.f32 %v4122, %v4161
  %v4168 = vmax.f32 %v4123, %v4164
  %v4169 = vadd.f32 %v4167, %v3193
  %v4170 = vadd.f32 %v4168, %v3193
  %v4171 = vmax.f32 %v4169, 0.0
  %v4172 = vmax.f32 %v4170, 0.0
  %v4173 = vpack.c.bf16 %v4172, %v4171
  %4174 = vst.msk [vmem:[#allocation4 + $0x38] sm:$0xff] %vm3200, %v4173
  %v4175 = vld [vmem:[#allocation3 + $0x180] sm:$0xff]
  %v4176 = vld [vmem:[#allocation3 + $0x188] sm:$0xff]
  %4177 = vmatprep.subr.bf16.mxu0 0
  %4178 = vmatpush1.bf16.msra.mxu0 %v3026
  %4179 = vmatprep.subr.bf16.mxu0 0
  %4180 = vmatpush1.bf16.msra.mxu0 %v3027
  %4181 = vmatprep.subr.bf16.mxu0 0
  %4182 = vmatpush1.bf16.msra.mxu0 %v3028
  %4183 = vmatprep.subr.bf16.mxu0 0
  %4184 = vmatpush1.bf16.msra.mxu0 %v3029
  %4185 = vmatprep.subr.bf16.mxu0 0
  %4186 = vmatpush1.bf16.msra.mxu0 %v3030
  %4187 = vmatprep.subr.bf16.mxu0 0
  %4188 = vmatpush1.bf16.msra.mxu0 %v3031
  %4189 = vmatprep.subr.bf16.mxu0 0
  %4190 = vmatpush1.bf16.msra.mxu0 %v3032
  %4191 = vmatprep.subr.bf16.mxu0 0
  %4192 = vmatpush1.bf16.msra.mxu0 %v3033
  %4193 = vmatprep.subr.bf16.mxu0 0
  %4194 = vmatpush1.bf16.msra.mxu0 %v3034
  %4195 = vmatprep.subr.bf16.mxu0 0
  %4196 = vmatpush1.bf16.msra.mxu0 %v3035
  %4197 = vmatprep.subr.bf16.mxu0 0
  %4198 = vmatpush1.bf16.msra.mxu0 %v3036
  %4199 = vmatprep.subr.bf16.mxu0 0
  %4200 = vmatpush1.bf16.msra.mxu0 %v3037
  %4201 = vmatprep.subr.bf16.mxu0 0
  %4202 = vmatpush1.bf16.msra.mxu0 %v3038
  %4203 = vmatprep.subr.bf16.mxu0 0
  %4204 = vmatpush1.bf16.msra.mxu0 %v3039
  %4205 = vmatprep.subr.bf16.mxu0 0
  %4206 = vmatpush1.bf16.msra.mxu0 %v3040
  %4207 = vmatprep.subr.bf16.mxu0 0
  %4208 = vmatpush1.bf16.msra.mxu0 %v3041
  %4209 = vmatprep.mubr.bf16.mxu0 %v4176
  %4210 = vmatmul.mubr.bf16.gmra.mrb[0].mxu0 %v4175
  %v4211 = vpop.f32.mrb[0].mxu0
  %v4212 = vadd.f32 0.0, %v4211
  %v4213 = vpop.f32.mrb[0].mxu0
  %v4214 = vpop.f32.mrb[0].mxu0
  %v4215 = vadd.f32 0.0, %v4214
  %v4216 = vpop.f32.mrb[0].mxu0
  %4217 = vdwg.mxu0
  %v4218 = vld [vmem:[#allocation3 + $0x190] sm:$0xff]
  %v4219 = vld [vmem:[#allocation3 + $0x198] sm:$0xff]
  %4220 = vmatprep.subr.bf16.mxu0 0
  %4221 = vmatpush1.bf16.msra.mxu0 %v3026
  %4222 = vmatprep.subr.bf16.mxu0 0
  %4223 = vmatpush1.bf16.msra.mxu0 %v3027
  %4224 = vmatprep.subr.bf16.mxu0 0
  %4225 = vmatpush1.bf16.msra.mxu0 %v3028
  %4226 = vmatprep.subr.bf16.mxu0 0
  %4227 = vmatpush1.bf16.msra.mxu0 %v3029
  %4228 = vmatprep.subr.bf16.mxu0 0
  %4229 = vmatpush1.bf16.msra.mxu0 %v3030
  %4230 = vmatprep.subr.bf16.mxu0 0
  %4231 = vmatpush1.bf16.msra.mxu0 %v3031
  %4232 = vmatprep.subr.bf16.mxu0 0
  %4233 = vmatpush1.bf16.msra.mxu0 %v3032
  %4234 = vmatprep.subr.bf16.mxu0 0
  %4235 = vmatpush1.bf16.msra.mxu0 %v3033
  %4236 = vmatprep.subr.bf16.mxu0 0
  %4237 = vmatpush1.bf16.msra.mxu0 %v3034
  %4238 = vmatprep.subr.bf16.mxu0 0
  %4239 = vmatpush1.bf16.msra.mxu0 %v3035
  %4240 = vmatprep.subr.bf16.mxu0 0
  %4241 = vmatpush1.bf16.msra.mxu0 %v3036
  %4242 = vmatprep.subr.bf16.mxu0 0
  %4243 = vmatpush1.bf16.msra.mxu0 %v3037
  %4244 = vmatprep.subr.bf16.mxu0 0
  %4245 = vmatpush1.bf16.msra.mxu0 %v3038
  %4246 = vmatprep.subr.bf16.mxu0 0
  %4247 = vmatpush1.bf16.msra.mxu0 %v3039
  %4248 = vmatprep.subr.bf16.mxu0 0
  %4249 = vmatpush1.bf16.msra.mxu0 %v3040
  %4250 = vmatprep.subr.bf16.mxu0 0
  %4251 = vmatpush1.bf16.msra.mxu0 %v3041
  %4252 = vmatprep.mubr.bf16.mxu0 %v4219
  %4253 = vmatmul.mubr.bf16.gmra.mrb[0].mxu0 %v4218
  %v4254 = vpop.f32.mrb[0].mxu0
  %v4255 = vadd.f32 0.0, %v4254
  %v4256 = vpop.f32.mrb[0].mxu0
  %v4257 = vpop.f32.mrb[0].mxu0
  %v4258 = vadd.f32 0.0, %v4257
  %v4259 = vpop.f32.mrb[0].mxu0
  %4260 = vdwg.mxu0
  %v4261 = vmax.f32 %v4212, %v4255
  %v4262 = vmax.f32 %v4215, %v4258
  %v4263 = vld [vmem:[#allocation3 + $0x1a0] sm:$0xff]
  %v4264 = vld [vmem:[#allocation3 + $0x1a8] sm:$0xff]
  %4265 = vmatprep.subr.bf16.mxu0 0
  %4266 = vmatpush1.bf16.msra.mxu0 %v3026
  %4267 = vmatprep.subr.bf16.mxu0 0
  %4268 = vmatpush1.bf16.msra.mxu0 %v3027
  %4269 = vmatprep.subr.bf16.mxu0 0
  %4270 = vmatpush1.bf16.msra.mxu0 %v3028
  %4271 = vmatprep.subr.bf16.mxu0 0
  %4272 = vmatpush1.bf16.msra.mxu0 %v3029
  %4273 = vmatprep.subr.bf16.mxu0 0
  %4274 = vmatpush1.bf16.msra.mxu0 %v3030
  %4275 = vmatprep.subr.bf16.mxu0 0
  %4276 = vmatpush1.bf16.msra.mxu0 %v3031
  %4277 = vmatprep.subr.bf16.mxu0 0
  %4278 = vmatpush1.bf16.msra.mxu0 %v3032
  %4279 = vmatprep.subr.bf16.mxu0 0
  %4280 = vmatpush1.bf16.msra.mxu0 %v3033
  %4281 = vmatprep.subr.bf16.mxu0 0
  %4282 = vmatpush1.bf16.msra.mxu0 %v3034
  %4283 = vmatprep.subr.bf16.mxu0 0
  %4284 = vmatpush1.bf16.msra.mxu0 %v3035
  %4285 = vmatprep.subr.bf16.mxu0 0
  %4286 = vmatpush1.bf16.msra.mxu0 %v3036
  %4287 = vmatprep.subr.bf16.mxu0 0
  %4288 = vmatpush1.bf16.msra.mxu0 %v3037
  %4289 = vmatprep.subr.bf16.mxu0 0
  %4290 = vmatpush1.bf16.msra.mxu0 %v3038
  %4291 = vmatprep.subr.bf16.mxu0 0
  %4292 = vmatpush1.bf16.msra.mxu0 %v3039
  %4293 = vmatprep.subr.bf16.mxu0 0
  %4294 = vmatpush1.bf16.msra.mxu0 %v3040
  %4295 = vmatprep.subr.bf16.mxu0 0
  %4296 = vmatpush1.bf16.msra.mxu0 %v3041
  %4297 = vmatprep.mubr.bf16.mxu0 %v4264
  %4298 = vmatmul.mubr.bf16.gmra.mrb[0].mxu0 %v4263
  %v4299 = vpop.f32.mrb[0].mxu0
  %v4300 = vadd.f32 0.0, %v4299
  %v4301 = vpop.f32.mrb[0].mxu0
  %v4302 = vpop.f32.mrb[0].mxu0
  %v4303 = vadd.f32 0.0, %v4302
  %v4304 = vpop.f32.mrb[0].mxu0
  %4305 = vdwg.mxu0
  %v4306 = vmax.f32 %v4261, %v4300
  %v4307 = vmax.f32 %v4262, %v4303
  %v4308 = vadd.f32 %v4306, %v3193
  %v4309 = vadd.f32 %v4307, %v3193
  %v4310 = vmax.f32 %v4308, 0.0
  %v4311 = vmax.f32 %v4309, 0.0
  %v4312 = vpack.c.bf16 %v4311, %v4310
  %4313 = vst.msk [vmem:[#allocation4 + $0x40] sm:$0xff] %vm3200, %v4312
  %v4314 = vld [vmem:[#allocation3 + $0x1b0] sm:$0xff]
  %v4315 = vld [vmem:[#allocation3 + $0x1b8] sm:$0xff]
  %4316 = vmatprep.subr.bf16.mxu0 0
  %4317 = vmatpush1.bf16.msra.mxu0 %v3026
  %4318 = vmatprep.subr.bf16.mxu0 0
  %4319 = vmatpush1.bf16.msra.mxu0 %v3027
  %4320 = vmatprep.subr.bf16.mxu0 0
  %4321 = vmatpush1.bf16.msra.mxu0 %v3028
  %4322 = vmatprep.subr.bf16.mxu0 0
  %4323 = vmatpush1.bf16.msra.mxu0 %v3029
  %4324 = vmatprep.subr.bf16.mxu0 0
  %4325 = vmatpush1.bf16.msra.mxu0 %v3030
  %4326 = vmatprep.subr.bf16.mxu0 0
  %4327 = vmatpush1.bf16.msra.mxu0 %v3031
  %4328 = vmatprep.subr.bf16.mxu0 0
  %4329 = vmatpush1.bf16.msra.mxu0 %v3032
  %4330 = vmatprep.subr.bf16.mxu0 0
  %4331 = vmatpush1.bf16.msra.mxu0 %v3033
  %4332 = vmatprep.subr.bf16.mxu0 0
  %4333 = vmatpush1.bf16.msra.mxu0 %v3034
  %4334 = vmatprep.subr.bf16.mxu0 0
  %4335 = vmatpush1.bf16.msra.mxu0 %v3035
  %4336 = vmatprep.subr.bf16.mxu0 0
  %4337 = vmatpush1.bf16.msra.mxu0 %v3036
  %4338 = vmatprep.subr.bf16.mxu0 0
  %4339 = vmatpush1.bf16.msra.mxu0 %v3037
  %4340 = vmatprep.subr.bf16.mxu0 0
  %4341 = vmatpush1.bf16.msra.mxu0 %v3038
  %4342 = vmatprep.subr.bf16.mxu0 0
  %4343 = vmatpush1.bf16.msra.mxu0 %v3039
  %4344 = vmatprep.subr.bf16.mxu0 0
  %4345 = vmatpush1.bf16.msra.mxu0 %v3040
  %4346 = vmatprep.subr.bf16.mxu0 0
  %4347 = vmatpush1.bf16.msra.mxu0 %v3041
  %4348 = vmatprep.mubr.bf16.mxu0 %v4315
  %4349 = vmatmul.mubr.bf16.gmra.mrb[0].mxu0 %v4314
  %v4350 = vpop.f32.mrb[0].mxu0
  %v4351 = vadd.f32 0.0, %v4350
  %v4352 = vpop.f32.mrb[0].mxu0
  %v4353 = vpop.f32.mrb[0].mxu0
  %v4354 = vadd.f32 0.0, %v4353
  %v4355 = vpop.f32.mrb[0].mxu0
  %4356 = vdwg.mxu0
  %v4357 = vld [vmem:[#allocation3 + $0x1c0] sm:$0xff]
  %v4358 = vld [vmem:[#allocation3 + $0x1c8] sm:$0xff]
  %4359 = vmatprep.subr.bf16.mxu0 0
  %4360 = vmatpush1.bf16.msra.mxu0 %v3026
  %4361 = vmatprep.subr.bf16.mxu0 0
  %4362 = vmatpush1.bf16.msra.mxu0 %v3027
  %4363 = vmatprep.subr.bf16.mxu0 0
  %4364 = vmatpush1.bf16.msra.mxu0 %v3028
  %4365 = vmatprep.subr.bf16.mxu0 0
  %4366 = vmatpush1.bf16.msra.mxu0 %v3029
  %4367 = vmatprep.subr.bf16.mxu0 0
  %4368 = vmatpush1.bf16.msra.mxu0 %v3030
  %4369 = vmatprep.subr.bf16.mxu0 0
  %4370 = vmatpush1.bf16.msra.mxu0 %v3031
  %4371 = vmatprep.subr.bf16.mxu0 0
  %4372 = vmatpush1.bf16.msra.mxu0 %v3032
  %4373 = vmatprep.subr.bf16.mxu0 0
  %4374 = vmatpush1.bf16.msra.mxu0 %v3033
  %4375 = vmatprep.subr.bf16.mxu0 0
  %4376 = vmatpush1.bf16.msra.mxu0 %v3034
  %4377 = vmatprep.subr.bf16.mxu0 0
  %4378 = vmatpush1.bf16.msra.mxu0 %v3035
  %4379 = vmatprep.subr.bf16.mxu0 0
  %4380 = vmatpush1.bf16.msra.mxu0 %v3036
  %4381 = vmatprep.subr.bf16.mxu0 0
  %4382 = vmatpush1.bf16.msra.mxu0 %v3037
  %4383 = vmatprep.subr.bf16.mxu0 0
  %4384 = vmatpush1.bf16.msra.mxu0 %v3038
  %4385 = vmatprep.subr.bf16.mxu0 0
  %4386 = vmatpush1.bf16.msra.mxu0 %v3039
  %4387 = vmatprep.subr.bf16.mxu0 0
  %4388 = vmatpush1.bf16.msra.mxu0 %v3040
  %4389 = vmatprep.subr.bf16.mxu0 0
  %4390 = vmatpush1.bf16.msra.mxu0 %v3041
  %4391 = vmatprep.mubr.bf16.mxu0 %v4358
  %4392 = vmatmul.mubr.bf16.gmra.mrb[0].mxu0 %v4357
  %v4393 = vpop.f32.mrb[0].mxu0
  %v4394 = vadd.f32 0.0, %v4393
  %v4395 = vpop.f32.mrb[0].mxu0
  %v4396 = vpop.f32.mrb[0].mxu0
  %v4397 = vadd.f32 0.0, %v4396
  %v4398 = vpop.f32.mrb[0].mxu0
  %4399 = vdwg.mxu0
  %v4400 = vmax.f32 %v4351, %v4394
  %v4401 = vmax.f32 %v4354, %v4397
  %v4402 = vld [vmem:[#allocation3 + $0x1d0] sm:$0xff]
  %v4403 = vld [vmem:[#allocation3 + $0x1d8] sm:$0xff]
  %4404 = vmatprep.subr.bf16.mxu0 0
  %4405 = vmatpush1.bf16.msra.mxu0 %v3026
  %4406 = vmatprep.subr.bf16.mxu0 0
  %4407 = vmatpush1.bf16.msra.mxu0 %v3027
  %4408 = vmatprep.subr.bf16.mxu0 0
  %4409 = vmatpush1.bf16.msra.mxu0 %v3028
  %4410 = vmatprep.subr.bf16.mxu0 0
  %4411 = vmatpush1.bf16.msra.mxu0 %v3029
  %4412 = vmatprep.subr.bf16.mxu0 0
  %4413 = vmatpush1.bf16.msra.mxu0 %v3030
  %4414 = vmatprep.subr.bf16.mxu0 0
  %4415 = vmatpush1.bf16.msra.mxu0 %v3031
  %4416 = vmatprep.subr.bf16.mxu0 0
  %4417 = vmatpush1.bf16.msra.mxu0 %v3032
  %4418 = vmatprep.subr.bf16.mxu0 0
  %4419 = vmatpush1.bf16.msra.mxu0 %v3033
  %4420 = vmatprep.subr.bf16.mxu0 0
  %4421 = vmatpush1.bf16.msra.mxu0 %v3034
  %4422 = vmatprep.subr.bf16.mxu0 0
  %4423 = vmatpush1.bf16.msra.mxu0 %v3035
  %4424 = vmatprep.subr.bf16.mxu0 0
  %4425 = vmatpush1.bf16.msra.mxu0 %v3036
  %4426 = vmatprep.subr.bf16.mxu0 0
  %4427 = vmatpush1.bf16.msra.mxu0 %v3037
  %4428 = vmatprep.subr.bf16.mxu0 0
  %4429 = vmatpush1.bf16.msra.mxu0 %v3038
  %4430 = vmatprep.subr.bf16.mxu0 0
  %4431 = vmatpush1.bf16.msra.mxu0 %v3039
  %4432 = vmatprep.subr.bf16.mxu0 0
  %4433 = vmatpush1.bf16.msra.mxu0 %v3040
  %4434 = vmatprep.subr.bf16.mxu0 0
  %4435 = vmatpush1.bf16.msra.mxu0 %v3041
  %4436 = vmatprep.mubr.bf16.mxu0 %v4403
  %4437 = vmatmul.mubr.bf16.gmra.mrb[0].mxu0 %v4402
  %v4438 = vpop.f32.mrb[0].mxu0
  %v4439 = vadd.f32 0.0, %v4438
  %v4440 = vpop.f32.mrb[0].mxu0
  %v4441 = vpop.f32.mrb[0].mxu0
  %v4442 = vadd.f32 0.0, %v4441
  %v4443 = vpop.f32.mrb[0].mxu0
  %4444 = vdwg.mxu0
  %v4445 = vmax.f32 %v4400, %v4439
  %v4446 = vmax.f32 %v4401, %v4442
  %v4447 = vadd.f32 %v4445, %v3193
  %v4448 = vadd.f32 %v4446, %v3193
  %v4449 = vmax.f32 %v4447, 0.0
  %v4450 = vmax.f32 %v4448, 0.0
  %v4451 = vpack.c.bf16 %v4450, %v4449
  %4452 = vst.msk [vmem:[#allocation4 + $0x48] sm:$0xff] %vm3200, %v4451
  %v4453 = vld [vmem:[#allocation3 + $0x1e0] sm:$0xff]
  %v4454 = vld [vmem:[#allocation3 + $0x1e8] sm:$0xff]
  %4455 = vmatprep.subr.bf16.mxu0 0
  %4456 = vmatpush1.bf16.msra.mxu0 %v3026
  %4457 = vmatprep.subr.bf16.mxu0 0
  %4458 = vmatpush1.bf16.msra.mxu0 %v3027
  %4459 = vmatprep.subr.bf16.mxu0 0
  %4460 = vmatpush1.bf16.msra.mxu0 %v3028
  %4461 = vmatprep.subr.bf16.mxu0 0
  %4462 = vmatpush1.bf16.msra.mxu0 %v3029
  %4463 = vmatprep.subr.bf16.mxu0 0
  %4464 = vmatpush1.bf16.msra.mxu0 %v3030
  %4465 = vmatprep.subr.bf16.mxu0 0
  %4466 = vmatpush1.bf16.msra.mxu0 %v3031
  %4467 = vmatprep.subr.bf16.mxu0 0
  %4468 = vmatpush1.bf16.msra.mxu0 %v3032
  %4469 = vmatprep.subr.bf16.mxu0 0
  %4470 = vmatpush1.bf16.msra.mxu0 %v3033
  %4471 = vmatprep.subr.bf16.mxu0 0
  %4472 = vmatpush1.bf16.msra.mxu0 %v3034
  %4473 = vmatprep.subr.bf16.mxu0 0
  %4474 = vmatpush1.bf16.msra.mxu0 %v3035
  %4475 = vmatprep.subr.bf16.mxu0 0
  %4476 = vmatpush1.bf16.msra.mxu0 %v3036
  %4477 = vmatprep.subr.bf16.mxu0 0
  %4478 = vmatpush1.bf16.msra.mxu0 %v3037
  %4479 = vmatprep.subr.bf16.mxu0 0
  %4480 = vmatpush1.bf16.msra.mxu0 %v3038
  %4481 = vmatprep.subr.bf16.mxu0 0
  %4482 = vmatpush1.bf16.msra.mxu0 %v3039
  %4483 = vmatprep.subr.bf16.mxu0 0
  %4484 = vmatpush1.bf16.msra.mxu0 %v3040
  %4485 = vmatprep.subr.bf16.mxu0 0
  %4486 = vmatpush1.bf16.msra.mxu0 %v3041
  %4487 = vmatprep.mubr.bf16.mxu0 %v4454
  %4488 = vmatmul.mubr.bf16.gmra.mrb[0].mxu0 %v4453
  %v4489 = vpop.f32.mrb[0].mxu0
  %v4490 = vadd.f32 0.0, %v4489
  %v4491 = vpop.f32.mrb[0].mxu0
  %v4492 = vpop.f32.mrb[0].mxu0
  %v4493 = vadd.f32 0.0, %v4492
  %v4494 = vpop.f32.mrb[0].mxu0
  %4495 = vdwg.mxu0
  %v4496 = vld [vmem:[#allocation3 + $0x1f0] sm:$0xff]
  %v4497 = vld [vmem:[#allocation3 + $0x1f8] sm:$0xff]
  %4498 = vmatprep.subr.bf16.mxu0 0
  %4499 = vmatpush1.bf16.msra.mxu0 %v3026
  %4500 = vmatprep.subr.bf16.mxu0 0
  %4501 = vmatpush1.bf16.msra.mxu0 %v3027
  %4502 = vmatprep.subr.bf16.mxu0 0
  %4503 = vmatpush1.bf16.msra.mxu0 %v3028
  %4504 = vmatprep.subr.bf16.mxu0 0
  %4505 = vmatpush1.bf16.msra.mxu0 %v3029
  %4506 = vmatprep.subr.bf16.mxu0 0
  %4507 = vmatpush1.bf16.msra.mxu0 %v3030
  %4508 = vmatprep.subr.bf16.mxu0 0
  %4509 = vmatpush1.bf16.msra.mxu0 %v3031
  %4510 = vmatprep.subr.bf16.mxu0 0
  %4511 = vmatpush1.bf16.msra.mxu0 %v3032
  %4512 = vmatprep.subr.bf16.mxu0 0
  %4513 = vmatpush1.bf16.msra.mxu0 %v3033
  %4514 = vmatprep.subr.bf16.mxu0 0
  %4515 = vmatpush1.bf16.msra.mxu0 %v3034
  %4516 = vmatprep.subr.bf16.mxu0 0
  %4517 = vmatpush1.bf16.msra.mxu0 %v3035
  %4518 = vmatprep.subr.bf16.mxu0 0
  %4519 = vmatpush1.bf16.msra.mxu0 %v3036
  %4520 = vmatprep.subr.bf16.mxu0 0
  %4521 = vmatpush1.bf16.msra.mxu0 %v3037
  %4522 = vmatprep.subr.bf16.mxu0 0
  %4523 = vmatpush1.bf16.msra.mxu0 %v3038
  %4524 = vmatprep.subr.bf16.mxu0 0
  %4525 = vmatpush1.bf16.msra.mxu0 %v3039
  %4526 = vmatprep.subr.bf16.mxu0 0
  %4527 = vmatpush1.bf16.msra.mxu0 %v3040
  %4528 = vmatprep.subr.bf16.mxu0 0
  %4529 = vmatpush1.bf16.msra.mxu0 %v3041
  %4530 = vmatprep.mubr.bf16.mxu0 %v4497
  %4531 = vmatmul.mubr.bf16.gmra.mrb[0].mxu0 %v4496
  %v4532 = vpop.f32.mrb[0].mxu0
  %v4533 = vadd.f32 0.0, %v4532
  %v4534 = vpop.f32.mrb[0].mxu0
  %v4535 = vpop.f32.mrb[0].mxu0
  %v4536 = vadd.f32 0.0, %v4535
  %v4537 = vpop.f32.mrb[0].mxu0
  %4538 = vdwg.mxu0
  %v4539 = vmax.f32 %v4490, %v4533
  %v4540 = vmax.f32 %v4493, %v4536
  %v4541 = vld [vmem:[#allocation3 + $0x200] sm:$0xff]
  %v4542 = vld [vmem:[#allocation3 + $0x208] sm:$0xff]
  %4543 = vmatprep.subr.bf16.mxu0 0
  %4544 = vmatpush1.bf16.msra.mxu0 %v3026
  %4545 = vmatprep.subr.bf16.mxu0 0
  %4546 = vmatpush1.bf16.msra.mxu0 %v3027
  %4547 = vmatprep.subr.bf16.mxu0 0
  %4548 = vmatpush1.bf16.msra.mxu0 %v3028
  %4549 = vmatprep.subr.bf16.mxu0 0
  %4550 = vmatpush1.bf16.msra.mxu0 %v3029
  %4551 = vmatprep.subr.bf16.mxu0 0
  %4552 = vmatpush1.bf16.msra.mxu0 %v3030
  %4553 = vmatprep.subr.bf16.mxu0 0
  %4554 = vmatpush1.bf16.msra.mxu0 %v3031
  %4555 = vmatprep.subr.bf16.mxu0 0
  %4556 = vmatpush1.bf16.msra.mxu0 %v3032
  %4557 = vmatprep.subr.bf16.mxu0 0
  %4558 = vmatpush1.bf16.msra.mxu0 %v3033
  %4559 = vmatprep.subr.bf16.mxu0 0
  %4560 = vmatpush1.bf16.msra.mxu0 %v3034
  %4561 = vmatprep.subr.bf16.mxu0 0
  %4562 = vmatpush1.bf16.msra.mxu0 %v3035
  %4563 = vmatprep.subr.bf16.mxu0 0
  %4564 = vmatpush1.bf16.msra.mxu0 %v3036
  %4565 = vmatprep.subr.bf16.mxu0 0
  %4566 = vmatpush1.bf16.msra.mxu0 %v3037
  %4567 = vmatprep.subr.bf16.mxu0 0
  %4568 = vmatpush1.bf16.msra.mxu0 %v3038
  %4569 = vmatprep.subr.bf16.mxu0 0
  %4570 = vmatpush1.bf16.msra.mxu0 %v3039
  %4571 = vmatprep.subr.bf16.mxu0 0
  %4572 = vmatpush1.bf16.msra.mxu0 %v3040
  %4573 = vmatprep.subr.bf16.mxu0 0
  %4574 = vmatpush1.bf16.msra.mxu0 %v3041
  %4575 = vmatprep.mubr.bf16.mxu0 %v4542
  %4576 = vmatmul.mubr.bf16.gmra.mrb[0].mxu0 %v4541
  %v4577 = vpop.f32.mrb[0].mxu0
  %v4578 = vadd.f32 0.0, %v4577
  %v4579 = vpop.f32.mrb[0].mxu0
  %v4580 = vpop.f32.mrb[0].mxu0
  %v4581 = vadd.f32 0.0, %v4580
  %v4582 = vpop.f32.mrb[0].mxu0
  %4583 = vdwg.mxu0
  %v4584 = vmax.f32 %v4539, %v4578
  %v4585 = vmax.f32 %v4540, %v4581
  %v4586 = vadd.f32 %v4584, %v3193
  %v4587 = vadd.f32 %v4585, %v3193
  %v4588 = vmax.f32 %v4586, 0.0
  %v4589 = vmax.f32 %v4587, 0.0
  %v4590 = vpack.c.bf16 %v4589, %v4588
  %4591 = vst.msk [vmem:[#allocation4 + $0x50] sm:$0xff] %vm3200, %v4590
  %v4592 = vld [vmem:[#allocation4] sm:$0xff]
  %v4593 = vld [vmem:[#allocation4 + $0x8] sm:$0xff]
  %v4594 = vld [vmem:[#allocation4 + $0x10] sm:$0xff]
  %4595 = vst.msk [vmem:[#allocation5] sm:$0xff] %vm3200, %v4592
  %4596 = vst.msk [vmem:[#allocation5 + $0x20] sm:$0xff] %vm3200, %v4593
  %4597 = vst.msk [vmem:[#allocation5 + $0x40] sm:$0xff] %vm3200, %v4594
  %v4598 = vld [vmem:[#allocation4 + $0x8] sm:$0xff]
  %v4599 = vld [vmem:[#allocation4 + $0x10] sm:$0xff]
  %v4600 = vld [vmem:[#allocation4 + $0x18] sm:$0xff]
  %4604 = vrot.lane.b32.xlu0 %v4598, 64
  %v4605 = vpop.permute.xlu0 %4604
  %4606 = vrot.lane.b32.xlu0 %v4599, 64
  %v4607 = vpop.permute.xlu0 %4606
  %4608 = vrot.lane.b32.xlu0 %v4600, 64
  %v4609 = vpop.permute.xlu0 %4608
  %vm4613 = vcmask 1048064
  %4614 = vst.msk [vmem:[#allocation5] sm:$0xff] %vm4613, %v4605
  %4615 = vst.msk [vmem:[#allocation5 + $0x20] sm:$0xff] %vm4613, %v4607
  %4616 = vst.msk [vmem:[#allocation5 + $0x40] sm:$0xff] %vm4613, %v4609
  %v4617 = vld [vmem:[#allocation4 + $0x10] sm:$0xff]
  %v4618 = vld [vmem:[#allocation4 + $0x18] sm:$0xff]
  %v4619 = vld [vmem:[#allocation4 + $0x20] sm:$0xff]
  %4620 = vst.msk [vmem:[#allocation5 + $0x8] sm:$0xff] %vm3200, %v4617
  %4621 = vst.msk [vmem:[#allocation5 + $0x28] sm:$0xff] %vm3200, %v4618
  %4622 = vst.msk [vmem:[#allocation5 + $0x48] sm:$0xff] %vm3200, %v4619
  %v4623 = vld [vmem:[#allocation4 + $0x18] sm:$0xff]
  %v4624 = vld [vmem:[#allocation4 + $0x20] sm:$0xff]
  %v4625 = vld [vmem:[#allocation4 + $0x28] sm:$0xff]
  %4629 = vrot.lane.b32.xlu0 %v4623, 64
  %v4630 = vpop.permute.xlu0 %4629
  %4631 = vrot.lane.b32.xlu0 %v4624, 64
  %v4632 = vpop.permute.xlu0 %4631
  %4633 = vrot.lane.b32.xlu0 %v4625, 64
  %v4634 = vpop.permute.xlu0 %4633
  %4638 = vst.msk [vmem:[#allocation5 + $0x8] sm:$0xff] %vm4613, %v4630
  %4639 = vst.msk [vmem:[#allocation5 + $0x28] sm:$0xff] %vm4613, %v4632
  %4640 = vst.msk [vmem:[#allocation5 + $0x48] sm:$0xff] %vm4613, %v4634
  %v4641 = vld [vmem:[#allocation4 + $0x20] sm:$0xff]
  %v4642 = vld [vmem:[#allocation4 + $0x28] sm:$0xff]
  %v4643 = vld [vmem:[#allocation4 + $0x30] sm:$0xff]
  %4644 = vst.msk [vmem:[#allocation5 + $0x10] sm:$0xff] %vm3200, %v4641
  %4645 = vst.msk [vmem:[#allocation5 + $0x30] sm:$0xff] %vm3200, %v4642
  %4646 = vst.msk [vmem:[#allocation5 + $0x50] sm:$0xff] %vm3200, %v4643
  %v4647 = vld [vmem:[#allocation4 + $0x28] sm:$0xff]
  %v4648 = vld [vmem:[#allocation4 + $0x30] sm:$0xff]
  %v4649 = vld [vmem:[#allocation4 + $0x38] sm:$0xff]
  %4653 = vrot.lane.b32.xlu0 %v4647, 64
  %v4654 = vpop.permute.xlu0 %4653
  %4655 = vrot.lane.b32.xlu0 %v4648, 64
  %v4656 = vpop.permute.xlu0 %4655
  %4657 = vrot.lane.b32.xlu0 %v4649, 64
  %v4658 = vpop.permute.xlu0 %4657
  %4662 = vst.msk [vmem:[#allocation5 + $0x10] sm:$0xff] %vm4613, %v4654
  %4663 = vst.msk [vmem:[#allocation5 + $0x30] sm:$0xff] %vm4613, %v4656
  %4664 = vst.msk [vmem:[#allocation5 + $0x50] sm:$0xff] %vm4613, %v4658
  %v4665 = vld [vmem:[#allocation4 + $0x30] sm:$0xff]
  %v4666 = vld [vmem:[#allocation4 + $0x38] sm:$0xff]
  %v4667 = vld [vmem:[#allocation4 + $0x40] sm:$0xff]
  %4668 = vst.msk [vmem:[#allocation5 + $0x18] sm:$0xff] %vm3200, %v4665
  %4669 = vst.msk [vmem:[#allocation5 + $0x38] sm:$0xff] %vm3200, %v4666
  %4670 = vst.msk [vmem:[#allocation5 + $0x58] sm:$0xff] %vm3200, %v4667
  %v4671 = vld [vmem:[#allocation4 + $0x38] sm:$0xff]
  %v4672 = vld [vmem:[#allocation4 + $0x40] sm:$0xff]
  %v4673 = vld [vmem:[#allocation4 + $0x48] sm:$0xff]
  %4677 = vrot.lane.b32.xlu0 %v4671, 64
  %v4678 = vpop.permute.xlu0 %4677
  %4679 = vrot.lane.b32.xlu0 %v4672, 64
  %v4680 = vpop.permute.xlu0 %4679
  %4681 = vrot.lane.b32.xlu0 %v4673, 64
  %v4682 = vpop.permute.xlu0 %4681
  %4686 = vst.msk [vmem:[#allocation5 + $0x18] sm:$0xff] %vm4613, %v4678
  %4687 = vst.msk [vmem:[#allocation5 + $0x38] sm:$0xff] %vm4613, %v4680
  %4688 = vst.msk [vmem:[#allocation5 + $0x58] sm:$0xff] %vm4613, %v4682
  %v4689 = vld [vmem:[%s3] sm:$0xf]
  %v4690 = vld [vmem:[%s3 + $0x4] sm:$0xf]
  %v4691 = vld [vmem:[%s3 + $0x8] sm:$0xf]
  %v4692 = vld [vmem:[%s3 + $0xc] sm:$0xf]
  %v4693 = vld [vmem:[%s3 + $0x10] sm:$0xf]
  %v4694 = vld [vmem:[%s3 + $0x14] sm:$0xf]
  %v4695 = vld [vmem:[%s3 + $0x18] sm:$0xf]
  %v4696 = vld [vmem:[%s3 + $0x1c] sm:$0xf]
  %v4697 = vld [vmem:[%s3 + $0x20] sm:$0xf]
  %v4698 = vld [vmem:[%s3 + $0x24] sm:$0xf]
  %v4699 = vld [vmem:[%s3 + $0x28] sm:$0xf]
  %v4700 = vld [vmem:[%s3 + $0x2c] sm:$0xf]
  %v4701 = vld [vmem:[%s3 + $0x30] sm:$0xf]
  %v4702 = vld [vmem:[%s3 + $0x34] sm:$0xf]
  %v4703 = vld [vmem:[%s3 + $0x38] sm:$0xf]
  %v4704 = vld [vmem:[%s3 + $0x3c] sm:$0xf]
  %v4705 = vld [vmem:[%s3 + $0x40] sm:$0xf]
  %v4706 = vld [vmem:[%s3 + $0x44] sm:$0xf]
  %v4707 = vld [vmem:[%s3 + $0x48] sm:$0xf]
  %v4708 = vld [vmem:[%s3 + $0x4c] sm:$0xf]
  %v4709 = vld [vmem:[%s3 + $0x50] sm:$0xf]
  %v4710 = vld [vmem:[%s3 + $0x54] sm:$0xf]
  %v4711 = vld [vmem:[%s3 + $0x58] sm:$0xf]
  %v4712 = vld [vmem:[%s3 + $0x5c] sm:$0xf]
  %v4713 = vld [vmem:[%s3 + $0x60] sm:$0xf]
  %v4714 = vld [vmem:[%s3 + $0x64] sm:$0xf]
  %v4715 = vld [vmem:[%s3 + $0x68] sm:$0xf]
  %v4716 = vld [vmem:[%s3 + $0x6c] sm:$0xf]
  %v4717 = vld [vmem:[%s3 + $0x70] sm:$0xf]
  %v4718 = vld [vmem:[%s3 + $0x74] sm:$0xf]
  %v4719 = vld [vmem:[%s3 + $0x78] sm:$0xf]
  %v4720 = vld [vmem:[%s3 + $0x7c] sm:$0xf]
  %v4721 = vld [vmem:[%s3 + $0x80] sm:$0xf]
  %v4722 = vld [vmem:[%s3 + $0x84] sm:$0xf]
  %v4723 = vld [vmem:[%s3 + $0x88] sm:$0xf]
  %v4724 = vld [vmem:[%s3 + $0x8c] sm:$0xf]
  %v4725 = vld [vmem:[%s3 + $0x90] sm:$0xf]
  %v4726 = vld [vmem:[%s3 + $0x94] sm:$0xf]
  %v4727 = vld [vmem:[%s3 + $0x98] sm:$0xf]
  %v4728 = vld [vmem:[%s3 + $0x9c] sm:$0xf]
  %v4729 = vld [vmem:[%s3 + $0xa0] sm:$0xf]
  %v4730 = vld [vmem:[%s3 + $0xa4] sm:$0xf]
  %v4731 = vld [vmem:[%s3 + $0xa8] sm:$0xf]
  %v4732 = vld [vmem:[%s3 + $0xac] sm:$0xf]
  %v4733 = vld [vmem:[%s3 + $0xb0] sm:$0xf]
  %v4734 = vld [vmem:[%s3 + $0xb4] sm:$0xf]
  %v4735 = vld [vmem:[%s3 + $0xb8] sm:$0xf]
  %v4736 = vld [vmem:[%s3 + $0xbc] sm:$0xf]
  %v4737 = vld [vmem:[%s3 + $0xc0] sm:$0xf]
  %v4738 = vld [vmem:[%s3 + $0xc4] sm:$0xf]
  %v4739 = vld [vmem:[%s3 + $0xc8] sm:$0xf]
  %v4740 = vld [vmem:[%s3 + $0xcc] sm:$0xf]
  %v4741 = vld [vmem:[%s3 + $0xd0] sm:$0xf]
  %v4742 = vld [vmem:[%s3 + $0xd4] sm:$0xf]
  %v4743 = vld [vmem:[%s3 + $0xd8] sm:$0xf]
  %v4744 = vld [vmem:[%s3 + $0xdc] sm:$0xf]
  %v4745 = vld [vmem:[%s3 + $0xe0] sm:$0xf]
  %v4746 = vld [vmem:[%s3 + $0xe4] sm:$0xf]
  %v4747 = vld [vmem:[%s3 + $0xe8] sm:$0xf]
  %v4748 = vld [vmem:[%s3 + $0xec] sm:$0xf]
  %v4749 = vld [vmem:[%s3 + $0xf0] sm:$0xf]
  %v4750 = vld [vmem:[%s3 + $0xf4] sm:$0xf]
  %v4751 = vld [vmem:[%s3 + $0xf8] sm:$0xf]
  %v4752 = vld [vmem:[%s3 + $0xfc] sm:$0xf]
  %v4753 = vld [vmem:[%s7] sm:$0x1]
  %v4754 = vld [vmem:[#allocation5] sm:$0xff]
  %v4755 = vld [vmem:[#allocation5 + $0x8] sm:$0xff]
  %v4756 = vld [vmem:[#allocation5 + $0x10] sm:$0xff]
  %v4757 = vld [vmem:[#allocation5 + $0x18] sm:$0xff]
  %v4822 = vunpack.c.l.b16 %v4689
  %v4823 = vunpack.c.l.b16 %v4690
  %v4824 = vunpack.c.l.b16 %v4691
  %v4825 = vunpack.c.l.b16 %v4692
  %v4826 = vunpack.c.l.b16 %v4693
  %v4827 = vunpack.c.l.b16 %v4694
  %v4828 = vunpack.c.l.b16 %v4695
  %v4829 = vunpack.c.l.b16 %v4696
  %v4830 = vunpack.c.l.b16 %v4697
  %v4831 = vunpack.c.l.b16 %v4698
  %v4832 = vunpack.c.l.b16 %v4699
  %v4833 = vunpack.c.l.b16 %v4700
  %v4834 = vunpack.c.l.b16 %v4701
  %v4835 = vunpack.c.l.b16 %v4702
  %v4836 = vunpack.c.l.b16 %v4703
  %v4837 = vunpack.c.l.b16 %v4704
  %v4838 = vunpack.c.l.b16 %v4705
  %v4839 = vunpack.c.l.b16 %v4706
  %v4840 = vunpack.c.l.b16 %v4707
  %v4841 = vunpack.c.l.b16 %v4708
  %v4842 = vunpack.c.l.b16 %v4709
  %v4843 = vunpack.c.l.b16 %v4710
  %v4844 = vunpack.c.l.b16 %v4711
  %v4845 = vunpack.c.l.b16 %v4712
  %v4846 = vunpack.c.l.b16 %v4713
  %v4847 = vunpack.c.l.b16 %v4714
  %v4848 = vunpack.c.l.b16 %v4715
  %v4849 = vunpack.c.l.b16 %v4716
  %v4850 = vunpack.c.l.b16 %v4717
  %v4851 = vunpack.c.l.b16 %v4718
  %v4852 = vunpack.c.l.b16 %v4719
  %v4853 = vunpack.c.l.b16 %v4720
  %v4854 = vunpack.c.l.b16 %v4721
  %v4855 = vunpack.c.l.b16 %v4722
  %v4856 = vunpack.c.l.b16 %v4723
  %v4857 = vunpack.c.l.b16 %v4724
  %v4858 = vunpack.c.l.b16 %v4725
  %v4859 = vunpack.c.l.b16 %v4726
  %v4860 = vunpack.c.l.b16 %v4727
  %v4861 = vunpack.c.l.b16 %v4728
  %v4862 = vunpack.c.l.b16 %v4729
  %v4863 = vunpack.c.l.b16 %v4730
  %v4864 = vunpack.c.l.b16 %v4731
  %v4865 = vunpack.c.l.b16 %v4732
  %v4866 = vunpack.c.l.b16 %v4733
  %v4867 = vunpack.c.l.b16 %v4734
  %v4868 = vunpack.c.l.b16 %v4735
  %v4869 = vunpack.c.l.b16 %v4736
  %v4870 = vunpack.c.l.b16 %v4737
  %v4871 = vunpack.c.l.b16 %v4738
  %v4872 = vunpack.c.l.b16 %v4739
  %v4873 = vunpack.c.l.b16 %v4740
  %v4874 = vunpack.c.l.b16 %v4741
  %v4875 = vunpack.c.l.b16 %v4742
  %v4876 = vunpack.c.l.b16 %v4743
  %v4877 = vunpack.c.l.b16 %v4744
  %v4878 = vunpack.c.l.b16 %v4745
  %v4879 = vunpack.c.l.b16 %v4746
  %v4880 = vunpack.c.l.b16 %v4747
  %v4881 = vunpack.c.l.b16 %v4748
  %v4882 = vunpack.c.l.b16 %v4749
  %v4883 = vunpack.c.l.b16 %v4750
  %v4884 = vunpack.c.l.b16 %v4751
  %v4885 = vunpack.c.l.b16 %v4752
  %v4886 = vpack.c.b16 %v4823, %v4822
  %v4887 = vpack.c.b16 %v4825, %v4824
  %v4888 = vpack.c.b16 %v4827, %v4826
  %v4889 = vpack.c.b16 %v4829, %v4828
  %v4890 = vpack.c.b16 %v4831, %v4830
  %v4891 = vpack.c.b16 %v4833, %v4832
  %v4892 = vpack.c.b16 %v4835, %v4834
  %v4893 = vpack.c.b16 %v4837, %v4836
  %v4894 = vpack.c.b16 %v4839, %v4838
  %v4895 = vpack.c.b16 %v4841, %v4840
  %v4896 = vpack.c.b16 %v4843, %v4842
  %v4897 = vpack.c.b16 %v4845, %v4844
  %v4898 = vpack.c.b16 %v4847, %v4846
  %v4899 = vpack.c.b16 %v4849, %v4848
  %v4900 = vpack.c.b16 %v4851, %v4850
  %v4901 = vpack.c.b16 %v4853, %v4852
  %v4902 = vpack.c.b16 %v4855, %v4854
  %v4903 = vpack.c.b16 %v4857, %v4856
  %v4904 = vpack.c.b16 %v4859, %v4858
  %v4905 = vpack.c.b16 %v4861, %v4860
  %v4906 = vpack.c.b16 %v4863, %v4862
  %v4907 = vpack.c.b16 %v4865, %v4864
  %v4908 = vpack.c.b16 %v4867, %v4866
  %v4909 = vpack.c.b16 %v4869, %v4868
  %v4910 = vpack.c.b16 %v4871, %v4870
  %v4911 = vpack.c.b16 %v4873, %v4872
  %v4912 = vpack.c.b16 %v4875, %v4874
  %v4913 = vpack.c.b16 %v4877, %v4876
  %v4914 = vpack.c.b16 %v4879, %v4878
  %v4915 = vpack.c.b16 %v4881, %v4880
  %v4916 = vpack.c.b16 %v4883, %v4882
  %v4917 = vpack.c.b16 %v4885, %v4884
  %4950 = vmatprep.subr.bf16.mxu0 0
  %4951 = vmatpush1.bf16.msra.mxu0 %v4886
  %4952 = vmatprep.subr.bf16.mxu0 0
  %4953 = vmatpush1.bf16.msra.mxu0 %v4887
  %4954 = vmatprep.subr.bf16.mxu0 0
  %4955 = vmatpush1.bf16.msra.mxu0 %v4888
  %4956 = vmatprep.subr.bf16.mxu0 0
  %4957 = vmatpush1.bf16.msra.mxu0 %v4889
  %4958 = vmatprep.subr.bf16.mxu0 0
  %4959 = vmatpush1.bf16.msra.mxu0 %v4890
  %4960 = vmatprep.subr.bf16.mxu0 0
  %4961 = vmatpush1.bf16.msra.mxu0 %v4891
  %4962 = vmatprep.subr.bf16.mxu0 0
  %4963 = vmatpush1.bf16.msra.mxu0 %v4892
  %4964 = vmatprep.subr.bf16.mxu0 0
  %4965 = vmatpush1.bf16.msra.mxu0 %v4893
  %4966 = vmatprep.subr.bf16.mxu0 0
  %4967 = vmatpush1.bf16.msra.mxu0 %v4894
  %4968 = vmatprep.subr.bf16.mxu0 0
  %4969 = vmatpush1.bf16.msra.mxu0 %v4895
  %4970 = vmatprep.subr.bf16.mxu0 0
  %4971 = vmatpush1.bf16.msra.mxu0 %v4896
  %4972 = vmatprep.subr.bf16.mxu0 0
  %4973 = vmatpush1.bf16.msra.mxu0 %v4897
  %4974 = vmatprep.subr.bf16.mxu0 0
  %4975 = vmatpush1.bf16.msra.mxu0 %v4898
  %4976 = vmatprep.subr.bf16.mxu0 0
  %4977 = vmatpush1.bf16.msra.mxu0 %v4899
  %4978 = vmatprep.subr.bf16.mxu0 0
  %4979 = vmatpush1.bf16.msra.mxu0 %v4900
  %4980 = vmatprep.subr.bf16.mxu0 0
  %4981 = vmatpush1.bf16.msra.mxu0 %v4901
  %4982 = vmatprep.mubr.bf16.mxu0 %v4755
  %4983 = vmatmul.mubr.bf16.gmra.mrb[0].mxu0 %v4754
  %v4984 = vpop.f32.mrb[0].mxu0
  %v4985 = vadd.f32 0.0, %v4984
  %v4986 = vpop.f32.mrb[0].mxu0
  %v4987 = vpop.f32.mrb[0].mxu0
  %v4988 = vadd.f32 0.0, %v4987
  %v4989 = vpop.f32.mrb[0].mxu0
  %4990 = vdwg.mxu0
  %4991 = vmatprep.subr.bf16.mxu0 0
  %4992 = vmatpush1.bf16.msra.mxu0 %v4902
  %4993 = vmatprep.subr.bf16.mxu0 0
  %4994 = vmatpush1.bf16.msra.mxu0 %v4903
  %4995 = vmatprep.subr.bf16.mxu0 0
  %4996 = vmatpush1.bf16.msra.mxu0 %v4904
  %4997 = vmatprep.subr.bf16.mxu0 0
  %4998 = vmatpush1.bf16.msra.mxu0 %v4905
  %4999 = vmatprep.subr.bf16.mxu0 0
  %5000 = vmatpush1.bf16.msra.mxu0 %v4906
  %5001 = vmatprep.subr.bf16.mxu0 0
  %5002 = vmatpush1.bf16.msra.mxu0 %v4907
  %5003 = vmatprep.subr.bf16.mxu0 0
  %5004 = vmatpush1.bf16.msra.mxu0 %v4908
  %5005 = vmatprep.subr.bf16.mxu0 0
  %5006 = vmatpush1.bf16.msra.mxu0 %v4909
  %5007 = vmatprep.subr.bf16.mxu0 0
  %5008 = vmatpush1.bf16.msra.mxu0 %v4910
  %5009 = vmatprep.subr.bf16.mxu0 0
  %5010 = vmatpush1.bf16.msra.mxu0 %v4911
  %5011 = vmatprep.subr.bf16.mxu0 0
  %5012 = vmatpush1.bf16.msra.mxu0 %v4912
  %5013 = vmatprep.subr.bf16.mxu0 0
  %5014 = vmatpush1.bf16.msra.mxu0 %v4913
  %5015 = vmatprep.subr.bf16.mxu0 0
  %5016 = vmatpush1.bf16.msra.mxu0 %v4914
  %5017 = vmatprep.subr.bf16.mxu0 0
  %5018 = vmatpush1.bf16.msra.mxu0 %v4915
  %5019 = vmatprep.subr.bf16.mxu0 0
  %5020 = vmatpush1.bf16.msra.mxu0 %v4916
  %5021 = vmatprep.subr.bf16.mxu0 0
  %5022 = vmatpush1.bf16.msra.mxu0 %v4917
  %5023 = vmatprep.mubr.bf16.mxu0 %v4757
  %5024 = vmatmul.mubr.bf16.gmra.mrb[0].mxu0 %v4756
  %v5025 = vpop.f32.mrb[0].mxu0
  %v5026 = vadd.f32 %v4985, %v5025
  %v5027 = vpop.f32.mrb[0].mxu0
  %v5028 = vpop.f32.mrb[0].mxu0
  %v5029 = vadd.f32 %v4988, %v5028
  %v5030 = vpop.f32.mrb[0].mxu0
  %5031 = vdwg.mxu0
  %v5032 = vld [vmem:[#allocation5 + $0x20] sm:$0xff]
  %v5033 = vld [vmem:[#allocation5 + $0x28] sm:$0xff]
  %v5034 = vld [vmem:[#allocation5 + $0x30] sm:$0xff]
  %v5035 = vld [vmem:[#allocation5 + $0x38] sm:$0xff]
  %5036 = vmatprep.subr.bf16.mxu0 0
  %5037 = vmatpush1.bf16.msra.mxu0 %v4886
  %5038 = vmatprep.subr.bf16.mxu0 0
  %5039 = vmatpush1.bf16.msra.mxu0 %v4887
  %5040 = vmatprep.subr.bf16.mxu0 0
  %5041 = vmatpush1.bf16.msra.mxu0 %v4888
  %5042 = vmatprep.subr.bf16.mxu0 0
  %5043 = vmatpush1.bf16.msra.mxu0 %v4889
  %5044 = vmatprep.subr.bf16.mxu0 0
  %5045 = vmatpush1.bf16.msra.mxu0 %v4890
  %5046 = vmatprep.subr.bf16.mxu0 0
  %5047 = vmatpush1.bf16.msra.mxu0 %v4891
  %5048 = vmatprep.subr.bf16.mxu0 0
  %5049 = vmatpush1.bf16.msra.mxu0 %v4892
  %5050 = vmatprep.subr.bf16.mxu0 0
  %5051 = vmatpush1.bf16.msra.mxu0 %v4893
  %5052 = vmatprep.subr.bf16.mxu0 0
  %5053 = vmatpush1.bf16.msra.mxu0 %v4894
  %5054 = vmatprep.subr.bf16.mxu0 0
  %5055 = vmatpush1.bf16.msra.mxu0 %v4895
  %5056 = vmatprep.subr.bf16.mxu0 0
  %5057 = vmatpush1.bf16.msra.mxu0 %v4896
  %5058 = vmatprep.subr.bf16.mxu0 0
  %5059 = vmatpush1.bf16.msra.mxu0 %v4897
  %5060 = vmatprep.subr.bf16.mxu0 0
  %5061 = vmatpush1.bf16.msra.mxu0 %v4898
  %5062 = vmatprep.subr.bf16.mxu0 0
  %5063 = vmatpush1.bf16.msra.mxu0 %v4899
  %5064 = vmatprep.subr.bf16.mxu0 0
  %5065 = vmatpush1.bf16.msra.mxu0 %v4900
  %5066 = vmatprep.subr.bf16.mxu0 0
  %5067 = vmatpush1.bf16.msra.mxu0 %v4901
  %5068 = vmatprep.mubr.bf16.mxu0 %v5033
  %5069 = vmatmul.mubr.bf16.gmra.mrb[0].mxu0 %v5032
  %v5070 = vpop.f32.mrb[0].mxu0
  %v5071 = vadd.f32 0.0, %v5070
  %v5072 = vpop.f32.mrb[0].mxu0
  %v5073 = vpop.f32.mrb[0].mxu0
  %v5074 = vadd.f32 0.0, %v5073
  %v5075 = vpop.f32.mrb[0].mxu0
  %5076 = vdwg.mxu0
  %5077 = vmatprep.subr.bf16.mxu0 0
  %5078 = vmatpush1.bf16.msra.mxu0 %v4902
  %5079 = vmatprep.subr.bf16.mxu0 0
  %5080 = vmatpush1.bf16.msra.mxu0 %v4903
  %5081 = vmatprep.subr.bf16.mxu0 0
  %5082 = vmatpush1.bf16.msra.mxu0 %v4904
  %5083 = vmatprep.subr.bf16.mxu0 0
  %5084 = vmatpush1.bf16.msra.mxu0 %v4905
  %5085 = vmatprep.subr.bf16.mxu0 0
  %5086 = vmatpush1.bf16.msra.mxu0 %v4906
  %5087 = vmatprep.subr.bf16.mxu0 0
  %5088 = vmatpush1.bf16.msra.mxu0 %v4907
  %5089 = vmatprep.subr.bf16.mxu0 0
  %5090 = vmatpush1.bf16.msra.mxu0 %v4908
  %5091 = vmatprep.subr.bf16.mxu0 0
  %5092 = vmatpush1.bf16.msra.mxu0 %v4909
  %5093 = vmatprep.subr.bf16.mxu0 0
  %5094 = vmatpush1.bf16.msra.mxu0 %v4910
  %5095 = vmatprep.subr.bf16.mxu0 0
  %5096 = vmatpush1.bf16.msra.mxu0 %v4911
  %5097 = vmatprep.subr.bf16.mxu0 0
  %5098 = vmatpush1.bf16.msra.mxu0 %v4912
  %5099 = vmatprep.subr.bf16.mxu0 0
  %5100 = vmatpush1.bf16.msra.mxu0 %v4913
  %5101 = vmatprep.subr.bf16.mxu0 0
  %5102 = vmatpush1.bf16.msra.mxu0 %v4914
  %5103 = vmatprep.subr.bf16.mxu0 0
  %5104 = vmatpush1.bf16.msra.mxu0 %v4915
  %5105 = vmatprep.subr.bf16.mxu0 0
  %5106 = vmatpush1.bf16.msra.mxu0 %v4916
  %5107 = vmatprep.subr.bf16.mxu0 0
  %5108 = vmatpush1.bf16.msra.mxu0 %v4917
  %5109 = vmatprep.mubr.bf16.mxu0 %v5035
  %5110 = vmatmul.mubr.bf16.gmra.mrb[0].mxu0 %v5034
  %v5111 = vpop.f32.mrb[0].mxu0
  %v5112 = vadd.f32 %v5071, %v5111
  %v5113 = vpop.f32.mrb[0].mxu0
  %v5114 = vpop.f32.mrb[0].mxu0
  %v5115 = vadd.f32 %v5074, %v5114
  %v5116 = vpop.f32.mrb[0].mxu0
  %5117 = vdwg.mxu0
  %v5118 = vmax.f32 %v5026, %v5112
  %v5119 = vmax.f32 %v5029, %v5115
  %v5120 = vld [vmem:[#allocation5 + $0x40] sm:$0xff]
  %v5121 = vld [vmem:[#allocation5 + $0x48] sm:$0xff]
  %v5122 = vld [vmem:[#allocation5 + $0x50] sm:$0xff]
  %v5123 = vld [vmem:[#allocation5 + $0x58] sm:$0xff]
  %5124 = vmatprep.subr.bf16.mxu0 0
  %5125 = vmatpush1.bf16.msra.mxu0 %v4886
  %5126 = vmatprep.subr.bf16.mxu0 0
  %5127 = vmatpush1.bf16.msra.mxu0 %v4887
  %5128 = vmatprep.subr.bf16.mxu0 0
  %5129 = vmatpush1.bf16.msra.mxu0 %v4888
  %5130 = vmatprep.subr.bf16.mxu0 0
  %5131 = vmatpush1.bf16.msra.mxu0 %v4889
  %5132 = vmatprep.subr.bf16.mxu0 0
  %5133 = vmatpush1.bf16.msra.mxu0 %v4890
  %5134 = vmatprep.subr.bf16.mxu0 0
  %5135 = vmatpush1.bf16.msra.mxu0 %v4891
  %5136 = vmatprep.subr.bf16.mxu0 0
  %5137 = vmatpush1.bf16.msra.mxu0 %v4892
  %5138 = vmatprep.subr.bf16.mxu0 0
  %5139 = vmatpush1.bf16.msra.mxu0 %v4893
  %5140 = vmatprep.subr.bf16.mxu0 0
  %5141 = vmatpush1.bf16.msra.mxu0 %v4894
  %5142 = vmatprep.subr.bf16.mxu0 0
  %5143 = vmatpush1.bf16.msra.mxu0 %v4895
  %5144 = vmatprep.subr.bf16.mxu0 0
  %5145 = vmatpush1.bf16.msra.mxu0 %v4896
  %5146 = vmatprep.subr.bf16.mxu0 0
  %5147 = vmatpush1.bf16.msra.mxu0 %v4897
  %5148 = vmatprep.subr.bf16.mxu0 0
  %5149 = vmatpush1.bf16.msra.mxu0 %v4898
  %5150 = vmatprep.subr.bf16.mxu0 0
  %5151 = vmatpush1.bf16.msra.mxu0 %v4899
  %5152 = vmatprep.subr.bf16.mxu0 0
  %5153 = vmatpush1.bf16.msra.mxu0 %v4900
  %5154 = vmatprep.subr.bf16.mxu0 0
  %5155 = vmatpush1.bf16.msra.mxu0 %v4901
  %5156 = vmatprep.mubr.bf16.mxu0 %v5121
  %5157 = vmatmul.mubr.bf16.gmra.mrb[0].mxu0 %v5120
  %v5158 = vpop.f32.mrb[0].mxu0
  %v5159 = vadd.f32 0.0, %v5158
  %v5160 = vpop.f32.mrb[0].mxu0
  %v5161 = vpop.f32.mrb[0].mxu0
  %v5162 = vadd.f32 0.0, %v5161
  %v5163 = vpop.f32.mrb[0].mxu0
  %5164 = vdwg.mxu0
  %5165 = vmatprep.subr.bf16.mxu0 0
  %5166 = vmatpush1.bf16.msra.mxu0 %v4902
  %5167 = vmatprep.subr.bf16.mxu0 0
  %5168 = vmatpush1.bf16.msra.mxu0 %v4903
  %5169 = vmatprep.subr.bf16.mxu0 0
  %5170 = vmatpush1.bf16.msra.mxu0 %v4904
  %5171 = vmatprep.subr.bf16.mxu0 0
  %5172 = vmatpush1.bf16.msra.mxu0 %v4905
  %5173 = vmatprep.subr.bf16.mxu0 0
  %5174 = vmatpush1.bf16.msra.mxu0 %v4906
  %5175 = vmatprep.subr.bf16.mxu0 0
  %5176 = vmatpush1.bf16.msra.mxu0 %v4907
  %5177 = vmatprep.subr.bf16.mxu0 0
  %5178 = vmatpush1.bf16.msra.mxu0 %v4908
  %5179 = vmatprep.subr.bf16.mxu0 0
  %5180 = vmatpush1.bf16.msra.mxu0 %v4909
  %5181 = vmatprep.subr.bf16.mxu0 0
  %5182 = vmatpush1.bf16.msra.mxu0 %v4910
  %5183 = vmatprep.subr.bf16.mxu0 0
  %5184 = vmatpush1.bf16.msra.mxu0 %v4911
  %5185 = vmatprep.subr.bf16.mxu0 0
  %5186 = vmatpush1.bf16.msra.mxu0 %v4912
  %5187 = vmatprep.subr.bf16.mxu0 0
  %5188 = vmatpush1.bf16.msra.mxu0 %v4913
  %5189 = vmatprep.subr.bf16.mxu0 0
  %5190 = vmatpush1.bf16.msra.mxu0 %v4914
  %5191 = vmatprep.subr.bf16.mxu0 0
  %5192 = vmatpush1.bf16.msra.mxu0 %v4915
  %5193 = vmatprep.subr.bf16.mxu0 0
  %5194 = vmatpush1.bf16.msra.mxu0 %v4916
  %5195 = vmatprep.subr.bf16.mxu0 0
  %5196 = vmatpush1.bf16.msra.mxu0 %v4917
  %5197 = vmatprep.mubr.bf16.mxu0 %v5123
  %5198 = vmatmul.mubr.bf16.gmra.mrb[0].mxu0 %v5122
  %v5199 = vpop.f32.mrb[0].mxu0
  %v5200 = vadd.f32 %v5159, %v5199
  %v5201 = vpop.f32.mrb[0].mxu0
  %v5202 = vpop.f32.mrb[0].mxu0
  %v5203 = vadd.f32 %v5162, %v5202
  %v5204 = vpop.f32.mrb[0].mxu0
  %5205 = vdwg.mxu0
  %v5206 = vmax.f32 %v5118, %v5200
  %v5207 = vmax.f32 %v5119, %v5203
  %v5209 = vlaneseq
  %v5210 = vshrl.u32 %v5209, 7
  %v5211 = vsub.s32 0, %v5210
  %v5212 = vrot.slane %v4753, %v5211
  %v5214 = vadd.f32 %v5206, %v5212
  %v5215 = vadd.f32 %v5207, %v5212
  %v5216 = vmax.f32 %v5214, 0.0
  %v5217 = vmax.f32 %v5215, 0.0
  %v5218 = vpack.c.bf16 %v5217, %v5216
  %v5219 = vld [vmem:[%s4] sm:$0xf]
  %v5220 = vld [vmem:[%s4 + $0x4] sm:$0xf]
  %v5221 = vld [vmem:[%s4 + $0x8] sm:$0xf]
  %v5222 = vld [vmem:[%s4 + $0xc] sm:$0xf]
  %v5223 = vld [vmem:[%s4 + $0x10] sm:$0xf]
  %v5224 = vld [vmem:[%s4 + $0x14] sm:$0xf]
  %v5225 = vld [vmem:[%s4 + $0x18] sm:$0xf]
  %v5226 = vld [vmem:[%s4 + $0x1c] sm:$0xf]
  %v5227 = vld [vmem:[%s4 + $0x20] sm:$0xf]
  %v5228 = vld [vmem:[%s4 + $0x24] sm:$0xf]
  %v5229 = vld [vmem:[%s4 + $0x28] sm:$0xf]
  %v5230 = vld [vmem:[%s4 + $0x2c] sm:$0xf]
  %v5231 = vld [vmem:[%s4 + $0x30] sm:$0xf]
  %v5232 = vld [vmem:[%s4 + $0x34] sm:$0xf]
  %v5233 = vld [vmem:[%s4 + $0x38] sm:$0xf]
  %v5234 = vld [vmem:[%s4 + $0x3c] sm:$0xf]
  %v5235 = vld [vmem:[%s8] sm:$0x1]
  %v5237 = vlaneseq
  %v5238 = vshrl.u32 %v5237, 7
  %v5239 = vsub.s32 0, %v5238
  %v5240 = vrot.slane %v5235, %v5239
  %v5258 = vunpack.c.l.b16 %v5219
  %v5259 = vunpack.c.l.b16 %v5220
  %v5260 = vunpack.c.l.b16 %v5221
  %v5261 = vunpack.c.l.b16 %v5222
  %v5262 = vunpack.c.l.b16 %v5223
  %v5263 = vunpack.c.l.b16 %v5224
  %v5264 = vunpack.c.l.b16 %v5225
  %v5265 = vunpack.c.l.b16 %v5226
  %v5266 = vunpack.c.l.b16 %v5227
  %v5267 = vunpack.c.l.b16 %v5228
  %v5268 = vunpack.c.l.b16 %v5229
  %v5269 = vunpack.c.l.b16 %v5230
  %v5270 = vunpack.c.l.b16 %v5231
  %v5271 = vunpack.c.l.b16 %v5232
  %v5272 = vunpack.c.l.b16 %v5233
  %v5273 = vunpack.c.l.b16 %v5234
  %v5274 = vpack.c.b16 %v5259, %v5258
  %v5275 = vpack.c.b16 %v5261, %v5260
  %v5276 = vpack.c.b16 %v5263, %v5262
  %v5277 = vpack.c.b16 %v5265, %v5264
  %v5278 = vpack.c.b16 %v5267, %v5266
  %v5279 = vpack.c.b16 %v5269, %v5268
  %v5280 = vpack.c.b16 %v5271, %v5270
  %v5281 = vpack.c.b16 %v5273, %v5272
  %5290 = vmatprep.subr.bf16.mxu0 0
  %5291 = vmatpush1.bf16.msra.mxu0 %v5274
  %5292 = vmatprep.subr.bf16.mxu0 0
  %5293 = vmatpush1.bf16.msra.mxu0 %v5275
  %5294 = vmatprep.subr.bf16.mxu0 0
  %5295 = vmatpush1.bf16.msra.mxu0 %v5276
  %5296 = vmatprep.subr.bf16.mxu0 0
  %5297 = vmatpush1.bf16.msra.mxu0 %v5277
  %5298 = vmatprep.subr.bf16.mxu0 0
  %5299 = vmatpush1.bf16.msra.mxu0 %v5278
  %5300 = vmatprep.subr.bf16.mxu0 0
  %5301 = vmatpush1.bf16.msra.mxu0 %v5279
  %5302 = vmatprep.subr.bf16.mxu0 0
  %5303 = vmatpush1.bf16.msra.mxu0 %v5280
  %5304 = vmatprep.subr.bf16.mxu0 0
  %5305 = vmatpush1.bf16.msra.mxu0 %v5281
  %5306 = vmatprep.subr.bf16.mxu0 0
  %5307 = vmatpush1.bf16.msra.mxu0 0
  %5308 = vmatprep.subr.bf16.mxu0 0
  %5309 = vmatpush1.bf16.msra.mxu0 0
  %5310 = vmatprep.subr.bf16.mxu0 0
  %5311 = vmatpush1.bf16.msra.mxu0 0
  %5312 = vmatprep.subr.bf16.mxu0 0
  %5313 = vmatpush1.bf16.msra.mxu0 0
  %5314 = vmatprep.subr.bf16.mxu0 0
  %5315 = vmatpush1.bf16.msra.mxu0 0
  %5316 = vmatprep.subr.bf16.mxu0 0
  %5317 = vmatpush1.bf16.msra.mxu0 0
  %5318 = vmatprep.subr.bf16.mxu0 0
  %5319 = vmatpush1.bf16.msra.mxu0 0
  %5320 = vmatprep.subr.bf16.mxu0 0
  %5321 = vmatpush1.bf16.msra.mxu0 0
  %5322 = vmatprep.mubr.bf16.mxu0 0
  %5323 = vmatmul.mubr.bf16.gmra.mrb[0].mxu0 %v5218
  %v5324 = vpop.f32.mrb[0].mxu0
  %v5325 = vadd.f32 %v5240, %v5324
  %v5326 = vpop.f32.mrb[0].mxu0
  %v5327 = vpop.f32.mrb[0].mxu0
  %v5328 = vadd.f32 %v5240, %v5327
  %v5329 = vpop.f32.mrb[0].mxu0
  %5330 = vdwg.mxu0
  %5331 = vst [vmem:[%s9] sm:$0xff] %v5325
  %5332 = vst [vmem:[%s9 + $0x8] sm:$0xff] %v5328
  // Predicated region
  $region38: #{cell_cnn_forward.1} parent=0 // pred_check
    _
  $region39: #{cell_cnn_forward.1} parent=0 // pred_check_branch
    %5334 = sbr.rel (0) target = $region41
  $region40: #{cell_cnn_forward.1} parent=0 // pred_region
    _
  $region41: #{cell_cnn_forward.1} parent=0 // pred_fallthru
    _
  // Predicated region
  $region42: #{cell_cnn_forward.1} parent=0 // pred_check
    _
  $region43: #{cell_cnn_forward.1} parent=0 // pred_check_branch
    %5336 = sbr.rel (0) target = $region45
  $region44: #{cell_cnn_forward.1} parent=0 // pred_region
    _
  $region45: #{cell_cnn_forward.1} parent=0 // pred_fallthru
    _

</llo_original>
